<compile_context>
chip_gen: v7x
topology: tpu7x:2x2x1
jax: 0.10.0
libtpu: 0.0.40
codegen_flags: <defaults>
</compile_context>

<pallas_src>
import math

import jax
import jax.numpy as jnp
from jax.experimental import pallas as pl
from jax.experimental.pallas import tpu as pltpu


# ------------------------------- small config --------------------------------
B = 2              # batch
S = 64             # sequence length (gives BS=128 -> full MXU rows)
H = 128            # hidden size, lane-dense (real model: 768)
N_HEADS = 2        # real model: 12
HEAD_DIM = H // N_HEADS
FFN = 256          # real model: 3072
N_LAYERS = 2       # real model: 6
VOCAB = 100
MAX_POS = 64
NUM_CLASSES = 5    # len(encoder.classes_) -- synthetic
C_PAD = 128        # classifier columns padded to a full lane group; sliced outside
LN_EPS = 1e-12
BS = B * S
ATTN_SCALE = 1.0 / math.sqrt(HEAD_DIM)


# ------------------------------ kernel helpers --------------------------------
def _layernorm(x, gamma, beta, eps=LN_EPS):
    mu = jnp.mean(x, axis=-1, keepdims=True)
    var = jnp.mean((x - mu) ** 2, axis=-1, keepdims=True)
    return (x - mu) * jax.lax.rsqrt(var + eps) * gamma + beta


def _gelu(x):
    # TODO(synk): DistilBERT uses exact erf-GELU; tanh approximation used here (EUP-friendly).
    c = math.sqrt(2.0 / math.pi)
    return 0.5 * x * (1.0 + jnp.tanh(c * (x + 0.044715 * x * x * x)))


def _split_heads(t):
    # (B*S, N_HEADS*HEAD_DIM) -> (N_HEADS*B, S, HEAD_DIM); heads folded onto the
    # major batch axis so attention runs as ONE batched einsum over all heads.
    return jnp.concatenate(
        [t[:, h * HEAD_DIM:(h + 1) * HEAD_DIM].reshape(B, S, HEAD_DIM)
         for h in range(N_HEADS)], axis=0)


def _merge_heads(t):
    # (N_HEADS*B, S, HEAD_DIM) -> (B*S, N_HEADS*HEAD_DIM)
    return jnp.concatenate(
        [t[h * B:(h + 1) * B].reshape(BS, HEAD_DIM) for h in range(N_HEADS)], axis=-1)


# ------------------------------- fused kernel --------------------------------
def fused_bert_kernel(x_ref, bias_ref, embg_ref, embb_ref,
                      wqkv_ref, bqkv_ref, wo_ref, bo_ref, g1_ref, be1_ref,
                      w1_ref, b1_ref, w2_ref, b2_ref, g2_ref, be2_ref,
                      wp_ref, bp_ref, wc_ref, bc_ref,
                      out_ref):
    # ---- embedding LayerNorm ----
    x = _layernorm(x_ref[...], embg_ref[...], embb_ref[...])        # (BS, H) f32

    attn_bias = bias_ref[...]                                       # (NH*B, S, S) dense, precomputed

    for l in range(N_LAYERS):         # static unroll; all weights VMEM-resident
        xb = x.astype(jnp.bfloat16)

        # fused QKV projection: one full-width (BS,H)x(H,3H) MXU matmul
        qkv = jnp.dot(xb, wqkv_ref[l], preferred_element_type=jnp.float32) + bqkv_ref[l]

        q = _split_heads(qkv[:, :H] * ATTN_SCALE).astype(jnp.bfloat16)     # (NH*B, S, HD)
        k = _split_heads(qkv[:, H:2 * H]).astype(jnp.bfloat16)
        v = _split_heads(qkv[:, 2 * H:]).astype(jnp.bfloat16)

        # ONE batched score einsum + ONE batched context einsum covering all heads
        scores = jnp.einsum('bqd,bkd->bqk', q, k,
                            preferred_element_type=jnp.float32) + attn_bias
        m = jnp.max(scores, axis=-1, keepdims=True)
        e = jnp.exp(scores - m)
        p = e * pl.reciprocal(jnp.sum(e, axis=-1, keepdims=True), approx=True)
        ctx = jnp.einsum('bqk,bkd->bqd', p.astype(jnp.bfloat16), v,
                         preferred_element_type=jnp.float32)               # (NH*B, S, HD)
        ctx = _merge_heads(ctx)                                            # (BS, H)

        # output projection + residual + sa_layer_norm
        attn = jnp.dot(ctx.astype(jnp.bfloat16), wo_ref[l],
                       preferred_element_type=jnp.float32) + bo_ref[l]
        sa = _layernorm(attn + x, g1_ref[l], be1_ref[l])

        # FFN (bf16 matmuls, f32 accumulate) + output_layer_norm
        h1 = jnp.dot(sa.astype(jnp.bfloat16), w1_ref[l],
                     preferred_element_type=jnp.float32) + b1_ref[l]
        h1 = _gelu(h1)
        ff = jnp.dot(h1.astype(jnp.bfloat16), w2_ref[l],
                     preferred_element_type=jnp.float32) + b2_ref[l]
        x = _layernorm(ff + sa, g2_ref[l], be2_ref[l])

    # ---- classification head ----
    pooled = x.reshape(B, S, H)[:, 0, :]                           # hidden_state[:, 0]
    pooled = jnp.dot(pooled.astype(jnp.bfloat16), wp_ref[...],
                     preferred_element_type=jnp.float32) + bp_ref[...]
    pooled = jnp.maximum(pooled, 0.0)          # ReLU; Dropout(0.2) is identity in eval
    logits = jnp.dot(pooled.astype(jnp.bfloat16), wc_ref[...],
                     preferred_element_type=jnp.float32) + bc_ref[...]
    # bc is -1e30 on padded class columns -> they vanish under the softmax.
    mx = jnp.max(logits, axis=1, keepdims=True)                    # LogSoftmax(dim=1), exact
    z = logits - mx
    out_ref[...] = z - jnp.log(jnp.sum(jnp.exp(z), axis=1, keepdims=True))


# ------------------------------- parameters --------------------------------
def init_params(key):
    n_keys = 2 + N_LAYERS * 4 + 2
    keys = jax.random.split(key, n_keys)
    kit = iter(keys)

    def dense(k, din, dout):
        return jax.random.normal(k, (din, dout), jnp.float32) / math.sqrt(din)

    params = {
        'word_emb': jax.random.normal(next(kit), (VOCAB, H), jnp.float32) * 0.02,
        'pos_emb': jax.random.normal(next(kit), (MAX_POS, H), jnp.float32) * 0.02,
        'emb_ln_g': jnp.ones((1, H), jnp.float32),
        'emb_ln_b': jnp.zeros((1, H), jnp.float32),
    }

    wqkv, bqkv, wo, bo, g1, be1, w1, b1, w2, b2, g2, be2 = ([] for _ in range(12))
    for _ in range(N_LAYERS):
        wqkv.append(dense(next(kit), H, 3 * H)); bqkv.append(jnp.zeros((1, 3 * H), jnp.float32))
        wo.append(dense(next(kit), H, H));       bo.append(jnp.zeros((1, H), jnp.float32))
        g1.append(jnp.ones((1, H), jnp.float32)); be1.append(jnp.zeros((1, H), jnp.float32))
        w1.append(dense(next(kit), H, FFN));     b1.append(jnp.zeros((1, FFN), jnp.float32))
        w2.append(dense(next(kit), FFN, H));     b2.append(jnp.zeros((1, H), jnp.float32))
        g2.append(jnp.ones((1, H), jnp.float32)); be2.append(jnp.zeros((1, H), jnp.float32))

    stack_bf16 = lambda xs: jnp.stack(xs).astype(jnp.bfloat16)   # matmul weights -> bf16
    stack_f32 = lambda xs: jnp.stack(xs)                         # biases / LN params -> f32
    params['layers'] = dict(
        wqkv=stack_bf16(wqkv), bqkv=stack_f32(bqkv),
        wo=stack_bf16(wo), bo=stack_f32(bo),
        g1=stack_f32(g1), be1=stack_f32(be1),
        w1=stack_bf16(w1), b1=stack_f32(b1),
        w2=stack_bf16(w2), b2=stack_f32(b2),
        g2=stack_f32(g2), be2=stack_f32(be2),
    )

    # head: pre_classifier (H->H) and classifier (H->NUM_CLASSES, lane-padded to C_PAD)
    params['wp'] = dense(next(kit), H, H).astype(jnp.bfloat16)
    params['bp'] = jnp.zeros((1, H), jnp.float32)
    wc = dense(next(kit), H, NUM_CLASSES)
    params['wc'] = jnp.pad(wc, ((0, 0), (0, C_PAD - NUM_CLASSES))).astype(jnp.bfloat16)
    bc = jnp.zeros((1, NUM_CLASSES), jnp.float32)
    params['bc'] = jnp.pad(bc, ((0, 0), (0, C_PAD - NUM_CLASSES)),
                           constant_values=-1e30)
    return params


# ------------------------------- forward --------------------------------
def bert_class_forward(params, input_ids, attention_mask):
    # Embedding gather is plain-JAX glue; everything else runs in the fused kernel.
    seq = input_ids.shape[1]
    x_emb = (params['word_emb'][input_ids]
             + params['pos_emb'][:seq][None, :, :]).reshape(BS, H)

    # Dense additive attention bias precomputed ONCE in the wrapper (head-major batch
    # ordering matches _split_heads): 0 keep / -1e9 pad.
    bias = (attention_mask.astype(jnp.float32) - 1.0) * 1e9             # (B, S)
    bias = jnp.broadcast_to(bias[:, None, :], (B, S, S))                # (B, S, S)
    attn_bias = jnp.tile(bias, (N_HEADS, 1, 1))                         # (NH*B, S, S)

    L = params['layers']
    args = (x_emb, attn_bias, params['emb_ln_g'], params['emb_ln_b'],
            L['wqkv'], L['bqkv'], L['wo'], L['bo'], L['g1'], L['be1'],
            L['w1'], L['b1'], L['w2'], L['b2'], L['g2'], L['be2'],
            params['wp'], params['bp'], params['wc'], params['bc'])

    out_bytes = B * C_PAD * 4
    arg_bytes = int(sum(int(a.size) * a.dtype.itemsize for a in args))
    # All buffers are VMEM-resident (no streaming grid at toy size). Derive the limit
    # from real needs and cap well under v7x's 64 MiB physical VMEM per TensorCore.
    vmem_limit = int(min(48 * 1024 * 1024, 4 * (arg_bytes + out_bytes) + (8 << 20)))

    flops = int(N_LAYERS * (2 * BS * H * (4 * H + 2 * FFN)
                            + 4 * N_HEADS * B * S * S * HEAD_DIM)
                + 2 * B * H * (H + C_PAD))
    transcendentals = int(N_LAYERS * (N_HEADS * B * S * S + BS * FFN) + B * C_PAD)

    out = pl.pallas_call(
        fused_bert_kernel,
        out_shape=jax.ShapeDtypeStruct((B, C_PAD), jnp.float32),
        compiler_params=pltpu.CompilerParams(vmem_limit_bytes=vmem_limit),
        cost_estimate=pl.CostEstimate(flops=flops,
                                      transcendentals=transcendentals,
                                      bytes_accessed=arg_bytes + out_bytes),
    )(*args)

    return out[:, :NUM_CLASSES]   # drop lane padding -> (B, num_classes) log-probs


# ------------------------------- main --------------------------------
if __name__ == "__main__":
    key = jax.random.PRNGKey(0)
    pkey, ikey = jax.random.split(key)
    params = init_params(pkey)

    input_ids = jax.random.randint(ikey, (B, S), 0, VOCAB, dtype=jnp.int32)
    attention_mask = jnp.ones((B, S), dtype=jnp.int32)
    attention_mask = attention_mask.at[1, S - 8:].set(0)  # some padding in batch 1

    log_probs = bert_class_forward(params, input_ids, attention_mask)
    log_probs = jax.block_until_ready(log_probs)

    # sanity: rows of exp(log_softmax) sum to 1
    row_sums = jnp.sum(jnp.exp(log_probs), axis=1)
    assert log_probs.shape == (B, NUM_CLASSES)
    assert bool(jnp.all(jnp.abs(row_sums - 1.0) < 1e-3))

    print("KERNEL_OK")
</pallas_src>

<mosaic_0001>
module attributes {stable_mosaic.version = 11 : i64} {
  func.func @fused_bert_kernel(%arg0: memref<128x128xf32, #tpu.memory_space<vmem>>, %arg1: memref<4x64x64xf32, #tpu.memory_space<vmem>>, %arg2: memref<1x128xf32, #tpu.memory_space<vmem>>, %arg3: memref<1x128xf32, #tpu.memory_space<vmem>>, %arg4: memref<2x128x384xbf16, #tpu.memory_space<vmem>>, %arg5: memref<2x1x384xf32, #tpu.memory_space<vmem>>, %arg6: memref<2x128x128xbf16, #tpu.memory_space<vmem>>, %arg7: memref<2x1x128xf32, #tpu.memory_space<vmem>>, %arg8: memref<2x1x128xf32, #tpu.memory_space<vmem>>, %arg9: memref<2x1x128xf32, #tpu.memory_space<vmem>>, %arg10: memref<2x128x256xbf16, #tpu.memory_space<vmem>>, %arg11: memref<2x1x256xf32, #tpu.memory_space<vmem>>, %arg12: memref<2x256x128xbf16, #tpu.memory_space<vmem>>, %arg13: memref<2x1x128xf32, #tpu.memory_space<vmem>>, %arg14: memref<2x1x128xf32, #tpu.memory_space<vmem>>, %arg15: memref<2x1x128xf32, #tpu.memory_space<vmem>>, %arg16: memref<128x128xbf16, #tpu.memory_space<vmem>>, %arg17: memref<1x128xf32, #tpu.memory_space<vmem>>, %arg18: memref<128x128xbf16, #tpu.memory_space<vmem>>, %arg19: memref<1x128xf32, #tpu.memory_space<vmem>>, %arg20: memref<2x128xf32, #tpu.memory_space<vmem>>) attributes {dimension_semantics = [], scalar_prefetch = 0 : i64, scratch_operands = 0 : i64, tpu.core_type = #tpu.core_type<tc>} {
    %c0 = arith.constant 0 : index
    %c0_0 = arith.constant 0 : index
    %0 = vector.load %arg0[%c0, %c0_0] : memref<128x128xf32, #tpu.memory_space<vmem>>, vector<128x128xf32>
    %c0_1 = arith.constant 0 : index
    %c0_2 = arith.constant 0 : index
    %1 = vector.load %arg2[%c0_1, %c0_2] : memref<1x128xf32, #tpu.memory_space<vmem>>, vector<1x128xf32>
    %c0_3 = arith.constant 0 : index
    %c0_4 = arith.constant 0 : index
    %2 = vector.load %arg3[%c0_3, %c0_4] : memref<1x128xf32, #tpu.memory_space<vmem>>, vector<1x128xf32>
    %cst = arith.constant dense<0.000000e+00> : vector<128xf32>
    %3 = vector.multi_reduction <add>, %0, %cst [1] : vector<128x128xf32> to vector<128xf32>
    %4 = vector.shape_cast %3 : vector<128xf32> to vector<128x1xf32>
    %cst_5 = arith.constant 1.280000e+02 : f32
    %5 = vector.broadcast %cst_5 : f32 to vector<128x1xf32>
    %6 = arith.divf %4, %5 : vector<128x1xf32>
    %7 = vector.broadcast %6 : vector<128x1xf32> to vector<128x128xf32>
    %8 = arith.subf %0, %7 : vector<128x128xf32>
    %9 = arith.mulf %8, %8 : vector<128x128xf32>
    %cst_6 = arith.constant dense<0.000000e+00> : vector<128xf32>
    %10 = vector.multi_reduction <add>, %9, %cst_6 [1] : vector<128x128xf32> to vector<128xf32>
    %11 = vector.shape_cast %10 : vector<128xf32> to vector<128x1xf32>
    %cst_7 = arith.constant 1.280000e+02 : f32
    %12 = vector.broadcast %cst_7 : f32 to vector<128x1xf32>
    %13 = arith.divf %11, %12 : vector<128x1xf32>
    %14 = vector.broadcast %6 : vector<128x1xf32> to vector<128x128xf32>
    %15 = arith.subf %0, %14 : vector<128x128xf32>
    %cst_8 = arith.constant 9.99999996E-13 : f32
    %16 = vector.broadcast %cst_8 : f32 to vector<128x1xf32>
    %17 = arith.addf %13, %16 : vector<128x1xf32>
    %18 = math.rsqrt %17 : vector<128x1xf32>
    %19 = vector.broadcast %18 : vector<128x1xf32> to vector<128x128xf32>
    %20 = arith.mulf %15, %19 : vector<128x128xf32>
    %21 = vector.broadcast %1 : vector<1x128xf32> to vector<128x128xf32>
    %22 = arith.mulf %20, %21 : vector<128x128xf32>
    %23 = vector.broadcast %2 : vector<1x128xf32> to vector<128x128xf32>
    %24 = arith.addf %22, %23 : vector<128x128xf32>
    %c0_9 = arith.constant 0 : index
    %c0_10 = arith.constant 0 : index
    %c0_11 = arith.constant 0 : index
    %25 = vector.load %arg1[%c0_9, %c0_10, %c0_11] : memref<4x64x64xf32, #tpu.memory_space<vmem>>, vector<4x64x64xf32>
    %26 = arith.truncf %24 : vector<128x128xf32> to vector<128x128xbf16>
    %c0_12 = arith.constant 0 : index
    %c0_13 = arith.constant 0 : index
    %c0_14 = arith.constant 0 : index
    %27 = vector.load %arg4[%c0_12, %c0_13, %c0_14] : memref<2x128x384xbf16, #tpu.memory_space<vmem>>, vector<1x128x384xbf16>
    %28 = vector.shape_cast %27 : vector<1x128x384xbf16> to vector<128x384xbf16>
    %cst_15 = arith.constant dense<0.000000e+00> : vector<128x384xf32>
    %29 = tpu.matmul %26, %28, %cst_15 {dimension_numbers = #tpu.dot_dimension_numbers<[1], [0], [0], [1], [0, 0, 1, 1], [], []>} : vector<128x128xbf16>, vector<128x384xbf16>, vector<128x384xf32> -> vector<128x384xf32>
    %c0_16 = arith.constant 0 : index
    %c0_17 = arith.constant 0 : index
    %c0_18 = arith.constant 0 : index
    %30 = vector.load %arg5[%c0_16, %c0_17, %c0_18] : memref<2x1x384xf32, #tpu.memory_space<vmem>>, vector<1x1x384xf32>
    %31 = vector.shape_cast %30 : vector<1x1x384xf32> to vector<1x384xf32>
    %32 = vector.broadcast %31 : vector<1x384xf32> to vector<128x384xf32>
    %33 = arith.addf %29, %32 : vector<128x384xf32>
    %34 = vector.extract_strided_slice %33 {offsets = [0, 0], sizes = [128, 128], strides = [1, 1]} : vector<128x384xf32> to vector<128x128xf32>
    %cst_19 = arith.constant 1.250000e-01 : f32
    %35 = vector.broadcast %cst_19 : f32 to vector<128x128xf32>
    %36 = arith.mulf %34, %35 : vector<128x128xf32>
    %37 = vector.extract_strided_slice %36 {offsets = [0, 0], sizes = [128, 64], strides = [1, 1]} : vector<128x128xf32> to vector<128x64xf32>
    %38 = vector.shape_cast %37 : vector<128x64xf32> to vector<2x64x64xf32>
    %39 = vector.extract_strided_slice %36 {offsets = [0, 64], sizes = [128, 64], strides = [1, 1]} : vector<128x128xf32> to vector<128x64xf32>
    %40 = vector.shape_cast %39 : vector<128x64xf32> to vector<2x64x64xf32>
    %41 = tpu.concatenate %38, %40 in 0 : vector<2x64x64xf32>, vector<2x64x64xf32> -> vector<4x64x64xf32>
    %42 = arith.truncf %41 : vector<4x64x64xf32> to vector<4x64x64xbf16>
    %43 = vector.extract_strided_slice %33 {offsets = [0, 128], sizes = [128, 128], strides = [1, 1]} : vector<128x384xf32> to vector<128x128xf32>
    %44 = vector.extract_strided_slice %43 {offsets = [0, 0], sizes = [128, 64], strides = [1, 1]} : vector<128x128xf32> to vector<128x64xf32>
    %45 = vector.shape_cast %44 : vector<128x64xf32> to vector<2x64x64xf32>
    %46 = vector.extract_strided_slice %43 {offsets = [0, 64], sizes = [128, 64], strides = [1, 1]} : vector<128x128xf32> to vector<128x64xf32>
    %47 = vector.shape_cast %46 : vector<128x64xf32> to vector<2x64x64xf32>
    %48 = tpu.concatenate %45, %47 in 0 : vector<2x64x64xf32>, vector<2x64x64xf32> -> vector<4x64x64xf32>
    %49 = arith.truncf %48 : vector<4x64x64xf32> to vector<4x64x64xbf16>
    %50 = vector.extract_strided_slice %33 {offsets = [0, 256], sizes = [128, 128], strides = [1, 1]} : vector<128x384xf32> to vector<128x128xf32>
    %51 = vector.extract_strided_slice %50 {offsets = [0, 0], sizes = [128, 64], strides = [1, 1]} : vector<128x128xf32> to vector<128x64xf32>
    %52 = vector.shape_cast %51 : vector<128x64xf32> to vector<2x64x64xf32>
    %53 = vector.extract_strided_slice %50 {offsets = [0, 64], sizes = [128, 64], strides = [1, 1]} : vector<128x128xf32> to vector<128x64xf32>
    %54 = vector.shape_cast %53 : vector<128x64xf32> to vector<2x64x64xf32>
    %55 = tpu.concatenate %52, %54 in 0 : vector<2x64x64xf32>, vector<2x64x64xf32> -> vector<4x64x64xf32>
    %56 = arith.truncf %55 : vector<4x64x64xf32> to vector<4x64x64xbf16>
    "tpu.trace_start"() <{level = 10 : i32, message = "bqd,bkd->bqk"}> : () -> ()
    %cst_20 = arith.constant dense<0.000000e+00> : vector<4x64x64xf32>
    %57 = tpu.matmul %42, %49, %cst_20 {dimension_numbers = #tpu.dot_dimension_numbers<[2], [2], [1], [1], [0, 0, 0, 1, 1, 1], [0], [0]>} : vector<4x64x64xbf16>, vector<4x64x64xbf16>, vector<4x64x64xf32> -> vector<4x64x64xf32>
    "tpu.trace_stop"() : () -> ()
    %58 = arith.addf %57, %25 : vector<4x64x64xf32>
    %cst_21 = arith.constant dense<0xFF800000> : vector<4x64xf32>
    %59 = vector.multi_reduction <maximumf>, %58, %cst_21 [2] : vector<4x64x64xf32> to vector<4x64xf32>
    %60 = vector.shape_cast %59 : vector<4x64xf32> to vector<4x64x1xf32>
    %61 = vector.broadcast %60 : vector<4x64x1xf32> to vector<4x64x64xf32>
    %62 = arith.subf %58, %61 : vector<4x64x64xf32>
    %63 = math.exp %62 : vector<4x64x64xf32>
    %cst_22 = arith.constant dense<0.000000e+00> : vector<4x64xf32>
    %64 = vector.multi_reduction <add>, %63, %cst_22 [2] : vector<4x64x64xf32> to vector<4x64xf32>
    %65 = vector.shape_cast %64 : vector<4x64xf32> to vector<4x64x1xf32>
    %66 = tpu.reciprocal %65 {approx = true} : vector<4x64x1xf32> -> vector<4x64x1xf32>
    %67 = vector.broadcast %66 : vector<4x64x1xf32> to vector<4x64x64xf32>
    %68 = arith.mulf %63, %67 : vector<4x64x64xf32>
    %69 = arith.truncf %68 : vector<4x64x64xf32> to vector<4x64x64xbf16>
    "tpu.trace_start"() <{level = 10 : i32, message = "bqk,bkd->bqd"}> : () -> ()
    %cst_23 = arith.constant dense<0.000000e+00> : vector<4x64x64xf32>
    %70 = tpu.matmul %69, %56, %cst_23 {dimension_numbers = #tpu.dot_dimension_numbers<[2], [1], [1], [2], [0, 0, 0, 1, 1, 2], [0], [0]>} : vector<4x64x64xbf16>, vector<4x64x64xbf16>, vector<4x64x64xf32> -> vector<4x64x64xf32>
    "tpu.trace_stop"() : () -> ()
    %71 = vector.extract_strided_slice %70 {offsets = [0, 0, 0], sizes = [2, 64, 64], strides = [1, 1, 1]} : vector<4x64x64xf32> to vector<2x64x64xf32>
    %72 = vector.shape_cast %71 : vector<2x64x64xf32> to vector<128x64xf32>
    %73 = vector.extract_strided_slice %70 {offsets = [2, 0, 0], sizes = [2, 64, 64], strides = [1, 1, 1]} : vector<4x64x64xf32> to vector<2x64x64xf32>
    %74 = vector.shape_cast %73 : vector<2x64x64xf32> to vector<128x64xf32>
    %75 = tpu.concatenate %72, %74 in 1 : vector<128x64xf32>, vector<128x64xf32> -> vector<128x128xf32>
    %76 = arith.truncf %75 : vector<128x128xf32> to vector<128x128xbf16>
    %c0_24 = arith.constant 0 : index
    %c0_25 = arith.constant 0 : index
    %c0_26 = arith.constant 0 : index
    %77 = vector.load %arg6[%c0_24, %c0_25, %c0_26] : memref<2x128x128xbf16, #tpu.memory_space<vmem>>, vector<1x128x128xbf16>
    %78 = vector.shape_cast %77 : vector<1x128x128xbf16> to vector<128x128xbf16>
    %cst_27 = arith.constant dense<0.000000e+00> : vector<128x128xf32>
    %79 = tpu.matmul %76, %78, %cst_27 {dimension_numbers = #tpu.dot_dimension_numbers<[1], [0], [0], [1], [0, 0, 1, 1], [], []>} : vector<128x128xbf16>, vector<128x128xbf16>, vector<128x128xf32> -> vector<128x128xf32>
    %c0_28 = arith.constant 0 : index
    %c0_29 = arith.constant 0 : index
    %c0_30 = arith.constant 0 : index
    %80 = vector.load %arg7[%c0_28, %c0_29, %c0_30] : memref<2x1x128xf32, #tpu.memory_space<vmem>>, vector<1x1x128xf32>
    %81 = vector.shape_cast %80 : vector<1x1x128xf32> to vector<1x128xf32>
    %82 = vector.broadcast %81 : vector<1x128xf32> to vector<128x128xf32>
    %83 = arith.addf %79, %82 : vector<128x128xf32>
    %84 = arith.addf %83, %24 : vector<128x128xf32>
    %c0_31 = arith.constant 0 : index
    %c0_32 = arith.constant 0 : index
    %c0_33 = arith.constant 0 : index
    %85 = vector.load %arg8[%c0_31, %c0_32, %c0_33] : memref<2x1x128xf32, #tpu.memory_space<vmem>>, vector<1x1x128xf32>
    %86 = vector.shape_cast %85 : vector<1x1x128xf32> to vector<1x128xf32>
    %c0_34 = arith.constant 0 : index
    %c0_35 = arith.constant 0 : index
    %c0_36 = arith.constant 0 : index
    %87 = vector.load %arg9[%c0_34, %c0_35, %c0_36] : memref<2x1x128xf32, #tpu.memory_space<vmem>>, vector<1x1x128xf32>
    %88 = vector.shape_cast %87 : vector<1x1x128xf32> to vector<1x128xf32>
    %cst_37 = arith.constant dense<0.000000e+00> : vector<128xf32>
    %89 = vector.multi_reduction <add>, %84, %cst_37 [1] : vector<128x128xf32> to vector<128xf32>
    %90 = vector.shape_cast %89 : vector<128xf32> to vector<128x1xf32>
    %cst_38 = arith.constant 1.280000e+02 : f32
    %91 = vector.broadcast %cst_38 : f32 to vector<128x1xf32>
    %92 = arith.divf %90, %91 : vector<128x1xf32>
    %93 = vector.broadcast %92 : vector<128x1xf32> to vector<128x128xf32>
    %94 = arith.subf %84, %93 : vector<128x128xf32>
    %95 = arith.mulf %94, %94 : vector<128x128xf32>
    %cst_39 = arith.constant dense<0.000000e+00> : vector<128xf32>
    %96 = vector.multi_reduction <add>, %95, %cst_39 [1] : vector<128x128xf32> to vector<128xf32>
    %97 = vector.shape_cast %96 : vector<128xf32> to vector<128x1xf32>
    %cst_40 = arith.constant 1.280000e+02 : f32
    %98 = vector.broadcast %cst_40 : f32 to vector<128x1xf32>
    %99 = arith.divf %97, %98 : vector<128x1xf32>
    %100 = vector.broadcast %92 : vector<128x1xf32> to vector<128x128xf32>
    %101 = arith.subf %84, %100 : vector<128x128xf32>
    %cst_41 = arith.constant 9.99999996E-13 : f32
    %102 = vector.broadcast %cst_41 : f32 to vector<128x1xf32>
    %103 = arith.addf %99, %102 : vector<128x1xf32>
    %104 = math.rsqrt %103 : vector<128x1xf32>
    %105 = vector.broadcast %104 : vector<128x1xf32> to vector<128x128xf32>
    %106 = arith.mulf %101, %105 : vector<128x128xf32>
    %107 = vector.broadcast %86 : vector<1x128xf32> to vector<128x128xf32>
    %108 = arith.mulf %106, %107 : vector<128x128xf32>
    %109 = vector.broadcast %88 : vector<1x128xf32> to vector<128x128xf32>
    %110 = arith.addf %108, %109 : vector<128x128xf32>
    %111 = arith.truncf %110 : vector<128x128xf32> to vector<128x128xbf16>
    %c0_42 = arith.constant 0 : index
    %c0_43 = arith.constant 0 : index
    %c0_44 = arith.constant 0 : index
    %112 = vector.load %arg10[%c0_42, %c0_43, %c0_44] : memref<2x128x256xbf16, #tpu.memory_space<vmem>>, vector<1x128x256xbf16>
    %113 = vector.shape_cast %112 : vector<1x128x256xbf16> to vector<128x256xbf16>
    %cst_45 = arith.constant dense<0.000000e+00> : vector<128x256xf32>
    %114 = tpu.matmul %111, %113, %cst_45 {dimension_numbers = #tpu.dot_dimension_numbers<[1], [0], [0], [1], [0, 0, 1, 1], [], []>} : vector<128x128xbf16>, vector<128x256xbf16>, vector<128x256xf32> -> vector<128x256xf32>
    %c0_46 = arith.constant 0 : index
    %c0_47 = arith.constant 0 : index
    %c0_48 = arith.constant 0 : index
    %115 = vector.load %arg11[%c0_46, %c0_47, %c0_48] : memref<2x1x256xf32, #tpu.memory_space<vmem>>, vector<1x1x256xf32>
    %116 = vector.shape_cast %115 : vector<1x1x256xf32> to vector<1x256xf32>
    %117 = vector.broadcast %116 : vector<1x256xf32> to vector<128x256xf32>
    %118 = arith.addf %114, %117 : vector<128x256xf32>
    %cst_49 = arith.constant 5.000000e-01 : f32
    %119 = vector.broadcast %cst_49 : f32 to vector<128x256xf32>
    %120 = arith.mulf %119, %118 : vector<128x256xf32>
    %cst_50 = arith.constant 4.471500e-02 : f32
    %121 = vector.broadcast %cst_50 : f32 to vector<128x256xf32>
    %122 = arith.mulf %121, %118 : vector<128x256xf32>
    %123 = arith.mulf %122, %118 : vector<128x256xf32>
    %124 = arith.mulf %123, %118 : vector<128x256xf32>
    %125 = arith.addf %118, %124 : vector<128x256xf32>
    %cst_51 = arith.constant 0.797884583 : f32
    %126 = vector.broadcast %cst_51 : f32 to vector<128x256xf32>
    %127 = arith.mulf %126, %125 : vector<128x256xf32>
    %128 = math.tanh %127 : vector<128x256xf32>
    %cst_52 = arith.constant 1.000000e+00 : f32
    %129 = vector.broadcast %cst_52 : f32 to vector<128x256xf32>
    %130 = arith.addf %129, %128 : vector<128x256xf32>
    %131 = arith.mulf %120, %130 : vector<128x256xf32>
    %132 = arith.truncf %131 : vector<128x256xf32> to vector<128x256xbf16>
    %c0_53 = arith.constant 0 : index
    %c0_54 = arith.constant 0 : index
    %c0_55 = arith.constant 0 : index
    %133 = vector.load %arg12[%c0_53, %c0_54, %c0_55] : memref<2x256x128xbf16, #tpu.memory_space<vmem>>, vector<1x256x128xbf16>
    %134 = vector.shape_cast %133 : vector<1x256x128xbf16> to vector<256x128xbf16>
    %cst_56 = arith.constant dense<0.000000e+00> : vector<128x128xf32>
    %135 = tpu.matmul %132, %134, %cst_56 {dimension_numbers = #tpu.dot_dimension_numbers<[1], [0], [0], [1], [0, 0, 1, 1], [], []>} : vector<128x256xbf16>, vector<256x128xbf16>, vector<128x128xf32> -> vector<128x128xf32>
    %c0_57 = arith.constant 0 : index
    %c0_58 = arith.constant 0 : index
    %c0_59 = arith.constant 0 : index
    %136 = vector.load %arg13[%c0_57, %c0_58, %c0_59] : memref<2x1x128xf32, #tpu.memory_space<vmem>>, vector<1x1x128xf32>
    %137 = vector.shape_cast %136 : vector<1x1x128xf32> to vector<1x128xf32>
    %138 = vector.broadcast %137 : vector<1x128xf32> to vector<128x128xf32>
    %139 = arith.addf %135, %138 : vector<128x128xf32>
    %140 = arith.addf %139, %110 : vector<128x128xf32>
    %c0_60 = arith.constant 0 : index
    %c0_61 = arith.constant 0 : index
    %c0_62 = arith.constant 0 : index
    %141 = vector.load %arg14[%c0_60, %c0_61, %c0_62] : memref<2x1x128xf32, #tpu.memory_space<vmem>>, vector<1x1x128xf32>
    %142 = vector.shape_cast %141 : vector<1x1x128xf32> to vector<1x128xf32>
    %c0_63 = arith.constant 0 : index
    %c0_64 = arith.constant 0 : index
    %c0_65 = arith.constant 0 : index
    %143 = vector.load %arg15[%c0_63, %c0_64, %c0_65] : memref<2x1x128xf32, #tpu.memory_space<vmem>>, vector<1x1x128xf32>
    %144 = vector.shape_cast %143 : vector<1x1x128xf32> to vector<1x128xf32>
    %cst_66 = arith.constant dense<0.000000e+00> : vector<128xf32>
    %145 = vector.multi_reduction <add>, %140, %cst_66 [1] : vector<128x128xf32> to vector<128xf32>
    %146 = vector.shape_cast %145 : vector<128xf32> to vector<128x1xf32>
    %cst_67 = arith.constant 1.280000e+02 : f32
    %147 = vector.broadcast %cst_67 : f32 to vector<128x1xf32>
    %148 = arith.divf %146, %147 : vector<128x1xf32>
    %149 = vector.broadcast %148 : vector<128x1xf32> to vector<128x128xf32>
    %150 = arith.subf %140, %149 : vector<128x128xf32>
    %151 = arith.mulf %150, %150 : vector<128x128xf32>
    %cst_68 = arith.constant dense<0.000000e+00> : vector<128xf32>
    %152 = vector.multi_reduction <add>, %151, %cst_68 [1] : vector<128x128xf32> to vector<128xf32>
    %153 = vector.shape_cast %152 : vector<128xf32> to vector<128x1xf32>
    %cst_69 = arith.constant 1.280000e+02 : f32
    %154 = vector.broadcast %cst_69 : f32 to vector<128x1xf32>
    %155 = arith.divf %153, %154 : vector<128x1xf32>
    %156 = vector.broadcast %148 : vector<128x1xf32> to vector<128x128xf32>
    %157 = arith.subf %140, %156 : vector<128x128xf32>
    %cst_70 = arith.constant 9.99999996E-13 : f32
    %158 = vector.broadcast %cst_70 : f32 to vector<128x1xf32>
    %159 = arith.addf %155, %158 : vector<128x1xf32>
    %160 = math.rsqrt %159 : vector<128x1xf32>
    %161 = vector.broadcast %160 : vector<128x1xf32> to vector<128x128xf32>
    %162 = arith.mulf %157, %161 : vector<128x128xf32>
    %163 = vector.broadcast %142 : vector<1x128xf32> to vector<128x128xf32>
    %164 = arith.mulf %162, %163 : vector<128x128xf32>
    %165 = vector.broadcast %144 : vector<1x128xf32> to vector<128x128xf32>
    %166 = arith.addf %164, %165 : vector<128x128xf32>
    %167 = arith.truncf %166 : vector<128x128xf32> to vector<128x128xbf16>
    %c1 = arith.constant 1 : index
    %c0_71 = arith.constant 0 : index
    %c0_72 = arith.constant 0 : index
    %168 = vector.load %arg4[%c1, %c0_71, %c0_72] : memref<2x128x384xbf16, #tpu.memory_space<vmem>>, vector<1x128x384xbf16>
    %169 = vector.shape_cast %168 : vector<1x128x384xbf16> to vector<128x384xbf16>
    %cst_73 = arith.constant dense<0.000000e+00> : vector<128x384xf32>
    %170 = tpu.matmul %167, %169, %cst_73 {dimension_numbers = #tpu.dot_dimension_numbers<[1], [0], [0], [1], [0, 0, 1, 1], [], []>} : vector<128x128xbf16>, vector<128x384xbf16>, vector<128x384xf32> -> vector<128x384xf32>
    %c1_74 = arith.constant 1 : index
    %c0_75 = arith.constant 0 : index
    %c0_76 = arith.constant 0 : index
    %171 = vector.load %arg5[%c1_74, %c0_75, %c0_76] : memref<2x1x384xf32, #tpu.memory_space<vmem>>, vector<1x1x384xf32>
    %172 = vector.shape_cast %171 : vector<1x1x384xf32> to vector<1x384xf32>
    %173 = vector.broadcast %172 : vector<1x384xf32> to vector<128x384xf32>
    %174 = arith.addf %170, %173 : vector<128x384xf32>
    %175 = vector.extract_strided_slice %174 {offsets = [0, 0], sizes = [128, 128], strides = [1, 1]} : vector<128x384xf32> to vector<128x128xf32>
    %cst_77 = arith.constant 1.250000e-01 : f32
    %176 = vector.broadcast %cst_77 : f32 to vector<128x128xf32>
    %177 = arith.mulf %175, %176 : vector<128x128xf32>
    %178 = vector.extract_strided_slice %177 {offsets = [0, 0], sizes = [128, 64], strides = [1, 1]} : vector<128x128xf32> to vector<128x64xf32>
    %179 = vector.shape_cast %178 : vector<128x64xf32> to vector<2x64x64xf32>
    %180 = vector.extract_strided_slice %177 {offsets = [0, 64], sizes = [128, 64], strides = [1, 1]} : vector<128x128xf32> to vector<128x64xf32>
    %181 = vector.shape_cast %180 : vector<128x64xf32> to vector<2x64x64xf32>
    %182 = tpu.concatenate %179, %181 in 0 : vector<2x64x64xf32>, vector<2x64x64xf32> -> vector<4x64x64xf32>
    %183 = arith.truncf %182 : vector<4x64x64xf32> to vector<4x64x64xbf16>
    %184 = vector.extract_strided_slice %174 {offsets = [0, 128], sizes = [128, 128], strides = [1, 1]} : vector<128x384xf32> to vector<128x128xf32>
    %185 = vector.extract_strided_slice %184 {offsets = [0, 0], sizes = [128, 64], strides = [1, 1]} : vector<128x128xf32> to vector<128x64xf32>
    %186 = vector.shape_cast %185 : vector<128x64xf32> to vector<2x64x64xf32>
    %187 = vector.extract_strided_slice %184 {offsets = [0, 64], sizes = [128, 64], strides = [1, 1]} : vector<128x128xf32> to vector<128x64xf32>
    %188 = vector.shape_cast %187 : vector<128x64xf32> to vector<2x64x64xf32>
    %189 = tpu.concatenate %186, %188 in 0 : vector<2x64x64xf32>, vector<2x64x64xf32> -> vector<4x64x64xf32>
    %190 = arith.truncf %189 : vector<4x64x64xf32> to vector<4x64x64xbf16>
    %191 = vector.extract_strided_slice %174 {offsets = [0, 256], sizes = [128, 128], strides = [1, 1]} : vector<128x384xf32> to vector<128x128xf32>
    %192 = vector.extract_strided_slice %191 {offsets = [0, 0], sizes = [128, 64], strides = [1, 1]} : vector<128x128xf32> to vector<128x64xf32>
    %193 = vector.shape_cast %192 : vector<128x64xf32> to vector<2x64x64xf32>
    %194 = vector.extract_strided_slice %191 {offsets = [0, 64], sizes = [128, 64], strides = [1, 1]} : vector<128x128xf32> to vector<128x64xf32>
    %195 = vector.shape_cast %194 : vector<128x64xf32> to vector<2x64x64xf32>
    %196 = tpu.concatenate %193, %195 in 0 : vector<2x64x64xf32>, vector<2x64x64xf32> -> vector<4x64x64xf32>
    %197 = arith.truncf %196 : vector<4x64x64xf32> to vector<4x64x64xbf16>
    "tpu.trace_start"() <{level = 10 : i32, message = "bqd,bkd->bqk"}> : () -> ()
    %cst_78 = arith.constant dense<0.000000e+00> : vector<4x64x64xf32>
    %198 = tpu.matmul %183, %190, %cst_78 {dimension_numbers = #tpu.dot_dimension_numbers<[2], [2], [1], [1], [0, 0, 0, 1, 1, 1], [0], [0]>} : vector<4x64x64xbf16>, vector<4x64x64xbf16>, vector<4x64x64xf32> -> vector<4x64x64xf32>
    "tpu.trace_stop"() : () -> ()
    %199 = arith.addf %198, %25 : vector<4x64x64xf32>
    %cst_79 = arith.constant dense<0xFF800000> : vector<4x64xf32>
    %200 = vector.multi_reduction <maximumf>, %199, %cst_79 [2] : vector<4x64x64xf32> to vector<4x64xf32>
    %201 = vector.shape_cast %200 : vector<4x64xf32> to vector<4x64x1xf32>
    %202 = vector.broadcast %201 : vector<4x64x1xf32> to vector<4x64x64xf32>
    %203 = arith.subf %199, %202 : vector<4x64x64xf32>
    %204 = math.exp %203 : vector<4x64x64xf32>
    %cst_80 = arith.constant dense<0.000000e+00> : vector<4x64xf32>
    %205 = vector.multi_reduction <add>, %204, %cst_80 [2] : vector<4x64x64xf32> to vector<4x64xf32>
    %206 = vector.shape_cast %205 : vector<4x64xf32> to vector<4x64x1xf32>
    %207 = tpu.reciprocal %206 {approx = true} : vector<4x64x1xf32> -> vector<4x64x1xf32>
    %208 = vector.broadcast %207 : vector<4x64x1xf32> to vector<4x64x64xf32>
    %209 = arith.mulf %204, %208 : vector<4x64x64xf32>
    %210 = arith.truncf %209 : vector<4x64x64xf32> to vector<4x64x64xbf16>
    "tpu.trace_start"() <{level = 10 : i32, message = "bqk,bkd->bqd"}> : () -> ()
    %cst_81 = arith.constant dense<0.000000e+00> : vector<4x64x64xf32>
    %211 = tpu.matmul %210, %197, %cst_81 {dimension_numbers = #tpu.dot_dimension_numbers<[2], [1], [1], [2], [0, 0, 0, 1, 1, 2], [0], [0]>} : vector<4x64x64xbf16>, vector<4x64x64xbf16>, vector<4x64x64xf32> -> vector<4x64x64xf32>
    "tpu.trace_stop"() : () -> ()
    %212 = vector.extract_strided_slice %211 {offsets = [0, 0, 0], sizes = [2, 64, 64], strides = [1, 1, 1]} : vector<4x64x64xf32> to vector<2x64x64xf32>
    %213 = vector.shape_cast %212 : vector<2x64x64xf32> to vector<128x64xf32>
    %214 = vector.extract_strided_slice %211 {offsets = [2, 0, 0], sizes = [2, 64, 64], strides = [1, 1, 1]} : vector<4x64x64xf32> to vector<2x64x64xf32>
    %215 = vector.shape_cast %214 : vector<2x64x64xf32> to vector<128x64xf32>
    %216 = tpu.concatenate %213, %215 in 1 : vector<128x64xf32>, vector<128x64xf32> -> vector<128x128xf32>
    %217 = arith.truncf %216 : vector<128x128xf32> to vector<128x128xbf16>
    %c1_82 = arith.constant 1 : index
    %c0_83 = arith.constant 0 : index
    %c0_84 = arith.constant 0 : index
    %218 = vector.load %arg6[%c1_82, %c0_83, %c0_84] : memref<2x128x128xbf16, #tpu.memory_space<vmem>>, vector<1x128x128xbf16>
    %219 = vector.shape_cast %218 : vector<1x128x128xbf16> to vector<128x128xbf16>
    %cst_85 = arith.constant dense<0.000000e+00> : vector<128x128xf32>
    %220 = tpu.matmul %217, %219, %cst_85 {dimension_numbers = #tpu.dot_dimension_numbers<[1], [0], [0], [1], [0, 0, 1, 1], [], []>} : vector<128x128xbf16>, vector<128x128xbf16>, vector<128x128xf32> -> vector<128x128xf32>
    %c1_86 = arith.constant 1 : index
    %c0_87 = arith.constant 0 : index
    %c0_88 = arith.constant 0 : index
    %221 = vector.load %arg7[%c1_86, %c0_87, %c0_88] : memref<2x1x128xf32, #tpu.memory_space<vmem>>, vector<1x1x128xf32>
    %222 = vector.shape_cast %221 : vector<1x1x128xf32> to vector<1x128xf32>
    %223 = vector.broadcast %222 : vector<1x128xf32> to vector<128x128xf32>
    %224 = arith.addf %220, %223 : vector<128x128xf32>
    %225 = arith.addf %224, %166 : vector<128x128xf32>
    %c1_89 = arith.constant 1 : index
    %c0_90 = arith.constant 0 : index
    %c0_91 = arith.constant 0 : index
    %226 = vector.load %arg8[%c1_89, %c0_90, %c0_91] : memref<2x1x128xf32, #tpu.memory_space<vmem>>, vector<1x1x128xf32>
    %227 = vector.shape_cast %226 : vector<1x1x128xf32> to vector<1x128xf32>
    %c1_92 = arith.constant 1 : index
    %c0_93 = arith.constant 0 : index
    %c0_94 = arith.constant 0 : index
    %228 = vector.load %arg9[%c1_92, %c0_93, %c0_94] : memref<2x1x128xf32, #tpu.memory_space<vmem>>, vector<1x1x128xf32>
    %229 = vector.shape_cast %228 : vector<1x1x128xf32> to vector<1x128xf32>
    %cst_95 = arith.constant dense<0.000000e+00> : vector<128xf32>
    %230 = vector.multi_reduction <add>, %225, %cst_95 [1] : vector<128x128xf32> to vector<128xf32>
    %231 = vector.shape_cast %230 : vector<128xf32> to vector<128x1xf32>
    %cst_96 = arith.constant 1.280000e+02 : f32
    %232 = vector.broadcast %cst_96 : f32 to vector<128x1xf32>
    %233 = arith.divf %231, %232 : vector<128x1xf32>
    %234 = vector.broadcast %233 : vector<128x1xf32> to vector<128x128xf32>
    %235 = arith.subf %225, %234 : vector<128x128xf32>
    %236 = arith.mulf %235, %235 : vector<128x128xf32>
    %cst_97 = arith.constant dense<0.000000e+00> : vector<128xf32>
    %237 = vector.multi_reduction <add>, %236, %cst_97 [1] : vector<128x128xf32> to vector<128xf32>
    %238 = vector.shape_cast %237 : vector<128xf32> to vector<128x1xf32>
    %cst_98 = arith.constant 1.280000e+02 : f32
    %239 = vector.broadcast %cst_98 : f32 to vector<128x1xf32>
    %240 = arith.divf %238, %239 : vector<128x1xf32>
    %241 = vector.broadcast %233 : vector<128x1xf32> to vector<128x128xf32>
    %242 = arith.subf %225, %241 : vector<128x128xf32>
    %cst_99 = arith.constant 9.99999996E-13 : f32
    %243 = vector.broadcast %cst_99 : f32 to vector<128x1xf32>
    %244 = arith.addf %240, %243 : vector<128x1xf32>
    %245 = math.rsqrt %244 : vector<128x1xf32>
    %246 = vector.broadcast %245 : vector<128x1xf32> to vector<128x128xf32>
    %247 = arith.mulf %242, %246 : vector<128x128xf32>
    %248 = vector.broadcast %227 : vector<1x128xf32> to vector<128x128xf32>
    %249 = arith.mulf %247, %248 : vector<128x128xf32>
    %250 = vector.broadcast %229 : vector<1x128xf32> to vector<128x128xf32>
    %251 = arith.addf %249, %250 : vector<128x128xf32>
    %252 = arith.truncf %251 : vector<128x128xf32> to vector<128x128xbf16>
    %c1_100 = arith.constant 1 : index
    %c0_101 = arith.constant 0 : index
    %c0_102 = arith.constant 0 : index
    %253 = vector.load %arg10[%c1_100, %c0_101, %c0_102] : memref<2x128x256xbf16, #tpu.memory_space<vmem>>, vector<1x128x256xbf16>
    %254 = vector.shape_cast %253 : vector<1x128x256xbf16> to vector<128x256xbf16>
    %cst_103 = arith.constant dense<0.000000e+00> : vector<128x256xf32>
    %255 = tpu.matmul %252, %254, %cst_103 {dimension_numbers = #tpu.dot_dimension_numbers<[1], [0], [0], [1], [0, 0, 1, 1], [], []>} : vector<128x128xbf16>, vector<128x256xbf16>, vector<128x256xf32> -> vector<128x256xf32>
    %c1_104 = arith.constant 1 : index
    %c0_105 = arith.constant 0 : index
    %c0_106 = arith.constant 0 : index
    %256 = vector.load %arg11[%c1_104, %c0_105, %c0_106] : memref<2x1x256xf32, #tpu.memory_space<vmem>>, vector<1x1x256xf32>
    %257 = vector.shape_cast %256 : vector<1x1x256xf32> to vector<1x256xf32>
    %258 = vector.broadcast %257 : vector<1x256xf32> to vector<128x256xf32>
    %259 = arith.addf %255, %258 : vector<128x256xf32>
    %cst_107 = arith.constant 5.000000e-01 : f32
    %260 = vector.broadcast %cst_107 : f32 to vector<128x256xf32>
    %261 = arith.mulf %260, %259 : vector<128x256xf32>
    %cst_108 = arith.constant 4.471500e-02 : f32
    %262 = vector.broadcast %cst_108 : f32 to vector<128x256xf32>
    %263 = arith.mulf %262, %259 : vector<128x256xf32>
    %264 = arith.mulf %263, %259 : vector<128x256xf32>
    %265 = arith.mulf %264, %259 : vector<128x256xf32>
    %266 = arith.addf %259, %265 : vector<128x256xf32>
    %cst_109 = arith.constant 0.797884583 : f32
    %267 = vector.broadcast %cst_109 : f32 to vector<128x256xf32>
    %268 = arith.mulf %267, %266 : vector<128x256xf32>
    %269 = math.tanh %268 : vector<128x256xf32>
    %cst_110 = arith.constant 1.000000e+00 : f32
    %270 = vector.broadcast %cst_110 : f32 to vector<128x256xf32>
    %271 = arith.addf %270, %269 : vector<128x256xf32>
    %272 = arith.mulf %261, %271 : vector<128x256xf32>
    %273 = arith.truncf %272 : vector<128x256xf32> to vector<128x256xbf16>
    %c1_111 = arith.constant 1 : index
    %c0_112 = arith.constant 0 : index
    %c0_113 = arith.constant 0 : index
    %274 = vector.load %arg12[%c1_111, %c0_112, %c0_113] : memref<2x256x128xbf16, #tpu.memory_space<vmem>>, vector<1x256x128xbf16>
    %275 = vector.shape_cast %274 : vector<1x256x128xbf16> to vector<256x128xbf16>
    %cst_114 = arith.constant dense<0.000000e+00> : vector<128x128xf32>
    %276 = tpu.matmul %273, %275, %cst_114 {dimension_numbers = #tpu.dot_dimension_numbers<[1], [0], [0], [1], [0, 0, 1, 1], [], []>} : vector<128x256xbf16>, vector<256x128xbf16>, vector<128x128xf32> -> vector<128x128xf32>
    %c1_115 = arith.constant 1 : index
    %c0_116 = arith.constant 0 : index
    %c0_117 = arith.constant 0 : index
    %277 = vector.load %arg13[%c1_115, %c0_116, %c0_117] : memref<2x1x128xf32, #tpu.memory_space<vmem>>, vector<1x1x128xf32>
    %278 = vector.shape_cast %277 : vector<1x1x128xf32> to vector<1x128xf32>
    %279 = vector.broadcast %278 : vector<1x128xf32> to vector<128x128xf32>
    %280 = arith.addf %276, %279 : vector<128x128xf32>
    %281 = arith.addf %280, %251 : vector<128x128xf32>
    %c1_118 = arith.constant 1 : index
    %c0_119 = arith.constant 0 : index
    %c0_120 = arith.constant 0 : index
    %282 = vector.load %arg14[%c1_118, %c0_119, %c0_120] : memref<2x1x128xf32, #tpu.memory_space<vmem>>, vector<1x1x128xf32>
    %283 = vector.shape_cast %282 : vector<1x1x128xf32> to vector<1x128xf32>
    %c1_121 = arith.constant 1 : index
    %c0_122 = arith.constant 0 : index
    %c0_123 = arith.constant 0 : index
    %284 = vector.load %arg15[%c1_121, %c0_122, %c0_123] : memref<2x1x128xf32, #tpu.memory_space<vmem>>, vector<1x1x128xf32>
    %285 = vector.shape_cast %284 : vector<1x1x128xf32> to vector<1x128xf32>
    %cst_124 = arith.constant dense<0.000000e+00> : vector<128xf32>
    %286 = vector.multi_reduction <add>, %281, %cst_124 [1] : vector<128x128xf32> to vector<128xf32>
    %287 = vector.shape_cast %286 : vector<128xf32> to vector<128x1xf32>
    %cst_125 = arith.constant 1.280000e+02 : f32
    %288 = vector.broadcast %cst_125 : f32 to vector<128x1xf32>
    %289 = arith.divf %287, %288 : vector<128x1xf32>
    %290 = vector.broadcast %289 : vector<128x1xf32> to vector<128x128xf32>
    %291 = arith.subf %281, %290 : vector<128x128xf32>
    %292 = arith.mulf %291, %291 : vector<128x128xf32>
    %cst_126 = arith.constant dense<0.000000e+00> : vector<128xf32>
    %293 = vector.multi_reduction <add>, %292, %cst_126 [1] : vector<128x128xf32> to vector<128xf32>
    %294 = vector.shape_cast %293 : vector<128xf32> to vector<128x1xf32>
    %cst_127 = arith.constant 1.280000e+02 : f32
    %295 = vector.broadcast %cst_127 : f32 to vector<128x1xf32>
    %296 = arith.divf %294, %295 : vector<128x1xf32>
    %297 = vector.broadcast %289 : vector<128x1xf32> to vector<128x128xf32>
    %298 = arith.subf %281, %297 : vector<128x128xf32>
    %cst_128 = arith.constant 9.99999996E-13 : f32
    %299 = vector.broadcast %cst_128 : f32 to vector<128x1xf32>
    %300 = arith.addf %296, %299 : vector<128x1xf32>
    %301 = math.rsqrt %300 : vector<128x1xf32>
    %302 = vector.broadcast %301 : vector<128x1xf32> to vector<128x128xf32>
    %303 = arith.mulf %298, %302 : vector<128x128xf32>
    %304 = vector.broadcast %283 : vector<1x128xf32> to vector<128x128xf32>
    %305 = arith.mulf %303, %304 : vector<128x128xf32>
    %306 = vector.broadcast %285 : vector<1x128xf32> to vector<128x128xf32>
    %307 = arith.addf %305, %306 : vector<128x128xf32>
    %308 = vector.shape_cast %307 : vector<128x128xf32> to vector<2x64x128xf32>
    %309 = vector.extract_strided_slice %308 {offsets = [0, 0, 0], sizes = [2, 1, 128], strides = [1, 1, 1]} : vector<2x64x128xf32> to vector<2x1x128xf32>
    %310 = vector.shape_cast %309 : vector<2x1x128xf32> to vector<2x128xf32>
    %311 = arith.truncf %310 : vector<2x128xf32> to vector<2x128xbf16>
    %c0_129 = arith.constant 0 : index
    %c0_130 = arith.constant 0 : index
    %312 = vector.load %arg16[%c0_129, %c0_130] : memref<128x128xbf16, #tpu.memory_space<vmem>>, vector<128x128xbf16>
    %cst_131 = arith.constant dense<0.000000e+00> : vector<2x128xf32>
    %313 = tpu.matmul %311, %312, %cst_131 {dimension_numbers = #tpu.dot_dimension_numbers<[1], [0], [0], [1], [0, 0, 1, 1], [], []>} : vector<2x128xbf16>, vector<128x128xbf16>, vector<2x128xf32> -> vector<2x128xf32>
    %c0_132 = arith.constant 0 : index
    %c0_133 = arith.constant 0 : index
    %314 = vector.load %arg17[%c0_132, %c0_133] : memref<1x128xf32, #tpu.memory_space<vmem>>, vector<1x128xf32>
    %315 = vector.broadcast %314 : vector<1x128xf32> to vector<2x128xf32>
    %316 = arith.addf %313, %315 : vector<2x128xf32>
    %cst_134 = arith.constant 0.000000e+00 : f32
    %317 = vector.broadcast %cst_134 : f32 to vector<2x128xf32>
    %318 = arith.maximumf %316, %317 : vector<2x128xf32>
    %319 = arith.truncf %318 : vector<2x128xf32> to vector<2x128xbf16>
    %c0_135 = arith.constant 0 : index
    %c0_136 = arith.constant 0 : index
    %320 = vector.load %arg18[%c0_135, %c0_136] : memref<128x128xbf16, #tpu.memory_space<vmem>>, vector<128x128xbf16>
    %cst_137 = arith.constant dense<0.000000e+00> : vector<2x128xf32>
    %321 = tpu.matmul %319, %320, %cst_137 {dimension_numbers = #tpu.dot_dimension_numbers<[1], [0], [0], [1], [0, 0, 1, 1], [], []>} : vector<2x128xbf16>, vector<128x128xbf16>, vector<2x128xf32> -> vector<2x128xf32>
    %c0_138 = arith.constant 0 : index
    %c0_139 = arith.constant 0 : index
    %322 = vector.load %arg19[%c0_138, %c0_139] : memref<1x128xf32, #tpu.memory_space<vmem>>, vector<1x128xf32>
    %323 = vector.broadcast %322 : vector<1x128xf32> to vector<2x128xf32>
    %324 = arith.addf %321, %323 : vector<2x128xf32>
    %cst_140 = arith.constant dense<0xFF800000> : vector<2xf32>
    %325 = vector.multi_reduction <maximumf>, %324, %cst_140 [1] : vector<2x128xf32> to vector<2xf32>
    %326 = vector.shape_cast %325 : vector<2xf32> to vector<2x1xf32>
    %327 = vector.broadcast %326 : vector<2x1xf32> to vector<2x128xf32>
    %328 = arith.subf %324, %327 : vector<2x128xf32>
    %329 = math.exp %328 : vector<2x128xf32>
    %cst_141 = arith.constant dense<0.000000e+00> : vector<2xf32>
    %330 = vector.multi_reduction <add>, %329, %cst_141 [1] : vector<2x128xf32> to vector<2xf32>
    %331 = vector.shape_cast %330 : vector<2xf32> to vector<2x1xf32>
    %332 = math.log %331 : vector<2x1xf32>
    %333 = vector.broadcast %332 : vector<2x1xf32> to vector<2x128xf32>
    %334 = arith.subf %328, %333 : vector<2x128xf32>
    %c0_142 = arith.constant 0 : index
    %c0_143 = arith.constant 0 : index
    %335 = vector.load %arg20[%c0_142, %c0_143] : memref<2x128xf32, #tpu.memory_space<vmem>>, vector<2x128xf32>
    tpu.vector_store %arg20[%c0_142, %c0_143], %334 {strides = array<i32>} : memref<2x128xf32, #tpu.memory_space<vmem>>, vector<2x128xf32>,
    return
  }
}

</mosaic_0001>

<llo_original>
// kernel: tpu_custom_call.1
$region0: #{tpu_custom_call.1}
  #allocation0 [shape = 'u32[]', space=smem, size = 0x4, offset = 0x4, fixed_abs, tag = 'smem constant byte address 0x4 - core index']
  #allocation1 [shape = 'u32[144,128]{1,0:T(1,128)}', space=vmem, size = 0x12000, scoped, tag = 'internal scratch']
  %s0 = inlined_call_operand.hbm [shape: f32[128,128], index: 0, kind: input, shape index: {}]
  %s1 = inlined_call_operand.hbm [shape: f32[4,64,64], index: 1, kind: input, shape index: {}]
  %s2 = inlined_call_operand.hbm [shape: f32[1,128], index: 2, kind: input, shape index: {}]
  %s3 = inlined_call_operand.hbm [shape: f32[1,128], index: 3, kind: input, shape index: {}]
  %s4 = inlined_call_operand.hbm [shape: bf16[2,128,384], index: 4, kind: input, shape index: {}]
  %s5 = inlined_call_operand.hbm [shape: f32[2,1,384], index: 5, kind: input, shape index: {}]
  %s6 = inlined_call_operand.hbm [shape: bf16[2,128,128], index: 6, kind: input, shape index: {}]
  %s7 = inlined_call_operand.hbm [shape: f32[2,1,128], index: 7, kind: input, shape index: {}]
  %s8 = inlined_call_operand.hbm [shape: f32[2,1,128], index: 8, kind: input, shape index: {}]
  %s9 = inlined_call_operand.hbm [shape: f32[2,1,128], index: 9, kind: input, shape index: {}]
  %s10 = inlined_call_operand.hbm [shape: bf16[2,128,256], index: 10, kind: input, shape index: {}]
  %s11 = inlined_call_operand.vmem [shape: f32[2,1,256], index: 11, kind: input, shape index: {}]
  %s12 = inlined_call_operand.hbm [shape: bf16[2,256,128], index: 12, kind: input, shape index: {}]
  %s13 = inlined_call_operand.hbm [shape: f32[2,1,128], index: 13, kind: input, shape index: {}]
  %s14 = inlined_call_operand.hbm [shape: f32[2,1,128], index: 14, kind: input, shape index: {}]
  %s15 = inlined_call_operand.hbm [shape: f32[2,1,128], index: 15, kind: input, shape index: {}]
  %s16 = inlined_call_operand.hbm [shape: bf16[128,128], index: 16, kind: input, shape index: {}]
  %s17 = inlined_call_operand.hbm [shape: f32[1,128], index: 17, kind: input, shape index: {}]
  %s18 = inlined_call_operand.vmem [shape: bf16[128,128], index: 18, kind: input, shape index: {}]
  %s19 = inlined_call_operand.vmem [shape: f32[1,128], index: 19, kind: input, shape index: {}]
  %s20 = inlined_call_operand.hbm [shape: f32[2,128], index: 20, kind: output, shape index: {}]
  %s21 = sld [smem:[#allocation0]]
  $region158: #{tpu_custom_call.1} parent=0
    _
  %s23 = ssub.s32 1, %s21
  %s24 = scalar_select 0, %s23, %s21
  $region1: #{tpu_custom_call.1} parent=0
    #allocation2 [shape = 'u8[65536]{0}', space=vmem, size = 0x10000, scoped, tag = 'input window, operand 0, single buffered']
    #allocation3 [shape = 's32[1]{0}', space=sflag, size = 0x4, scoped, tag = 'scoped memory for tpu_custom_call.1']
    #allocation4 [shape = 's32[1]{0}', space=sflag, size = 0x4, scoped, tag = 'scoped memory for tpu_custom_call.1']
    #allocation5 [shape = 'u8[131072]{0}', space=vmem, size = 0x20000, scoped, tag = 'input window, operand 1, single buffered']
    #allocation6 [shape = 's32[1]{0}', space=sflag, size = 0x4, scoped, tag = 'scoped memory for tpu_custom_call.1']
    #allocation7 [shape = 'u8[512]{0}', space=vmem, size = 0x400, scoped, tag = 'input window, operand 2, single buffered']
    #allocation8 [shape = 'u8[512]{0}', space=vmem, size = 0x400, scoped, tag = 'input window, operand 3, single buffered']
    #allocation9 [shape = 's32[1]{0}', space=sflag, size = 0x4, scoped, tag = 'scoped memory for tpu_custom_call.1']
    #allocation10 [shape = 'u8[196608]{0}', space=vmem, size = 0x30000, scoped, tag = 'input window, operand 4, single buffered']
    #allocation11 [shape = 'u8[3072]{0}', space=vmem, size = 0xc00, scoped, tag = 'input window, operand 5, single buffered']
    #allocation12 [shape = 's32[1]{0}', space=sflag, size = 0x4, scoped, tag = 'scoped memory for tpu_custom_call.1']
    #allocation13 [shape = 'u8[65536]{0}', space=vmem, size = 0x10000, scoped, tag = 'input window, operand 6, single buffered']
    #allocation14 [shape = 'u8[1024]{0}', space=vmem, size = 0x400, scoped, tag = 'input window, operand 7, single buffered']
    #allocation15 [shape = 's32[1]{0}', space=sflag, size = 0x4, scoped, tag = 'scoped memory for tpu_custom_call.1']
    #allocation16 [shape = 'u8[1024]{0}', space=vmem, size = 0x400, scoped, tag = 'input window, operand 8, single buffered']
    #allocation17 [shape = 'u8[1024]{0}', space=vmem, size = 0x400, scoped, tag = 'input window, operand 9, single buffered']
    #allocation18 [shape = 's32[1]{0}', space=sflag, size = 0x4, scoped, tag = 'scoped memory for tpu_custom_call.1']
    #allocation19 [shape = 'u8[131072]{0}', space=vmem, size = 0x20000, scoped, tag = 'input window, operand 10, single buffered']
    #allocation20 [shape = 'u8[131072]{0}', space=vmem, size = 0x20000, scoped, tag = 'input window, operand 12, single buffered']
    #allocation21 [shape = 's32[1]{0}', space=sflag, size = 0x4, scoped, tag = 'scoped memory for tpu_custom_call.1']
    #allocation22 [shape = 'u8[1024]{0}', space=vmem, size = 0x400, scoped, tag = 'input window, operand 13, single buffered']
    #allocation23 [shape = 'u8[1024]{0}', space=vmem, size = 0x400, scoped, tag = 'input window, operand 14, single buffered']
    #allocation24 [shape = 's32[1]{0}', space=sflag, size = 0x4, scoped, tag = 'scoped memory for tpu_custom_call.1']
    #allocation25 [shape = 'u8[1024]{0}', space=vmem, size = 0x400, scoped, tag = 'input window, operand 15, single buffered']
    #allocation26 [shape = 'u8[32768]{0}', space=vmem, size = 0x8000, scoped, tag = 'input window, operand 16, single buffered']
    #allocation27 [shape = 's32[1]{0}', space=sflag, size = 0x4, scoped, tag = 'scoped memory for tpu_custom_call.1']
    #allocation28 [shape = 'u8[512]{0}', space=vmem, size = 0x400, scoped, tag = 'input window, operand 17, single buffered']
    #allocation29 [shape = 'u8[1024]{0}', space=vmem, size = 0x400, scoped, tag = 'output window, operand 0, single buffered']
    %25 = vsyncpa [#allocation3], 0
    %26 = vsyncpa [#allocation6], 0
    %27 = vsyncpa [#allocation9], 0
    %28 = vsyncpa [#allocation12], 0
    %29 = vsyncpa [#allocation15], 0
    %30 = vsyncpa [#allocation18], 0
    %31 = vsyncpa [#allocation21], 0
    %32 = vsyncpa [#allocation24], 0
    %33 = vsyncpa [#allocation27], 0
    %34 = vsyncpa [#allocation4], 0
    // Predicated region
    $region2: #{tpu_custom_call.1} parent=1 // pred_check
      _
    $region3: #{tpu_custom_call.1} parent=1 // pred_check_branch
      %36 = sbr.rel (0) target = $region5
    $region4: #{tpu_custom_call.1} parent=1 // pred_region
      %s38 = ssub.s32 2048, 2048
      %39 = vsyncadd [#allocation3], %s38
      %s40 = sshll.u32 [#allocation2], 4
      %s41 = int_to_ptr.vmem [resolvable:$true] %s40
      %46 = dma.hbm_to_vmem [thread:$0]  %s0, 2048, %s41, [#allocation3], 128, 128, 8
    $region5: #{tpu_custom_call.1} parent=1 // pred_fallthru
      _
    // Predicated region
    $region6: #{tpu_custom_call.1} parent=1 // pred_check
      _
    $region7: #{tpu_custom_call.1} parent=1 // pred_check_branch
      %48 = sbr.rel (0) target = $region9
    $region8: #{tpu_custom_call.1} parent=1 // pred_region
      %s50 = ssub.s32 4096, 4096
      %51 = vsyncadd [#allocation6], %s50
      %s52 = sshll.u32 [#allocation5], 4
      %s53 = int_to_ptr.vmem [resolvable:$true] %s52
      %58 = dma.hbm_to_vmem [thread:$0]  %s1, 4096, %s53, [#allocation6], 128, 128, 8
    $region9: #{tpu_custom_call.1} parent=1 // pred_fallthru
      _
    // Predicated region
    $region10: #{tpu_custom_call.1} parent=1 // pred_check
      _
    $region11: #{tpu_custom_call.1} parent=1 // pred_check_branch
      %60 = sbr.rel (0) target = $region13
    $region12: #{tpu_custom_call.1} parent=1 // pred_region
      %s62 = ssub.s32 16, 16
      %63 = vsyncadd [#allocation6], %s62
      %s65 = sshll.u32 [#allocation7], 4
      %s66 = int_to_ptr.vmem [resolvable:$true] %s65
      %68 = dma.hbm_to_vmem [thread:$0]  %s2, 16, %s66, [#allocation6]
    $region13: #{tpu_custom_call.1} parent=1 // pred_fallthru
      _
    // Predicated region
    $region14: #{tpu_custom_call.1} parent=1 // pred_check
      _
    $region15: #{tpu_custom_call.1} parent=1 // pred_check_branch
      %70 = sbr.rel (0) target = $region17
    $region16: #{tpu_custom_call.1} parent=1 // pred_region
      %s72 = ssub.s32 16, 16
      %73 = vsyncadd [#allocation9], %s72
      %s75 = sshll.u32 [#allocation8], 4
      %s76 = int_to_ptr.vmem [resolvable:$true] %s75
      %78 = dma.hbm_to_vmem [thread:$0]  %s3, 16, %s76, [#allocation9]
    $region17: #{tpu_custom_call.1} parent=1 // pred_fallthru
      _
    // Predicated region
    $region18: #{tpu_custom_call.1} parent=1 // pred_check
      _
    $region19: #{tpu_custom_call.1} parent=1 // pred_check_branch
      %80 = sbr.rel (0) target = $region21
    $region20: #{tpu_custom_call.1} parent=1 // pred_region
      %s82 = ssub.s32 6144, 6144
      %83 = vsyncadd [#allocation9], %s82
      %s84 = sshll.u32 [#allocation10], 4
      %s85 = int_to_ptr.vmem [resolvable:$true] %s84
      %90 = dma.hbm_to_vmem [thread:$0]  %s4, 6144, %s85, [#allocation9], 192, 192, 12
    $region21: #{tpu_custom_call.1} parent=1 // pred_fallthru
      _
    // Predicated region
    $region22: #{tpu_custom_call.1} parent=1 // pred_check
      _
    $region23: #{tpu_custom_call.1} parent=1 // pred_check_branch
      %92 = sbr.rel (0) target = $region25
    $region24: #{tpu_custom_call.1} parent=1 // pred_region
      %s94 = ssub.s32 96, 96
      %95 = vsyncadd [#allocation12], %s94
      %s96 = sshll.u32 [#allocation11], 4
      %s97 = int_to_ptr.vmem [resolvable:$true] %s96
      %102 = dma.hbm_to_vmem [thread:$0]  %s5, 96, %s97, [#allocation12], 48, 48, 3
    $region25: #{tpu_custom_call.1} parent=1 // pred_fallthru
      _
    // Predicated region
    $region26: #{tpu_custom_call.1} parent=1 // pred_check
      _
    $region27: #{tpu_custom_call.1} parent=1 // pred_check_branch
      %104 = sbr.rel (0) target = $region29
    $region28: #{tpu_custom_call.1} parent=1 // pred_region
      %s106 = ssub.s32 2048, 2048
      %107 = vsyncadd [#allocation12], %s106
      %s108 = sshll.u32 [#allocation13], 4
      %s109 = int_to_ptr.vmem [resolvable:$true] %s108
      %114 = dma.hbm_to_vmem [thread:$0]  %s6, 2048, %s109, [#allocation12], 64, 64, 4
    $region29: #{tpu_custom_call.1} parent=1 // pred_fallthru
      _
    // Predicated region
    $region30: #{tpu_custom_call.1} parent=1 // pred_check
      _
    $region31: #{tpu_custom_call.1} parent=1 // pred_check_branch
      %116 = sbr.rel (0) target = $region33
    $region32: #{tpu_custom_call.1} parent=1 // pred_region
      %s118 = ssub.s32 32, 32
      %119 = vsyncadd [#allocation15], %s118
      %s120 = sshll.u32 [#allocation14], 4
      %s121 = int_to_ptr.vmem [resolvable:$true] %s120
      %126 = dma.hbm_to_vmem [thread:$0]  %s7, 32, %s121, [#allocation15], 16, 16, 1
    $region33: #{tpu_custom_call.1} parent=1 // pred_fallthru
      _
    // Predicated region
    $region34: #{tpu_custom_call.1} parent=1 // pred_check
      _
    $region35: #{tpu_custom_call.1} parent=1 // pred_check_branch
      %128 = sbr.rel (0) target = $region37
    $region36: #{tpu_custom_call.1} parent=1 // pred_region
      %s130 = ssub.s32 32, 32
      %131 = vsyncadd [#allocation15], %s130
      %s132 = sshll.u32 [#allocation16], 4
      %s133 = int_to_ptr.vmem [resolvable:$true] %s132
      %138 = dma.hbm_to_vmem [thread:$0]  %s8, 32, %s133, [#allocation15], 16, 16, 1
    $region37: #{tpu_custom_call.1} parent=1 // pred_fallthru
      _
    // Predicated region
    $region38: #{tpu_custom_call.1} parent=1 // pred_check
      _
    $region39: #{tpu_custom_call.1} parent=1 // pred_check_branch
      %140 = sbr.rel (0) target = $region41
    $region40: #{tpu_custom_call.1} parent=1 // pred_region
      %s142 = ssub.s32 32, 32
      %143 = vsyncadd [#allocation18], %s142
      %s144 = sshll.u32 [#allocation17], 4
      %s145 = int_to_ptr.vmem [resolvable:$true] %s144
      %150 = dma.hbm_to_vmem [thread:$0]  %s9, 32, %s145, [#allocation18], 16, 16, 1
    $region41: #{tpu_custom_call.1} parent=1 // pred_fallthru
      _
    // Predicated region
    $region42: #{tpu_custom_call.1} parent=1 // pred_check
      _
    $region43: #{tpu_custom_call.1} parent=1 // pred_check_branch
      %152 = sbr.rel (0) target = $region45
    $region44: #{tpu_custom_call.1} parent=1 // pred_region
      %s154 = ssub.s32 4096, 4096
      %155 = vsyncadd [#allocation18], %s154
      %s156 = sshll.u32 [#allocation19], 4
      %s157 = int_to_ptr.vmem [resolvable:$true] %s156
      %162 = dma.hbm_to_vmem [thread:$0]  %s10, 4096, %s157, [#allocation18], 128, 128, 8
    $region45: #{tpu_custom_call.1} parent=1 // pred_fallthru
      _
    // Predicated region
    $region46: #{tpu_custom_call.1} parent=1 // pred_check
      _
    $region47: #{tpu_custom_call.1} parent=1 // pred_check_branch
      %164 = sbr.rel (0) target = $region49
    $region48: #{tpu_custom_call.1} parent=1 // pred_region
      _
    $region49: #{tpu_custom_call.1} parent=1 // pred_fallthru
      _
    // Predicated region
    $region50: #{tpu_custom_call.1} parent=1 // pred_check
      _
    $region51: #{tpu_custom_call.1} parent=1 // pred_check_branch
      %166 = sbr.rel (0) target = $region53
    $region52: #{tpu_custom_call.1} parent=1 // pred_region
      %s168 = ssub.s32 4096, 4096
      %169 = vsyncadd [#allocation21], %s168
      %s170 = sshll.u32 [#allocation20], 4
      %s171 = int_to_ptr.vmem [resolvable:$true] %s170
      %176 = dma.hbm_to_vmem [thread:$0]  %s12, 4096, %s171, [#allocation21], 64, 64, 4
    $region53: #{tpu_custom_call.1} parent=1 // pred_fallthru
      _
    // Predicated region
    $region54: #{tpu_custom_call.1} parent=1 // pred_check
      _
    $region55: #{tpu_custom_call.1} parent=1 // pred_check_branch
      %178 = sbr.rel (0) target = $region57
    $region56: #{tpu_custom_call.1} parent=1 // pred_region
      %s180 = ssub.s32 32, 32
      %181 = vsyncadd [#allocation21], %s180
      %s182 = sshll.u32 [#allocation22], 4
      %s183 = int_to_ptr.vmem [resolvable:$true] %s182
      %188 = dma.hbm_to_vmem [thread:$0]  %s13, 32, %s183, [#allocation21], 16, 16, 1
    $region57: #{tpu_custom_call.1} parent=1 // pred_fallthru
      _
    // Predicated region
    $region58: #{tpu_custom_call.1} parent=1 // pred_check
      _
    $region59: #{tpu_custom_call.1} parent=1 // pred_check_branch
      %190 = sbr.rel (0) target = $region61
    $region60: #{tpu_custom_call.1} parent=1 // pred_region
      %s192 = ssub.s32 32, 32
      %193 = vsyncadd [#allocation24], %s192
      %s194 = sshll.u32 [#allocation23], 4
      %s195 = int_to_ptr.vmem [resolvable:$true] %s194
      %200 = dma.hbm_to_vmem [thread:$0]  %s14, 32, %s195, [#allocation24], 16, 16, 1
    $region61: #{tpu_custom_call.1} parent=1 // pred_fallthru
      _
    // Predicated region
    $region62: #{tpu_custom_call.1} parent=1 // pred_check
      _
    $region63: #{tpu_custom_call.1} parent=1 // pred_check_branch
      %202 = sbr.rel (0) target = $region65
    $region64: #{tpu_custom_call.1} parent=1 // pred_region
      %s204 = ssub.s32 32, 32
      %205 = vsyncadd [#allocation24], %s204
      %s206 = sshll.u32 [#allocation25], 4
      %s207 = int_to_ptr.vmem [resolvable:$true] %s206
      %212 = dma.hbm_to_vmem [thread:$0]  %s15, 32, %s207, [#allocation24], 16, 16, 1
    $region65: #{tpu_custom_call.1} parent=1 // pred_fallthru
      _
    // Predicated region
    $region66: #{tpu_custom_call.1} parent=1 // pred_check
      _
    $region67: #{tpu_custom_call.1} parent=1 // pred_check_branch
      %214 = sbr.rel (0) target = $region69
    $region68: #{tpu_custom_call.1} parent=1 // pred_region
      %s216 = ssub.s32 1024, 1024
      %217 = vsyncadd [#allocation27], %s216
      %s218 = sshll.u32 [#allocation26], 4
      %s219 = int_to_ptr.vmem [resolvable:$true] %s218
      %224 = dma.hbm_to_vmem [thread:$0]  %s16, 1024, %s219, [#allocation27], 64, 64, 4
    $region69: #{tpu_custom_call.1} parent=1 // pred_fallthru
      _
    // Predicated region
    $region70: #{tpu_custom_call.1} parent=1 // pred_check
      _
    $region71: #{tpu_custom_call.1} parent=1 // pred_check_branch
      %226 = sbr.rel (0) target = $region73
    $region72: #{tpu_custom_call.1} parent=1 // pred_region
      %s228 = ssub.s32 16, 16
      %229 = vsyncadd [#allocation27], %s228
      %s231 = sshll.u32 [#allocation28], 4
      %s232 = int_to_ptr.vmem [resolvable:$true] %s231
      %234 = dma.hbm_to_vmem [thread:$0]  %s17, 16, %s232, [#allocation27]
    $region73: #{tpu_custom_call.1} parent=1 // pred_fallthru
      _
    // Predicated region
    $region74: #{tpu_custom_call.1} parent=1 // pred_check
      _
    $region75: #{tpu_custom_call.1} parent=1 // pred_check_branch
      %236 = sbr.rel (0) target = $region77
    $region76: #{tpu_custom_call.1} parent=1 // pred_region
      _
    $region77: #{tpu_custom_call.1} parent=1 // pred_fallthru
      _
    // Predicated region
    $region78: #{tpu_custom_call.1} parent=1 // pred_check
      _
    $region79: #{tpu_custom_call.1} parent=1 // pred_check_branch
      %238 = sbr.rel (0) target = $region81
    $region80: #{tpu_custom_call.1} parent=1 // pred_region
      _
    $region81: #{tpu_custom_call.1} parent=1 // pred_fallthru
      _
    // Predicated region
    $region82: #{tpu_custom_call.1} parent=1 // pred_check
      _
    $region83: #{tpu_custom_call.1} parent=1 // pred_check_branch
      %240 = sbr.rel (0) target = $region85
    $region84: #{tpu_custom_call.1} parent=1 // pred_region
      %241 = dma.done [#allocation3], 2048
    $region85: #{tpu_custom_call.1} parent=1 // pred_fallthru
      _
    // Predicated region
    $region86: #{tpu_custom_call.1} parent=1 // pred_check
      _
    $region87: #{tpu_custom_call.1} parent=1 // pred_check_branch
      %243 = sbr.rel (0) target = $region89
    $region88: #{tpu_custom_call.1} parent=1 // pred_region
      %244 = dma.done [#allocation6], 4096
    $region89: #{tpu_custom_call.1} parent=1 // pred_fallthru
      _
    // Predicated region
    $region90: #{tpu_custom_call.1} parent=1 // pred_check
      _
    $region91: #{tpu_custom_call.1} parent=1 // pred_check_branch
      %246 = sbr.rel (0) target = $region93
    $region92: #{tpu_custom_call.1} parent=1 // pred_region
      %247 = dma.done [#allocation6], 16
    $region93: #{tpu_custom_call.1} parent=1 // pred_fallthru
      _
    // Predicated region
    $region94: #{tpu_custom_call.1} parent=1 // pred_check
      _
    $region95: #{tpu_custom_call.1} parent=1 // pred_check_branch
      %249 = sbr.rel (0) target = $region97
    $region96: #{tpu_custom_call.1} parent=1 // pred_region
      %250 = dma.done [#allocation9], 16
    $region97: #{tpu_custom_call.1} parent=1 // pred_fallthru
      _
    // Predicated region
    $region98: #{tpu_custom_call.1} parent=1 // pred_check
      _
    $region99: #{tpu_custom_call.1} parent=1 // pred_check_branch
      %252 = sbr.rel (0) target = $region101
    $region100: #{tpu_custom_call.1} parent=1 // pred_region
      %253 = dma.done [#allocation9], 6144
    $region101: #{tpu_custom_call.1} parent=1 // pred_fallthru
      _
    // Predicated region
    $region102: #{tpu_custom_call.1} parent=1 // pred_check
      _
    $region103: #{tpu_custom_call.1} parent=1 // pred_check_branch
      %255 = sbr.rel (0) target = $region105
    $region104: #{tpu_custom_call.1} parent=1 // pred_region
      %256 = dma.done [#allocation12], 96
    $region105: #{tpu_custom_call.1} parent=1 // pred_fallthru
      _
    // Predicated region
    $region106: #{tpu_custom_call.1} parent=1 // pred_check
      _
    $region107: #{tpu_custom_call.1} parent=1 // pred_check_branch
      %258 = sbr.rel (0) target = $region109
    $region108: #{tpu_custom_call.1} parent=1 // pred_region
      %259 = dma.done [#allocation12], 2048
    $region109: #{tpu_custom_call.1} parent=1 // pred_fallthru
      _
    // Predicated region
    $region110: #{tpu_custom_call.1} parent=1 // pred_check
      _
    $region111: #{tpu_custom_call.1} parent=1 // pred_check_branch
      %261 = sbr.rel (0) target = $region113
    $region112: #{tpu_custom_call.1} parent=1 // pred_region
      %262 = dma.done [#allocation15], 32
    $region113: #{tpu_custom_call.1} parent=1 // pred_fallthru
      _
    // Predicated region
    $region114: #{tpu_custom_call.1} parent=1 // pred_check
      _
    $region115: #{tpu_custom_call.1} parent=1 // pred_check_branch
      %264 = sbr.rel (0) target = $region117
    $region116: #{tpu_custom_call.1} parent=1 // pred_region
      %265 = dma.done [#allocation15], 32
    $region117: #{tpu_custom_call.1} parent=1 // pred_fallthru
      _
    // Predicated region
    $region118: #{tpu_custom_call.1} parent=1 // pred_check
      _
    $region119: #{tpu_custom_call.1} parent=1 // pred_check_branch
      %267 = sbr.rel (0) target = $region121
    $region120: #{tpu_custom_call.1} parent=1 // pred_region
      %268 = dma.done [#allocation18], 32
    $region121: #{tpu_custom_call.1} parent=1 // pred_fallthru
      _
    // Predicated region
    $region122: #{tpu_custom_call.1} parent=1 // pred_check
      _
    $region123: #{tpu_custom_call.1} parent=1 // pred_check_branch
      %270 = sbr.rel (0) target = $region125
    $region124: #{tpu_custom_call.1} parent=1 // pred_region
      %271 = dma.done [#allocation18], 4096
    $region125: #{tpu_custom_call.1} parent=1 // pred_fallthru
      _
    // Predicated region
    $region126: #{tpu_custom_call.1} parent=1 // pred_check
      _
    $region127: #{tpu_custom_call.1} parent=1 // pred_check_branch
      %273 = sbr.rel (0) target = $region129
    $region128: #{tpu_custom_call.1} parent=1 // pred_region
      %274 = dma.done [#allocation21], 4096
    $region129: #{tpu_custom_call.1} parent=1 // pred_fallthru
      _
    // Predicated region
    $region130: #{tpu_custom_call.1} parent=1 // pred_check
      _
    $region131: #{tpu_custom_call.1} parent=1 // pred_check_branch
      %276 = sbr.rel (0) target = $region133
    $region132: #{tpu_custom_call.1} parent=1 // pred_region
      %277 = dma.done [#allocation21], 32
    $region133: #{tpu_custom_call.1} parent=1 // pred_fallthru
      _
    // Predicated region
    $region134: #{tpu_custom_call.1} parent=1 // pred_check
      _
    $region135: #{tpu_custom_call.1} parent=1 // pred_check_branch
      %279 = sbr.rel (0) target = $region137
    $region136: #{tpu_custom_call.1} parent=1 // pred_region
      %280 = dma.done [#allocation24], 32
    $region137: #{tpu_custom_call.1} parent=1 // pred_fallthru
      _
    // Predicated region
    $region138: #{tpu_custom_call.1} parent=1 // pred_check
      _
    $region139: #{tpu_custom_call.1} parent=1 // pred_check_branch
      %282 = sbr.rel (0) target = $region141
    $region140: #{tpu_custom_call.1} parent=1 // pred_region
      %283 = dma.done [#allocation24], 32
    $region141: #{tpu_custom_call.1} parent=1 // pred_fallthru
      _
    // Predicated region
    $region142: #{tpu_custom_call.1} parent=1 // pred_check
      _
    $region143: #{tpu_custom_call.1} parent=1 // pred_check_branch
      %285 = sbr.rel (0) target = $region145
    $region144: #{tpu_custom_call.1} parent=1 // pred_region
      %286 = dma.done [#allocation27], 1024
    $region145: #{tpu_custom_call.1} parent=1 // pred_fallthru
      _
    // Predicated region
    $region146: #{tpu_custom_call.1} parent=1 // pred_check
      _
    $region147: #{tpu_custom_call.1} parent=1 // pred_check_branch
      %288 = sbr.rel (0) target = $region149
    $region148: #{tpu_custom_call.1} parent=1 // pred_region
      %289 = dma.done [#allocation27], 16
    $region149: #{tpu_custom_call.1} parent=1 // pred_fallthru
      _
    %v291 = vld [vmem:[#allocation2] sm:$0xff]
    %v292 = vld [vmem:[#allocation2 + $0x8] sm:$0xff]
    %v293 = vld [vmem:[#allocation2 + $0x10] sm:$0xff]
    %v294 = vld [vmem:[#allocation2 + $0x18] sm:$0xff]
    %v295 = vld [vmem:[#allocation2 + $0x20] sm:$0xff]
    %v296 = vld [vmem:[#allocation2 + $0x28] sm:$0xff]
    %v297 = vld [vmem:[#allocation2 + $0x30] sm:$0xff]
    %v298 = vld [vmem:[#allocation2 + $0x38] sm:$0xff]
    %v299 = vld [vmem:[#allocation2 + $0x40] sm:$0xff]
    %v300 = vld [vmem:[#allocation2 + $0x48] sm:$0xff]
    %v301 = vld [vmem:[#allocation2 + $0x50] sm:$0xff]
    %v302 = vld [vmem:[#allocation2 + $0x58] sm:$0xff]
    %v303 = vld [vmem:[#allocation2 + $0x60] sm:$0xff]
    %v304 = vld [vmem:[#allocation2 + $0x68] sm:$0xff]
    %v305 = vld [vmem:[#allocation2 + $0x70] sm:$0xff]
    %v306 = vld [vmem:[#allocation2 + $0x78] sm:$0xff]
    %v307 = vld [vmem:[#allocation7] sm:$0x1]
    %v308 = vld [vmem:[#allocation8] sm:$0x1]
    %309 = vadd.xlane.f32.xlu0 %v291
    %v310 = vpop.xlane.xlu0 %309
    %311 = vadd.xlane.f32.xlu0 %v292
    %v312 = vpop.xlane.xlu0 %311
    %313 = vadd.xlane.f32.xlu0 %v293
    %v314 = vpop.xlane.xlu0 %313
    %315 = vadd.xlane.f32.xlu0 %v294
    %v316 = vpop.xlane.xlu0 %315
    %317 = vadd.xlane.f32.xlu0 %v295
    %v318 = vpop.xlane.xlu0 %317
    %319 = vadd.xlane.f32.xlu0 %v296
    %v320 = vpop.xlane.xlu0 %319
    %321 = vadd.xlane.f32.xlu0 %v297
    %v322 = vpop.xlane.xlu0 %321
    %323 = vadd.xlane.f32.xlu0 %v298
    %v324 = vpop.xlane.xlu0 %323
    %325 = vadd.xlane.f32.xlu0 %v299
    %v326 = vpop.xlane.xlu0 %325
    %327 = vadd.xlane.f32.xlu0 %v300
    %v328 = vpop.xlane.xlu0 %327
    %329 = vadd.xlane.f32.xlu0 %v301
    %v330 = vpop.xlane.xlu0 %329
    %331 = vadd.xlane.f32.xlu0 %v302
    %v332 = vpop.xlane.xlu0 %331
    %333 = vadd.xlane.f32.xlu0 %v303
    %v334 = vpop.xlane.xlu0 %333
    %335 = vadd.xlane.f32.xlu0 %v304
    %v336 = vpop.xlane.xlu0 %335
    %337 = vadd.xlane.f32.xlu0 %v305
    %v338 = vpop.xlane.xlu0 %337
    %339 = vadd.xlane.f32.xlu0 %v306
    %v340 = vpop.xlane.xlu0 %339
    %v341 = vrcp.pop 128.0
    %v342 = vmul.f32 %v310, %v341
    %v343 = vmul.f32 %v312, %v341
    %v344 = vmul.f32 %v314, %v341
    %v345 = vmul.f32 %v316, %v341
    %v346 = vmul.f32 %v318, %v341
    %v347 = vmul.f32 %v320, %v341
    %v348 = vmul.f32 %v322, %v341
    %v349 = vmul.f32 %v324, %v341
    %v350 = vmul.f32 %v326, %v341
    %v351 = vmul.f32 %v328, %v341
    %v352 = vmul.f32 %v330, %v341
    %v353 = vmul.f32 %v332, %v341
    %v354 = vmul.f32 %v334, %v341
    %v355 = vmul.f32 %v336, %v341
    %v356 = vmul.f32 %v338, %v341
    %v357 = vmul.f32 %v340, %v341
    %v358 = vsub.f32 %v291, %v342
    %v359 = vsub.f32 %v292, %v343
    %v360 = vsub.f32 %v293, %v344
    %v361 = vsub.f32 %v294, %v345
    %v362 = vsub.f32 %v295, %v346
    %v363 = vsub.f32 %v296, %v347
    %v364 = vsub.f32 %v297, %v348
    %v365 = vsub.f32 %v298, %v349
    %v366 = vsub.f32 %v299, %v350
    %v367 = vsub.f32 %v300, %v351
    %v368 = vsub.f32 %v301, %v352
    %v369 = vsub.f32 %v302, %v353
    %v370 = vsub.f32 %v303, %v354
    %v371 = vsub.f32 %v304, %v355
    %v372 = vsub.f32 %v305, %v356
    %v373 = vsub.f32 %v306, %v357
    %v374 = vmul.f32 %v358, %v358
    %v375 = vmul.f32 %v359, %v359
    %v376 = vmul.f32 %v360, %v360
    %v377 = vmul.f32 %v361, %v361
    %v378 = vmul.f32 %v362, %v362
    %v379 = vmul.f32 %v363, %v363
    %v380 = vmul.f32 %v364, %v364
    %v381 = vmul.f32 %v365, %v365
    %v382 = vmul.f32 %v366, %v366
    %v383 = vmul.f32 %v367, %v367
    %v384 = vmul.f32 %v368, %v368
    %v385 = vmul.f32 %v369, %v369
    %v386 = vmul.f32 %v370, %v370
    %v387 = vmul.f32 %v371, %v371
    %v388 = vmul.f32 %v372, %v372
    %v389 = vmul.f32 %v373, %v373
    %390 = vadd.xlane.f32.xlu0 %v374
    %v391 = vpop.xlane.xlu0 %390
    %392 = vadd.xlane.f32.xlu0 %v375
    %v393 = vpop.xlane.xlu0 %392
    %394 = vadd.xlane.f32.xlu0 %v376
    %v395 = vpop.xlane.xlu0 %394
    %396 = vadd.xlane.f32.xlu0 %v377
    %v397 = vpop.xlane.xlu0 %396
    %398 = vadd.xlane.f32.xlu0 %v378
    %v399 = vpop.xlane.xlu0 %398
    %400 = vadd.xlane.f32.xlu0 %v379
    %v401 = vpop.xlane.xlu0 %400
    %402 = vadd.xlane.f32.xlu0 %v380
    %v403 = vpop.xlane.xlu0 %402
    %404 = vadd.xlane.f32.xlu0 %v381
    %v405 = vpop.xlane.xlu0 %404
    %406 = vadd.xlane.f32.xlu0 %v382
    %v407 = vpop.xlane.xlu0 %406
    %408 = vadd.xlane.f32.xlu0 %v383
    %v409 = vpop.xlane.xlu0 %408
    %410 = vadd.xlane.f32.xlu0 %v384
    %v411 = vpop.xlane.xlu0 %410
    %412 = vadd.xlane.f32.xlu0 %v385
    %v413 = vpop.xlane.xlu0 %412
    %414 = vadd.xlane.f32.xlu0 %v386
    %v415 = vpop.xlane.xlu0 %414
    %416 = vadd.xlane.f32.xlu0 %v387
    %v417 = vpop.xlane.xlu0 %416
    %418 = vadd.xlane.f32.xlu0 %v388
    %v419 = vpop.xlane.xlu0 %418
    %420 = vadd.xlane.f32.xlu0 %v389
    %v421 = vpop.xlane.xlu0 %420
    %v422 = vmul.f32 %v391, %v341
    %v423 = vmul.f32 %v393, %v341
    %v424 = vmul.f32 %v395, %v341
    %v425 = vmul.f32 %v397, %v341
    %v426 = vmul.f32 %v399, %v341
    %v427 = vmul.f32 %v401, %v341
    %v428 = vmul.f32 %v403, %v341
    %v429 = vmul.f32 %v405, %v341
    %v430 = vmul.f32 %v407, %v341
    %v431 = vmul.f32 %v409, %v341
    %v432 = vmul.f32 %v411, %v341
    %v433 = vmul.f32 %v413, %v341
    %v434 = vmul.f32 %v415, %v341
    %v435 = vmul.f32 %v417, %v341
    %v436 = vmul.f32 %v419, %v341
    %v437 = vmul.f32 %v421, %v341
    %v438 = vadd.f32 %v422, 1e-12
    %v439 = vadd.f32 %v423, 1e-12
    %v440 = vadd.f32 %v424, 1e-12
    %v441 = vadd.f32 %v425, 1e-12
    %v442 = vadd.f32 %v426, 1e-12
    %v443 = vadd.f32 %v427, 1e-12
    %v444 = vadd.f32 %v428, 1e-12
    %v445 = vadd.f32 %v429, 1e-12
    %v446 = vadd.f32 %v430, 1e-12
    %v447 = vadd.f32 %v431, 1e-12
    %v448 = vadd.f32 %v432, 1e-12
    %v449 = vadd.f32 %v433, 1e-12
    %v450 = vadd.f32 %v434, 1e-12
    %v451 = vadd.f32 %v435, 1e-12
    %v452 = vadd.f32 %v436, 1e-12
    %v453 = vadd.f32 %v437, 1e-12
    %v454 = vrsqrt.pop %v438
    %v455 = vrsqrt.pop %v439
    %v456 = vrsqrt.pop %v440
    %v457 = vrsqrt.pop %v441
    %v458 = vrsqrt.pop %v442
    %v459 = vrsqrt.pop %v443
    %v460 = vrsqrt.pop %v444
    %v461 = vrsqrt.pop %v445
    %v462 = vrsqrt.pop %v446
    %v463 = vrsqrt.pop %v447
    %v464 = vrsqrt.pop %v448
    %v465 = vrsqrt.pop %v449
    %v466 = vrsqrt.pop %v450
    %v467 = vrsqrt.pop %v451
    %v468 = vrsqrt.pop %v452
    %v469 = vrsqrt.pop %v453
    %v470 = vmul.f32 %v358, %v454
    %v471 = vmul.f32 %v359, %v455
    %v472 = vmul.f32 %v360, %v456
    %v473 = vmul.f32 %v361, %v457
    %v474 = vmul.f32 %v362, %v458
    %v475 = vmul.f32 %v363, %v459
    %v476 = vmul.f32 %v364, %v460
    %v477 = vmul.f32 %v365, %v461
    %v478 = vmul.f32 %v366, %v462
    %v479 = vmul.f32 %v367, %v463
    %v480 = vmul.f32 %v368, %v464
    %v481 = vmul.f32 %v369, %v465
    %v482 = vmul.f32 %v370, %v466
    %v483 = vmul.f32 %v371, %v467
    %v484 = vmul.f32 %v372, %v468
    %v485 = vmul.f32 %v373, %v469
    %v487 = vlaneseq
    %v488 = vshrl.u32 %v487, 7
    %v489 = vsub.s32 0, %v488
    %v490 = vrot.slane %v307, %v489
    %v492 = vmul.f32 %v470, %v490
    %v493 = vmul.f32 %v471, %v490
    %v494 = vmul.f32 %v472, %v490
    %v495 = vmul.f32 %v473, %v490
    %v496 = vmul.f32 %v474, %v490
    %v497 = vmul.f32 %v475, %v490
    %v498 = vmul.f32 %v476, %v490
    %v499 = vmul.f32 %v477, %v490
    %v500 = vmul.f32 %v478, %v490
    %v501 = vmul.f32 %v479, %v490
    %v502 = vmul.f32 %v480, %v490
    %v503 = vmul.f32 %v481, %v490
    %v504 = vmul.f32 %v482, %v490
    %v505 = vmul.f32 %v483, %v490
    %v506 = vmul.f32 %v484, %v490
    %v507 = vmul.f32 %v485, %v490
    %v509 = vlaneseq
    %v510 = vshrl.u32 %v509, 7
    %v511 = vsub.s32 0, %v510
    %v512 = vrot.slane %v308, %v511
    %v514 = vadd.f32 %v492, %v512
    %v515 = vadd.f32 %v493, %v512
    %v516 = vadd.f32 %v494, %v512
    %v517 = vadd.f32 %v495, %v512
    %v518 = vadd.f32 %v496, %v512
    %v519 = vadd.f32 %v497, %v512
    %v520 = vadd.f32 %v498, %v512
    %v521 = vadd.f32 %v499, %v512
    %v522 = vadd.f32 %v500, %v512
    %v523 = vadd.f32 %v501, %v512
    %v524 = vadd.f32 %v502, %v512
    %v525 = vadd.f32 %v503, %v512
    %v526 = vadd.f32 %v504, %v512
    %v527 = vadd.f32 %v505, %v512
    %v528 = vadd.f32 %v506, %v512
    %v529 = vadd.f32 %v507, %v512
    %v530 = vld [vmem:[#allocation5] sm:$0xff]
    %v531 = vld [vmem:[#allocation5 + $0x8] sm:$0xff]
    %v532 = vld [vmem:[#allocation5 + $0x10] sm:$0xff]
    %v533 = vld [vmem:[#allocation5 + $0x18] sm:$0xff]
    %v534 = vld [vmem:[#allocation5 + $0x20] sm:$0xff]
    %v535 = vld [vmem:[#allocation5 + $0x28] sm:$0xff]
    %v536 = vld [vmem:[#allocation5 + $0x30] sm:$0xff]
    %v537 = vld [vmem:[#allocation5 + $0x38] sm:$0xff]
    %v538 = vld [vmem:[#allocation5 + $0x40] sm:$0xff]
    %v539 = vld [vmem:[#allocation5 + $0x48] sm:$0xff]
    %v540 = vld [vmem:[#allocation5 + $0x50] sm:$0xff]
    %v541 = vld [vmem:[#allocation5 + $0x58] sm:$0xff]
    %v542 = vld [vmem:[#allocation5 + $0x60] sm:$0xff]
    %v543 = vld [vmem:[#allocation5 + $0x68] sm:$0xff]
    %v544 = vld [vmem:[#allocation5 + $0x70] sm:$0xff]
    %v545 = vld [vmem:[#allocation5 + $0x78] sm:$0xff]
    %v546 = vld [vmem:[#allocation5 + $0x80] sm:$0xff]
    %v547 = vld [vmem:[#allocation5 + $0x88] sm:$0xff]
    %v548 = vld [vmem:[#allocation5 + $0x90] sm:$0xff]
    %v549 = vld [vmem:[#allocation5 + $0x98] sm:$0xff]
    %v550 = vld [vmem:[#allocation5 + $0xa0] sm:$0xff]
    %v551 = vld [vmem:[#allocation5 + $0xa8] sm:$0xff]
    %v552 = vld [vmem:[#allocation5 + $0xb0] sm:$0xff]
    %v553 = vld [vmem:[#allocation5 + $0xb8] sm:$0xff]
    %v554 = vld [vmem:[#allocation5 + $0xc0] sm:$0xff]
    %v555 = vld [vmem:[#allocation5 + $0xc8] sm:$0xff]
    %v556 = vld [vmem:[#allocation5 + $0xd0] sm:$0xff]
    %v557 = vld [vmem:[#allocation5 + $0xd8] sm:$0xff]
    %v558 = vld [vmem:[#allocation5 + $0xe0] sm:$0xff]
    %v559 = vld [vmem:[#allocation5 + $0xe8] sm:$0xff]
    %v560 = vld [vmem:[#allocation5 + $0xf0] sm:$0xff]
    %v561 = vld [vmem:[#allocation5 + $0xf8] sm:$0xff]
    %v562 = vpack.c.bf16 %v515, %v514
    %v563 = vpack.c.bf16 %v517, %v516
    %v564 = vpack.c.bf16 %v519, %v518
    %v565 = vpack.c.bf16 %v521, %v520
    %v566 = vpack.c.bf16 %v523, %v522
    %v567 = vpack.c.bf16 %v525, %v524
    %v568 = vpack.c.bf16 %v527, %v526
    %v569 = vpack.c.bf16 %v529, %v528
    %v570 = vld [vmem:[#allocation10] sm:$0xff]
    %v571 = vld [vmem:[#allocation10 + $0x8] sm:$0xf]
    %v572 = vld [vmem:[#allocation10 + $0xc] sm:$0xff]
    %v573 = vld [vmem:[#allocation10 + $0x14] sm:$0xf]
    %v574 = vld [vmem:[#allocation10 + $0x18] sm:$0xff]
    %v575 = vld [vmem:[#allocation10 + $0x20] sm:$0xf]
    %v576 = vld [vmem:[#allocation10 + $0x24] sm:$0xff]
    %v577 = vld [vmem:[#allocation10 + $0x2c] sm:$0xf]
    %v578 = vld [vmem:[#allocation10 + $0x30] sm:$0xff]
    %v579 = vld [vmem:[#allocation10 + $0x38] sm:$0xf]
    %v580 = vld [vmem:[#allocation10 + $0x3c] sm:$0xff]
    %v581 = vld [vmem:[#allocation10 + $0x44] sm:$0xf]
    %v582 = vld [vmem:[#allocation10 + $0x48] sm:$0xff]
    %v583 = vld [vmem:[#allocation10 + $0x50] sm:$0xf]
    %v584 = vld [vmem:[#allocation10 + $0x54] sm:$0xff]
    %v585 = vld [vmem:[#allocation10 + $0x5c] sm:$0xf]
    %v586 = vld [vmem:[#allocation10 + $0x60] sm:$0xff]
    %v587 = vld [vmem:[#allocation10 + $0x68] sm:$0xf]
    %v588 = vld [vmem:[#allocation10 + $0x6c] sm:$0xff]
    %v589 = vld [vmem:[#allocation10 + $0x74] sm:$0xf]
    %v590 = vld [vmem:[#allocation10 + $0x78] sm:$0xff]
    %v591 = vld [vmem:[#allocation10 + $0x80] sm:$0xf]
    %v592 = vld [vmem:[#allocation10 + $0x84] sm:$0xff]
    %v593 = vld [vmem:[#allocation10 + $0x8c] sm:$0xf]
    %v594 = vld [vmem:[#allocation10 + $0x90] sm:$0xff]
    %v595 = vld [vmem:[#allocation10 + $0x98] sm:$0xf]
    %v596 = vld [vmem:[#allocation10 + $0x9c] sm:$0xff]
    %v597 = vld [vmem:[#allocation10 + $0xa4] sm:$0xf]
    %v598 = vld [vmem:[#allocation10 + $0xa8] sm:$0xff]
    %v599 = vld [vmem:[#allocation10 + $0xb0] sm:$0xf]
    %v600 = vld [vmem:[#allocation10 + $0xb4] sm:$0xff]
    %v601 = vld [vmem:[#allocation10 + $0xbc] sm:$0xf]
    %v602 = vld [vmem:[#allocation11] sm:$0x7]
    %v604 = vlaneseq
    %v605 = vshrl.u32 %v604, 7
    %v606 = vsub.s32 0, %v605
    %v607 = vrot.slane %v602, %v606
    %v608 = vlaneseq
    %v609 = vshrl.u32 %v608, 7
    %v610 = vsub.s32 1, %v609
    %v611 = vrot.slane %v602, %v610
    %v612 = vlaneseq
    %v613 = vshrl.u32 %v612, 7
    %v614 = vsub.s32 2, %v613
    %v615 = vrot.slane %v602, %v614
    %v651 = vunpack.c.l.b16 %v570
    %v652 = vunpack.c.h.b16 %v570
    %v653 = vunpack.c.l.b16 %v571
    %v654 = vunpack.c.l.b16 %v572
    %v655 = vunpack.c.h.b16 %v572
    %v656 = vunpack.c.l.b16 %v573
    %v657 = vunpack.c.l.b16 %v574
    %v658 = vunpack.c.h.b16 %v574
    %v659 = vunpack.c.l.b16 %v575
    %v660 = vunpack.c.l.b16 %v576
    %v661 = vunpack.c.h.b16 %v576
    %v662 = vunpack.c.l.b16 %v577
    %v663 = vunpack.c.l.b16 %v578
    %v664 = vunpack.c.h.b16 %v578
    %v665 = vunpack.c.l.b16 %v579
    %v666 = vunpack.c.l.b16 %v580
    %v667 = vunpack.c.h.b16 %v580
    %v668 = vunpack.c.l.b16 %v581
    %v669 = vunpack.c.l.b16 %v582
    %v670 = vunpack.c.h.b16 %v582
    %v671 = vunpack.c.l.b16 %v583
    %v672 = vunpack.c.l.b16 %v584
    %v673 = vunpack.c.h.b16 %v584
    %v674 = vunpack.c.l.b16 %v585
    %v675 = vunpack.c.l.b16 %v586
    %v676 = vunpack.c.h.b16 %v586
    %v677 = vunpack.c.l.b16 %v587
    %v678 = vunpack.c.l.b16 %v588
    %v679 = vunpack.c.h.b16 %v588
    %v680 = vunpack.c.l.b16 %v589
    %v681 = vunpack.c.l.b16 %v590
    %v682 = vunpack.c.h.b16 %v590
    %v683 = vunpack.c.l.b16 %v591
    %v684 = vunpack.c.l.b16 %v592
    %v685 = vunpack.c.h.b16 %v592
    %v686 = vunpack.c.l.b16 %v593
    %v687 = vunpack.c.l.b16 %v594
    %v688 = vunpack.c.h.b16 %v594
    %v689 = vunpack.c.l.b16 %v595
    %v690 = vunpack.c.l.b16 %v596
    %v691 = vunpack.c.h.b16 %v596
    %v692 = vunpack.c.l.b16 %v597
    %v693 = vunpack.c.l.b16 %v598
    %v694 = vunpack.c.h.b16 %v598
    %v695 = vunpack.c.l.b16 %v599
    %v696 = vunpack.c.l.b16 %v600
    %v697 = vunpack.c.h.b16 %v600
    %v698 = vunpack.c.l.b16 %v601
    %v699 = vpack.c.b16 %v654, %v651
    %v700 = vpack.c.b16 %v655, %v652
    %v701 = vpack.c.b16 %v656, %v653
    %v702 = vpack.c.b16 %v660, %v657
    %v703 = vpack.c.b16 %v661, %v658
    %v704 = vpack.c.b16 %v662, %v659
    %v705 = vpack.c.b16 %v666, %v663
    %v706 = vpack.c.b16 %v667, %v664
    %v707 = vpack.c.b16 %v668, %v665
    %v708 = vpack.c.b16 %v672, %v669
    %v709 = vpack.c.b16 %v673, %v670
    %v710 = vpack.c.b16 %v674, %v671
    %v711 = vpack.c.b16 %v678, %v675
    %v712 = vpack.c.b16 %v679, %v676
    %v713 = vpack.c.b16 %v680, %v677
    %v714 = vpack.c.b16 %v684, %v681
    %v715 = vpack.c.b16 %v685, %v682
    %v716 = vpack.c.b16 %v686, %v683
    %v717 = vpack.c.b16 %v690, %v687
    %v718 = vpack.c.b16 %v691, %v688
    %v719 = vpack.c.b16 %v692, %v689
    %v720 = vpack.c.b16 %v696, %v693
    %v721 = vpack.c.b16 %v697, %v694
    %v722 = vpack.c.b16 %v698, %v695
    %747 = vmatprep.subr.bf16.mxu0 %v700
    %748 = vmatpush1.bf16.msra.mxu0 %v699
    %749 = vmatprep.subr.bf16.mxu0 %v703
    %750 = vmatpush1.bf16.msra.mxu0 %v702
    %751 = vmatprep.subr.bf16.mxu0 %v706
    %752 = vmatpush1.bf16.msra.mxu0 %v705
    %753 = vmatprep.subr.bf16.mxu0 %v709
    %754 = vmatpush1.bf16.msra.mxu0 %v708
    %755 = vmatprep.subr.bf16.mxu0 %v712
    %756 = vmatpush1.bf16.msra.mxu0 %v711
    %757 = vmatprep.subr.bf16.mxu0 %v715
    %758 = vmatpush1.bf16.msra.mxu0 %v714
    %759 = vmatprep.subr.bf16.mxu0 %v718
    %760 = vmatpush1.bf16.msra.mxu0 %v717
    %761 = vmatprep.subr.bf16.mxu0 %v721
    %762 = vmatpush1.bf16.msra.mxu0 %v720
    %763 = vmatprep.subr.bf16.mxu0 0
    %764 = vmatpush1.bf16.msra.mxu0 0
    %765 = vmatprep.subr.bf16.mxu0 0
    %766 = vmatpush1.bf16.msra.mxu0 0
    %767 = vmatprep.subr.bf16.mxu0 0
    %768 = vmatpush1.bf16.msra.mxu0 0
    %769 = vmatprep.subr.bf16.mxu0 0
    %770 = vmatpush1.bf16.msra.mxu0 0
    %771 = vmatprep.subr.bf16.mxu0 0
    %772 = vmatpush1.bf16.msra.mxu0 0
    %773 = vmatprep.subr.bf16.mxu0 0
    %774 = vmatpush1.bf16.msra.mxu0 0
    %775 = vmatprep.subr.bf16.mxu0 0
    %776 = vmatpush1.bf16.msra.mxu0 0
    %777 = vmatprep.subr.bf16.mxu0 0
    %778 = vmatpush1.bf16.msra.mxu0 0
    %779 = vmatprep.mubr.bf16.mxu0 0
    %780 = vmatmul.mubr.bf16.gmra.mrb[0].mxu0 %v562
    %v781 = vpop.f32.mrb[0].mxu0
    %v782 = vadd.f32 %v607, %v781
    %v783 = vpop.f32.mrb[0].mxu0
    %v784 = vadd.f32 %v611, %v783
    %v785 = vpop.f32.mrb[0].mxu0
    %v786 = vadd.f32 %v607, %v785
    %v787 = vpop.f32.mrb[0].mxu0
    %v788 = vadd.f32 %v611, %v787
    %789 = vmatprep.mubr.bf16.mxu0 0
    %790 = vmatmul.mubr.bf16.gmra.mrb[0].mxu0 %v563
    %v791 = vpop.f32.mrb[0].mxu0
    %v792 = vadd.f32 %v607, %v791
    %v793 = vpop.f32.mrb[0].mxu0
    %v794 = vadd.f32 %v611, %v793
    %v795 = vpop.f32.mrb[0].mxu0
    %v796 = vadd.f32 %v607, %v795
    %v797 = vpop.f32.mrb[0].mxu0
    %v798 = vadd.f32 %v611, %v797
    %799 = vmatprep.mubr.bf16.mxu0 0
    %800 = vmatmul.mubr.bf16.gmra.mrb[0].mxu0 %v564
    %v801 = vpop.f32.mrb[0].mxu0
    %v802 = vadd.f32 %v607, %v801
    %v803 = vpop.f32.mrb[0].mxu0
    %v804 = vadd.f32 %v611, %v803
    %v805 = vpop.f32.mrb[0].mxu0
    %v806 = vadd.f32 %v607, %v805
    %v807 = vpop.f32.mrb[0].mxu0
    %v808 = vadd.f32 %v611, %v807
    %809 = vmatprep.mubr.bf16.mxu0 0
    %810 = vmatmul.mubr.bf16.gmra.mrb[0].mxu0 %v565
    %v811 = vpop.f32.mrb[0].mxu0
    %v812 = vadd.f32 %v607, %v811
    %v813 = vpop.f32.mrb[0].mxu0
    %v814 = vadd.f32 %v611, %v813
    %v815 = vpop.f32.mrb[0].mxu0
    %v816 = vadd.f32 %v607, %v815
    %v817 = vpop.f32.mrb[0].mxu0
    %v818 = vadd.f32 %v611, %v817
    %819 = vmatprep.mubr.bf16.mxu0 0
    %820 = vmatmul.mubr.bf16.gmra.mrb[0].mxu0 %v566
    %v821 = vpop.f32.mrb[0].mxu0
    %v822 = vadd.f32 %v607, %v821
    %v823 = vpop.f32.mrb[0].mxu0
    %v824 = vadd.f32 %v611, %v823
    %v825 = vpop.f32.mrb[0].mxu0
    %v826 = vadd.f32 %v607, %v825
    %v827 = vpop.f32.mrb[0].mxu0
    %v828 = vadd.f32 %v611, %v827
    %829 = vmatprep.mubr.bf16.mxu0 0
    %830 = vmatmul.mubr.bf16.gmra.mrb[0].mxu0 %v567
    %v831 = vpop.f32.mrb[0].mxu0
    %v832 = vadd.f32 %v607, %v831
    %v833 = vpop.f32.mrb[0].mxu0
    %v834 = vadd.f32 %v611, %v833
    %v835 = vpop.f32.mrb[0].mxu0
    %v836 = vadd.f32 %v607, %v835
    %v837 = vpop.f32.mrb[0].mxu0
    %v838 = vadd.f32 %v611, %v837
    %839 = vmatprep.mubr.bf16.mxu0 0
    %840 = vmatmul.mubr.bf16.gmra.mrb[0].mxu0 %v568
    %v841 = vpop.f32.mrb[0].mxu0
    %v842 = vadd.f32 %v607, %v841
    %v843 = vpop.f32.mrb[0].mxu0
    %v844 = vadd.f32 %v611, %v843
    %v845 = vpop.f32.mrb[0].mxu0
    %v846 = vadd.f32 %v607, %v845
    %v847 = vpop.f32.mrb[0].mxu0
    %v848 = vadd.f32 %v611, %v847
    %849 = vmatprep.mubr.bf16.mxu0 0
    %850 = vmatmul.mubr.bf16.gmra.mrb[0].mxu0 %v569
    %v851 = vpop.f32.mrb[0].mxu0
    %v852 = vadd.f32 %v607, %v851
    %v853 = vpop.f32.mrb[0].mxu0
    %v854 = vadd.f32 %v611, %v853
    %v855 = vpop.f32.mrb[0].mxu0
    %v856 = vadd.f32 %v607, %v855
    %v857 = vpop.f32.mrb[0].mxu0
    %v858 = vadd.f32 %v611, %v857
    %859 = vdwg.mxu0
    %860 = vmatprep.subr.bf16.mxu0 0
    %861 = vmatpush1.bf16.msra.mxu0 %v701
    %862 = vmatprep.subr.bf16.mxu0 0
    %863 = vmatpush1.bf16.msra.mxu0 %v704
    %864 = vmatprep.subr.bf16.mxu0 0
    %865 = vmatpush1.bf16.msra.mxu0 %v707
    %866 = vmatprep.subr.bf16.mxu0 0
    %867 = vmatpush1.bf16.msra.mxu0 %v710
    %868 = vmatprep.subr.bf16.mxu0 0
    %869 = vmatpush1.bf16.msra.mxu0 %v713
    %870 = vmatprep.subr.bf16.mxu0 0
    %871 = vmatpush1.bf16.msra.mxu0 %v716
    %872 = vmatprep.subr.bf16.mxu0 0
    %873 = vmatpush1.bf16.msra.mxu0 %v719
    %874 = vmatprep.subr.bf16.mxu0 0
    %875 = vmatpush1.bf16.msra.mxu0 %v722
    %876 = vmatprep.subr.bf16.mxu0 0
    %877 = vmatpush1.bf16.msra.mxu0 0
    %878 = vmatprep.subr.bf16.mxu0 0
    %879 = vmatpush1.bf16.msra.mxu0 0
    %880 = vmatprep.subr.bf16.mxu0 0
    %881 = vmatpush1.bf16.msra.mxu0 0
    %882 = vmatprep.subr.bf16.mxu0 0
    %883 = vmatpush1.bf16.msra.mxu0 0
    %884 = vmatprep.subr.bf16.mxu0 0
    %885 = vmatpush1.bf16.msra.mxu0 0
    %886 = vmatprep.subr.bf16.mxu0 0
    %887 = vmatpush1.bf16.msra.mxu0 0
    %888 = vmatprep.subr.bf16.mxu0 0
    %889 = vmatpush1.bf16.msra.mxu0 0
    %890 = vmatprep.subr.bf16.mxu0 0
    %891 = vmatpush1.bf16.msra.mxu0 0
    %892 = vmatprep.mubr.bf16.mxu0 0
    %893 = vmatmul.mubr.bf16.gmra.mrb[0].mxu0 %v562
    %v894 = vpop.f32.mrb[0].mxu0
    %v895 = vadd.f32 %v615, %v894
    %v896 = vpop.f32.mrb[0].mxu0
    %v897 = vpop.f32.mrb[0].mxu0
    %v898 = vadd.f32 %v615, %v897
    %v899 = vpop.f32.mrb[0].mxu0
    %900 = vmatprep.mubr.bf16.mxu0 0
    %901 = vmatmul.mubr.bf16.gmra.mrb[0].mxu0 %v563
    %v902 = vpop.f32.mrb[0].mxu0
    %v903 = vadd.f32 %v615, %v902
    %v904 = vpop.f32.mrb[0].mxu0
    %v905 = vpop.f32.mrb[0].mxu0
    %v906 = vadd.f32 %v615, %v905
    %v907 = vpop.f32.mrb[0].mxu0
    %908 = vmatprep.mubr.bf16.mxu0 0
    %909 = vmatmul.mubr.bf16.gmra.mrb[0].mxu0 %v564
    %v910 = vpop.f32.mrb[0].mxu0
    %v911 = vadd.f32 %v615, %v910
    %v912 = vpop.f32.mrb[0].mxu0
    %v913 = vpop.f32.mrb[0].mxu0
    %v914 = vadd.f32 %v615, %v913
    %v915 = vpop.f32.mrb[0].mxu0
    %916 = vmatprep.mubr.bf16.mxu0 0
    %917 = vmatmul.mubr.bf16.gmra.mrb[0].mxu0 %v565
    %v918 = vpop.f32.mrb[0].mxu0
    %v919 = vadd.f32 %v615, %v918
    %v920 = vpop.f32.mrb[0].mxu0
    %v921 = vpop.f32.mrb[0].mxu0
    %v922 = vadd.f32 %v615, %v921
    %v923 = vpop.f32.mrb[0].mxu0
    %924 = vmatprep.mubr.bf16.mxu0 0
    %925 = vmatmul.mubr.bf16.gmra.mrb[0].mxu0 %v566
    %v926 = vpop.f32.mrb[0].mxu0
    %v927 = vadd.f32 %v615, %v926
    %v928 = vpop.f32.mrb[0].mxu0
    %v929 = vpop.f32.mrb[0].mxu0
    %v930 = vadd.f32 %v615, %v929
    %v931 = vpop.f32.mrb[0].mxu0
    %932 = vmatprep.mubr.bf16.mxu0 0
    %933 = vmatmul.mubr.bf16.gmra.mrb[0].mxu0 %v567
    %v934 = vpop.f32.mrb[0].mxu0
    %v935 = vadd.f32 %v615, %v934
    %v936 = vpop.f32.mrb[0].mxu0
    %v937 = vpop.f32.mrb[0].mxu0
    %v938 = vadd.f32 %v615, %v937
    %v939 = vpop.f32.mrb[0].mxu0
    %940 = vmatprep.mubr.bf16.mxu0 0
    %941 = vmatmul.mubr.bf16.gmra.mrb[0].mxu0 %v568
    %v942 = vpop.f32.mrb[0].mxu0
    %v943 = vadd.f32 %v615, %v942
    %v944 = vpop.f32.mrb[0].mxu0
    %v945 = vpop.f32.mrb[0].mxu0
    %v946 = vadd.f32 %v615, %v945
    %v947 = vpop.f32.mrb[0].mxu0
    %948 = vmatprep.mubr.bf16.mxu0 0
    %949 = vmatmul.mubr.bf16.gmra.mrb[0].mxu0 %v569
    %v950 = vpop.f32.mrb[0].mxu0
    %v951 = vadd.f32 %v615, %v950
    %v952 = vpop.f32.mrb[0].mxu0
    %v953 = vpop.f32.mrb[0].mxu0
    %v954 = vadd.f32 %v615, %v953
    %v955 = vpop.f32.mrb[0].mxu0
    %956 = vdwg.mxu0
    %v957 = vmul.f32 %v782, 0.125
    %v958 = vmul.f32 %v786, 0.125
    %v959 = vmul.f32 %v792, 0.125
    %v960 = vmul.f32 %v796, 0.125
    %v961 = vmul.f32 %v802, 0.125
    %v962 = vmul.f32 %v806, 0.125
    %v963 = vmul.f32 %v812, 0.125
    %v964 = vmul.f32 %v816, 0.125
    %v965 = vmul.f32 %v822, 0.125
    %v966 = vmul.f32 %v826, 0.125
    %v967 = vmul.f32 %v832, 0.125
    %v968 = vmul.f32 %v836, 0.125
    %v969 = vmul.f32 %v842, 0.125
    %v970 = vmul.f32 %v846, 0.125
    %v971 = vmul.f32 %v852, 0.125
    %v972 = vmul.f32 %v856, 0.125
    %989 = vrot.lane.b32.xlu0 %v957, 64
    %v990 = vpop.permute.xlu0 %989
    %991 = vrot.lane.b32.xlu0 %v958, 64
    %v992 = vpop.permute.xlu0 %991
    %993 = vrot.lane.b32.xlu0 %v959, 64
    %v994 = vpop.permute.xlu0 %993
    %995 = vrot.lane.b32.xlu0 %v960, 64
    %v996 = vpop.permute.xlu0 %995
    %997 = vrot.lane.b32.xlu0 %v961, 64
    %v998 = vpop.permute.xlu0 %997
    %999 = vrot.lane.b32.xlu0 %v962, 64
    %v1000 = vpop.permute.xlu0 %999
    %1001 = vrot.lane.b32.xlu0 %v963, 64
    %v1002 = vpop.permute.xlu0 %1001
    %1003 = vrot.lane.b32.xlu0 %v964, 64
    %v1004 = vpop.permute.xlu0 %1003
    %1005 = vrot.lane.b32.xlu0 %v965, 64
    %v1006 = vpop.permute.xlu0 %1005
    %1007 = vrot.lane.b32.xlu0 %v966, 64
    %v1008 = vpop.permute.xlu0 %1007
    %1009 = vrot.lane.b32.xlu0 %v967, 64
    %v1010 = vpop.permute.xlu0 %1009
    %1011 = vrot.lane.b32.xlu0 %v968, 64
    %v1012 = vpop.permute.xlu0 %1011
    %1013 = vrot.lane.b32.xlu0 %v969, 64
    %v1014 = vpop.permute.xlu0 %1013
    %1015 = vrot.lane.b32.xlu0 %v970, 64
    %v1016 = vpop.permute.xlu0 %1015
    %1017 = vrot.lane.b32.xlu0 %v971, 64
    %v1018 = vpop.permute.xlu0 %1017
    %1019 = vrot.lane.b32.xlu0 %v972, 64
    %v1020 = vpop.permute.xlu0 %1019
    %v1037 = vpack.c.bf16 %v958, %v957
    %v1038 = vpack.c.bf16 %v960, %v959
    %v1039 = vpack.c.bf16 %v962, %v961
    %v1040 = vpack.c.bf16 %v964, %v963
    %v1041 = vpack.c.bf16 %v966, %v965
    %v1042 = vpack.c.bf16 %v968, %v967
    %v1043 = vpack.c.bf16 %v970, %v969
    %v1044 = vpack.c.bf16 %v972, %v971
    %v1045 = vpack.c.bf16 %v992, %v990
    %v1046 = vpack.c.bf16 %v996, %v994
    %v1047 = vpack.c.bf16 %v1000, %v998
    %v1048 = vpack.c.bf16 %v1004, %v1002
    %v1049 = vpack.c.bf16 %v1008, %v1006
    %v1050 = vpack.c.bf16 %v1012, %v1010
    %v1051 = vpack.c.bf16 %v1016, %v1014
    %v1052 = vpack.c.bf16 %v1020, %v1018
    %1069 = vrot.lane.b32.xlu0 %v784, 64
    %v1070 = vpop.permute.xlu0 %1069
    %1071 = vrot.lane.b32.xlu0 %v788, 64
    %v1072 = vpop.permute.xlu0 %1071
    %1073 = vrot.lane.b32.xlu0 %v794, 64
    %v1074 = vpop.permute.xlu0 %1073
    %1075 = vrot.lane.b32.xlu0 %v798, 64
    %v1076 = vpop.permute.xlu0 %1075
    %1077 = vrot.lane.b32.xlu0 %v804, 64
    %v1078 = vpop.permute.xlu0 %1077
    %1079 = vrot.lane.b32.xlu0 %v808, 64
    %v1080 = vpop.permute.xlu0 %1079
    %1081 = vrot.lane.b32.xlu0 %v814, 64
    %v1082 = vpop.permute.xlu0 %1081
    %1083 = vrot.lane.b32.xlu0 %v818, 64
    %v1084 = vpop.permute.xlu0 %1083
    %1085 = vrot.lane.b32.xlu0 %v824, 64
    %v1086 = vpop.permute.xlu0 %1085
    %1087 = vrot.lane.b32.xlu0 %v828, 64
    %v1088 = vpop.permute.xlu0 %1087
    %1089 = vrot.lane.b32.xlu0 %v834, 64
    %v1090 = vpop.permute.xlu0 %1089
    %1091 = vrot.lane.b32.xlu0 %v838, 64
    %v1092 = vpop.permute.xlu0 %1091
    %1093 = vrot.lane.b32.xlu0 %v844, 64
    %v1094 = vpop.permute.xlu0 %1093
    %1095 = vrot.lane.b32.xlu0 %v848, 64
    %v1096 = vpop.permute.xlu0 %1095
    %1097 = vrot.lane.b32.xlu0 %v854, 64
    %v1098 = vpop.permute.xlu0 %1097
    %1099 = vrot.lane.b32.xlu0 %v858, 64
    %v1100 = vpop.permute.xlu0 %1099
    %v1117 = vpack.c.bf16 %v788, %v784
    %v1118 = vpack.c.bf16 %v798, %v794
    %v1119 = vpack.c.bf16 %v808, %v804
    %v1120 = vpack.c.bf16 %v818, %v814
    %v1121 = vpack.c.bf16 %v828, %v824
    %v1122 = vpack.c.bf16 %v838, %v834
    %v1123 = vpack.c.bf16 %v848, %v844
    %v1124 = vpack.c.bf16 %v858, %v854
    %v1125 = vpack.c.bf16 %v1072, %v1070
    %v1126 = vpack.c.bf16 %v1076, %v1074
    %v1127 = vpack.c.bf16 %v1080, %v1078
    %v1128 = vpack.c.bf16 %v1084, %v1082
    %v1129 = vpack.c.bf16 %v1088, %v1086
    %v1130 = vpack.c.bf16 %v1092, %v1090
    %v1131 = vpack.c.bf16 %v1096, %v1094
    %v1132 = vpack.c.bf16 %v1100, %v1098
    %1149 = vrot.lane.b32.xlu0 %v895, 64
    %v1150 = vpop.permute.xlu0 %1149
    %1151 = vrot.lane.b32.xlu0 %v898, 64
    %v1152 = vpop.permute.xlu0 %1151
    %1153 = vrot.lane.b32.xlu0 %v903, 64
    %v1154 = vpop.permute.xlu0 %1153
    %1155 = vrot.lane.b32.xlu0 %v906, 64
    %v1156 = vpop.permute.xlu0 %1155
    %1157 = vrot.lane.b32.xlu0 %v911, 64
    %v1158 = vpop.permute.xlu0 %1157
    %1159 = vrot.lane.b32.xlu0 %v914, 64
    %v1160 = vpop.permute.xlu0 %1159
    %1161 = vrot.lane.b32.xlu0 %v919, 64
    %v1162 = vpop.permute.xlu0 %1161
    %1163 = vrot.lane.b32.xlu0 %v922, 64
    %v1164 = vpop.permute.xlu0 %1163
    %1165 = vrot.lane.b32.xlu0 %v927, 64
    %v1166 = vpop.permute.xlu0 %1165
    %1167 = vrot.lane.b32.xlu0 %v930, 64
    %v1168 = vpop.permute.xlu0 %1167
    %1169 = vrot.lane.b32.xlu0 %v935, 64
    %v1170 = vpop.permute.xlu0 %1169
    %1171 = vrot.lane.b32.xlu0 %v938, 64
    %v1172 = vpop.permute.xlu0 %1171
    %1173 = vrot.lane.b32.xlu0 %v943, 64
    %v1174 = vpop.permute.xlu0 %1173
    %1175 = vrot.lane.b32.xlu0 %v946, 64
    %v1176 = vpop.permute.xlu0 %1175
    %1177 = vrot.lane.b32.xlu0 %v951, 64
    %v1178 = vpop.permute.xlu0 %1177
    %1179 = vrot.lane.b32.xlu0 %v954, 64
    %v1180 = vpop.permute.xlu0 %1179
    %v1197 = vpack.c.bf16 %v898, %v895
    %v1198 = vpack.c.bf16 %v906, %v903
    %v1199 = vpack.c.bf16 %v914, %v911
    %v1200 = vpack.c.bf16 %v922, %v919
    %v1201 = vpack.c.bf16 %v930, %v927
    %v1202 = vpack.c.bf16 %v938, %v935
    %v1203 = vpack.c.bf16 %v946, %v943
    %v1204 = vpack.c.bf16 %v954, %v951
    %v1205 = vpack.c.bf16 %v1152, %v1150
    %v1206 = vpack.c.bf16 %v1156, %v1154
    %v1207 = vpack.c.bf16 %v1160, %v1158
    %v1208 = vpack.c.bf16 %v1164, %v1162
    %v1209 = vpack.c.bf16 %v1168, %v1166
    %v1210 = vpack.c.bf16 %v1172, %v1170
    %v1211 = vpack.c.bf16 %v1176, %v1174
    %v1212 = vpack.c.bf16 %v1180, %v1178
    %vm1213 = vcmask 523264
    %v1215 = vsel %vm1213, %v1037, 0
    %v1218 = vsel %vm1213, %v1038, 0
    %v1221 = vsel %vm1213, %v1039, 0
    %v1224 = vsel %vm1213, %v1040, 0
    %v1227 = vsel %vm1213, %v1117, 0
    %v1230 = vsel %vm1213, %v1118, 0
    %v1233 = vsel %vm1213, %v1119, 0
    %v1236 = vsel %vm1213, %v1120, 0
    %1238 = vmatprep.subr.bf16.mxu0 0
    %1239 = vmatpush1.bf16.xpose.msra.mxu0 %v1227
    %1240 = vmatprep.subr.bf16.mxu0 0
    %1241 = vmatpush1.bf16.xpose.msra.mxu0 %v1230
    %1242 = vmatprep.subr.bf16.mxu0 0
    %1243 = vmatpush1.bf16.xpose.msra.mxu0 %v1233
    %1244 = vmatprep.subr.bf16.mxu0 0
    %1245 = vmatpush1.bf16.xpose.msra.mxu0 %v1236
    %1246 = vmatprep.subr.bf16.mxu0 0
    %1247 = vmatpush1.bf16.xpose.msra.mxu0 0
    %1248 = vmatprep.subr.bf16.mxu0 0
    %1249 = vmatpush1.bf16.xpose.msra.mxu0 0
    %1250 = vmatprep.subr.bf16.mxu0 0
    %1251 = vmatpush1.bf16.xpose.msra.mxu0 0
    %1252 = vmatprep.subr.bf16.mxu0 0
    %1253 = vmatpush1.bf16.xpose.msra.mxu0 0
    %1254 = vmatprep.subr.bf16.mxu0 0
    %1255 = vmatpush1.bf16.xpose.msra.mxu0 0
    %1256 = vmatprep.subr.bf16.mxu0 0
    %1257 = vmatpush1.bf16.xpose.msra.mxu0 0
    %1258 = vmatprep.subr.bf16.mxu0 0
    %1259 = vmatpush1.bf16.xpose.msra.mxu0 0
    %1260 = vmatprep.subr.bf16.mxu0 0
    %1261 = vmatpush1.bf16.xpose.msra.mxu0 0
    %1262 = vmatprep.subr.bf16.mxu0 0
    %1263 = vmatpush1.bf16.xpose.msra.mxu0 0
    %1264 = vmatprep.subr.bf16.mxu0 0
    %1265 = vmatpush1.bf16.xpose.msra.mxu0 0
    %1266 = vmatprep.subr.bf16.mxu0 0
    %1267 = vmatpush1.bf16.xpose.msra.mxu0 0
    %1268 = vmatprep.subr.bf16.mxu0 0
    %1269 = vmatpush1.bf16.xpose.msra.mxu0 0
    %1270 = vmatprep.mubr.bf16.mxu0 0
    %1271 = vmatmul.mubr.bf16.gmra.mrb[0].mxu0 %v1215
    %v1272 = vpop.f32.mrb[0].mxu0
    %v1273 = vadd.f32 %v530, %v1272
    %v1274 = vpop.f32.mrb[0].mxu0
    %v1275 = vpop.f32.mrb[0].mxu0
    %v1276 = vadd.f32 %v531, %v1275
    %v1277 = vpop.f32.mrb[0].mxu0
    %1278 = vmatprep.mubr.bf16.mxu0 0
    %1279 = vmatmul.mubr.bf16.gmra.mrb[0].mxu0 %v1218
    %v1280 = vpop.f32.mrb[0].mxu0
    %v1281 = vadd.f32 %v532, %v1280
    %v1282 = vpop.f32.mrb[0].mxu0
    %v1283 = vpop.f32.mrb[0].mxu0
    %v1284 = vadd.f32 %v533, %v1283
    %v1285 = vpop.f32.mrb[0].mxu0
    %1286 = vmatprep.mubr.bf16.mxu0 0
    %1287 = vmatmul.mubr.bf16.gmra.mrb[0].mxu0 %v1221
    %v1288 = vpop.f32.mrb[0].mxu0
    %v1289 = vadd.f32 %v534, %v1288
    %v1290 = vpop.f32.mrb[0].mxu0
    %v1291 = vpop.f32.mrb[0].mxu0
    %v1292 = vadd.f32 %v535, %v1291
    %v1293 = vpop.f32.mrb[0].mxu0
    %1294 = vmatprep.mubr.bf16.mxu0 0
    %1295 = vmatmul.mubr.bf16.gmra.mrb[0].mxu0 %v1224
    %v1296 = vpop.f32.mrb[0].mxu0
    %v1297 = vadd.f32 %v536, %v1296
    %v1298 = vpop.f32.mrb[0].mxu0
    %v1299 = vpop.f32.mrb[0].mxu0
    %v1300 = vadd.f32 %v537, %v1299
    %v1301 = vpop.f32.mrb[0].mxu0
    %1302 = vdwg.mxu0
    %v1304 = vsel %vm1213, %v1041, 0
    %v1307 = vsel %vm1213, %v1042, 0
    %v1310 = vsel %vm1213, %v1043, 0
    %v1313 = vsel %vm1213, %v1044, 0
    %v1316 = vsel %vm1213, %v1121, 0
    %v1319 = vsel %vm1213, %v1122, 0
    %v1322 = vsel %vm1213, %v1123, 0
    %v1325 = vsel %vm1213, %v1124, 0
    %1327 = vmatprep.subr.bf16.mxu0 0
    %1328 = vmatpush1.bf16.xpose.msra.mxu0 %v1316
    %1329 = vmatprep.subr.bf16.mxu0 0
    %1330 = vmatpush1.bf16.xpose.msra.mxu0 %v1319
    %1331 = vmatprep.subr.bf16.mxu0 0
    %1332 = vmatpush1.bf16.xpose.msra.mxu0 %v1322
    %1333 = vmatprep.subr.bf16.mxu0 0
    %1334 = vmatpush1.bf16.xpose.msra.mxu0 %v1325
    %1335 = vmatprep.subr.bf16.mxu0 0
    %1336 = vmatpush1.bf16.xpose.msra.mxu0 0
    %1337 = vmatprep.subr.bf16.mxu0 0
    %1338 = vmatpush1.bf16.xpose.msra.mxu0 0
    %1339 = vmatprep.subr.bf16.mxu0 0
    %1340 = vmatpush1.bf16.xpose.msra.mxu0 0
    %1341 = vmatprep.subr.bf16.mxu0 0
    %1342 = vmatpush1.bf16.xpose.msra.mxu0 0
    %1343 = vmatprep.subr.bf16.mxu0 0
    %1344 = vmatpush1.bf16.xpose.msra.mxu0 0
    %1345 = vmatprep.subr.bf16.mxu0 0
    %1346 = vmatpush1.bf16.xpose.msra.mxu0 0
    %1347 = vmatprep.subr.bf16.mxu0 0
    %1348 = vmatpush1.bf16.xpose.msra.mxu0 0
    %1349 = vmatprep.subr.bf16.mxu0 0
    %1350 = vmatpush1.bf16.xpose.msra.mxu0 0
    %1351 = vmatprep.subr.bf16.mxu0 0
    %1352 = vmatpush1.bf16.xpose.msra.mxu0 0
    %1353 = vmatprep.subr.bf16.mxu0 0
    %1354 = vmatpush1.bf16.xpose.msra.mxu0 0
    %1355 = vmatprep.subr.bf16.mxu0 0
    %1356 = vmatpush1.bf16.xpose.msra.mxu0 0
    %1357 = vmatprep.subr.bf16.mxu0 0
    %1358 = vmatpush1.bf16.xpose.msra.mxu0 0
    %1359 = vmatprep.mubr.bf16.mxu0 0
    %1360 = vmatmul.mubr.bf16.gmra.mrb[0].mxu0 %v1304
    %v1361 = vpop.f32.mrb[0].mxu0
    %v1362 = vadd.f32 %v538, %v1361
    %v1363 = vpop.f32.mrb[0].mxu0
    %v1364 = vpop.f32.mrb[0].mxu0
    %v1365 = vadd.f32 %v539, %v1364
    %v1366 = vpop.f32.mrb[0].mxu0
    %1367 = vmatprep.mubr.bf16.mxu0 0
    %1368 = vmatmul.mubr.bf16.gmra.mrb[0].mxu0 %v1307
    %v1369 = vpop.f32.mrb[0].mxu0
    %v1370 = vadd.f32 %v540, %v1369
    %v1371 = vpop.f32.mrb[0].mxu0
    %v1372 = vpop.f32.mrb[0].mxu0
    %v1373 = vadd.f32 %v541, %v1372
    %v1374 = vpop.f32.mrb[0].mxu0
    %1375 = vmatprep.mubr.bf16.mxu0 0
    %1376 = vmatmul.mubr.bf16.gmra.mrb[0].mxu0 %v1310
    %v1377 = vpop.f32.mrb[0].mxu0
    %v1378 = vadd.f32 %v542, %v1377
    %v1379 = vpop.f32.mrb[0].mxu0
    %v1380 = vpop.f32.mrb[0].mxu0
    %v1381 = vadd.f32 %v543, %v1380
    %v1382 = vpop.f32.mrb[0].mxu0
    %1383 = vmatprep.mubr.bf16.mxu0 0
    %1384 = vmatmul.mubr.bf16.gmra.mrb[0].mxu0 %v1313
    %v1385 = vpop.f32.mrb[0].mxu0
    %v1386 = vadd.f32 %v544, %v1385
    %v1387 = vpop.f32.mrb[0].mxu0
    %v1388 = vpop.f32.mrb[0].mxu0
    %v1389 = vadd.f32 %v545, %v1388
    %v1390 = vpop.f32.mrb[0].mxu0
    %1391 = vdwg.mxu0
    %v1393 = vsel %vm1213, %v1045, 0
    %v1396 = vsel %vm1213, %v1046, 0
    %v1399 = vsel %vm1213, %v1047, 0
    %v1402 = vsel %vm1213, %v1048, 0
    %v1405 = vsel %vm1213, %v1125, 0
    %v1408 = vsel %vm1213, %v1126, 0
    %v1411 = vsel %vm1213, %v1127, 0
    %v1414 = vsel %vm1213, %v1128, 0
    %1416 = vmatprep.subr.bf16.mxu0 0
    %1417 = vmatpush1.bf16.xpose.msra.mxu0 %v1405
    %1418 = vmatprep.subr.bf16.mxu0 0
    %1419 = vmatpush1.bf16.xpose.msra.mxu0 %v1408
    %1420 = vmatprep.subr.bf16.mxu0 0
    %1421 = vmatpush1.bf16.xpose.msra.mxu0 %v1411
    %1422 = vmatprep.subr.bf16.mxu0 0
    %1423 = vmatpush1.bf16.xpose.msra.mxu0 %v1414
    %1424 = vmatprep.subr.bf16.mxu0 0
    %1425 = vmatpush1.bf16.xpose.msra.mxu0 0
    %1426 = vmatprep.subr.bf16.mxu0 0
    %1427 = vmatpush1.bf16.xpose.msra.mxu0 0
    %1428 = vmatprep.subr.bf16.mxu0 0
    %1429 = vmatpush1.bf16.xpose.msra.mxu0 0
    %1430 = vmatprep.subr.bf16.mxu0 0
    %1431 = vmatpush1.bf16.xpose.msra.mxu0 0
    %1432 = vmatprep.subr.bf16.mxu0 0
    %1433 = vmatpush1.bf16.xpose.msra.mxu0 0
    %1434 = vmatprep.subr.bf16.mxu0 0
    %1435 = vmatpush1.bf16.xpose.msra.mxu0 0
    %1436 = vmatprep.subr.bf16.mxu0 0
    %1437 = vmatpush1.bf16.xpose.msra.mxu0 0
    %1438 = vmatprep.subr.bf16.mxu0 0
    %1439 = vmatpush1.bf16.xpose.msra.mxu0 0
    %1440 = vmatprep.subr.bf16.mxu0 0
    %1441 = vmatpush1.bf16.xpose.msra.mxu0 0
    %1442 = vmatprep.subr.bf16.mxu0 0
    %1443 = vmatpush1.bf16.xpose.msra.mxu0 0
    %1444 = vmatprep.subr.bf16.mxu0 0
    %1445 = vmatpush1.bf16.xpose.msra.mxu0 0
    %1446 = vmatprep.subr.bf16.mxu0 0
    %1447 = vmatpush1.bf16.xpose.msra.mxu0 0
    %1448 = vmatprep.mubr.bf16.mxu0 0
    %1449 = vmatmul.mubr.bf16.gmra.mrb[0].mxu0 %v1393
    %v1450 = vpop.f32.mrb[0].mxu0
    %v1451 = vadd.f32 %v546, %v1450
    %v1452 = vpop.f32.mrb[0].mxu0
    %v1453 = vpop.f32.mrb[0].mxu0
    %v1454 = vadd.f32 %v547, %v1453
    %v1455 = vpop.f32.mrb[0].mxu0
    %1456 = vmatprep.mubr.bf16.mxu0 0
    %1457 = vmatmul.mubr.bf16.gmra.mrb[0].mxu0 %v1396
    %v1458 = vpop.f32.mrb[0].mxu0
    %v1459 = vadd.f32 %v548, %v1458
    %v1460 = vpop.f32.mrb[0].mxu0
    %v1461 = vpop.f32.mrb[0].mxu0
    %v1462 = vadd.f32 %v549, %v1461
    %v1463 = vpop.f32.mrb[0].mxu0
    %1464 = vmatprep.mubr.bf16.mxu0 0
    %1465 = vmatmul.mubr.bf16.gmra.mrb[0].mxu0 %v1399
    %v1466 = vpop.f32.mrb[0].mxu0
    %v1467 = vadd.f32 %v550, %v1466
    %v1468 = vpop.f32.mrb[0].mxu0
    %v1469 = vpop.f32.mrb[0].mxu0
    %v1470 = vadd.f32 %v551, %v1469
    %v1471 = vpop.f32.mrb[0].mxu0
    %1472 = vmatprep.mubr.bf16.mxu0 0
    %1473 = vmatmul.mubr.bf16.gmra.mrb[0].mxu0 %v1402
    %v1474 = vpop.f32.mrb[0].mxu0
    %v1475 = vadd.f32 %v552, %v1474
    %v1476 = vpop.f32.mrb[0].mxu0
    %v1477 = vpop.f32.mrb[0].mxu0
    %v1478 = vadd.f32 %v553, %v1477
    %v1479 = vpop.f32.mrb[0].mxu0
    %1480 = vdwg.mxu0
    %v1482 = vsel %vm1213, %v1049, 0
    %v1485 = vsel %vm1213, %v1050, 0
    %v1488 = vsel %vm1213, %v1051, 0
    %v1491 = vsel %vm1213, %v1052, 0
    %v1494 = vsel %vm1213, %v1129, 0
    %v1497 = vsel %vm1213, %v1130, 0
    %v1500 = vsel %vm1213, %v1131, 0
    %v1503 = vsel %vm1213, %v1132, 0
    %1505 = vmatprep.subr.bf16.mxu0 0
    %1506 = vmatpush1.bf16.xpose.msra.mxu0 %v1494
    %1507 = vmatprep.subr.bf16.mxu0 0
    %1508 = vmatpush1.bf16.xpose.msra.mxu0 %v1497
    %1509 = vmatprep.subr.bf16.mxu0 0
    %1510 = vmatpush1.bf16.xpose.msra.mxu0 %v1500
    %1511 = vmatprep.subr.bf16.mxu0 0
    %1512 = vmatpush1.bf16.xpose.msra.mxu0 %v1503
    %1513 = vmatprep.subr.bf16.mxu0 0
    %1514 = vmatpush1.bf16.xpose.msra.mxu0 0
    %1515 = vmatprep.subr.bf16.mxu0 0
    %1516 = vmatpush1.bf16.xpose.msra.mxu0 0
    %1517 = vmatprep.subr.bf16.mxu0 0
    %1518 = vmatpush1.bf16.xpose.msra.mxu0 0
    %1519 = vmatprep.subr.bf16.mxu0 0
    %1520 = vmatpush1.bf16.xpose.msra.mxu0 0
    %1521 = vmatprep.subr.bf16.mxu0 0
    %1522 = vmatpush1.bf16.xpose.msra.mxu0 0
    %1523 = vmatprep.subr.bf16.mxu0 0
    %1524 = vmatpush1.bf16.xpose.msra.mxu0 0
    %1525 = vmatprep.subr.bf16.mxu0 0
    %1526 = vmatpush1.bf16.xpose.msra.mxu0 0
    %1527 = vmatprep.subr.bf16.mxu0 0
    %1528 = vmatpush1.bf16.xpose.msra.mxu0 0
    %1529 = vmatprep.subr.bf16.mxu0 0
    %1530 = vmatpush1.bf16.xpose.msra.mxu0 0
    %1531 = vmatprep.subr.bf16.mxu0 0
    %1532 = vmatpush1.bf16.xpose.msra.mxu0 0
    %1533 = vmatprep.subr.bf16.mxu0 0
    %1534 = vmatpush1.bf16.xpose.msra.mxu0 0
    %1535 = vmatprep.subr.bf16.mxu0 0
    %1536 = vmatpush1.bf16.xpose.msra.mxu0 0
    %1537 = vmatprep.mubr.bf16.mxu0 0
    %1538 = vmatmul.mubr.bf16.gmra.mrb[0].mxu0 %v1482
    %v1539 = vpop.f32.mrb[0].mxu0
    %v1540 = vadd.f32 %v554, %v1539
    %v1541 = vpop.f32.mrb[0].mxu0
    %v1542 = vpop.f32.mrb[0].mxu0
    %v1543 = vadd.f32 %v555, %v1542
    %v1544 = vpop.f32.mrb[0].mxu0
    %1545 = vmatprep.mubr.bf16.mxu0 0
    %1546 = vmatmul.mubr.bf16.gmra.mrb[0].mxu0 %v1485
    %v1547 = vpop.f32.mrb[0].mxu0
    %v1548 = vadd.f32 %v556, %v1547
    %v1549 = vpop.f32.mrb[0].mxu0
    %v1550 = vpop.f32.mrb[0].mxu0
    %v1551 = vadd.f32 %v557, %v1550
    %v1552 = vpop.f32.mrb[0].mxu0
    %1553 = vmatprep.mubr.bf16.mxu0 0
    %1554 = vmatmul.mubr.bf16.gmra.mrb[0].mxu0 %v1488
    %v1555 = vpop.f32.mrb[0].mxu0
    %v1556 = vadd.f32 %v558, %v1555
    %v1557 = vpop.f32.mrb[0].mxu0
    %v1558 = vpop.f32.mrb[0].mxu0
    %v1559 = vadd.f32 %v559, %v1558
    %v1560 = vpop.f32.mrb[0].mxu0
    %1561 = vmatprep.mubr.bf16.mxu0 0
    %1562 = vmatmul.mubr.bf16.gmra.mrb[0].mxu0 %v1491
    %v1563 = vpop.f32.mrb[0].mxu0
    %v1564 = vadd.f32 %v560, %v1563
    %v1565 = vpop.f32.mrb[0].mxu0
    %v1566 = vpop.f32.mrb[0].mxu0
    %v1567 = vadd.f32 %v561, %v1566
    %v1568 = vpop.f32.mrb[0].mxu0
    %1569 = vdwg.mxu0
    %v1570 = vsel %vm1213, %v1273, -inf
    %1571 = vmax.xlane.f32.xlu0 %v1570
    %v1572 = vpop.xlane.xlu0 %1571
    %v1573 = vsel %vm1213, %v1276, -inf
    %1574 = vmax.xlane.f32.xlu0 %v1573
    %v1575 = vpop.xlane.xlu0 %1574
    %v1576 = vsel %vm1213, %v1281, -inf
    %1577 = vmax.xlane.f32.xlu0 %v1576
    %v1578 = vpop.xlane.xlu0 %1577
    %v1579 = vsel %vm1213, %v1284, -inf
    %1580 = vmax.xlane.f32.xlu0 %v1579
    %v1581 = vpop.xlane.xlu0 %1580
    %v1582 = vsel %vm1213, %v1289, -inf
    %1583 = vmax.xlane.f32.xlu0 %v1582
    %v1584 = vpop.xlane.xlu0 %1583
    %v1585 = vsel %vm1213, %v1292, -inf
    %1586 = vmax.xlane.f32.xlu0 %v1585
    %v1587 = vpop.xlane.xlu0 %1586
    %v1588 = vsel %vm1213, %v1297, -inf
    %1589 = vmax.xlane.f32.xlu0 %v1588
    %v1590 = vpop.xlane.xlu0 %1589
    %v1591 = vsel %vm1213, %v1300, -inf
    %1592 = vmax.xlane.f32.xlu0 %v1591
    %v1593 = vpop.xlane.xlu0 %1592
    %v1594 = vsel %vm1213, %v1362, -inf
    %1595 = vmax.xlane.f32.xlu0 %v1594
    %v1596 = vpop.xlane.xlu0 %1595
    %v1597 = vsel %vm1213, %v1365, -inf
    %1598 = vmax.xlane.f32.xlu0 %v1597
    %v1599 = vpop.xlane.xlu0 %1598
    %v1600 = vsel %vm1213, %v1370, -inf
    %1601 = vmax.xlane.f32.xlu0 %v1600
    %v1602 = vpop.xlane.xlu0 %1601
    %v1603 = vsel %vm1213, %v1373, -inf
    %1604 = vmax.xlane.f32.xlu0 %v1603
    %v1605 = vpop.xlane.xlu0 %1604
    %v1606 = vsel %vm1213, %v1378, -inf
    %1607 = vmax.xlane.f32.xlu0 %v1606
    %v1608 = vpop.xlane.xlu0 %1607
    %v1609 = vsel %vm1213, %v1381, -inf
    %1610 = vmax.xlane.f32.xlu0 %v1609
    %v1611 = vpop.xlane.xlu0 %1610
    %v1612 = vsel %vm1213, %v1386, -inf
    %1613 = vmax.xlane.f32.xlu0 %v1612
    %v1614 = vpop.xlane.xlu0 %1613
    %v1615 = vsel %vm1213, %v1389, -inf
    %1616 = vmax.xlane.f32.xlu0 %v1615
    %v1617 = vpop.xlane.xlu0 %1616
    %v1618 = vsel %vm1213, %v1451, -inf
    %1619 = vmax.xlane.f32.xlu0 %v1618
    %v1620 = vpop.xlane.xlu0 %1619
    %v1621 = vsel %vm1213, %v1454, -inf
    %1622 = vmax.xlane.f32.xlu0 %v1621
    %v1623 = vpop.xlane.xlu0 %1622
    %v1624 = vsel %vm1213, %v1459, -inf
    %1625 = vmax.xlane.f32.xlu0 %v1624
    %v1626 = vpop.xlane.xlu0 %1625
    %v1627 = vsel %vm1213, %v1462, -inf
    %1628 = vmax.xlane.f32.xlu0 %v1627
    %v1629 = vpop.xlane.xlu0 %1628
    %v1630 = vsel %vm1213, %v1467, -inf
    %1631 = vmax.xlane.f32.xlu0 %v1630
    %v1632 = vpop.xlane.xlu0 %1631
    %v1633 = vsel %vm1213, %v1470, -inf
    %1634 = vmax.xlane.f32.xlu0 %v1633
    %v1635 = vpop.xlane.xlu0 %1634
    %v1636 = vsel %vm1213, %v1475, -inf
    %1637 = vmax.xlane.f32.xlu0 %v1636
    %v1638 = vpop.xlane.xlu0 %1637
    %v1639 = vsel %vm1213, %v1478, -inf
    %1640 = vmax.xlane.f32.xlu0 %v1639
    %v1641 = vpop.xlane.xlu0 %1640
    %v1642 = vsel %vm1213, %v1540, -inf
    %1643 = vmax.xlane.f32.xlu0 %v1642
    %v1644 = vpop.xlane.xlu0 %1643
    %v1645 = vsel %vm1213, %v1543, -inf
    %1646 = vmax.xlane.f32.xlu0 %v1645
    %v1647 = vpop.xlane.xlu0 %1646
    %v1648 = vsel %vm1213, %v1548, -inf
    %1649 = vmax.xlane.f32.xlu0 %v1648
    %v1650 = vpop.xlane.xlu0 %1649
    %v1651 = vsel %vm1213, %v1551, -inf
    %1652 = vmax.xlane.f32.xlu0 %v1651
    %v1653 = vpop.xlane.xlu0 %1652
    %v1654 = vsel %vm1213, %v1556, -inf
    %1655 = vmax.xlane.f32.xlu0 %v1654
    %v1656 = vpop.xlane.xlu0 %1655
    %v1657 = vsel %vm1213, %v1559, -inf
    %1658 = vmax.xlane.f32.xlu0 %v1657
    %v1659 = vpop.xlane.xlu0 %1658
    %v1660 = vsel %vm1213, %v1564, -inf
    %1661 = vmax.xlane.f32.xlu0 %v1660
    %v1662 = vpop.xlane.xlu0 %1661
    %v1663 = vsel %vm1213, %v1567, -inf
    %1664 = vmax.xlane.f32.xlu0 %v1663
    %v1665 = vpop.xlane.xlu0 %1664
    %v1666 = vsub.f32 %v1273, %v1572
    %v1667 = vsub.f32 %v1276, %v1575
    %v1668 = vsub.f32 %v1281, %v1578
    %v1669 = vsub.f32 %v1284, %v1581
    %v1670 = vsub.f32 %v1289, %v1584
    %v1671 = vsub.f32 %v1292, %v1587
    %v1672 = vsub.f32 %v1297, %v1590
    %v1673 = vsub.f32 %v1300, %v1593
    %v1674 = vsub.f32 %v1362, %v1596
    %v1675 = vsub.f32 %v1365, %v1599
    %v1676 = vsub.f32 %v1370, %v1602
    %v1677 = vsub.f32 %v1373, %v1605
    %v1678 = vsub.f32 %v1378, %v1608
    %v1679 = vsub.f32 %v1381, %v1611
    %v1680 = vsub.f32 %v1386, %v1614
    %v1681 = vsub.f32 %v1389, %v1617
    %v1682 = vsub.f32 %v1451, %v1620
    %v1683 = vsub.f32 %v1454, %v1623
    %v1684 = vsub.f32 %v1459, %v1626
    %v1685 = vsub.f32 %v1462, %v1629
    %v1686 = vsub.f32 %v1467, %v1632
    %v1687 = vsub.f32 %v1470, %v1635
    %v1688 = vsub.f32 %v1475, %v1638
    %v1689 = vsub.f32 %v1478, %v1641
    %v1690 = vsub.f32 %v1540, %v1644
    %v1691 = vsub.f32 %v1543, %v1647
    %v1692 = vsub.f32 %v1548, %v1650
    %v1693 = vsub.f32 %v1551, %v1653
    %v1694 = vsub.f32 %v1556, %v1656
    %v1695 = vsub.f32 %v1559, %v1659
    %v1696 = vsub.f32 %v1564, %v1662
    %v1697 = vsub.f32 %v1567, %v1665
    %v1698 = vmul.f32 %v1666, 1.442695
    %v1699 = vpow.pop %v1698
    %v1700 = vmul.f32 %v1667, 1.442695
    %v1701 = vpow.pop %v1700
    %v1702 = vmul.f32 %v1668, 1.442695
    %v1703 = vpow.pop %v1702
    %v1704 = vmul.f32 %v1669, 1.442695
    %v1705 = vpow.pop %v1704
    %v1706 = vmul.f32 %v1670, 1.442695
    %v1707 = vpow.pop %v1706
    %v1708 = vmul.f32 %v1671, 1.442695
    %v1709 = vpow.pop %v1708
    %v1710 = vmul.f32 %v1672, 1.442695
    %v1711 = vpow.pop %v1710
    %v1712 = vmul.f32 %v1673, 1.442695
    %v1713 = vpow.pop %v1712
    %v1714 = vmul.f32 %v1674, 1.442695
    %v1715 = vpow.pop %v1714
    %v1716 = vmul.f32 %v1675, 1.442695
    %v1717 = vpow.pop %v1716
    %v1718 = vmul.f32 %v1676, 1.442695
    %v1719 = vpow.pop %v1718
    %v1720 = vmul.f32 %v1677, 1.442695
    %v1721 = vpow.pop %v1720
    %v1722 = vmul.f32 %v1678, 1.442695
    %v1723 = vpow.pop %v1722
    %v1724 = vmul.f32 %v1679, 1.442695
    %v1725 = vpow.pop %v1724
    %v1726 = vmul.f32 %v1680, 1.442695
    %v1727 = vpow.pop %v1726
    %v1728 = vmul.f32 %v1681, 1.442695
    %v1729 = vpow.pop %v1728
    %v1730 = vmul.f32 %v1682, 1.442695
    %v1731 = vpow.pop %v1730
    %v1732 = vmul.f32 %v1683, 1.442695
    %v1733 = vpow.pop %v1732
    %v1734 = vmul.f32 %v1684, 1.442695
    %v1735 = vpow.pop %v1734
    %v1736 = vmul.f32 %v1685, 1.442695
    %v1737 = vpow.pop %v1736
    %v1738 = vmul.f32 %v1686, 1.442695
    %v1739 = vpow.pop %v1738
    %v1740 = vmul.f32 %v1687, 1.442695
    %v1741 = vpow.pop %v1740
    %v1742 = vmul.f32 %v1688, 1.442695
    %v1743 = vpow.pop %v1742
    %v1744 = vmul.f32 %v1689, 1.442695
    %v1745 = vpow.pop %v1744
    %v1746 = vmul.f32 %v1690, 1.442695
    %v1747 = vpow.pop %v1746
    %v1748 = vmul.f32 %v1691, 1.442695
    %v1749 = vpow.pop %v1748
    %v1750 = vmul.f32 %v1692, 1.442695
    %v1751 = vpow.pop %v1750
    %v1752 = vmul.f32 %v1693, 1.442695
    %v1753 = vpow.pop %v1752
    %v1754 = vmul.f32 %v1694, 1.442695
    %v1755 = vpow.pop %v1754
    %v1756 = vmul.f32 %v1695, 1.442695
    %v1757 = vpow.pop %v1756
    %v1758 = vmul.f32 %v1696, 1.442695
    %v1759 = vpow.pop %v1758
    %v1760 = vmul.f32 %v1697, 1.442695
    %v1761 = vpow.pop %v1760
    %v1762 = vsel %vm1213, %v1699, 0.0
    %1763 = vadd.xlane.f32.xlu0 %v1762
    %v1764 = vpop.xlane.xlu0 %1763
    %v1765 = vsel %vm1213, %v1701, 0.0
    %1766 = vadd.xlane.f32.xlu0 %v1765
    %v1767 = vpop.xlane.xlu0 %1766
    %v1768 = vsel %vm1213, %v1703, 0.0
    %1769 = vadd.xlane.f32.xlu0 %v1768
    %v1770 = vpop.xlane.xlu0 %1769
    %v1771 = vsel %vm1213, %v1705, 0.0
    %1772 = vadd.xlane.f32.xlu0 %v1771
    %v1773 = vpop.xlane.xlu0 %1772
    %v1774 = vsel %vm1213, %v1707, 0.0
    %1775 = vadd.xlane.f32.xlu0 %v1774
    %v1776 = vpop.xlane.xlu0 %1775
    %v1777 = vsel %vm1213, %v1709, 0.0
    %1778 = vadd.xlane.f32.xlu0 %v1777
    %v1779 = vpop.xlane.xlu0 %1778
    %v1780 = vsel %vm1213, %v1711, 0.0
    %1781 = vadd.xlane.f32.xlu0 %v1780
    %v1782 = vpop.xlane.xlu0 %1781
    %v1783 = vsel %vm1213, %v1713, 0.0
    %1784 = vadd.xlane.f32.xlu0 %v1783
    %v1785 = vpop.xlane.xlu0 %1784
    %v1786 = vsel %vm1213, %v1715, 0.0
    %1787 = vadd.xlane.f32.xlu0 %v1786
    %v1788 = vpop.xlane.xlu0 %1787
    %v1789 = vsel %vm1213, %v1717, 0.0
    %1790 = vadd.xlane.f32.xlu0 %v1789
    %v1791 = vpop.xlane.xlu0 %1790
    %v1792 = vsel %vm1213, %v1719, 0.0
    %1793 = vadd.xlane.f32.xlu0 %v1792
    %v1794 = vpop.xlane.xlu0 %1793
    %v1795 = vsel %vm1213, %v1721, 0.0
    %1796 = vadd.xlane.f32.xlu0 %v1795
    %v1797 = vpop.xlane.xlu0 %1796
    %v1798 = vsel %vm1213, %v1723, 0.0
    %1799 = vadd.xlane.f32.xlu0 %v1798
    %v1800 = vpop.xlane.xlu0 %1799
    %v1801 = vsel %vm1213, %v1725, 0.0
    %1802 = vadd.xlane.f32.xlu0 %v1801
    %v1803 = vpop.xlane.xlu0 %1802
    %v1804 = vsel %vm1213, %v1727, 0.0
    %1805 = vadd.xlane.f32.xlu0 %v1804
    %v1806 = vpop.xlane.xlu0 %1805
    %v1807 = vsel %vm1213, %v1729, 0.0
    %1808 = vadd.xlane.f32.xlu0 %v1807
    %v1809 = vpop.xlane.xlu0 %1808
    %v1810 = vsel %vm1213, %v1731, 0.0
    %1811 = vadd.xlane.f32.xlu0 %v1810
    %v1812 = vpop.xlane.xlu0 %1811
    %v1813 = vsel %vm1213, %v1733, 0.0
    %1814 = vadd.xlane.f32.xlu0 %v1813
    %v1815 = vpop.xlane.xlu0 %1814
    %v1816 = vsel %vm1213, %v1735, 0.0
    %1817 = vadd.xlane.f32.xlu0 %v1816
    %v1818 = vpop.xlane.xlu0 %1817
    %v1819 = vsel %vm1213, %v1737, 0.0
    %1820 = vadd.xlane.f32.xlu0 %v1819
    %v1821 = vpop.xlane.xlu0 %1820
    %v1822 = vsel %vm1213, %v1739, 0.0
    %1823 = vadd.xlane.f32.xlu0 %v1822
    %v1824 = vpop.xlane.xlu0 %1823
    %v1825 = vsel %vm1213, %v1741, 0.0
    %1826 = vadd.xlane.f32.xlu0 %v1825
    %v1827 = vpop.xlane.xlu0 %1826
    %v1828 = vsel %vm1213, %v1743, 0.0
    %1829 = vadd.xlane.f32.xlu0 %v1828
    %v1830 = vpop.xlane.xlu0 %1829
    %v1831 = vsel %vm1213, %v1745, 0.0
    %1832 = vadd.xlane.f32.xlu0 %v1831
    %v1833 = vpop.xlane.xlu0 %1832
    %v1834 = vsel %vm1213, %v1747, 0.0
    %1835 = vadd.xlane.f32.xlu0 %v1834
    %v1836 = vpop.xlane.xlu0 %1835
    %v1837 = vsel %vm1213, %v1749, 0.0
    %1838 = vadd.xlane.f32.xlu0 %v1837
    %v1839 = vpop.xlane.xlu0 %1838
    %v1840 = vsel %vm1213, %v1751, 0.0
    %1841 = vadd.xlane.f32.xlu0 %v1840
    %v1842 = vpop.xlane.xlu0 %1841
    %v1843 = vsel %vm1213, %v1753, 0.0
    %1844 = vadd.xlane.f32.xlu0 %v1843
    %v1845 = vpop.xlane.xlu0 %1844
    %v1846 = vsel %vm1213, %v1755, 0.0
    %1847 = vadd.xlane.f32.xlu0 %v1846
    %v1848 = vpop.xlane.xlu0 %1847
    %v1849 = vsel %vm1213, %v1757, 0.0
    %1850 = vadd.xlane.f32.xlu0 %v1849
    %v1851 = vpop.xlane.xlu0 %1850
    %v1852 = vsel %vm1213, %v1759, 0.0
    %1853 = vadd.xlane.f32.xlu0 %v1852
    %v1854 = vpop.xlane.xlu0 %1853
    %v1855 = vsel %vm1213, %v1761, 0.0
    %1856 = vadd.xlane.f32.xlu0 %v1855
    %v1857 = vpop.xlane.xlu0 %1856
    %v1858 = vrcp.pop %v1764
    %v1859 = vrcp.pop %v1767
    %v1860 = vrcp.pop %v1770
    %v1861 = vrcp.pop %v1773
    %v1862 = vrcp.pop %v1776
    %v1863 = vrcp.pop %v1779
    %v1864 = vrcp.pop %v1782
    %v1865 = vrcp.pop %v1785
    %v1866 = vrcp.pop %v1788
    %v1867 = vrcp.pop %v1791
    %v1868 = vrcp.pop %v1794
    %v1869 = vrcp.pop %v1797
    %v1870 = vrcp.pop %v1800
    %v1871 = vrcp.pop %v1803
    %v1872 = vrcp.pop %v1806
    %v1873 = vrcp.pop %v1809
    %v1874 = vrcp.pop %v1812
    %v1875 = vrcp.pop %v1815
    %v1876 = vrcp.pop %v1818
    %v1877 = vrcp.pop %v1821
    %v1878 = vrcp.pop %v1824
    %v1879 = vrcp.pop %v1827
    %v1880 = vrcp.pop %v1830
    %v1881 = vrcp.pop %v1833
    %v1882 = vrcp.pop %v1836
    %v1883 = vrcp.pop %v1839
    %v1884 = vrcp.pop %v1842
    %v1885 = vrcp.pop %v1845
    %v1886 = vrcp.pop %v1848
    %v1887 = vrcp.pop %v1851
    %v1888 = vrcp.pop %v1854
    %v1889 = vrcp.pop %v1857
    %v1890 = vmul.f32 %v1699, %v1858
    %v1891 = vmul.f32 %v1701, %v1859
    %v1892 = vmul.f32 %v1703, %v1860
    %v1893 = vmul.f32 %v1705, %v1861
    %v1894 = vmul.f32 %v1707, %v1862
    %v1895 = vmul.f32 %v1709, %v1863
    %v1896 = vmul.f32 %v1711, %v1864
    %v1897 = vmul.f32 %v1713, %v1865
    %v1898 = vmul.f32 %v1715, %v1866
    %v1899 = vmul.f32 %v1717, %v1867
    %v1900 = vmul.f32 %v1719, %v1868
    %v1901 = vmul.f32 %v1721, %v1869
    %v1902 = vmul.f32 %v1723, %v1870
    %v1903 = vmul.f32 %v1725, %v1871
    %v1904 = vmul.f32 %v1727, %v1872
    %v1905 = vmul.f32 %v1729, %v1873
    %v1906 = vmul.f32 %v1731, %v1874
    %v1907 = vmul.f32 %v1733, %v1875
    %v1908 = vmul.f32 %v1735, %v1876
    %v1909 = vmul.f32 %v1737, %v1877
    %v1910 = vmul.f32 %v1739, %v1878
    %v1911 = vmul.f32 %v1741, %v1879
    %v1912 = vmul.f32 %v1743, %v1880
    %v1913 = vmul.f32 %v1745, %v1881
    %v1914 = vmul.f32 %v1747, %v1882
    %v1915 = vmul.f32 %v1749, %v1883
    %v1916 = vmul.f32 %v1751, %v1884
    %v1917 = vmul.f32 %v1753, %v1885
    %v1918 = vmul.f32 %v1755, %v1886
    %v1919 = vmul.f32 %v1757, %v1887
    %v1920 = vmul.f32 %v1759, %v1888
    %v1921 = vmul.f32 %v1761, %v1889
    %v1922 = vpack.c.bf16 %v1891, %v1890
    %v1923 = vpack.c.bf16 %v1893, %v1892
    %v1924 = vpack.c.bf16 %v1895, %v1894
    %v1925 = vpack.c.bf16 %v1897, %v1896
    %v1926 = vpack.c.bf16 %v1899, %v1898
    %v1927 = vpack.c.bf16 %v1901, %v1900
    %v1928 = vpack.c.bf16 %v1903, %v1902
    %v1929 = vpack.c.bf16 %v1905, %v1904
    %v1930 = vpack.c.bf16 %v1907, %v1906
    %v1931 = vpack.c.bf16 %v1909, %v1908
    %v1932 = vpack.c.bf16 %v1911, %v1910
    %v1933 = vpack.c.bf16 %v1913, %v1912
    %v1934 = vpack.c.bf16 %v1915, %v1914
    %v1935 = vpack.c.bf16 %v1917, %v1916
    %v1936 = vpack.c.bf16 %v1919, %v1918
    %v1937 = vpack.c.bf16 %v1921, %v1920
    %v1939 = vsel %vm1213, %v1922, 0
    %v1942 = vsel %vm1213, %v1923, 0
    %v1945 = vsel %vm1213, %v1924, 0
    %v1948 = vsel %vm1213, %v1925, 0
    %1950 = vmatprep.subr.bf16.mxu0 0
    %1951 = vmatpush1.bf16.msra.mxu0 %v1197
    %1952 = vmatprep.subr.bf16.mxu0 0
    %1953 = vmatpush1.bf16.msra.mxu0 %v1198
    %1954 = vmatprep.subr.bf16.mxu0 0
    %1955 = vmatpush1.bf16.msra.mxu0 %v1199
    %1956 = vmatprep.subr.bf16.mxu0 0
    %1957 = vmatpush1.bf16.msra.mxu0 %v1200
    %1958 = vmatprep.subr.bf16.mxu0 0
    %1959 = vmatpush1.bf16.msra.mxu0 0
    %1960 = vmatprep.subr.bf16.mxu0 0
    %1961 = vmatpush1.bf16.msra.mxu0 0
    %1962 = vmatprep.subr.bf16.mxu0 0
    %1963 = vmatpush1.bf16.msra.mxu0 0
    %1964 = vmatprep.subr.bf16.mxu0 0
    %1965 = vmatpush1.bf16.msra.mxu0 0
    %1966 = vmatprep.subr.bf16.mxu0 0
    %1967 = vmatpush1.bf16.msra.mxu0 0
    %1968 = vmatprep.subr.bf16.mxu0 0
    %1969 = vmatpush1.bf16.msra.mxu0 0
    %1970 = vmatprep.subr.bf16.mxu0 0
    %1971 = vmatpush1.bf16.msra.mxu0 0
    %1972 = vmatprep.subr.bf16.mxu0 0
    %1973 = vmatpush1.bf16.msra.mxu0 0
    %1974 = vmatprep.subr.bf16.mxu0 0
    %1975 = vmatpush1.bf16.msra.mxu0 0
    %1976 = vmatprep.subr.bf16.mxu0 0
    %1977 = vmatpush1.bf16.msra.mxu0 0
    %1978 = vmatprep.subr.bf16.mxu0 0
    %1979 = vmatpush1.bf16.msra.mxu0 0
    %1980 = vmatprep.subr.bf16.mxu0 0
    %1981 = vmatpush1.bf16.msra.mxu0 0
    %1982 = vmatprep.mubr.bf16.mxu0 0
    %1983 = vmatmul.mubr.bf16.gmra.mrb[0].mxu0 %v1939
    %v1984 = vpop.f32.mrb[0].mxu0
    %v1985 = vadd.f32 0.0, %v1984
    %v1986 = vpop.f32.mrb[0].mxu0
    %v1987 = vpop.f32.mrb[0].mxu0
    %v1988 = vadd.f32 0.0, %v1987
    %v1989 = vpop.f32.mrb[0].mxu0
    %1990 = vmatprep.mubr.bf16.mxu0 0
    %1991 = vmatmul.mubr.bf16.gmra.mrb[0].mxu0 %v1942
    %v1992 = vpop.f32.mrb[0].mxu0
    %v1993 = vadd.f32 0.0, %v1992
    %v1994 = vpop.f32.mrb[0].mxu0
    %v1995 = vpop.f32.mrb[0].mxu0
    %v1996 = vadd.f32 0.0, %v1995
    %v1997 = vpop.f32.mrb[0].mxu0
    %1998 = vmatprep.mubr.bf16.mxu0 0
    %1999 = vmatmul.mubr.bf16.gmra.mrb[0].mxu0 %v1945
    %v2000 = vpop.f32.mrb[0].mxu0
    %v2001 = vadd.f32 0.0, %v2000
    %v2002 = vpop.f32.mrb[0].mxu0
    %v2003 = vpop.f32.mrb[0].mxu0
    %v2004 = vadd.f32 0.0, %v2003
    %v2005 = vpop.f32.mrb[0].mxu0
    %2006 = vmatprep.mubr.bf16.mxu0 0
    %2007 = vmatmul.mubr.bf16.gmra.mrb[0].mxu0 %v1948
    %v2008 = vpop.f32.mrb[0].mxu0
    %v2009 = vadd.f32 0.0, %v2008
    %v2010 = vpop.f32.mrb[0].mxu0
    %v2011 = vpop.f32.mrb[0].mxu0
    %v2012 = vadd.f32 0.0, %v2011
    %v2013 = vpop.f32.mrb[0].mxu0
    %2014 = vdwg.mxu0
    %v2016 = vsel %vm1213, %v1926, 0
    %v2019 = vsel %vm1213, %v1927, 0
    %v2022 = vsel %vm1213, %v1928, 0
    %v2025 = vsel %vm1213, %v1929, 0
    %2027 = vmatprep.subr.bf16.mxu0 0
    %2028 = vmatpush1.bf16.msra.mxu0 %v1201
    %2029 = vmatprep.subr.bf16.mxu0 0
    %2030 = vmatpush1.bf16.msra.mxu0 %v1202
    %2031 = vmatprep.subr.bf16.mxu0 0
    %2032 = vmatpush1.bf16.msra.mxu0 %v1203
    %2033 = vmatprep.subr.bf16.mxu0 0
    %2034 = vmatpush1.bf16.msra.mxu0 %v1204
    %2035 = vmatprep.subr.bf16.mxu0 0
    %2036 = vmatpush1.bf16.msra.mxu0 0
    %2037 = vmatprep.subr.bf16.mxu0 0
    %2038 = vmatpush1.bf16.msra.mxu0 0
    %2039 = vmatprep.subr.bf16.mxu0 0
    %2040 = vmatpush1.bf16.msra.mxu0 0
    %2041 = vmatprep.subr.bf16.mxu0 0
    %2042 = vmatpush1.bf16.msra.mxu0 0
    %2043 = vmatprep.subr.bf16.mxu0 0
    %2044 = vmatpush1.bf16.msra.mxu0 0
    %2045 = vmatprep.subr.bf16.mxu0 0
    %2046 = vmatpush1.bf16.msra.mxu0 0
    %2047 = vmatprep.subr.bf16.mxu0 0
    %2048 = vmatpush1.bf16.msra.mxu0 0
    %2049 = vmatprep.subr.bf16.mxu0 0
    %2050 = vmatpush1.bf16.msra.mxu0 0
    %2051 = vmatprep.subr.bf16.mxu0 0
    %2052 = vmatpush1.bf16.msra.mxu0 0
    %2053 = vmatprep.subr.bf16.mxu0 0
    %2054 = vmatpush1.bf16.msra.mxu0 0
    %2055 = vmatprep.subr.bf16.mxu0 0
    %2056 = vmatpush1.bf16.msra.mxu0 0
    %2057 = vmatprep.subr.bf16.mxu0 0
    %2058 = vmatpush1.bf16.msra.mxu0 0
    %2059 = vmatprep.mubr.bf16.mxu0 0
    %2060 = vmatmul.mubr.bf16.gmra.mrb[0].mxu0 %v2016
    %v2061 = vpop.f32.mrb[0].mxu0
    %v2062 = vadd.f32 0.0, %v2061
    %v2063 = vpop.f32.mrb[0].mxu0
    %v2064 = vpop.f32.mrb[0].mxu0
    %v2065 = vadd.f32 0.0, %v2064
    %v2066 = vpop.f32.mrb[0].mxu0
    %2067 = vmatprep.mubr.bf16.mxu0 0
    %2068 = vmatmul.mubr.bf16.gmra.mrb[0].mxu0 %v2019
    %v2069 = vpop.f32.mrb[0].mxu0
    %v2070 = vadd.f32 0.0, %v2069
    %v2071 = vpop.f32.mrb[0].mxu0
    %v2072 = vpop.f32.mrb[0].mxu0
    %v2073 = vadd.f32 0.0, %v2072
    %v2074 = vpop.f32.mrb[0].mxu0
    %2075 = vmatprep.mubr.bf16.mxu0 0
    %2076 = vmatmul.mubr.bf16.gmra.mrb[0].mxu0 %v2022
    %v2077 = vpop.f32.mrb[0].mxu0
    %v2078 = vadd.f32 0.0, %v2077
    %v2079 = vpop.f32.mrb[0].mxu0
    %v2080 = vpop.f32.mrb[0].mxu0
    %v2081 = vadd.f32 0.0, %v2080
    %v2082 = vpop.f32.mrb[0].mxu0
    %2083 = vmatprep.mubr.bf16.mxu0 0
    %2084 = vmatmul.mubr.bf16.gmra.mrb[0].mxu0 %v2025
    %v2085 = vpop.f32.mrb[0].mxu0
    %v2086 = vadd.f32 0.0, %v2085
    %v2087 = vpop.f32.mrb[0].mxu0
    %v2088 = vpop.f32.mrb[0].mxu0
    %v2089 = vadd.f32 0.0, %v2088
    %v2090 = vpop.f32.mrb[0].mxu0
    %2091 = vdwg.mxu0
    %v2093 = vsel %vm1213, %v1930, 0
    %v2096 = vsel %vm1213, %v1931, 0
    %v2099 = vsel %vm1213, %v1932, 0
    %v2102 = vsel %vm1213, %v1933, 0
    %2104 = vmatprep.subr.bf16.mxu0 0
    %2105 = vmatpush1.bf16.msra.mxu0 %v1205
    %2106 = vmatprep.subr.bf16.mxu0 0
    %2107 = vmatpush1.bf16.msra.mxu0 %v1206
    %2108 = vmatprep.subr.bf16.mxu0 0
    %2109 = vmatpush1.bf16.msra.mxu0 %v1207
    %2110 = vmatprep.subr.bf16.mxu0 0
    %2111 = vmatpush1.bf16.msra.mxu0 %v1208
    %2112 = vmatprep.subr.bf16.mxu0 0
    %2113 = vmatpush1.bf16.msra.mxu0 0
    %2114 = vmatprep.subr.bf16.mxu0 0
    %2115 = vmatpush1.bf16.msra.mxu0 0
    %2116 = vmatprep.subr.bf16.mxu0 0
    %2117 = vmatpush1.bf16.msra.mxu0 0
    %2118 = vmatprep.subr.bf16.mxu0 0
    %2119 = vmatpush1.bf16.msra.mxu0 0
    %2120 = vmatprep.subr.bf16.mxu0 0
    %2121 = vmatpush1.bf16.msra.mxu0 0
    %2122 = vmatprep.subr.bf16.mxu0 0
    %2123 = vmatpush1.bf16.msra.mxu0 0
    %2124 = vmatprep.subr.bf16.mxu0 0
    %2125 = vmatpush1.bf16.msra.mxu0 0
    %2126 = vmatprep.subr.bf16.mxu0 0
    %2127 = vmatpush1.bf16.msra.mxu0 0
    %2128 = vmatprep.subr.bf16.mxu0 0
    %2129 = vmatpush1.bf16.msra.mxu0 0
    %2130 = vmatprep.subr.bf16.mxu0 0
    %2131 = vmatpush1.bf16.msra.mxu0 0
    %2132 = vmatprep.subr.bf16.mxu0 0
    %2133 = vmatpush1.bf16.msra.mxu0 0
    %2134 = vmatprep.subr.bf16.mxu0 0
    %2135 = vmatpush1.bf16.msra.mxu0 0
    %2136 = vmatprep.mubr.bf16.mxu0 0
    %2137 = vmatmul.mubr.bf16.gmra.mrb[0].mxu0 %v2093
    %v2138 = vpop.f32.mrb[0].mxu0
    %v2139 = vadd.f32 0.0, %v2138
    %v2140 = vpop.f32.mrb[0].mxu0
    %v2141 = vpop.f32.mrb[0].mxu0
    %v2142 = vadd.f32 0.0, %v2141
    %v2143 = vpop.f32.mrb[0].mxu0
    %2144 = vmatprep.mubr.bf16.mxu0 0
    %2145 = vmatmul.mubr.bf16.gmra.mrb[0].mxu0 %v2096
    %v2146 = vpop.f32.mrb[0].mxu0
    %v2147 = vadd.f32 0.0, %v2146
    %v2148 = vpop.f32.mrb[0].mxu0
    %v2149 = vpop.f32.mrb[0].mxu0
    %v2150 = vadd.f32 0.0, %v2149
    %v2151 = vpop.f32.mrb[0].mxu0
    %2152 = vmatprep.mubr.bf16.mxu0 0
    %2153 = vmatmul.mubr.bf16.gmra.mrb[0].mxu0 %v2099
    %v2154 = vpop.f32.mrb[0].mxu0
    %v2155 = vadd.f32 0.0, %v2154
    %v2156 = vpop.f32.mrb[0].mxu0
    %v2157 = vpop.f32.mrb[0].mxu0
    %v2158 = vadd.f32 0.0, %v2157
    %v2159 = vpop.f32.mrb[0].mxu0
    %2160 = vmatprep.mubr.bf16.mxu0 0
    %2161 = vmatmul.mubr.bf16.gmra.mrb[0].mxu0 %v2102
    %v2162 = vpop.f32.mrb[0].mxu0
    %v2163 = vadd.f32 0.0, %v2162
    %v2164 = vpop.f32.mrb[0].mxu0
    %v2165 = vpop.f32.mrb[0].mxu0
    %v2166 = vadd.f32 0.0, %v2165
    %v2167 = vpop.f32.mrb[0].mxu0
    %2168 = vdwg.mxu0
    %v2170 = vsel %vm1213, %v1934, 0
    %v2173 = vsel %vm1213, %v1935, 0
    %v2176 = vsel %vm1213, %v1936, 0
    %v2179 = vsel %vm1213, %v1937, 0
    %2181 = vmatprep.subr.bf16.mxu0 0
    %2182 = vmatpush1.bf16.msra.mxu0 %v1209
    %2183 = vmatprep.subr.bf16.mxu0 0
    %2184 = vmatpush1.bf16.msra.mxu0 %v1210
    %2185 = vmatprep.subr.bf16.mxu0 0
    %2186 = vmatpush1.bf16.msra.mxu0 %v1211
    %2187 = vmatprep.subr.bf16.mxu0 0
    %2188 = vmatpush1.bf16.msra.mxu0 %v1212
    %2189 = vmatprep.subr.bf16.mxu0 0
    %2190 = vmatpush1.bf16.msra.mxu0 0
    %2191 = vmatprep.subr.bf16.mxu0 0
    %2192 = vmatpush1.bf16.msra.mxu0 0
    %2193 = vmatprep.subr.bf16.mxu0 0
    %2194 = vmatpush1.bf16.msra.mxu0 0
    %2195 = vmatprep.subr.bf16.mxu0 0
    %2196 = vmatpush1.bf16.msra.mxu0 0
    %2197 = vmatprep.subr.bf16.mxu0 0
    %2198 = vmatpush1.bf16.msra.mxu0 0
    %2199 = vmatprep.subr.bf16.mxu0 0
    %2200 = vmatpush1.bf16.msra.mxu0 0
    %2201 = vmatprep.subr.bf16.mxu0 0
    %2202 = vmatpush1.bf16.msra.mxu0 0
    %2203 = vmatprep.subr.bf16.mxu0 0
    %2204 = vmatpush1.bf16.msra.mxu0 0
    %2205 = vmatprep.subr.bf16.mxu0 0
    %2206 = vmatpush1.bf16.msra.mxu0 0
    %2207 = vmatprep.subr.bf16.mxu0 0
    %2208 = vmatpush1.bf16.msra.mxu0 0
    %2209 = vmatprep.subr.bf16.mxu0 0
    %2210 = vmatpush1.bf16.msra.mxu0 0
    %2211 = vmatprep.subr.bf16.mxu0 0
    %2212 = vmatpush1.bf16.msra.mxu0 0
    %2213 = vmatprep.mubr.bf16.mxu0 0
    %2214 = vmatmul.mubr.bf16.gmra.mrb[0].mxu0 %v2170
    %v2215 = vpop.f32.mrb[0].mxu0
    %v2216 = vadd.f32 0.0, %v2215
    %v2217 = vpop.f32.mrb[0].mxu0
    %v2218 = vpop.f32.mrb[0].mxu0
    %v2219 = vadd.f32 0.0, %v2218
    %v2220 = vpop.f32.mrb[0].mxu0
    %2221 = vmatprep.mubr.bf16.mxu0 0
    %2222 = vmatmul.mubr.bf16.gmra.mrb[0].mxu0 %v2173
    %v2223 = vpop.f32.mrb[0].mxu0
    %v2224 = vadd.f32 0.0, %v2223
    %v2225 = vpop.f32.mrb[0].mxu0
    %v2226 = vpop.f32.mrb[0].mxu0
    %v2227 = vadd.f32 0.0, %v2226
    %v2228 = vpop.f32.mrb[0].mxu0
    %2229 = vmatprep.mubr.bf16.mxu0 0
    %2230 = vmatmul.mubr.bf16.gmra.mrb[0].mxu0 %v2176
    %v2231 = vpop.f32.mrb[0].mxu0
    %v2232 = vadd.f32 0.0, %v2231
    %v2233 = vpop.f32.mrb[0].mxu0
    %v2234 = vpop.f32.mrb[0].mxu0
    %v2235 = vadd.f32 0.0, %v2234
    %v2236 = vpop.f32.mrb[0].mxu0
    %2237 = vmatprep.mubr.bf16.mxu0 0
    %2238 = vmatmul.mubr.bf16.gmra.mrb[0].mxu0 %v2179
    %v2239 = vpop.f32.mrb[0].mxu0
    %v2240 = vadd.f32 0.0, %v2239
    %v2241 = vpop.f32.mrb[0].mxu0
    %v2242 = vpop.f32.mrb[0].mxu0
    %v2243 = vadd.f32 0.0, %v2242
    %v2244 = vpop.f32.mrb[0].mxu0
    %2245 = vdwg.mxu0
    %2262 = vrot.lane.b32.xlu0 %v2139, 64
    %v2263 = vpop.permute.xlu0 %2262
    %2264 = vrot.lane.b32.xlu0 %v2142, 64
    %v2265 = vpop.permute.xlu0 %2264
    %2266 = vrot.lane.b32.xlu0 %v2147, 64
    %v2267 = vpop.permute.xlu0 %2266
    %2268 = vrot.lane.b32.xlu0 %v2150, 64
    %v2269 = vpop.permute.xlu0 %2268
    %2270 = vrot.lane.b32.xlu0 %v2155, 64
    %v2271 = vpop.permute.xlu0 %2270
    %2272 = vrot.lane.b32.xlu0 %v2158, 64
    %v2273 = vpop.permute.xlu0 %2272
    %2274 = vrot.lane.b32.xlu0 %v2163, 64
    %v2275 = vpop.permute.xlu0 %2274
    %2276 = vrot.lane.b32.xlu0 %v2166, 64
    %v2277 = vpop.permute.xlu0 %2276
    %2278 = vrot.lane.b32.xlu0 %v2216, 64
    %v2279 = vpop.permute.xlu0 %2278
    %2280 = vrot.lane.b32.xlu0 %v2219, 64
    %v2281 = vpop.permute.xlu0 %2280
    %2282 = vrot.lane.b32.xlu0 %v2224, 64
    %v2283 = vpop.permute.xlu0 %2282
    %2284 = vrot.lane.b32.xlu0 %v2227, 64
    %v2285 = vpop.permute.xlu0 %2284
    %2286 = vrot.lane.b32.xlu0 %v2232, 64
    %v2287 = vpop.permute.xlu0 %2286
    %2288 = vrot.lane.b32.xlu0 %v2235, 64
    %v2289 = vpop.permute.xlu0 %2288
    %2290 = vrot.lane.b32.xlu0 %v2240, 64
    %v2291 = vpop.permute.xlu0 %2290
    %2292 = vrot.lane.b32.xlu0 %v2243, 64
    %v2293 = vpop.permute.xlu0 %2292
    %v2310 = vsel %vm1213, %v1985, %v2263
    %v2311 = vsel %vm1213, %v1988, %v2265
    %v2312 = vsel %vm1213, %v1993, %v2267
    %v2313 = vsel %vm1213, %v1996, %v2269
    %v2314 = vsel %vm1213, %v2001, %v2271
    %v2315 = vsel %vm1213, %v2004, %v2273
    %v2316 = vsel %vm1213, %v2009, %v2275
    %v2317 = vsel %vm1213, %v2012, %v2277
    %v2318 = vsel %vm1213, %v2062, %v2279
    %v2319 = vsel %vm1213, %v2065, %v2281
    %v2320 = vsel %vm1213, %v2070, %v2283
    %v2321 = vsel %vm1213, %v2073, %v2285
    %v2322 = vsel %vm1213, %v2078, %v2287
    %v2323 = vsel %vm1213, %v2081, %v2289
    %v2324 = vsel %vm1213, %v2086, %v2291
    %v2325 = vsel %vm1213, %v2089, %v2293
    %v2326 = vpack.c.bf16 %v2311, %v2310
    %v2327 = vpack.c.bf16 %v2313, %v2312
    %v2328 = vpack.c.bf16 %v2315, %v2314
    %v2329 = vpack.c.bf16 %v2317, %v2316
    %v2330 = vpack.c.bf16 %v2319, %v2318
    %v2331 = vpack.c.bf16 %v2321, %v2320
    %v2332 = vpack.c.bf16 %v2323, %v2322
    %v2333 = vpack.c.bf16 %v2325, %v2324
    %v2334 = vld [vmem:[#allocation13] sm:$0xf]
    %v2335 = vld [vmem:[#allocation13 + $0x4] sm:$0xf]
    %v2336 = vld [vmem:[#allocation13 + $0x8] sm:$0xf]
    %v2337 = vld [vmem:[#allocation13 + $0xc] sm:$0xf]
    %v2338 = vld [vmem:[#allocation13 + $0x10] sm:$0xf]
    %v2339 = vld [vmem:[#allocation13 + $0x14] sm:$0xf]
    %v2340 = vld [vmem:[#allocation13 + $0x18] sm:$0xf]
    %v2341 = vld [vmem:[#allocation13 + $0x1c] sm:$0xf]
    %v2342 = vld [vmem:[#allocation13 + $0x20] sm:$0xf]
    %v2343 = vld [vmem:[#allocation13 + $0x24] sm:$0xf]
    %v2344 = vld [vmem:[#allocation13 + $0x28] sm:$0xf]
    %v2345 = vld [vmem:[#allocation13 + $0x2c] sm:$0xf]
    %v2346 = vld [vmem:[#allocation13 + $0x30] sm:$0xf]
    %v2347 = vld [vmem:[#allocation13 + $0x34] sm:$0xf]
    %v2348 = vld [vmem:[#allocation13 + $0x38] sm:$0xf]
    %v2349 = vld [vmem:[#allocation13 + $0x3c] sm:$0xf]
    %v2350 = vld [vmem:[#allocation14] sm:$0x1]
    %v2352 = vlaneseq
    %v2353 = vshrl.u32 %v2352, 7
    %v2354 = vsub.s32 0, %v2353
    %v2355 = vrot.slane %v2350, %v2354
    %v2373 = vunpack.c.l.b16 %v2334
    %v2374 = vunpack.c.l.b16 %v2335
    %v2375 = vunpack.c.l.b16 %v2336
    %v2376 = vunpack.c.l.b16 %v2337
    %v2377 = vunpack.c.l.b16 %v2338
    %v2378 = vunpack.c.l.b16 %v2339
    %v2379 = vunpack.c.l.b16 %v2340
    %v2380 = vunpack.c.l.b16 %v2341
    %v2381 = vunpack.c.l.b16 %v2342
    %v2382 = vunpack.c.l.b16 %v2343
    %v2383 = vunpack.c.l.b16 %v2344
    %v2384 = vunpack.c.l.b16 %v2345
    %v2385 = vunpack.c.l.b16 %v2346
    %v2386 = vunpack.c.l.b16 %v2347
    %v2387 = vunpack.c.l.b16 %v2348
    %v2388 = vunpack.c.l.b16 %v2349
    %v2389 = vpack.c.b16 %v2374, %v2373
    %v2390 = vpack.c.b16 %v2376, %v2375
    %v2391 = vpack.c.b16 %v2378, %v2377
    %v2392 = vpack.c.b16 %v2380, %v2379
    %v2393 = vpack.c.b16 %v2382, %v2381
    %v2394 = vpack.c.b16 %v2384, %v2383
    %v2395 = vpack.c.b16 %v2386, %v2385
    %v2396 = vpack.c.b16 %v2388, %v2387
    %2405 = vmatprep.subr.bf16.mxu0 0
    %2406 = vmatpush1.bf16.msra.mxu0 %v2389
    %2407 = vmatprep.subr.bf16.mxu0 0
    %2408 = vmatpush1.bf16.msra.mxu0 %v2390
    %2409 = vmatprep.subr.bf16.mxu0 0
    %2410 = vmatpush1.bf16.msra.mxu0 %v2391
    %2411 = vmatprep.subr.bf16.mxu0 0
    %2412 = vmatpush1.bf16.msra.mxu0 %v2392
    %2413 = vmatprep.subr.bf16.mxu0 0
    %2414 = vmatpush1.bf16.msra.mxu0 %v2393
    %2415 = vmatprep.subr.bf16.mxu0 0
    %2416 = vmatpush1.bf16.msra.mxu0 %v2394
    %2417 = vmatprep.subr.bf16.mxu0 0
    %2418 = vmatpush1.bf16.msra.mxu0 %v2395
    %2419 = vmatprep.subr.bf16.mxu0 0
    %2420 = vmatpush1.bf16.msra.mxu0 %v2396
    %2421 = vmatprep.subr.bf16.mxu0 0
    %2422 = vmatpush1.bf16.msra.mxu0 0
    %2423 = vmatprep.subr.bf16.mxu0 0
    %2424 = vmatpush1.bf16.msra.mxu0 0
    %2425 = vmatprep.subr.bf16.mxu0 0
    %2426 = vmatpush1.bf16.msra.mxu0 0
    %2427 = vmatprep.subr.bf16.mxu0 0
    %2428 = vmatpush1.bf16.msra.mxu0 0
    %2429 = vmatprep.subr.bf16.mxu0 0
    %2430 = vmatpush1.bf16.msra.mxu0 0
    %2431 = vmatprep.subr.bf16.mxu0 0
    %2432 = vmatpush1.bf16.msra.mxu0 0
    %2433 = vmatprep.subr.bf16.mxu0 0
    %2434 = vmatpush1.bf16.msra.mxu0 0
    %2435 = vmatprep.subr.bf16.mxu0 0
    %2436 = vmatpush1.bf16.msra.mxu0 0
    %2437 = vmatprep.mubr.bf16.mxu0 0
    %2438 = vmatmul.mubr.bf16.gmra.mrb[0].mxu0 %v2326
    %v2439 = vpop.f32.mrb[0].mxu0
    %v2440 = vadd.f32 %v2355, %v2439
    %v2441 = vpop.f32.mrb[0].mxu0
    %v2442 = vpop.f32.mrb[0].mxu0
    %v2443 = vadd.f32 %v2355, %v2442
    %v2444 = vpop.f32.mrb[0].mxu0
    %2445 = vmatprep.mubr.bf16.mxu0 0
    %2446 = vmatmul.mubr.bf16.gmra.mrb[0].mxu0 %v2327
    %v2447 = vpop.f32.mrb[0].mxu0
    %v2448 = vadd.f32 %v2355, %v2447
    %v2449 = vpop.f32.mrb[0].mxu0
    %v2450 = vpop.f32.mrb[0].mxu0
    %v2451 = vadd.f32 %v2355, %v2450
    %v2452 = vpop.f32.mrb[0].mxu0
    %2453 = vmatprep.mubr.bf16.mxu0 0
    %2454 = vmatmul.mubr.bf16.gmra.mrb[0].mxu0 %v2328
    %v2455 = vpop.f32.mrb[0].mxu0
    %v2456 = vadd.f32 %v2355, %v2455
    %v2457 = vpop.f32.mrb[0].mxu0
    %v2458 = vpop.f32.mrb[0].mxu0
    %v2459 = vadd.f32 %v2355, %v2458
    %v2460 = vpop.f32.mrb[0].mxu0
    %2461 = vmatprep.mubr.bf16.mxu0 0
    %2462 = vmatmul.mubr.bf16.gmra.mrb[0].mxu0 %v2329
    %v2463 = vpop.f32.mrb[0].mxu0
    %v2464 = vadd.f32 %v2355, %v2463
    %v2465 = vpop.f32.mrb[0].mxu0
    %v2466 = vpop.f32.mrb[0].mxu0
    %v2467 = vadd.f32 %v2355, %v2466
    %v2468 = vpop.f32.mrb[0].mxu0
    %2469 = vmatprep.mubr.bf16.mxu0 0
    %2470 = vmatmul.mubr.bf16.gmra.mrb[0].mxu0 %v2330
    %v2471 = vpop.f32.mrb[0].mxu0
    %v2472 = vadd.f32 %v2355, %v2471
    %v2473 = vpop.f32.mrb[0].mxu0
    %v2474 = vpop.f32.mrb[0].mxu0
    %v2475 = vadd.f32 %v2355, %v2474
    %v2476 = vpop.f32.mrb[0].mxu0
    %2477 = vmatprep.mubr.bf16.mxu0 0
    %2478 = vmatmul.mubr.bf16.gmra.mrb[0].mxu0 %v2331
    %v2479 = vpop.f32.mrb[0].mxu0
    %v2480 = vadd.f32 %v2355, %v2479
    %v2481 = vpop.f32.mrb[0].mxu0
    %v2482 = vpop.f32.mrb[0].mxu0
    %v2483 = vadd.f32 %v2355, %v2482
    %v2484 = vpop.f32.mrb[0].mxu0
    %2485 = vmatprep.mubr.bf16.mxu0 0
    %2486 = vmatmul.mubr.bf16.gmra.mrb[0].mxu0 %v2332
    %v2487 = vpop.f32.mrb[0].mxu0
    %v2488 = vadd.f32 %v2355, %v2487
    %v2489 = vpop.f32.mrb[0].mxu0
    %v2490 = vpop.f32.mrb[0].mxu0
    %v2491 = vadd.f32 %v2355, %v2490
    %v2492 = vpop.f32.mrb[0].mxu0
    %2493 = vmatprep.mubr.bf16.mxu0 0
    %2494 = vmatmul.mubr.bf16.gmra.mrb[0].mxu0 %v2333
    %v2495 = vpop.f32.mrb[0].mxu0
    %v2496 = vadd.f32 %v2355, %v2495
    %v2497 = vpop.f32.mrb[0].mxu0
    %v2498 = vpop.f32.mrb[0].mxu0
    %v2499 = vadd.f32 %v2355, %v2498
    %v2500 = vpop.f32.mrb[0].mxu0
    %2501 = vdwg.mxu0
    %v2502 = vadd.f32 %v2440, %v514
    %v2503 = vadd.f32 %v2443, %v515
    %v2504 = vadd.f32 %v2448, %v516
    %v2505 = vadd.f32 %v2451, %v517
    %v2506 = vadd.f32 %v2456, %v518
    %v2507 = vadd.f32 %v2459, %v519
    %v2508 = vadd.f32 %v2464, %v520
    %v2509 = vadd.f32 %v2467, %v521
    %v2510 = vadd.f32 %v2472, %v522
    %v2511 = vadd.f32 %v2475, %v523
    %v2512 = vadd.f32 %v2480, %v524
    %v2513 = vadd.f32 %v2483, %v525
    %v2514 = vadd.f32 %v2488, %v526
    %v2515 = vadd.f32 %v2491, %v527
    %v2516 = vadd.f32 %v2496, %v528
    %v2517 = vadd.f32 %v2499, %v529
    %v2518 = vld [vmem:[#allocation16] sm:$0x1]
    %v2519 = vld [vmem:[#allocation17] sm:$0x1]
    %2520 = vadd.xlane.f32.xlu0 %v2502
    %v2521 = vpop.xlane.xlu0 %2520
    %2522 = vadd.xlane.f32.xlu0 %v2503
    %v2523 = vpop.xlane.xlu0 %2522
    %2524 = vadd.xlane.f32.xlu0 %v2504
    %v2525 = vpop.xlane.xlu0 %2524
    %2526 = vadd.xlane.f32.xlu0 %v2505
    %v2527 = vpop.xlane.xlu0 %2526
    %2528 = vadd.xlane.f32.xlu0 %v2506
    %v2529 = vpop.xlane.xlu0 %2528
    %2530 = vadd.xlane.f32.xlu0 %v2507
    %v2531 = vpop.xlane.xlu0 %2530
    %2532 = vadd.xlane.f32.xlu0 %v2508
    %v2533 = vpop.xlane.xlu0 %2532
    %2534 = vadd.xlane.f32.xlu0 %v2509
    %v2535 = vpop.xlane.xlu0 %2534
    %2536 = vadd.xlane.f32.xlu0 %v2510
    %v2537 = vpop.xlane.xlu0 %2536
    %2538 = vadd.xlane.f32.xlu0 %v2511
    %v2539 = vpop.xlane.xlu0 %2538
    %2540 = vadd.xlane.f32.xlu0 %v2512
    %v2541 = vpop.xlane.xlu0 %2540
    %2542 = vadd.xlane.f32.xlu0 %v2513
    %v2543 = vpop.xlane.xlu0 %2542
    %2544 = vadd.xlane.f32.xlu0 %v2514
    %v2545 = vpop.xlane.xlu0 %2544
    %2546 = vadd.xlane.f32.xlu0 %v2515
    %v2547 = vpop.xlane.xlu0 %2546
    %2548 = vadd.xlane.f32.xlu0 %v2516
    %v2549 = vpop.xlane.xlu0 %2548
    %2550 = vadd.xlane.f32.xlu0 %v2517
    %v2551 = vpop.xlane.xlu0 %2550
    %v2552 = vmul.f32 %v2521, %v341
    %v2553 = vmul.f32 %v2523, %v341
    %v2554 = vmul.f32 %v2525, %v341
    %v2555 = vmul.f32 %v2527, %v341
    %v2556 = vmul.f32 %v2529, %v341
    %v2557 = vmul.f32 %v2531, %v341
    %v2558 = vmul.f32 %v2533, %v341
    %v2559 = vmul.f32 %v2535, %v341
    %v2560 = vmul.f32 %v2537, %v341
    %v2561 = vmul.f32 %v2539, %v341
    %v2562 = vmul.f32 %v2541, %v341
    %v2563 = vmul.f32 %v2543, %v341
    %v2564 = vmul.f32 %v2545, %v341
    %v2565 = vmul.f32 %v2547, %v341
    %v2566 = vmul.f32 %v2549, %v341
    %v2567 = vmul.f32 %v2551, %v341
    %v2568 = vsub.f32 %v2502, %v2552
    %v2569 = vsub.f32 %v2503, %v2553
    %v2570 = vsub.f32 %v2504, %v2554
    %v2571 = vsub.f32 %v2505, %v2555
    %v2572 = vsub.f32 %v2506, %v2556
    %v2573 = vsub.f32 %v2507, %v2557
    %v2574 = vsub.f32 %v2508, %v2558
    %v2575 = vsub.f32 %v2509, %v2559
    %v2576 = vsub.f32 %v2510, %v2560
    %v2577 = vsub.f32 %v2511, %v2561
    %v2578 = vsub.f32 %v2512, %v2562
    %v2579 = vsub.f32 %v2513, %v2563
    %v2580 = vsub.f32 %v2514, %v2564
    %v2581 = vsub.f32 %v2515, %v2565
    %v2582 = vsub.f32 %v2516, %v2566
    %v2583 = vsub.f32 %v2517, %v2567
    %v2584 = vmul.f32 %v2568, %v2568
    %v2585 = vmul.f32 %v2569, %v2569
    %v2586 = vmul.f32 %v2570, %v2570
    %v2587 = vmul.f32 %v2571, %v2571
    %v2588 = vmul.f32 %v2572, %v2572
    %v2589 = vmul.f32 %v2573, %v2573
    %v2590 = vmul.f32 %v2574, %v2574
    %v2591 = vmul.f32 %v2575, %v2575
    %v2592 = vmul.f32 %v2576, %v2576
    %v2593 = vmul.f32 %v2577, %v2577
    %v2594 = vmul.f32 %v2578, %v2578
    %v2595 = vmul.f32 %v2579, %v2579
    %v2596 = vmul.f32 %v2580, %v2580
    %v2597 = vmul.f32 %v2581, %v2581
    %v2598 = vmul.f32 %v2582, %v2582
    %v2599 = vmul.f32 %v2583, %v2583
    %2600 = vadd.xlane.f32.xlu0 %v2584
    %v2601 = vpop.xlane.xlu0 %2600
    %2602 = vadd.xlane.f32.xlu0 %v2585
    %v2603 = vpop.xlane.xlu0 %2602
    %2604 = vadd.xlane.f32.xlu0 %v2586
    %v2605 = vpop.xlane.xlu0 %2604
    %2606 = vadd.xlane.f32.xlu0 %v2587
    %v2607 = vpop.xlane.xlu0 %2606
    %2608 = vadd.xlane.f32.xlu0 %v2588
    %v2609 = vpop.xlane.xlu0 %2608
    %2610 = vadd.xlane.f32.xlu0 %v2589
    %v2611 = vpop.xlane.xlu0 %2610
    %2612 = vadd.xlane.f32.xlu0 %v2590
    %v2613 = vpop.xlane.xlu0 %2612
    %2614 = vadd.xlane.f32.xlu0 %v2591
    %v2615 = vpop.xlane.xlu0 %2614
    %2616 = vadd.xlane.f32.xlu0 %v2592
    %v2617 = vpop.xlane.xlu0 %2616
    %2618 = vadd.xlane.f32.xlu0 %v2593
    %v2619 = vpop.xlane.xlu0 %2618
    %2620 = vadd.xlane.f32.xlu0 %v2594
    %v2621 = vpop.xlane.xlu0 %2620
    %2622 = vadd.xlane.f32.xlu0 %v2595
    %v2623 = vpop.xlane.xlu0 %2622
    %2624 = vadd.xlane.f32.xlu0 %v2596
    %v2625 = vpop.xlane.xlu0 %2624
    %2626 = vadd.xlane.f32.xlu0 %v2597
    %v2627 = vpop.xlane.xlu0 %2626
    %2628 = vadd.xlane.f32.xlu0 %v2598
    %v2629 = vpop.xlane.xlu0 %2628
    %2630 = vadd.xlane.f32.xlu0 %v2599
    %v2631 = vpop.xlane.xlu0 %2630
    %v2632 = vmul.f32 %v2601, %v341
    %v2633 = vmul.f32 %v2603, %v341
    %v2634 = vmul.f32 %v2605, %v341
    %v2635 = vmul.f32 %v2607, %v341
    %v2636 = vmul.f32 %v2609, %v341
    %v2637 = vmul.f32 %v2611, %v341
    %v2638 = vmul.f32 %v2613, %v341
    %v2639 = vmul.f32 %v2615, %v341
    %v2640 = vmul.f32 %v2617, %v341
    %v2641 = vmul.f32 %v2619, %v341
    %v2642 = vmul.f32 %v2621, %v341
    %v2643 = vmul.f32 %v2623, %v341
    %v2644 = vmul.f32 %v2625, %v341
    %v2645 = vmul.f32 %v2627, %v341
    %v2646 = vmul.f32 %v2629, %v341
    %v2647 = vmul.f32 %v2631, %v341
    %v2648 = vadd.f32 %v2632, 1e-12
    %v2649 = vadd.f32 %v2633, 1e-12
    %v2650 = vadd.f32 %v2634, 1e-12
    %v2651 = vadd.f32 %v2635, 1e-12
    %v2652 = vadd.f32 %v2636, 1e-12
    %v2653 = vadd.f32 %v2637, 1e-12
    %v2654 = vadd.f32 %v2638, 1e-12
    %v2655 = vadd.f32 %v2639, 1e-12
    %v2656 = vadd.f32 %v2640, 1e-12
    %v2657 = vadd.f32 %v2641, 1e-12
    %v2658 = vadd.f32 %v2642, 1e-12
    %v2659 = vadd.f32 %v2643, 1e-12
    %v2660 = vadd.f32 %v2644, 1e-12
    %v2661 = vadd.f32 %v2645, 1e-12
    %v2662 = vadd.f32 %v2646, 1e-12
    %v2663 = vadd.f32 %v2647, 1e-12
    %v2664 = vrsqrt.pop %v2648
    %v2665 = vrsqrt.pop %v2649
    %v2666 = vrsqrt.pop %v2650
    %v2667 = vrsqrt.pop %v2651
    %v2668 = vrsqrt.pop %v2652
    %v2669 = vrsqrt.pop %v2653
    %v2670 = vrsqrt.pop %v2654
    %v2671 = vrsqrt.pop %v2655
    %v2672 = vrsqrt.pop %v2656
    %v2673 = vrsqrt.pop %v2657
    %v2674 = vrsqrt.pop %v2658
    %v2675 = vrsqrt.pop %v2659
    %v2676 = vrsqrt.pop %v2660
    %v2677 = vrsqrt.pop %v2661
    %v2678 = vrsqrt.pop %v2662
    %v2679 = vrsqrt.pop %v2663
    %v2680 = vmul.f32 %v2568, %v2664
    %v2681 = vmul.f32 %v2569, %v2665
    %v2682 = vmul.f32 %v2570, %v2666
    %v2683 = vmul.f32 %v2571, %v2667
    %v2684 = vmul.f32 %v2572, %v2668
    %v2685 = vmul.f32 %v2573, %v2669
    %v2686 = vmul.f32 %v2574, %v2670
    %v2687 = vmul.f32 %v2575, %v2671
    %v2688 = vmul.f32 %v2576, %v2672
    %v2689 = vmul.f32 %v2577, %v2673
    %v2690 = vmul.f32 %v2578, %v2674
    %v2691 = vmul.f32 %v2579, %v2675
    %v2692 = vmul.f32 %v2580, %v2676
    %v2693 = vmul.f32 %v2581, %v2677
    %v2694 = vmul.f32 %v2582, %v2678
    %v2695 = vmul.f32 %v2583, %v2679
    %v2697 = vlaneseq
    %v2698 = vshrl.u32 %v2697, 7
    %v2699 = vsub.s32 0, %v2698
    %v2700 = vrot.slane %v2518, %v2699
    %v2702 = vmul.f32 %v2680, %v2700
    %v2703 = vmul.f32 %v2681, %v2700
    %v2704 = vmul.f32 %v2682, %v2700
    %v2705 = vmul.f32 %v2683, %v2700
    %v2706 = vmul.f32 %v2684, %v2700
    %v2707 = vmul.f32 %v2685, %v2700
    %v2708 = vmul.f32 %v2686, %v2700
    %v2709 = vmul.f32 %v2687, %v2700
    %v2710 = vmul.f32 %v2688, %v2700
    %v2711 = vmul.f32 %v2689, %v2700
    %v2712 = vmul.f32 %v2690, %v2700
    %v2713 = vmul.f32 %v2691, %v2700
    %v2714 = vmul.f32 %v2692, %v2700
    %v2715 = vmul.f32 %v2693, %v2700
    %v2716 = vmul.f32 %v2694, %v2700
    %v2717 = vmul.f32 %v2695, %v2700
    %v2719 = vlaneseq
    %v2720 = vshrl.u32 %v2719, 7
    %v2721 = vsub.s32 0, %v2720
    %v2722 = vrot.slane %v2519, %v2721
    %v2724 = vadd.f32 %v2702, %v2722
    %v2725 = vadd.f32 %v2703, %v2722
    %v2726 = vadd.f32 %v2704, %v2722
    %v2727 = vadd.f32 %v2705, %v2722
    %v2728 = vadd.f32 %v2706, %v2722
    %v2729 = vadd.f32 %v2707, %v2722
    %v2730 = vadd.f32 %v2708, %v2722
    %v2731 = vadd.f32 %v2709, %v2722
    %v2732 = vadd.f32 %v2710, %v2722
    %v2733 = vadd.f32 %v2711, %v2722
    %v2734 = vadd.f32 %v2712, %v2722
    %v2735 = vadd.f32 %v2713, %v2722
    %v2736 = vadd.f32 %v2714, %v2722
    %v2737 = vadd.f32 %v2715, %v2722
    %v2738 = vadd.f32 %v2716, %v2722
    %v2739 = vadd.f32 %v2717, %v2722
    %v2740 = vpack.c.bf16 %v2725, %v2724
    %v2741 = vpack.c.bf16 %v2727, %v2726
    %v2742 = vpack.c.bf16 %v2729, %v2728
    %v2743 = vpack.c.bf16 %v2731, %v2730
    %v2744 = vpack.c.bf16 %v2733, %v2732
    %v2745 = vpack.c.bf16 %v2735, %v2734
    %v2746 = vpack.c.bf16 %v2737, %v2736
    %v2747 = vpack.c.bf16 %v2739, %v2738
    %v2748 = vld [vmem:[#allocation19] sm:$0xff]
    %v2749 = vld [vmem:[#allocation19 + $0x8] sm:$0xff]
    %v2750 = vld [vmem:[#allocation19 + $0x10] sm:$0xff]
    %v2751 = vld [vmem:[#allocation19 + $0x18] sm:$0xff]
    %v2752 = vld [vmem:[#allocation19 + $0x20] sm:$0xff]
    %v2753 = vld [vmem:[#allocation19 + $0x28] sm:$0xff]
    %v2754 = vld [vmem:[#allocation19 + $0x30] sm:$0xff]
    %v2755 = vld [vmem:[#allocation19 + $0x38] sm:$0xff]
    %v2756 = vld [vmem:[#allocation19 + $0x40] sm:$0xff]
    %v2757 = vld [vmem:[#allocation19 + $0x48] sm:$0xff]
    %v2758 = vld [vmem:[#allocation19 + $0x50] sm:$0xff]
    %v2759 = vld [vmem:[#allocation19 + $0x58] sm:$0xff]
    %v2760 = vld [vmem:[#allocation19 + $0x60] sm:$0xff]
    %v2761 = vld [vmem:[#allocation19 + $0x68] sm:$0xff]
    %v2762 = vld [vmem:[#allocation19 + $0x70] sm:$0xff]
    %v2763 = vld [vmem:[#allocation19 + $0x78] sm:$0xff]
    %v2764 = vld [vmem:[%s11] sm:$0x3]
    %v2766 = vlaneseq
    %v2767 = vshrl.u32 %v2766, 7
    %v2768 = vsub.s32 0, %v2767
    %v2769 = vrot.slane %v2764, %v2768
    %v2770 = vlaneseq
    %v2771 = vshrl.u32 %v2770, 7
    %v2772 = vsub.s32 1, %v2771
    %v2773 = vrot.slane %v2764, %v2772
    %v2792 = vunpack.c.l.b16 %v2748
    %v2793 = vunpack.c.h.b16 %v2748
    %v2794 = vunpack.c.l.b16 %v2749
    %v2795 = vunpack.c.h.b16 %v2749
    %v2796 = vunpack.c.l.b16 %v2750
    %v2797 = vunpack.c.h.b16 %v2750
    %v2798 = vunpack.c.l.b16 %v2751
    %v2799 = vunpack.c.h.b16 %v2751
    %v2800 = vunpack.c.l.b16 %v2752
    %v2801 = vunpack.c.h.b16 %v2752
    %v2802 = vunpack.c.l.b16 %v2753
    %v2803 = vunpack.c.h.b16 %v2753
    %v2804 = vunpack.c.l.b16 %v2754
    %v2805 = vunpack.c.h.b16 %v2754
    %v2806 = vunpack.c.l.b16 %v2755
    %v2807 = vunpack.c.h.b16 %v2755
    %v2808 = vunpack.c.l.b16 %v2756
    %v2809 = vunpack.c.h.b16 %v2756
    %v2810 = vunpack.c.l.b16 %v2757
    %v2811 = vunpack.c.h.b16 %v2757
    %v2812 = vunpack.c.l.b16 %v2758
    %v2813 = vunpack.c.h.b16 %v2758
    %v2814 = vunpack.c.l.b16 %v2759
    %v2815 = vunpack.c.h.b16 %v2759
    %v2816 = vunpack.c.l.b16 %v2760
    %v2817 = vunpack.c.h.b16 %v2760
    %v2818 = vunpack.c.l.b16 %v2761
    %v2819 = vunpack.c.h.b16 %v2761
    %v2820 = vunpack.c.l.b16 %v2762
    %v2821 = vunpack.c.h.b16 %v2762
    %v2822 = vunpack.c.l.b16 %v2763
    %v2823 = vunpack.c.h.b16 %v2763
    %v2824 = vpack.c.b16 %v2794, %v2792
    %v2825 = vpack.c.b16 %v2795, %v2793
    %v2826 = vpack.c.b16 %v2798, %v2796
    %v2827 = vpack.c.b16 %v2799, %v2797
    %v2828 = vpack.c.b16 %v2802, %v2800
    %v2829 = vpack.c.b16 %v2803, %v2801
    %v2830 = vpack.c.b16 %v2806, %v2804
    %v2831 = vpack.c.b16 %v2807, %v2805
    %v2832 = vpack.c.b16 %v2810, %v2808
    %v2833 = vpack.c.b16 %v2811, %v2809
    %v2834 = vpack.c.b16 %v2814, %v2812
    %v2835 = vpack.c.b16 %v2815, %v2813
    %v2836 = vpack.c.b16 %v2818, %v2816
    %v2837 = vpack.c.b16 %v2819, %v2817
    %v2838 = vpack.c.b16 %v2822, %v2820
    %v2839 = vpack.c.b16 %v2823, %v2821
    %2856 = vmatprep.subr.bf16.mxu0 %v2825
    %2857 = vmatpush1.bf16.msra.mxu0 %v2824
    %2858 = vmatprep.subr.bf16.mxu0 %v2827
    %2859 = vmatpush1.bf16.msra.mxu0 %v2826
    %2860 = vmatprep.subr.bf16.mxu0 %v2829
    %2861 = vmatpush1.bf16.msra.mxu0 %v2828
    %2862 = vmatprep.subr.bf16.mxu0 %v2831
    %2863 = vmatpush1.bf16.msra.mxu0 %v2830
    %2864 = vmatprep.subr.bf16.mxu0 %v2833
    %2865 = vmatpush1.bf16.msra.mxu0 %v2832
    %2866 = vmatprep.subr.bf16.mxu0 %v2835
    %2867 = vmatpush1.bf16.msra.mxu0 %v2834
    %2868 = vmatprep.subr.bf16.mxu0 %v2837
    %2869 = vmatpush1.bf16.msra.mxu0 %v2836
    %2870 = vmatprep.subr.bf16.mxu0 %v2839
    %2871 = vmatpush1.bf16.msra.mxu0 %v2838
    %2872 = vmatprep.subr.bf16.mxu0 0
    %2873 = vmatpush1.bf16.msra.mxu0 0
    %2874 = vmatprep.subr.bf16.mxu0 0
    %2875 = vmatpush1.bf16.msra.mxu0 0
    %2876 = vmatprep.subr.bf16.mxu0 0
    %2877 = vmatpush1.bf16.msra.mxu0 0
    %2878 = vmatprep.subr.bf16.mxu0 0
    %2879 = vmatpush1.bf16.msra.mxu0 0
    %2880 = vmatprep.subr.bf16.mxu0 0
    %2881 = vmatpush1.bf16.msra.mxu0 0
    %2882 = vmatprep.subr.bf16.mxu0 0
    %2883 = vmatpush1.bf16.msra.mxu0 0
    %2884 = vmatprep.subr.bf16.mxu0 0
    %2885 = vmatpush1.bf16.msra.mxu0 0
    %2886 = vmatprep.subr.bf16.mxu0 0
    %2887 = vmatpush1.bf16.msra.mxu0 0
    %2888 = vmatprep.mubr.bf16.mxu0 0
    %2889 = vmatmul.mubr.bf16.gmra.mrb[0].mxu0 %v2740
    %v2890 = vpop.f32.mrb[0].mxu0
    %v2891 = vadd.f32 %v2769, %v2890
    %v2892 = vpop.f32.mrb[0].mxu0
    %v2893 = vadd.f32 %v2773, %v2892
    %v2894 = vpop.f32.mrb[0].mxu0
    %v2895 = vadd.f32 %v2769, %v2894
    %v2896 = vpop.f32.mrb[0].mxu0
    %v2897 = vadd.f32 %v2773, %v2896
    %2898 = vmatprep.mubr.bf16.mxu0 0
    %2899 = vmatmul.mubr.bf16.gmra.mrb[0].mxu0 %v2741
    %v2900 = vpop.f32.mrb[0].mxu0
    %v2901 = vadd.f32 %v2769, %v2900
    %v2902 = vpop.f32.mrb[0].mxu0
    %v2903 = vadd.f32 %v2773, %v2902
    %v2904 = vpop.f32.mrb[0].mxu0
    %v2905 = vadd.f32 %v2769, %v2904
    %v2906 = vpop.f32.mrb[0].mxu0
    %v2907 = vadd.f32 %v2773, %v2906
    %2908 = vmatprep.mubr.bf16.mxu0 0
    %2909 = vmatmul.mubr.bf16.gmra.mrb[0].mxu0 %v2742
    %v2910 = vpop.f32.mrb[0].mxu0
    %v2911 = vadd.f32 %v2769, %v2910
    %v2912 = vpop.f32.mrb[0].mxu0
    %v2913 = vadd.f32 %v2773, %v2912
    %v2914 = vpop.f32.mrb[0].mxu0
    %v2915 = vadd.f32 %v2769, %v2914
    %v2916 = vpop.f32.mrb[0].mxu0
    %v2917 = vadd.f32 %v2773, %v2916
    %2918 = vmatprep.mubr.bf16.mxu0 0
    %2919 = vmatmul.mubr.bf16.gmra.mrb[0].mxu0 %v2743
    %v2920 = vpop.f32.mrb[0].mxu0
    %v2921 = vadd.f32 %v2769, %v2920
    %v2922 = vpop.f32.mrb[0].mxu0
    %v2923 = vadd.f32 %v2773, %v2922
    %v2924 = vpop.f32.mrb[0].mxu0
    %v2925 = vadd.f32 %v2769, %v2924
    %v2926 = vpop.f32.mrb[0].mxu0
    %v2927 = vadd.f32 %v2773, %v2926
    %2928 = vmatprep.mubr.bf16.mxu0 0
    %2929 = vmatmul.mubr.bf16.gmra.mrb[0].mxu0 %v2744
    %v2930 = vpop.f32.mrb[0].mxu0
    %v2931 = vadd.f32 %v2769, %v2930
    %v2932 = vpop.f32.mrb[0].mxu0
    %v2933 = vadd.f32 %v2773, %v2932
    %v2934 = vpop.f32.mrb[0].mxu0
    %v2935 = vadd.f32 %v2769, %v2934
    %v2936 = vpop.f32.mrb[0].mxu0
    %v2937 = vadd.f32 %v2773, %v2936
    %2938 = vmatprep.mubr.bf16.mxu0 0
    %2939 = vmatmul.mubr.bf16.gmra.mrb[0].mxu0 %v2745
    %v2940 = vpop.f32.mrb[0].mxu0
    %v2941 = vadd.f32 %v2769, %v2940
    %v2942 = vpop.f32.mrb[0].mxu0
    %v2943 = vadd.f32 %v2773, %v2942
    %v2944 = vpop.f32.mrb[0].mxu0
    %v2945 = vadd.f32 %v2769, %v2944
    %v2946 = vpop.f32.mrb[0].mxu0
    %v2947 = vadd.f32 %v2773, %v2946
    %2948 = vmatprep.mubr.bf16.mxu0 0
    %2949 = vmatmul.mubr.bf16.gmra.mrb[0].mxu0 %v2746
    %v2950 = vpop.f32.mrb[0].mxu0
    %v2951 = vadd.f32 %v2769, %v2950
    %v2952 = vpop.f32.mrb[0].mxu0
    %v2953 = vadd.f32 %v2773, %v2952
    %v2954 = vpop.f32.mrb[0].mxu0
    %v2955 = vadd.f32 %v2769, %v2954
    %v2956 = vpop.f32.mrb[0].mxu0
    %v2957 = vadd.f32 %v2773, %v2956
    %2958 = vmatprep.mubr.bf16.mxu0 0
    %2959 = vmatmul.mubr.bf16.gmra.mrb[0].mxu0 %v2747
    %v2960 = vpop.f32.mrb[0].mxu0
    %v2961 = vadd.f32 %v2769, %v2960
    %v2962 = vpop.f32.mrb[0].mxu0
    %v2963 = vadd.f32 %v2773, %v2962
    %v2964 = vpop.f32.mrb[0].mxu0
    %v2965 = vadd.f32 %v2769, %v2964
    %v2966 = vpop.f32.mrb[0].mxu0
    %v2967 = vadd.f32 %v2773, %v2966
    %2968 = vdwg.mxu0
    %v2969 = vmul.f32 %v2891, 0.5
    %v2970 = vmul.f32 %v2893, 0.5
    %v2971 = vmul.f32 %v2895, 0.5
    %v2972 = vmul.f32 %v2897, 0.5
    %v2973 = vmul.f32 %v2901, 0.5
    %v2974 = vmul.f32 %v2903, 0.5
    %v2975 = vmul.f32 %v2905, 0.5
    %v2976 = vmul.f32 %v2907, 0.5
    %v2977 = vmul.f32 %v2911, 0.5
    %v2978 = vmul.f32 %v2913, 0.5
    %v2979 = vmul.f32 %v2915, 0.5
    %v2980 = vmul.f32 %v2917, 0.5
    %v2981 = vmul.f32 %v2921, 0.5
    %v2982 = vmul.f32 %v2923, 0.5
    %v2983 = vmul.f32 %v2925, 0.5
    %v2984 = vmul.f32 %v2927, 0.5
    %v2985 = vmul.f32 %v2931, 0.5
    %v2986 = vmul.f32 %v2933, 0.5
    %v2987 = vmul.f32 %v2935, 0.5
    %v2988 = vmul.f32 %v2937, 0.5
    %v2989 = vmul.f32 %v2941, 0.5
    %v2990 = vmul.f32 %v2943, 0.5
    %v2991 = vmul.f32 %v2945, 0.5
    %v2992 = vmul.f32 %v2947, 0.5
    %v2993 = vmul.f32 %v2951, 0.5
    %v2994 = vmul.f32 %v2953, 0.5
    %v2995 = vmul.f32 %v2955, 0.5
    %v2996 = vmul.f32 %v2957, 0.5
    %v2997 = vmul.f32 %v2961, 0.5
    %v2998 = vmul.f32 %v2963, 0.5
    %v2999 = vmul.f32 %v2965, 0.5
    %v3000 = vmul.f32 %v2967, 0.5
    %v3001 = vmul.f32 %v2891, 0.044715
    %v3002 = vmul.f32 %v2893, 0.044715
    %v3003 = vmul.f32 %v2895, 0.044715
    %v3004 = vmul.f32 %v2897, 0.044715
    %v3005 = vmul.f32 %v2901, 0.044715
    %v3006 = vmul.f32 %v2903, 0.044715
    %v3007 = vmul.f32 %v2905, 0.044715
    %v3008 = vmul.f32 %v2907, 0.044715
    %v3009 = vmul.f32 %v2911, 0.044715
    %v3010 = vmul.f32 %v2913, 0.044715
    %v3011 = vmul.f32 %v2915, 0.044715
    %v3012 = vmul.f32 %v2917, 0.044715
    %v3013 = vmul.f32 %v2921, 0.044715
    %v3014 = vmul.f32 %v2923, 0.044715
    %v3015 = vmul.f32 %v2925, 0.044715
    %v3016 = vmul.f32 %v2927, 0.044715
    %v3017 = vmul.f32 %v2931, 0.044715
    %v3018 = vmul.f32 %v2933, 0.044715
    %v3019 = vmul.f32 %v2935, 0.044715
    %v3020 = vmul.f32 %v2937, 0.044715
    %v3021 = vmul.f32 %v2941, 0.044715
    %v3022 = vmul.f32 %v2943, 0.044715
    %v3023 = vmul.f32 %v2945, 0.044715
    %v3024 = vmul.f32 %v2947, 0.044715
    %v3025 = vmul.f32 %v2951, 0.044715
    %v3026 = vmul.f32 %v2953, 0.044715
    %v3027 = vmul.f32 %v2955, 0.044715
    %v3028 = vmul.f32 %v2957, 0.044715
    %v3029 = vmul.f32 %v2961, 0.044715
    %v3030 = vmul.f32 %v2963, 0.044715
    %v3031 = vmul.f32 %v2965, 0.044715
    %v3032 = vmul.f32 %v2967, 0.044715
    %v3033 = vmul.f32 %v3001, %v2891
    %v3034 = vmul.f32 %v3002, %v2893
    %v3035 = vmul.f32 %v3003, %v2895
    %v3036 = vmul.f32 %v3004, %v2897
    %v3037 = vmul.f32 %v3005, %v2901
    %v3038 = vmul.f32 %v3006, %v2903
    %v3039 = vmul.f32 %v3007, %v2905
    %v3040 = vmul.f32 %v3008, %v2907
    %v3041 = vmul.f32 %v3009, %v2911
    %v3042 = vmul.f32 %v3010, %v2913
    %v3043 = vmul.f32 %v3011, %v2915
    %v3044 = vmul.f32 %v3012, %v2917
    %v3045 = vmul.f32 %v3013, %v2921
    %v3046 = vmul.f32 %v3014, %v2923
    %v3047 = vmul.f32 %v3015, %v2925
    %v3048 = vmul.f32 %v3016, %v2927
    %v3049 = vmul.f32 %v3017, %v2931
    %v3050 = vmul.f32 %v3018, %v2933
    %v3051 = vmul.f32 %v3019, %v2935
    %v3052 = vmul.f32 %v3020, %v2937
    %v3053 = vmul.f32 %v3021, %v2941
    %v3054 = vmul.f32 %v3022, %v2943
    %v3055 = vmul.f32 %v3023, %v2945
    %v3056 = vmul.f32 %v3024, %v2947
    %v3057 = vmul.f32 %v3025, %v2951
    %v3058 = vmul.f32 %v3026, %v2953
    %v3059 = vmul.f32 %v3027, %v2955
    %v3060 = vmul.f32 %v3028, %v2957
    %v3061 = vmul.f32 %v3029, %v2961
    %v3062 = vmul.f32 %v3030, %v2963
    %v3063 = vmul.f32 %v3031, %v2965
    %v3064 = vmul.f32 %v3032, %v2967
    %v3065 = vmul.f32 %v3033, %v2891
    %v3066 = vmul.f32 %v3034, %v2893
    %v3067 = vmul.f32 %v3035, %v2895
    %v3068 = vmul.f32 %v3036, %v2897
    %v3069 = vmul.f32 %v3037, %v2901
    %v3070 = vmul.f32 %v3038, %v2903
    %v3071 = vmul.f32 %v3039, %v2905
    %v3072 = vmul.f32 %v3040, %v2907
    %v3073 = vmul.f32 %v3041, %v2911
    %v3074 = vmul.f32 %v3042, %v2913
    %v3075 = vmul.f32 %v3043, %v2915
    %v3076 = vmul.f32 %v3044, %v2917
    %v3077 = vmul.f32 %v3045, %v2921
    %v3078 = vmul.f32 %v3046, %v2923
    %v3079 = vmul.f32 %v3047, %v2925
    %v3080 = vmul.f32 %v3048, %v2927
    %v3081 = vmul.f32 %v3049, %v2931
    %v3082 = vmul.f32 %v3050, %v2933
    %v3083 = vmul.f32 %v3051, %v2935
    %v3084 = vmul.f32 %v3052, %v2937
    %v3085 = vmul.f32 %v3053, %v2941
    %v3086 = vmul.f32 %v3054, %v2943
    %v3087 = vmul.f32 %v3055, %v2945
    %v3088 = vmul.f32 %v3056, %v2947
    %v3089 = vmul.f32 %v3057, %v2951
    %v3090 = vmul.f32 %v3058, %v2953
    %v3091 = vmul.f32 %v3059, %v2955
    %v3092 = vmul.f32 %v3060, %v2957
    %v3093 = vmul.f32 %v3061, %v2961
    %v3094 = vmul.f32 %v3062, %v2963
    %v3095 = vmul.f32 %v3063, %v2965
    %v3096 = vmul.f32 %v3064, %v2967
    %v3097 = vadd.f32 %v2891, %v3065
    %v3098 = vadd.f32 %v2893, %v3066
    %v3099 = vadd.f32 %v2895, %v3067
    %v3100 = vadd.f32 %v2897, %v3068
    %v3101 = vadd.f32 %v2901, %v3069
    %v3102 = vadd.f32 %v2903, %v3070
    %v3103 = vadd.f32 %v2905, %v3071
    %v3104 = vadd.f32 %v2907, %v3072
    %v3105 = vadd.f32 %v2911, %v3073
    %v3106 = vadd.f32 %v2913, %v3074
    %v3107 = vadd.f32 %v2915, %v3075
    %v3108 = vadd.f32 %v2917, %v3076
    %v3109 = vadd.f32 %v2921, %v3077
    %v3110 = vadd.f32 %v2923, %v3078
    %v3111 = vadd.f32 %v2925, %v3079
    %v3112 = vadd.f32 %v2927, %v3080
    %v3113 = vadd.f32 %v2931, %v3081
    %v3114 = vadd.f32 %v2933, %v3082
    %v3115 = vadd.f32 %v2935, %v3083
    %v3116 = vadd.f32 %v2937, %v3084
    %v3117 = vadd.f32 %v2941, %v3085
    %v3118 = vadd.f32 %v2943, %v3086
    %v3119 = vadd.f32 %v2945, %v3087
    %v3120 = vadd.f32 %v2947, %v3088
    %v3121 = vadd.f32 %v2951, %v3089
    %v3122 = vadd.f32 %v2953, %v3090
    %v3123 = vadd.f32 %v2955, %v3091
    %v3124 = vadd.f32 %v2957, %v3092
    %v3125 = vadd.f32 %v2961, %v3093
    %v3126 = vadd.f32 %v2963, %v3094
    %v3127 = vadd.f32 %v2965, %v3095
    %v3128 = vadd.f32 %v2967, %v3096
    %v3129 = vmul.f32 %v3097, 0.7978846
    %v3130 = vmul.f32 %v3098, 0.7978846
    %v3131 = vmul.f32 %v3099, 0.7978846
    %v3132 = vmul.f32 %v3100, 0.7978846
    %v3133 = vmul.f32 %v3101, 0.7978846
    %v3134 = vmul.f32 %v3102, 0.7978846
    %v3135 = vmul.f32 %v3103, 0.7978846
    %v3136 = vmul.f32 %v3104, 0.7978846
    %v3137 = vmul.f32 %v3105, 0.7978846
    %v3138 = vmul.f32 %v3106, 0.7978846
    %v3139 = vmul.f32 %v3107, 0.7978846
    %v3140 = vmul.f32 %v3108, 0.7978846
    %v3141 = vmul.f32 %v3109, 0.7978846
    %v3142 = vmul.f32 %v3110, 0.7978846
    %v3143 = vmul.f32 %v3111, 0.7978846
    %v3144 = vmul.f32 %v3112, 0.7978846
    %v3145 = vmul.f32 %v3113, 0.7978846
    %v3146 = vmul.f32 %v3114, 0.7978846
    %v3147 = vmul.f32 %v3115, 0.7978846
    %v3148 = vmul.f32 %v3116, 0.7978846
    %v3149 = vmul.f32 %v3117, 0.7978846
    %v3150 = vmul.f32 %v3118, 0.7978846
    %v3151 = vmul.f32 %v3119, 0.7978846
    %v3152 = vmul.f32 %v3120, 0.7978846
    %v3153 = vmul.f32 %v3121, 0.7978846
    %v3154 = vmul.f32 %v3122, 0.7978846
    %v3155 = vmul.f32 %v3123, 0.7978846
    %v3156 = vmul.f32 %v3124, 0.7978846
    %v3157 = vmul.f32 %v3125, 0.7978846
    %v3158 = vmul.f32 %v3126, 0.7978846
    %v3159 = vmul.f32 %v3127, 0.7978846
    %v3160 = vmul.f32 %v3128, 0.7978846
    %v3161 = vtanh.pop %v3129
    %v3162 = vtanh.pop %v3130
    %v3163 = vtanh.pop %v3131
    %v3164 = vtanh.pop %v3132
    %v3165 = vtanh.pop %v3133
    %v3166 = vtanh.pop %v3134
    %v3167 = vtanh.pop %v3135
    %v3168 = vtanh.pop %v3136
    %v3169 = vtanh.pop %v3137
    %v3170 = vtanh.pop %v3138
    %v3171 = vtanh.pop %v3139
    %v3172 = vtanh.pop %v3140
    %v3173 = vtanh.pop %v3141
    %v3174 = vtanh.pop %v3142
    %v3175 = vtanh.pop %v3143
    %v3176 = vtanh.pop %v3144
    %v3177 = vtanh.pop %v3145
    %v3178 = vtanh.pop %v3146
    %v3179 = vtanh.pop %v3147
    %v3180 = vtanh.pop %v3148
    %v3181 = vtanh.pop %v3149
    %v3182 = vtanh.pop %v3150
    %v3183 = vtanh.pop %v3151
    %v3184 = vtanh.pop %v3152
    %v3185 = vtanh.pop %v3153
    %v3186 = vtanh.pop %v3154
    %v3187 = vtanh.pop %v3155
    %v3188 = vtanh.pop %v3156
    %v3189 = vtanh.pop %v3157
    %v3190 = vtanh.pop %v3158
    %v3191 = vtanh.pop %v3159
    %v3192 = vtanh.pop %v3160
    %v3193 = vadd.f32 %v3161, 1.0
    %v3194 = vadd.f32 %v3162, 1.0
    %v3195 = vadd.f32 %v3163, 1.0
    %v3196 = vadd.f32 %v3164, 1.0
    %v3197 = vadd.f32 %v3165, 1.0
    %v3198 = vadd.f32 %v3166, 1.0
    %v3199 = vadd.f32 %v3167, 1.0
    %v3200 = vadd.f32 %v3168, 1.0
    %v3201 = vadd.f32 %v3169, 1.0
    %v3202 = vadd.f32 %v3170, 1.0
    %v3203 = vadd.f32 %v3171, 1.0
    %v3204 = vadd.f32 %v3172, 1.0
    %v3205 = vadd.f32 %v3173, 1.0
    %v3206 = vadd.f32 %v3174, 1.0
    %v3207 = vadd.f32 %v3175, 1.0
    %v3208 = vadd.f32 %v3176, 1.0
    %v3209 = vadd.f32 %v3177, 1.0
    %v3210 = vadd.f32 %v3178, 1.0
    %v3211 = vadd.f32 %v3179, 1.0
    %v3212 = vadd.f32 %v3180, 1.0
    %v3213 = vadd.f32 %v3181, 1.0
    %v3214 = vadd.f32 %v3182, 1.0
    %v3215 = vadd.f32 %v3183, 1.0
    %v3216 = vadd.f32 %v3184, 1.0
    %v3217 = vadd.f32 %v3185, 1.0
    %v3218 = vadd.f32 %v3186, 1.0
    %v3219 = vadd.f32 %v3187, 1.0
    %v3220 = vadd.f32 %v3188, 1.0
    %v3221 = vadd.f32 %v3189, 1.0
    %v3222 = vadd.f32 %v3190, 1.0
    %v3223 = vadd.f32 %v3191, 1.0
    %v3224 = vadd.f32 %v3192, 1.0
    %v3225 = vmul.f32 %v2969, %v3193
    %v3226 = vmul.f32 %v2970, %v3194
    %v3227 = vmul.f32 %v2971, %v3195
    %v3228 = vmul.f32 %v2972, %v3196
    %v3229 = vmul.f32 %v2973, %v3197
    %v3230 = vmul.f32 %v2974, %v3198
    %v3231 = vmul.f32 %v2975, %v3199
    %v3232 = vmul.f32 %v2976, %v3200
    %v3233 = vmul.f32 %v2977, %v3201
    %v3234 = vmul.f32 %v2978, %v3202
    %v3235 = vmul.f32 %v2979, %v3203
    %v3236 = vmul.f32 %v2980, %v3204
    %v3237 = vmul.f32 %v2981, %v3205
    %v3238 = vmul.f32 %v2982, %v3206
    %v3239 = vmul.f32 %v2983, %v3207
    %v3240 = vmul.f32 %v2984, %v3208
    %v3241 = vmul.f32 %v2985, %v3209
    %v3242 = vmul.f32 %v2986, %v3210
    %v3243 = vmul.f32 %v2987, %v3211
    %v3244 = vmul.f32 %v2988, %v3212
    %v3245 = vmul.f32 %v2989, %v3213
    %v3246 = vmul.f32 %v2990, %v3214
    %v3247 = vmul.f32 %v2991, %v3215
    %v3248 = vmul.f32 %v2992, %v3216
    %v3249 = vmul.f32 %v2993, %v3217
    %v3250 = vmul.f32 %v2994, %v3218
    %v3251 = vmul.f32 %v2995, %v3219
    %v3252 = vmul.f32 %v2996, %v3220
    %v3253 = vmul.f32 %v2997, %v3221
    %v3254 = vmul.f32 %v2998, %v3222
    %v3255 = vmul.f32 %v2999, %v3223
    %v3256 = vmul.f32 %v3000, %v3224
    %v3257 = vpack.c.bf16 %v3227, %v3225
    %v3258 = vpack.c.bf16 %v3228, %v3226
    %v3259 = vpack.c.bf16 %v3231, %v3229
    %v3260 = vpack.c.bf16 %v3232, %v3230
    %v3261 = vpack.c.bf16 %v3235, %v3233
    %v3262 = vpack.c.bf16 %v3236, %v3234
    %v3263 = vpack.c.bf16 %v3239, %v3237
    %v3264 = vpack.c.bf16 %v3240, %v3238
    %v3265 = vpack.c.bf16 %v3243, %v3241
    %v3266 = vpack.c.bf16 %v3244, %v3242
    %v3267 = vpack.c.bf16 %v3247, %v3245
    %v3268 = vpack.c.bf16 %v3248, %v3246
    %v3269 = vpack.c.bf16 %v3251, %v3249
    %v3270 = vpack.c.bf16 %v3252, %v3250
    %v3271 = vpack.c.bf16 %v3255, %v3253
    %v3272 = vpack.c.bf16 %v3256, %v3254
    %v3273 = vld [vmem:[#allocation20] sm:$0xf]
    %v3274 = vld [vmem:[#allocation20 + $0x4] sm:$0xf]
    %v3275 = vld [vmem:[#allocation20 + $0x8] sm:$0xf]
    %v3276 = vld [vmem:[#allocation20 + $0xc] sm:$0xf]
    %v3277 = vld [vmem:[#allocation20 + $0x10] sm:$0xf]
    %v3278 = vld [vmem:[#allocation20 + $0x14] sm:$0xf]
    %v3279 = vld [vmem:[#allocation20 + $0x18] sm:$0xf]
    %v3280 = vld [vmem:[#allocation20 + $0x1c] sm:$0xf]
    %v3281 = vld [vmem:[#allocation20 + $0x20] sm:$0xf]
    %v3282 = vld [vmem:[#allocation20 + $0x24] sm:$0xf]
    %v3283 = vld [vmem:[#allocation20 + $0x28] sm:$0xf]
    %v3284 = vld [vmem:[#allocation20 + $0x2c] sm:$0xf]
    %v3285 = vld [vmem:[#allocation20 + $0x30] sm:$0xf]
    %v3286 = vld [vmem:[#allocation20 + $0x34] sm:$0xf]
    %v3287 = vld [vmem:[#allocation20 + $0x38] sm:$0xf]
    %v3288 = vld [vmem:[#allocation20 + $0x3c] sm:$0xf]
    %v3289 = vld [vmem:[#allocation20 + $0x40] sm:$0xf]
    %v3290 = vld [vmem:[#allocation20 + $0x44] sm:$0xf]
    %v3291 = vld [vmem:[#allocation20 + $0x48] sm:$0xf]
    %v3292 = vld [vmem:[#allocation20 + $0x4c] sm:$0xf]
    %v3293 = vld [vmem:[#allocation20 + $0x50] sm:$0xf]
    %v3294 = vld [vmem:[#allocation20 + $0x54] sm:$0xf]
    %v3295 = vld [vmem:[#allocation20 + $0x58] sm:$0xf]
    %v3296 = vld [vmem:[#allocation20 + $0x5c] sm:$0xf]
    %v3297 = vld [vmem:[#allocation20 + $0x60] sm:$0xf]
    %v3298 = vld [vmem:[#allocation20 + $0x64] sm:$0xf]
    %v3299 = vld [vmem:[#allocation20 + $0x68] sm:$0xf]
    %v3300 = vld [vmem:[#allocation20 + $0x6c] sm:$0xf]
    %v3301 = vld [vmem:[#allocation20 + $0x70] sm:$0xf]
    %v3302 = vld [vmem:[#allocation20 + $0x74] sm:$0xf]
    %v3303 = vld [vmem:[#allocation20 + $0x78] sm:$0xf]
    %v3304 = vld [vmem:[#allocation20 + $0x7c] sm:$0xf]
    %v3305 = vld [vmem:[#allocation22] sm:$0x1]
    %v3307 = vlaneseq
    %v3308 = vshrl.u32 %v3307, 7
    %v3309 = vsub.s32 0, %v3308
    %v3310 = vrot.slane %v3305, %v3309
    %v3344 = vunpack.c.l.b16 %v3273
    %v3345 = vunpack.c.l.b16 %v3274
    %v3346 = vunpack.c.l.b16 %v3275
    %v3347 = vunpack.c.l.b16 %v3276
    %v3348 = vunpack.c.l.b16 %v3277
    %v3349 = vunpack.c.l.b16 %v3278
    %v3350 = vunpack.c.l.b16 %v3279
    %v3351 = vunpack.c.l.b16 %v3280
    %v3352 = vunpack.c.l.b16 %v3281
    %v3353 = vunpack.c.l.b16 %v3282
    %v3354 = vunpack.c.l.b16 %v3283
    %v3355 = vunpack.c.l.b16 %v3284
    %v3356 = vunpack.c.l.b16 %v3285
    %v3357 = vunpack.c.l.b16 %v3286
    %v3358 = vunpack.c.l.b16 %v3287
    %v3359 = vunpack.c.l.b16 %v3288
    %v3360 = vunpack.c.l.b16 %v3289
    %v3361 = vunpack.c.l.b16 %v3290
    %v3362 = vunpack.c.l.b16 %v3291
    %v3363 = vunpack.c.l.b16 %v3292
    %v3364 = vunpack.c.l.b16 %v3293
    %v3365 = vunpack.c.l.b16 %v3294
    %v3366 = vunpack.c.l.b16 %v3295
    %v3367 = vunpack.c.l.b16 %v3296
    %v3368 = vunpack.c.l.b16 %v3297
    %v3369 = vunpack.c.l.b16 %v3298
    %v3370 = vunpack.c.l.b16 %v3299
    %v3371 = vunpack.c.l.b16 %v3300
    %v3372 = vunpack.c.l.b16 %v3301
    %v3373 = vunpack.c.l.b16 %v3302
    %v3374 = vunpack.c.l.b16 %v3303
    %v3375 = vunpack.c.l.b16 %v3304
    %v3376 = vpack.c.b16 %v3345, %v3344
    %v3377 = vpack.c.b16 %v3347, %v3346
    %v3378 = vpack.c.b16 %v3349, %v3348
    %v3379 = vpack.c.b16 %v3351, %v3350
    %v3380 = vpack.c.b16 %v3353, %v3352
    %v3381 = vpack.c.b16 %v3355, %v3354
    %v3382 = vpack.c.b16 %v3357, %v3356
    %v3383 = vpack.c.b16 %v3359, %v3358
    %v3384 = vpack.c.b16 %v3361, %v3360
    %v3385 = vpack.c.b16 %v3363, %v3362
    %v3386 = vpack.c.b16 %v3365, %v3364
    %v3387 = vpack.c.b16 %v3367, %v3366
    %v3388 = vpack.c.b16 %v3369, %v3368
    %v3389 = vpack.c.b16 %v3371, %v3370
    %v3390 = vpack.c.b16 %v3373, %v3372
    %v3391 = vpack.c.b16 %v3375, %v3374
    %3408 = vmatprep.subr.bf16.mxu0 0
    %3409 = vmatpush1.bf16.msra.mxu0 %v3376
    %3410 = vmatprep.subr.bf16.mxu0 0
    %3411 = vmatpush1.bf16.msra.mxu0 %v3377
    %3412 = vmatprep.subr.bf16.mxu0 0
    %3413 = vmatpush1.bf16.msra.mxu0 %v3378
    %3414 = vmatprep.subr.bf16.mxu0 0
    %3415 = vmatpush1.bf16.msra.mxu0 %v3379
    %3416 = vmatprep.subr.bf16.mxu0 0
    %3417 = vmatpush1.bf16.msra.mxu0 %v3380
    %3418 = vmatprep.subr.bf16.mxu0 0
    %3419 = vmatpush1.bf16.msra.mxu0 %v3381
    %3420 = vmatprep.subr.bf16.mxu0 0
    %3421 = vmatpush1.bf16.msra.mxu0 %v3382
    %3422 = vmatprep.subr.bf16.mxu0 0
    %3423 = vmatpush1.bf16.msra.mxu0 %v3383
    %3424 = vmatprep.subr.bf16.mxu0 0
    %3425 = vmatpush1.bf16.msra.mxu0 %v3384
    %3426 = vmatprep.subr.bf16.mxu0 0
    %3427 = vmatpush1.bf16.msra.mxu0 %v3385
    %3428 = vmatprep.subr.bf16.mxu0 0
    %3429 = vmatpush1.bf16.msra.mxu0 %v3386
    %3430 = vmatprep.subr.bf16.mxu0 0
    %3431 = vmatpush1.bf16.msra.mxu0 %v3387
    %3432 = vmatprep.subr.bf16.mxu0 0
    %3433 = vmatpush1.bf16.msra.mxu0 %v3388
    %3434 = vmatprep.subr.bf16.mxu0 0
    %3435 = vmatpush1.bf16.msra.mxu0 %v3389
    %3436 = vmatprep.subr.bf16.mxu0 0
    %3437 = vmatpush1.bf16.msra.mxu0 %v3390
    %3438 = vmatprep.subr.bf16.mxu0 0
    %3439 = vmatpush1.bf16.msra.mxu0 %v3391
    %3440 = vmatprep.mubr.bf16.mxu0 %v3258
    %3441 = vmatmul.mubr.bf16.gmra.mrb[0].mxu0 %v3257
    %v3442 = vpop.f32.mrb[0].mxu0
    %v3443 = vadd.f32 %v3310, %v3442
    %v3444 = vpop.f32.mrb[0].mxu0
    %v3445 = vpop.f32.mrb[0].mxu0
    %v3446 = vadd.f32 %v3310, %v3445
    %v3447 = vpop.f32.mrb[0].mxu0
    %3448 = vmatprep.mubr.bf16.mxu0 %v3260
    %3449 = vmatmul.mubr.bf16.gmra.mrb[0].mxu0 %v3259
    %v3450 = vpop.f32.mrb[0].mxu0
    %v3451 = vadd.f32 %v3310, %v3450
    %v3452 = vpop.f32.mrb[0].mxu0
    %v3453 = vpop.f32.mrb[0].mxu0
    %v3454 = vadd.f32 %v3310, %v3453
    %v3455 = vpop.f32.mrb[0].mxu0
    %3456 = vmatprep.mubr.bf16.mxu0 %v3262
    %3457 = vmatmul.mubr.bf16.gmra.mrb[0].mxu0 %v3261
    %v3458 = vpop.f32.mrb[0].mxu0
    %v3459 = vadd.f32 %v3310, %v3458
    %v3460 = vpop.f32.mrb[0].mxu0
    %v3461 = vpop.f32.mrb[0].mxu0
    %v3462 = vadd.f32 %v3310, %v3461
    %v3463 = vpop.f32.mrb[0].mxu0
    %3464 = vmatprep.mubr.bf16.mxu0 %v3264
    %3465 = vmatmul.mubr.bf16.gmra.mrb[0].mxu0 %v3263
    %v3466 = vpop.f32.mrb[0].mxu0
    %v3467 = vadd.f32 %v3310, %v3466
    %v3468 = vpop.f32.mrb[0].mxu0
    %v3469 = vpop.f32.mrb[0].mxu0
    %v3470 = vadd.f32 %v3310, %v3469
    %v3471 = vpop.f32.mrb[0].mxu0
    %3472 = vmatprep.mubr.bf16.mxu0 %v3266
    %3473 = vmatmul.mubr.bf16.gmra.mrb[0].mxu0 %v3265
    %v3474 = vpop.f32.mrb[0].mxu0
    %v3475 = vadd.f32 %v3310, %v3474
    %v3476 = vpop.f32.mrb[0].mxu0
    %v3477 = vpop.f32.mrb[0].mxu0
    %v3478 = vadd.f32 %v3310, %v3477
    %v3479 = vpop.f32.mrb[0].mxu0
    %3480 = vmatprep.mubr.bf16.mxu0 %v3268
    %3481 = vmatmul.mubr.bf16.gmra.mrb[0].mxu0 %v3267
    %v3482 = vpop.f32.mrb[0].mxu0
    %v3483 = vadd.f32 %v3310, %v3482
    %v3484 = vpop.f32.mrb[0].mxu0
    %v3485 = vpop.f32.mrb[0].mxu0
    %v3486 = vadd.f32 %v3310, %v3485
    %v3487 = vpop.f32.mrb[0].mxu0
    %3488 = vmatprep.mubr.bf16.mxu0 %v3270
    %3489 = vmatmul.mubr.bf16.gmra.mrb[0].mxu0 %v3269
    %v3490 = vpop.f32.mrb[0].mxu0
    %v3491 = vadd.f32 %v3310, %v3490
    %v3492 = vpop.f32.mrb[0].mxu0
    %v3493 = vpop.f32.mrb[0].mxu0
    %v3494 = vadd.f32 %v3310, %v3493
    %v3495 = vpop.f32.mrb[0].mxu0
    %3496 = vmatprep.mubr.bf16.mxu0 %v3272
    %3497 = vmatmul.mubr.bf16.gmra.mrb[0].mxu0 %v3271
    %v3498 = vpop.f32.mrb[0].mxu0
    %v3499 = vadd.f32 %v3310, %v3498
    %v3500 = vpop.f32.mrb[0].mxu0
    %v3501 = vpop.f32.mrb[0].mxu0
    %v3502 = vadd.f32 %v3310, %v3501
    %v3503 = vpop.f32.mrb[0].mxu0
    %3504 = vdwg.mxu0
    %v3505 = vadd.f32 %v3443, %v2724
    %v3506 = vadd.f32 %v3446, %v2725
    %v3507 = vadd.f32 %v3451, %v2726
    %v3508 = vadd.f32 %v3454, %v2727
    %v3509 = vadd.f32 %v3459, %v2728
    %v3510 = vadd.f32 %v3462, %v2729
    %v3511 = vadd.f32 %v3467, %v2730
    %v3512 = vadd.f32 %v3470, %v2731
    %v3513 = vadd.f32 %v3475, %v2732
    %v3514 = vadd.f32 %v3478, %v2733
    %v3515 = vadd.f32 %v3483, %v2734
    %v3516 = vadd.f32 %v3486, %v2735
    %v3517 = vadd.f32 %v3491, %v2736
    %v3518 = vadd.f32 %v3494, %v2737
    %v3519 = vadd.f32 %v3499, %v2738
    %v3520 = vadd.f32 %v3502, %v2739
    %v3521 = vld [vmem:[#allocation23] sm:$0x1]
    %v3522 = vld [vmem:[#allocation25] sm:$0x1]
    %3523 = vadd.xlane.f32.xlu0 %v3505
    %v3524 = vpop.xlane.xlu0 %3523
    %3525 = vadd.xlane.f32.xlu0 %v3506
    %v3526 = vpop.xlane.xlu0 %3525
    %3527 = vadd.xlane.f32.xlu0 %v3507
    %v3528 = vpop.xlane.xlu0 %3527
    %3529 = vadd.xlane.f32.xlu0 %v3508
    %v3530 = vpop.xlane.xlu0 %3529
    %3531 = vadd.xlane.f32.xlu0 %v3509
    %v3532 = vpop.xlane.xlu0 %3531
    %3533 = vadd.xlane.f32.xlu0 %v3510
    %v3534 = vpop.xlane.xlu0 %3533
    %3535 = vadd.xlane.f32.xlu0 %v3511
    %v3536 = vpop.xlane.xlu0 %3535
    %3537 = vadd.xlane.f32.xlu0 %v3512
    %v3538 = vpop.xlane.xlu0 %3537
    %3539 = vadd.xlane.f32.xlu0 %v3513
    %v3540 = vpop.xlane.xlu0 %3539
    %3541 = vadd.xlane.f32.xlu0 %v3514
    %v3542 = vpop.xlane.xlu0 %3541
    %3543 = vadd.xlane.f32.xlu0 %v3515
    %v3544 = vpop.xlane.xlu0 %3543
    %3545 = vadd.xlane.f32.xlu0 %v3516
    %v3546 = vpop.xlane.xlu0 %3545
    %3547 = vadd.xlane.f32.xlu0 %v3517
    %v3548 = vpop.xlane.xlu0 %3547
    %3549 = vadd.xlane.f32.xlu0 %v3518
    %v3550 = vpop.xlane.xlu0 %3549
    %3551 = vadd.xlane.f32.xlu0 %v3519
    %v3552 = vpop.xlane.xlu0 %3551
    %3553 = vadd.xlane.f32.xlu0 %v3520
    %v3554 = vpop.xlane.xlu0 %3553
    %v3555 = vmul.f32 %v3524, %v341
    %v3556 = vmul.f32 %v3526, %v341
    %v3557 = vmul.f32 %v3528, %v341
    %v3558 = vmul.f32 %v3530, %v341
    %v3559 = vmul.f32 %v3532, %v341
    %v3560 = vmul.f32 %v3534, %v341
    %v3561 = vmul.f32 %v3536, %v341
    %v3562 = vmul.f32 %v3538, %v341
    %v3563 = vmul.f32 %v3540, %v341
    %v3564 = vmul.f32 %v3542, %v341
    %v3565 = vmul.f32 %v3544, %v341
    %v3566 = vmul.f32 %v3546, %v341
    %v3567 = vmul.f32 %v3548, %v341
    %v3568 = vmul.f32 %v3550, %v341
    %v3569 = vmul.f32 %v3552, %v341
    %v3570 = vmul.f32 %v3554, %v341
    %v3571 = vsub.f32 %v3505, %v3555
    %v3572 = vsub.f32 %v3506, %v3556
    %v3573 = vsub.f32 %v3507, %v3557
    %v3574 = vsub.f32 %v3508, %v3558
    %v3575 = vsub.f32 %v3509, %v3559
    %v3576 = vsub.f32 %v3510, %v3560
    %v3577 = vsub.f32 %v3511, %v3561
    %v3578 = vsub.f32 %v3512, %v3562
    %v3579 = vsub.f32 %v3513, %v3563
    %v3580 = vsub.f32 %v3514, %v3564
    %v3581 = vsub.f32 %v3515, %v3565
    %v3582 = vsub.f32 %v3516, %v3566
    %v3583 = vsub.f32 %v3517, %v3567
    %v3584 = vsub.f32 %v3518, %v3568
    %v3585 = vsub.f32 %v3519, %v3569
    %v3586 = vsub.f32 %v3520, %v3570
    %v3587 = vmul.f32 %v3571, %v3571
    %v3588 = vmul.f32 %v3572, %v3572
    %v3589 = vmul.f32 %v3573, %v3573
    %v3590 = vmul.f32 %v3574, %v3574
    %v3591 = vmul.f32 %v3575, %v3575
    %v3592 = vmul.f32 %v3576, %v3576
    %v3593 = vmul.f32 %v3577, %v3577
    %v3594 = vmul.f32 %v3578, %v3578
    %v3595 = vmul.f32 %v3579, %v3579
    %v3596 = vmul.f32 %v3580, %v3580
    %v3597 = vmul.f32 %v3581, %v3581
    %v3598 = vmul.f32 %v3582, %v3582
    %v3599 = vmul.f32 %v3583, %v3583
    %v3600 = vmul.f32 %v3584, %v3584
    %v3601 = vmul.f32 %v3585, %v3585
    %v3602 = vmul.f32 %v3586, %v3586
    %3603 = vadd.xlane.f32.xlu0 %v3587
    %v3604 = vpop.xlane.xlu0 %3603
    %3605 = vadd.xlane.f32.xlu0 %v3588
    %v3606 = vpop.xlane.xlu0 %3605
    %3607 = vadd.xlane.f32.xlu0 %v3589
    %v3608 = vpop.xlane.xlu0 %3607
    %3609 = vadd.xlane.f32.xlu0 %v3590
    %v3610 = vpop.xlane.xlu0 %3609
    %3611 = vadd.xlane.f32.xlu0 %v3591
    %v3612 = vpop.xlane.xlu0 %3611
    %3613 = vadd.xlane.f32.xlu0 %v3592
    %v3614 = vpop.xlane.xlu0 %3613
    %3615 = vadd.xlane.f32.xlu0 %v3593
    %v3616 = vpop.xlane.xlu0 %3615
    %3617 = vadd.xlane.f32.xlu0 %v3594
    %v3618 = vpop.xlane.xlu0 %3617
    %3619 = vadd.xlane.f32.xlu0 %v3595
    %v3620 = vpop.xlane.xlu0 %3619
    %3621 = vadd.xlane.f32.xlu0 %v3596
    %v3622 = vpop.xlane.xlu0 %3621
    %3623 = vadd.xlane.f32.xlu0 %v3597
    %v3624 = vpop.xlane.xlu0 %3623
    %3625 = vadd.xlane.f32.xlu0 %v3598
    %v3626 = vpop.xlane.xlu0 %3625
    %3627 = vadd.xlane.f32.xlu0 %v3599
    %v3628 = vpop.xlane.xlu0 %3627
    %3629 = vadd.xlane.f32.xlu0 %v3600
    %v3630 = vpop.xlane.xlu0 %3629
    %3631 = vadd.xlane.f32.xlu0 %v3601
    %v3632 = vpop.xlane.xlu0 %3631
    %3633 = vadd.xlane.f32.xlu0 %v3602
    %v3634 = vpop.xlane.xlu0 %3633
    %v3635 = vmul.f32 %v3604, %v341
    %v3636 = vmul.f32 %v3606, %v341
    %v3637 = vmul.f32 %v3608, %v341
    %v3638 = vmul.f32 %v3610, %v341
    %v3639 = vmul.f32 %v3612, %v341
    %v3640 = vmul.f32 %v3614, %v341
    %v3641 = vmul.f32 %v3616, %v341
    %v3642 = vmul.f32 %v3618, %v341
    %v3643 = vmul.f32 %v3620, %v341
    %v3644 = vmul.f32 %v3622, %v341
    %v3645 = vmul.f32 %v3624, %v341
    %v3646 = vmul.f32 %v3626, %v341
    %v3647 = vmul.f32 %v3628, %v341
    %v3648 = vmul.f32 %v3630, %v341
    %v3649 = vmul.f32 %v3632, %v341
    %v3650 = vmul.f32 %v3634, %v341
    %v3651 = vadd.f32 %v3635, 1e-12
    %v3652 = vadd.f32 %v3636, 1e-12
    %v3653 = vadd.f32 %v3637, 1e-12
    %v3654 = vadd.f32 %v3638, 1e-12
    %v3655 = vadd.f32 %v3639, 1e-12
    %v3656 = vadd.f32 %v3640, 1e-12
    %v3657 = vadd.f32 %v3641, 1e-12
    %v3658 = vadd.f32 %v3642, 1e-12
    %v3659 = vadd.f32 %v3643, 1e-12
    %v3660 = vadd.f32 %v3644, 1e-12
    %v3661 = vadd.f32 %v3645, 1e-12
    %v3662 = vadd.f32 %v3646, 1e-12
    %v3663 = vadd.f32 %v3647, 1e-12
    %v3664 = vadd.f32 %v3648, 1e-12
    %v3665 = vadd.f32 %v3649, 1e-12
    %v3666 = vadd.f32 %v3650, 1e-12
    %v3667 = vrsqrt.pop %v3651
    %v3668 = vrsqrt.pop %v3652
    %v3669 = vrsqrt.pop %v3653
    %v3670 = vrsqrt.pop %v3654
    %v3671 = vrsqrt.pop %v3655
    %v3672 = vrsqrt.pop %v3656
    %v3673 = vrsqrt.pop %v3657
    %v3674 = vrsqrt.pop %v3658
    %v3675 = vrsqrt.pop %v3659
    %v3676 = vrsqrt.pop %v3660
    %v3677 = vrsqrt.pop %v3661
    %v3678 = vrsqrt.pop %v3662
    %v3679 = vrsqrt.pop %v3663
    %v3680 = vrsqrt.pop %v3664
    %v3681 = vrsqrt.pop %v3665
    %v3682 = vrsqrt.pop %v3666
    %v3683 = vmul.f32 %v3571, %v3667
    %v3684 = vmul.f32 %v3572, %v3668
    %v3685 = vmul.f32 %v3573, %v3669
    %v3686 = vmul.f32 %v3574, %v3670
    %v3687 = vmul.f32 %v3575, %v3671
    %v3688 = vmul.f32 %v3576, %v3672
    %v3689 = vmul.f32 %v3577, %v3673
    %v3690 = vmul.f32 %v3578, %v3674
    %v3691 = vmul.f32 %v3579, %v3675
    %v3692 = vmul.f32 %v3580, %v3676
    %v3693 = vmul.f32 %v3581, %v3677
    %v3694 = vmul.f32 %v3582, %v3678
    %v3695 = vmul.f32 %v3583, %v3679
    %v3696 = vmul.f32 %v3584, %v3680
    %v3697 = vmul.f32 %v3585, %v3681
    %v3698 = vmul.f32 %v3586, %v3682
    %v3700 = vlaneseq
    %v3701 = vshrl.u32 %v3700, 7
    %v3702 = vsub.s32 0, %v3701
    %v3703 = vrot.slane %v3521, %v3702
    %v3705 = vmul.f32 %v3683, %v3703
    %v3706 = vmul.f32 %v3684, %v3703
    %v3707 = vmul.f32 %v3685, %v3703
    %v3708 = vmul.f32 %v3686, %v3703
    %v3709 = vmul.f32 %v3687, %v3703
    %v3710 = vmul.f32 %v3688, %v3703
    %v3711 = vmul.f32 %v3689, %v3703
    %v3712 = vmul.f32 %v3690, %v3703
    %v3713 = vmul.f32 %v3691, %v3703
    %v3714 = vmul.f32 %v3692, %v3703
    %v3715 = vmul.f32 %v3693, %v3703
    %v3716 = vmul.f32 %v3694, %v3703
    %v3717 = vmul.f32 %v3695, %v3703
    %v3718 = vmul.f32 %v3696, %v3703
    %v3719 = vmul.f32 %v3697, %v3703
    %v3720 = vmul.f32 %v3698, %v3703
    %v3722 = vlaneseq
    %v3723 = vshrl.u32 %v3722, 7
    %v3724 = vsub.s32 0, %v3723
    %v3725 = vrot.slane %v3522, %v3724
    %v3727 = vadd.f32 %v3705, %v3725
    %v3728 = vadd.f32 %v3706, %v3725
    %v3729 = vadd.f32 %v3707, %v3725
    %v3730 = vadd.f32 %v3708, %v3725
    %v3731 = vadd.f32 %v3709, %v3725
    %v3732 = vadd.f32 %v3710, %v3725
    %v3733 = vadd.f32 %v3711, %v3725
    %v3734 = vadd.f32 %v3712, %v3725
    %v3735 = vadd.f32 %v3713, %v3725
    %v3736 = vadd.f32 %v3714, %v3725
    %v3737 = vadd.f32 %v3715, %v3725
    %v3738 = vadd.f32 %v3716, %v3725
    %v3739 = vadd.f32 %v3717, %v3725
    %v3740 = vadd.f32 %v3718, %v3725
    %v3741 = vadd.f32 %v3719, %v3725
    %v3742 = vadd.f32 %v3720, %v3725
    %v3743 = vpack.c.bf16 %v3728, %v3727
    %v3744 = vpack.c.bf16 %v3730, %v3729
    %v3745 = vpack.c.bf16 %v3732, %v3731
    %v3746 = vpack.c.bf16 %v3734, %v3733
    %v3747 = vpack.c.bf16 %v3736, %v3735
    %v3748 = vpack.c.bf16 %v3738, %v3737
    %v3749 = vpack.c.bf16 %v3740, %v3739
    %v3750 = vpack.c.bf16 %v3742, %v3741
    %s3751 = scalar_lea.vmem [#allocation10], 192
    %v3752 = vld [vmem:[%s3751] sm:$0xff]
    %v3753 = vld [vmem:[%s3751 + $0x8] sm:$0xf]
    %v3754 = vld [vmem:[%s3751 + $0xc] sm:$0xff]
    %v3755 = vld [vmem:[%s3751 + $0x14] sm:$0xf]
    %v3756 = vld [vmem:[%s3751 + $0x18] sm:$0xff]
    %v3757 = vld [vmem:[%s3751 + $0x20] sm:$0xf]
    %v3758 = vld [vmem:[%s3751 + $0x24] sm:$0xff]
    %v3759 = vld [vmem:[%s3751 + $0x2c] sm:$0xf]
    %v3760 = vld [vmem:[%s3751 + $0x30] sm:$0xff]
    %v3761 = vld [vmem:[%s3751 + $0x38] sm:$0xf]
    %v3762 = vld [vmem:[%s3751 + $0x3c] sm:$0xff]
    %v3763 = vld [vmem:[%s3751 + $0x44] sm:$0xf]
    %v3764 = vld [vmem:[%s3751 + $0x48] sm:$0xff]
    %v3765 = vld [vmem:[%s3751 + $0x50] sm:$0xf]
    %v3766 = vld [vmem:[%s3751 + $0x54] sm:$0xff]
    %v3767 = vld [vmem:[%s3751 + $0x5c] sm:$0xf]
    %v3768 = vld [vmem:[%s3751 + $0x60] sm:$0xff]
    %v3769 = vld [vmem:[%s3751 + $0x68] sm:$0xf]
    %v3770 = vld [vmem:[%s3751 + $0x6c] sm:$0xff]
    %v3771 = vld [vmem:[%s3751 + $0x74] sm:$0xf]
    %v3772 = vld [vmem:[%s3751 + $0x78] sm:$0xff]
    %v3773 = vld [vmem:[%s3751 + $0x80] sm:$0xf]
    %v3774 = vld [vmem:[%s3751 + $0x84] sm:$0xff]
    %v3775 = vld [vmem:[%s3751 + $0x8c] sm:$0xf]
    %v3776 = vld [vmem:[%s3751 + $0x90] sm:$0xff]
    %v3777 = vld [vmem:[%s3751 + $0x98] sm:$0xf]
    %v3778 = vld [vmem:[%s3751 + $0x9c] sm:$0xff]
    %v3779 = vld [vmem:[%s3751 + $0xa4] sm:$0xf]
    %v3780 = vld [vmem:[%s3751 + $0xa8] sm:$0xff]
    %v3781 = vld [vmem:[%s3751 + $0xb0] sm:$0xf]
    %v3782 = vld [vmem:[%s3751 + $0xb4] sm:$0xff]
    %v3783 = vld [vmem:[%s3751 + $0xbc] sm:$0xf]
    %s3784 = scalar_lea.vmem [#allocation11], 3
    %v3785 = vld [vmem:[%s3784] sm:$0x7]
    %v3787 = vlaneseq
    %v3788 = vshrl.u32 %v3787, 7
    %v3789 = vsub.s32 0, %v3788
    %v3790 = vrot.slane %v3785, %v3789
    %v3791 = vlaneseq
    %v3792 = vshrl.u32 %v3791, 7
    %v3793 = vsub.s32 1, %v3792
    %v3794 = vrot.slane %v3785, %v3793
    %v3795 = vlaneseq
    %v3796 = vshrl.u32 %v3795, 7
    %v3797 = vsub.s32 2, %v3796
    %v3798 = vrot.slane %v3785, %v3797
    %v3834 = vunpack.c.l.b16 %v3752
    %v3835 = vunpack.c.h.b16 %v3752
    %v3836 = vunpack.c.l.b16 %v3753
    %v3837 = vunpack.c.l.b16 %v3754
    %v3838 = vunpack.c.h.b16 %v3754
    %v3839 = vunpack.c.l.b16 %v3755
    %v3840 = vunpack.c.l.b16 %v3756
    %v3841 = vunpack.c.h.b16 %v3756
    %v3842 = vunpack.c.l.b16 %v3757
    %v3843 = vunpack.c.l.b16 %v3758
    %v3844 = vunpack.c.h.b16 %v3758
    %v3845 = vunpack.c.l.b16 %v3759
    %v3846 = vunpack.c.l.b16 %v3760
    %v3847 = vunpack.c.h.b16 %v3760
    %v3848 = vunpack.c.l.b16 %v3761
    %v3849 = vunpack.c.l.b16 %v3762
    %v3850 = vunpack.c.h.b16 %v3762
    %v3851 = vunpack.c.l.b16 %v3763
    %v3852 = vunpack.c.l.b16 %v3764
    %v3853 = vunpack.c.h.b16 %v3764
    %v3854 = vunpack.c.l.b16 %v3765
    %v3855 = vunpack.c.l.b16 %v3766
    %v3856 = vunpack.c.h.b16 %v3766
    %v3857 = vunpack.c.l.b16 %v3767
    %v3858 = vunpack.c.l.b16 %v3768
    %v3859 = vunpack.c.h.b16 %v3768
    %v3860 = vunpack.c.l.b16 %v3769
    %v3861 = vunpack.c.l.b16 %v3770
    %v3862 = vunpack.c.h.b16 %v3770
    %v3863 = vunpack.c.l.b16 %v3771
    %v3864 = vunpack.c.l.b16 %v3772
    %v3865 = vunpack.c.h.b16 %v3772
    %v3866 = vunpack.c.l.b16 %v3773
    %v3867 = vunpack.c.l.b16 %v3774
    %v3868 = vunpack.c.h.b16 %v3774
    %v3869 = vunpack.c.l.b16 %v3775
    %v3870 = vunpack.c.l.b16 %v3776
    %v3871 = vunpack.c.h.b16 %v3776
    %v3872 = vunpack.c.l.b16 %v3777
    %v3873 = vunpack.c.l.b16 %v3778
    %v3874 = vunpack.c.h.b16 %v3778
    %v3875 = vunpack.c.l.b16 %v3779
    %v3876 = vunpack.c.l.b16 %v3780
    %v3877 = vunpack.c.h.b16 %v3780
    %v3878 = vunpack.c.l.b16 %v3781
    %v3879 = vunpack.c.l.b16 %v3782
    %v3880 = vunpack.c.h.b16 %v3782
    %v3881 = vunpack.c.l.b16 %v3783
    %v3882 = vpack.c.b16 %v3837, %v3834
    %v3883 = vpack.c.b16 %v3838, %v3835
    %v3884 = vpack.c.b16 %v3839, %v3836
    %v3885 = vpack.c.b16 %v3843, %v3840
    %v3886 = vpack.c.b16 %v3844, %v3841
    %v3887 = vpack.c.b16 %v3845, %v3842
    %v3888 = vpack.c.b16 %v3849, %v3846
    %v3889 = vpack.c.b16 %v3850, %v3847
    %v3890 = vpack.c.b16 %v3851, %v3848
    %v3891 = vpack.c.b16 %v3855, %v3852
    %v3892 = vpack.c.b16 %v3856, %v3853
    %v3893 = vpack.c.b16 %v3857, %v3854
    %v3894 = vpack.c.b16 %v3861, %v3858
    %v3895 = vpack.c.b16 %v3862, %v3859
    %v3896 = vpack.c.b16 %v3863, %v3860
    %v3897 = vpack.c.b16 %v3867, %v3864
    %v3898 = vpack.c.b16 %v3868, %v3865
    %v3899 = vpack.c.b16 %v3869, %v3866
    %v3900 = vpack.c.b16 %v3873, %v3870
    %v3901 = vpack.c.b16 %v3874, %v3871
    %v3902 = vpack.c.b16 %v3875, %v3872
    %v3903 = vpack.c.b16 %v3879, %v3876
    %v3904 = vpack.c.b16 %v3880, %v3877
    %v3905 = vpack.c.b16 %v3881, %v3878
    %3930 = vmatprep.subr.bf16.mxu0 %v3883
    %3931 = vmatpush1.bf16.msra.mxu0 %v3882
    %3932 = vmatprep.subr.bf16.mxu0 %v3886
    %3933 = vmatpush1.bf16.msra.mxu0 %v3885
    %3934 = vmatprep.subr.bf16.mxu0 %v3889
    %3935 = vmatpush1.bf16.msra.mxu0 %v3888
    %3936 = vmatprep.subr.bf16.mxu0 %v3892
    %3937 = vmatpush1.bf16.msra.mxu0 %v3891
    %3938 = vmatprep.subr.bf16.mxu0 %v3895
    %3939 = vmatpush1.bf16.msra.mxu0 %v3894
    %3940 = vmatprep.subr.bf16.mxu0 %v3898
    %3941 = vmatpush1.bf16.msra.mxu0 %v3897
    %3942 = vmatprep.subr.bf16.mxu0 %v3901
    %3943 = vmatpush1.bf16.msra.mxu0 %v3900
    %3944 = vmatprep.subr.bf16.mxu0 %v3904
    %3945 = vmatpush1.bf16.msra.mxu0 %v3903
    %3946 = vmatprep.subr.bf16.mxu0 0
    %3947 = vmatpush1.bf16.msra.mxu0 0
    %3948 = vmatprep.subr.bf16.mxu0 0
    %3949 = vmatpush1.bf16.msra.mxu0 0
    %3950 = vmatprep.subr.bf16.mxu0 0
    %3951 = vmatpush1.bf16.msra.mxu0 0
    %3952 = vmatprep.subr.bf16.mxu0 0
    %3953 = vmatpush1.bf16.msra.mxu0 0
    %3954 = vmatprep.subr.bf16.mxu0 0
    %3955 = vmatpush1.bf16.msra.mxu0 0
    %3956 = vmatprep.subr.bf16.mxu0 0
    %3957 = vmatpush1.bf16.msra.mxu0 0
    %3958 = vmatprep.subr.bf16.mxu0 0
    %3959 = vmatpush1.bf16.msra.mxu0 0
    %3960 = vmatprep.subr.bf16.mxu0 0
    %3961 = vmatpush1.bf16.msra.mxu0 0
    %3962 = vmatprep.mubr.bf16.mxu0 0
    %3963 = vmatmul.mubr.bf16.gmra.mrb[0].mxu0 %v3743
    %v3964 = vpop.f32.mrb[0].mxu0
    %v3965 = vadd.f32 %v3790, %v3964
    %v3966 = vpop.f32.mrb[0].mxu0
    %v3967 = vadd.f32 %v3794, %v3966
    %v3968 = vpop.f32.mrb[0].mxu0
    %v3969 = vadd.f32 %v3790, %v3968
    %v3970 = vpop.f32.mrb[0].mxu0
    %v3971 = vadd.f32 %v3794, %v3970
    %3972 = vmatprep.mubr.bf16.mxu0 0
    %3973 = vmatmul.mubr.bf16.gmra.mrb[0].mxu0 %v3744
    %v3974 = vpop.f32.mrb[0].mxu0
    %v3975 = vadd.f32 %v3790, %v3974
    %v3976 = vpop.f32.mrb[0].mxu0
    %v3977 = vadd.f32 %v3794, %v3976
    %v3978 = vpop.f32.mrb[0].mxu0
    %v3979 = vadd.f32 %v3790, %v3978
    %v3980 = vpop.f32.mrb[0].mxu0
    %v3981 = vadd.f32 %v3794, %v3980
    %3982 = vmatprep.mubr.bf16.mxu0 0
    %3983 = vmatmul.mubr.bf16.gmra.mrb[0].mxu0 %v3745
    %v3984 = vpop.f32.mrb[0].mxu0
    %v3985 = vadd.f32 %v3790, %v3984
    %v3986 = vpop.f32.mrb[0].mxu0
    %v3987 = vadd.f32 %v3794, %v3986
    %v3988 = vpop.f32.mrb[0].mxu0
    %v3989 = vadd.f32 %v3790, %v3988
    %v3990 = vpop.f32.mrb[0].mxu0
    %v3991 = vadd.f32 %v3794, %v3990
    %3992 = vmatprep.mubr.bf16.mxu0 0
    %3993 = vmatmul.mubr.bf16.gmra.mrb[0].mxu0 %v3746
    %v3994 = vpop.f32.mrb[0].mxu0
    %v3995 = vadd.f32 %v3790, %v3994
    %v3996 = vpop.f32.mrb[0].mxu0
    %v3997 = vadd.f32 %v3794, %v3996
    %v3998 = vpop.f32.mrb[0].mxu0
    %v3999 = vadd.f32 %v3790, %v3998
    %v4000 = vpop.f32.mrb[0].mxu0
    %v4001 = vadd.f32 %v3794, %v4000
    %4002 = vmatprep.mubr.bf16.mxu0 0
    %4003 = vmatmul.mubr.bf16.gmra.mrb[0].mxu0 %v3747
    %v4004 = vpop.f32.mrb[0].mxu0
    %v4005 = vadd.f32 %v3790, %v4004
    %v4006 = vpop.f32.mrb[0].mxu0
    %v4007 = vadd.f32 %v3794, %v4006
    %v4008 = vpop.f32.mrb[0].mxu0
    %v4009 = vadd.f32 %v3790, %v4008
    %v4010 = vpop.f32.mrb[0].mxu0
    %v4011 = vadd.f32 %v3794, %v4010
    %4012 = vmatprep.mubr.bf16.mxu0 0
    %4013 = vmatmul.mubr.bf16.gmra.mrb[0].mxu0 %v3748
    %v4014 = vpop.f32.mrb[0].mxu0
    %v4015 = vadd.f32 %v3790, %v4014
    %v4016 = vpop.f32.mrb[0].mxu0
    %v4017 = vadd.f32 %v3794, %v4016
    %v4018 = vpop.f32.mrb[0].mxu0
    %v4019 = vadd.f32 %v3790, %v4018
    %v4020 = vpop.f32.mrb[0].mxu0
    %v4021 = vadd.f32 %v3794, %v4020
    %4022 = vmatprep.mubr.bf16.mxu0 0
    %4023 = vmatmul.mubr.bf16.gmra.mrb[0].mxu0 %v3749
    %v4024 = vpop.f32.mrb[0].mxu0
    %v4025 = vadd.f32 %v3790, %v4024
    %v4026 = vpop.f32.mrb[0].mxu0
    %v4027 = vadd.f32 %v3794, %v4026
    %v4028 = vpop.f32.mrb[0].mxu0
    %v4029 = vadd.f32 %v3790, %v4028
    %v4030 = vpop.f32.mrb[0].mxu0
    %v4031 = vadd.f32 %v3794, %v4030
    %4032 = vmatprep.mubr.bf16.mxu0 0
    %4033 = vmatmul.mubr.bf16.gmra.mrb[0].mxu0 %v3750
    %v4034 = vpop.f32.mrb[0].mxu0
    %v4035 = vadd.f32 %v3790, %v4034
    %v4036 = vpop.f32.mrb[0].mxu0
    %v4037 = vadd.f32 %v3794, %v4036
    %v4038 = vpop.f32.mrb[0].mxu0
    %v4039 = vadd.f32 %v3790, %v4038
    %v4040 = vpop.f32.mrb[0].mxu0
    %v4041 = vadd.f32 %v3794, %v4040
    %4042 = vdwg.mxu0
    %4043 = vmatprep.subr.bf16.mxu0 0
    %4044 = vmatpush1.bf16.msra.mxu0 %v3884
    %4045 = vmatprep.subr.bf16.mxu0 0
    %4046 = vmatpush1.bf16.msra.mxu0 %v3887
    %4047 = vmatprep.subr.bf16.mxu0 0
    %4048 = vmatpush1.bf16.msra.mxu0 %v3890
    %4049 = vmatprep.subr.bf16.mxu0 0
    %4050 = vmatpush1.bf16.msra.mxu0 %v3893
    %4051 = vmatprep.subr.bf16.mxu0 0
    %4052 = vmatpush1.bf16.msra.mxu0 %v3896
    %4053 = vmatprep.subr.bf16.mxu0 0
    %4054 = vmatpush1.bf16.msra.mxu0 %v3899
    %4055 = vmatprep.subr.bf16.mxu0 0
    %4056 = vmatpush1.bf16.msra.mxu0 %v3902
    %4057 = vmatprep.subr.bf16.mxu0 0
    %4058 = vmatpush1.bf16.msra.mxu0 %v3905
    %4059 = vmatprep.subr.bf16.mxu0 0
    %4060 = vmatpush1.bf16.msra.mxu0 0
    %4061 = vmatprep.subr.bf16.mxu0 0
    %4062 = vmatpush1.bf16.msra.mxu0 0
    %4063 = vmatprep.subr.bf16.mxu0 0
    %4064 = vmatpush1.bf16.msra.mxu0 0
    %4065 = vmatprep.subr.bf16.mxu0 0
    %4066 = vmatpush1.bf16.msra.mxu0 0
    %4067 = vmatprep.subr.bf16.mxu0 0
    %4068 = vmatpush1.bf16.msra.mxu0 0
    %4069 = vmatprep.subr.bf16.mxu0 0
    %4070 = vmatpush1.bf16.msra.mxu0 0
    %4071 = vmatprep.subr.bf16.mxu0 0
    %4072 = vmatpush1.bf16.msra.mxu0 0
    %4073 = vmatprep.subr.bf16.mxu0 0
    %4074 = vmatpush1.bf16.msra.mxu0 0
    %4075 = vmatprep.mubr.bf16.mxu0 0
    %4076 = vmatmul.mubr.bf16.gmra.mrb[0].mxu0 %v3743
    %v4077 = vpop.f32.mrb[0].mxu0
    %v4078 = vadd.f32 %v3798, %v4077
    %v4079 = vpop.f32.mrb[0].mxu0
    %v4080 = vpop.f32.mrb[0].mxu0
    %v4081 = vadd.f32 %v3798, %v4080
    %v4082 = vpop.f32.mrb[0].mxu0
    %4083 = vmatprep.mubr.bf16.mxu0 0
    %4084 = vmatmul.mubr.bf16.gmra.mrb[0].mxu0 %v3744
    %v4085 = vpop.f32.mrb[0].mxu0
    %v4086 = vadd.f32 %v3798, %v4085
    %v4087 = vpop.f32.mrb[0].mxu0
    %v4088 = vpop.f32.mrb[0].mxu0
    %v4089 = vadd.f32 %v3798, %v4088
    %v4090 = vpop.f32.mrb[0].mxu0
    %4091 = vmatprep.mubr.bf16.mxu0 0
    %4092 = vmatmul.mubr.bf16.gmra.mrb[0].mxu0 %v3745
    %v4093 = vpop.f32.mrb[0].mxu0
    %v4094 = vadd.f32 %v3798, %v4093
    %v4095 = vpop.f32.mrb[0].mxu0
    %v4096 = vpop.f32.mrb[0].mxu0
    %v4097 = vadd.f32 %v3798, %v4096
    %v4098 = vpop.f32.mrb[0].mxu0
    %4099 = vmatprep.mubr.bf16.mxu0 0
    %4100 = vmatmul.mubr.bf16.gmra.mrb[0].mxu0 %v3746
    %v4101 = vpop.f32.mrb[0].mxu0
    %v4102 = vadd.f32 %v3798, %v4101
    %v4103 = vpop.f32.mrb[0].mxu0
    %v4104 = vpop.f32.mrb[0].mxu0
    %v4105 = vadd.f32 %v3798, %v4104
    %v4106 = vpop.f32.mrb[0].mxu0
    %4107 = vmatprep.mubr.bf16.mxu0 0
    %4108 = vmatmul.mubr.bf16.gmra.mrb[0].mxu0 %v3747
    %v4109 = vpop.f32.mrb[0].mxu0
    %v4110 = vadd.f32 %v3798, %v4109
    %v4111 = vpop.f32.mrb[0].mxu0
    %v4112 = vpop.f32.mrb[0].mxu0
    %v4113 = vadd.f32 %v3798, %v4112
    %v4114 = vpop.f32.mrb[0].mxu0
    %4115 = vmatprep.mubr.bf16.mxu0 0
    %4116 = vmatmul.mubr.bf16.gmra.mrb[0].mxu0 %v3748
    %v4117 = vpop.f32.mrb[0].mxu0
    %v4118 = vadd.f32 %v3798, %v4117
    %v4119 = vpop.f32.mrb[0].mxu0
    %v4120 = vpop.f32.mrb[0].mxu0
    %v4121 = vadd.f32 %v3798, %v4120
    %v4122 = vpop.f32.mrb[0].mxu0
    %4123 = vmatprep.mubr.bf16.mxu0 0
    %4124 = vmatmul.mubr.bf16.gmra.mrb[0].mxu0 %v3749
    %v4125 = vpop.f32.mrb[0].mxu0
    %v4126 = vadd.f32 %v3798, %v4125
    %v4127 = vpop.f32.mrb[0].mxu0
    %v4128 = vpop.f32.mrb[0].mxu0
    %v4129 = vadd.f32 %v3798, %v4128
    %v4130 = vpop.f32.mrb[0].mxu0
    %4131 = vmatprep.mubr.bf16.mxu0 0
    %4132 = vmatmul.mubr.bf16.gmra.mrb[0].mxu0 %v3750
    %v4133 = vpop.f32.mrb[0].mxu0
    %v4134 = vadd.f32 %v3798, %v4133
    %v4135 = vpop.f32.mrb[0].mxu0
    %v4136 = vpop.f32.mrb[0].mxu0
    %v4137 = vadd.f32 %v3798, %v4136
    %v4138 = vpop.f32.mrb[0].mxu0
    %4139 = vdwg.mxu0
    %v4140 = vmul.f32 %v3965, 0.125
    %v4141 = vmul.f32 %v3969, 0.125
    %v4142 = vmul.f32 %v3975, 0.125
    %v4143 = vmul.f32 %v3979, 0.125
    %v4144 = vmul.f32 %v3985, 0.125
    %v4145 = vmul.f32 %v3989, 0.125
    %v4146 = vmul.f32 %v3995, 0.125
    %v4147 = vmul.f32 %v3999, 0.125
    %v4148 = vmul.f32 %v4005, 0.125
    %v4149 = vmul.f32 %v4009, 0.125
    %v4150 = vmul.f32 %v4015, 0.125
    %v4151 = vmul.f32 %v4019, 0.125
    %v4152 = vmul.f32 %v4025, 0.125
    %v4153 = vmul.f32 %v4029, 0.125
    %v4154 = vmul.f32 %v4035, 0.125
    %v4155 = vmul.f32 %v4039, 0.125
    %4172 = vrot.lane.b32.xlu0 %v4140, 64
    %v4173 = vpop.permute.xlu0 %4172
    %4174 = vrot.lane.b32.xlu0 %v4141, 64
    %v4175 = vpop.permute.xlu0 %4174
    %4176 = vrot.lane.b32.xlu0 %v4142, 64
    %v4177 = vpop.permute.xlu0 %4176
    %4178 = vrot.lane.b32.xlu0 %v4143, 64
    %v4179 = vpop.permute.xlu0 %4178
    %4180 = vrot.lane.b32.xlu0 %v4144, 64
    %v4181 = vpop.permute.xlu0 %4180
    %4182 = vrot.lane.b32.xlu0 %v4145, 64
    %v4183 = vpop.permute.xlu0 %4182
    %4184 = vrot.lane.b32.xlu0 %v4146, 64
    %v4185 = vpop.permute.xlu0 %4184
    %4186 = vrot.lane.b32.xlu0 %v4147, 64
    %v4187 = vpop.permute.xlu0 %4186
    %4188 = vrot.lane.b32.xlu0 %v4148, 64
    %v4189 = vpop.permute.xlu0 %4188
    %4190 = vrot.lane.b32.xlu0 %v4149, 64
    %v4191 = vpop.permute.xlu0 %4190
    %4192 = vrot.lane.b32.xlu0 %v4150, 64
    %v4193 = vpop.permute.xlu0 %4192
    %4194 = vrot.lane.b32.xlu0 %v4151, 64
    %v4195 = vpop.permute.xlu0 %4194
    %4196 = vrot.lane.b32.xlu0 %v4152, 64
    %v4197 = vpop.permute.xlu0 %4196
    %4198 = vrot.lane.b32.xlu0 %v4153, 64
    %v4199 = vpop.permute.xlu0 %4198
    %4200 = vrot.lane.b32.xlu0 %v4154, 64
    %v4201 = vpop.permute.xlu0 %4200
    %4202 = vrot.lane.b32.xlu0 %v4155, 64
    %v4203 = vpop.permute.xlu0 %4202
    %v4220 = vpack.c.bf16 %v4141, %v4140
    %v4221 = vpack.c.bf16 %v4143, %v4142
    %v4222 = vpack.c.bf16 %v4145, %v4144
    %v4223 = vpack.c.bf16 %v4147, %v4146
    %v4224 = vpack.c.bf16 %v4149, %v4148
    %v4225 = vpack.c.bf16 %v4151, %v4150
    %v4226 = vpack.c.bf16 %v4153, %v4152
    %v4227 = vpack.c.bf16 %v4155, %v4154
    %v4228 = vpack.c.bf16 %v4175, %v4173
    %v4229 = vpack.c.bf16 %v4179, %v4177
    %v4230 = vpack.c.bf16 %v4183, %v4181
    %v4231 = vpack.c.bf16 %v4187, %v4185
    %v4232 = vpack.c.bf16 %v4191, %v4189
    %v4233 = vpack.c.bf16 %v4195, %v4193
    %v4234 = vpack.c.bf16 %v4199, %v4197
    %v4235 = vpack.c.bf16 %v4203, %v4201
    %4252 = vrot.lane.b32.xlu0 %v3967, 64
    %v4253 = vpop.permute.xlu0 %4252
    %4254 = vrot.lane.b32.xlu0 %v3971, 64
    %v4255 = vpop.permute.xlu0 %4254
    %4256 = vrot.lane.b32.xlu0 %v3977, 64
    %v4257 = vpop.permute.xlu0 %4256
    %4258 = vrot.lane.b32.xlu0 %v3981, 64
    %v4259 = vpop.permute.xlu0 %4258
    %4260 = vrot.lane.b32.xlu0 %v3987, 64
    %v4261 = vpop.permute.xlu0 %4260
    %4262 = vrot.lane.b32.xlu0 %v3991, 64
    %v4263 = vpop.permute.xlu0 %4262
    %4264 = vrot.lane.b32.xlu0 %v3997, 64
    %v4265 = vpop.permute.xlu0 %4264
    %4266 = vrot.lane.b32.xlu0 %v4001, 64
    %v4267 = vpop.permute.xlu0 %4266
    %4268 = vrot.lane.b32.xlu0 %v4007, 64
    %v4269 = vpop.permute.xlu0 %4268
    %4270 = vrot.lane.b32.xlu0 %v4011, 64
    %v4271 = vpop.permute.xlu0 %4270
    %4272 = vrot.lane.b32.xlu0 %v4017, 64
    %v4273 = vpop.permute.xlu0 %4272
    %4274 = vrot.lane.b32.xlu0 %v4021, 64
    %v4275 = vpop.permute.xlu0 %4274
    %4276 = vrot.lane.b32.xlu0 %v4027, 64
    %v4277 = vpop.permute.xlu0 %4276
    %4278 = vrot.lane.b32.xlu0 %v4031, 64
    %v4279 = vpop.permute.xlu0 %4278
    %4280 = vrot.lane.b32.xlu0 %v4037, 64
    %v4281 = vpop.permute.xlu0 %4280
    %4282 = vrot.lane.b32.xlu0 %v4041, 64
    %v4283 = vpop.permute.xlu0 %4282
    %v4300 = vpack.c.bf16 %v3971, %v3967
    %v4301 = vpack.c.bf16 %v3981, %v3977
    %v4302 = vpack.c.bf16 %v3991, %v3987
    %v4303 = vpack.c.bf16 %v4001, %v3997
    %v4304 = vpack.c.bf16 %v4011, %v4007
    %v4305 = vpack.c.bf16 %v4021, %v4017
    %v4306 = vpack.c.bf16 %v4031, %v4027
    %v4307 = vpack.c.bf16 %v4041, %v4037
    %v4308 = vpack.c.bf16 %v4255, %v4253
    %v4309 = vpack.c.bf16 %v4259, %v4257
    %v4310 = vpack.c.bf16 %v4263, %v4261
    %v4311 = vpack.c.bf16 %v4267, %v4265
    %v4312 = vpack.c.bf16 %v4271, %v4269
    %v4313 = vpack.c.bf16 %v4275, %v4273
    %v4314 = vpack.c.bf16 %v4279, %v4277
    %v4315 = vpack.c.bf16 %v4283, %v4281
    %4332 = vrot.lane.b32.xlu0 %v4078, 64
    %v4333 = vpop.permute.xlu0 %4332
    %4334 = vrot.lane.b32.xlu0 %v4081, 64
    %v4335 = vpop.permute.xlu0 %4334
    %4336 = vrot.lane.b32.xlu0 %v4086, 64
    %v4337 = vpop.permute.xlu0 %4336
    %4338 = vrot.lane.b32.xlu0 %v4089, 64
    %v4339 = vpop.permute.xlu0 %4338
    %4340 = vrot.lane.b32.xlu0 %v4094, 64
    %v4341 = vpop.permute.xlu0 %4340
    %4342 = vrot.lane.b32.xlu0 %v4097, 64
    %v4343 = vpop.permute.xlu0 %4342
    %4344 = vrot.lane.b32.xlu0 %v4102, 64
    %v4345 = vpop.permute.xlu0 %4344
    %4346 = vrot.lane.b32.xlu0 %v4105, 64
    %v4347 = vpop.permute.xlu0 %4346
    %4348 = vrot.lane.b32.xlu0 %v4110, 64
    %v4349 = vpop.permute.xlu0 %4348
    %4350 = vrot.lane.b32.xlu0 %v4113, 64
    %v4351 = vpop.permute.xlu0 %4350
    %4352 = vrot.lane.b32.xlu0 %v4118, 64
    %v4353 = vpop.permute.xlu0 %4352
    %4354 = vrot.lane.b32.xlu0 %v4121, 64
    %v4355 = vpop.permute.xlu0 %4354
    %4356 = vrot.lane.b32.xlu0 %v4126, 64
    %v4357 = vpop.permute.xlu0 %4356
    %4358 = vrot.lane.b32.xlu0 %v4129, 64
    %v4359 = vpop.permute.xlu0 %4358
    %4360 = vrot.lane.b32.xlu0 %v4134, 64
    %v4361 = vpop.permute.xlu0 %4360
    %4362 = vrot.lane.b32.xlu0 %v4137, 64
    %v4363 = vpop.permute.xlu0 %4362
    %v4380 = vpack.c.bf16 %v4081, %v4078
    %v4381 = vpack.c.bf16 %v4089, %v4086
    %v4382 = vpack.c.bf16 %v4097, %v4094
    %v4383 = vpack.c.bf16 %v4105, %v4102
    %v4384 = vpack.c.bf16 %v4113, %v4110
    %v4385 = vpack.c.bf16 %v4121, %v4118
    %v4386 = vpack.c.bf16 %v4129, %v4126
    %v4387 = vpack.c.bf16 %v4137, %v4134
    %v4388 = vpack.c.bf16 %v4335, %v4333
    %v4389 = vpack.c.bf16 %v4339, %v4337
    %v4390 = vpack.c.bf16 %v4343, %v4341
    %v4391 = vpack.c.bf16 %v4347, %v4345
    %v4392 = vpack.c.bf16 %v4351, %v4349
    %v4393 = vpack.c.bf16 %v4355, %v4353
    %v4394 = vpack.c.bf16 %v4359, %v4357
    %v4395 = vpack.c.bf16 %v4363, %v4361
    %v4397 = vsel %vm1213, %v4220, 0
    %v4400 = vsel %vm1213, %v4221, 0
    %v4403 = vsel %vm1213, %v4222, 0
    %v4406 = vsel %vm1213, %v4223, 0
    %v4409 = vsel %vm1213, %v4300, 0
    %v4412 = vsel %vm1213, %v4301, 0
    %v4415 = vsel %vm1213, %v4302, 0
    %v4418 = vsel %vm1213, %v4303, 0
    %4420 = vmatprep.subr.bf16.mxu0 0
    %4421 = vmatpush1.bf16.xpose.msra.mxu0 %v4409
    %4422 = vmatprep.subr.bf16.mxu0 0
    %4423 = vmatpush1.bf16.xpose.msra.mxu0 %v4412
    %4424 = vmatprep.subr.bf16.mxu0 0
    %4425 = vmatpush1.bf16.xpose.msra.mxu0 %v4415
    %4426 = vmatprep.subr.bf16.mxu0 0
    %4427 = vmatpush1.bf16.xpose.msra.mxu0 %v4418
    %4428 = vmatprep.subr.bf16.mxu0 0
    %4429 = vmatpush1.bf16.xpose.msra.mxu0 0
    %4430 = vmatprep.subr.bf16.mxu0 0
    %4431 = vmatpush1.bf16.xpose.msra.mxu0 0
    %4432 = vmatprep.subr.bf16.mxu0 0
    %4433 = vmatpush1.bf16.xpose.msra.mxu0 0
    %4434 = vmatprep.subr.bf16.mxu0 0
    %4435 = vmatpush1.bf16.xpose.msra.mxu0 0
    %4436 = vmatprep.subr.bf16.mxu0 0
    %4437 = vmatpush1.bf16.xpose.msra.mxu0 0
    %4438 = vmatprep.subr.bf16.mxu0 0
    %4439 = vmatpush1.bf16.xpose.msra.mxu0 0
    %4440 = vmatprep.subr.bf16.mxu0 0
    %4441 = vmatpush1.bf16.xpose.msra.mxu0 0
    %4442 = vmatprep.subr.bf16.mxu0 0
    %4443 = vmatpush1.bf16.xpose.msra.mxu0 0
    %4444 = vmatprep.subr.bf16.mxu0 0
    %4445 = vmatpush1.bf16.xpose.msra.mxu0 0
    %4446 = vmatprep.subr.bf16.mxu0 0
    %4447 = vmatpush1.bf16.xpose.msra.mxu0 0
    %4448 = vmatprep.subr.bf16.mxu0 0
    %4449 = vmatpush1.bf16.xpose.msra.mxu0 0
    %4450 = vmatprep.subr.bf16.mxu0 0
    %4451 = vmatpush1.bf16.xpose.msra.mxu0 0
    %4452 = vmatprep.mubr.bf16.mxu0 0
    %4453 = vmatmul.mubr.bf16.gmra.mrb[0].mxu0 %v4397
    %v4454 = vpop.f32.mrb[0].mxu0
    %v4455 = vadd.f32 %v530, %v4454
    %v4456 = vpop.f32.mrb[0].mxu0
    %v4457 = vpop.f32.mrb[0].mxu0
    %v4458 = vadd.f32 %v531, %v4457
    %v4459 = vpop.f32.mrb[0].mxu0
    %4460 = vmatprep.mubr.bf16.mxu0 0
    %4461 = vmatmul.mubr.bf16.gmra.mrb[0].mxu0 %v4400
    %v4462 = vpop.f32.mrb[0].mxu0
    %v4463 = vadd.f32 %v532, %v4462
    %v4464 = vpop.f32.mrb[0].mxu0
    %v4465 = vpop.f32.mrb[0].mxu0
    %v4466 = vadd.f32 %v533, %v4465
    %v4467 = vpop.f32.mrb[0].mxu0
    %4468 = vmatprep.mubr.bf16.mxu0 0
    %4469 = vmatmul.mubr.bf16.gmra.mrb[0].mxu0 %v4403
    %v4470 = vpop.f32.mrb[0].mxu0
    %v4471 = vadd.f32 %v534, %v4470
    %v4472 = vpop.f32.mrb[0].mxu0
    %v4473 = vpop.f32.mrb[0].mxu0
    %v4474 = vadd.f32 %v535, %v4473
    %v4475 = vpop.f32.mrb[0].mxu0
    %4476 = vmatprep.mubr.bf16.mxu0 0
    %4477 = vmatmul.mubr.bf16.gmra.mrb[0].mxu0 %v4406
    %v4478 = vpop.f32.mrb[0].mxu0
    %v4479 = vadd.f32 %v536, %v4478
    %v4480 = vpop.f32.mrb[0].mxu0
    %v4481 = vpop.f32.mrb[0].mxu0
    %v4482 = vadd.f32 %v537, %v4481
    %v4483 = vpop.f32.mrb[0].mxu0
    %4484 = vdwg.mxu0
    %v4486 = vsel %vm1213, %v4224, 0
    %v4489 = vsel %vm1213, %v4225, 0
    %v4492 = vsel %vm1213, %v4226, 0
    %v4495 = vsel %vm1213, %v4227, 0
    %v4498 = vsel %vm1213, %v4304, 0
    %v4501 = vsel %vm1213, %v4305, 0
    %v4504 = vsel %vm1213, %v4306, 0
    %v4507 = vsel %vm1213, %v4307, 0
    %4509 = vmatprep.subr.bf16.mxu0 0
    %4510 = vmatpush1.bf16.xpose.msra.mxu0 %v4498
    %4511 = vmatprep.subr.bf16.mxu0 0
    %4512 = vmatpush1.bf16.xpose.msra.mxu0 %v4501
    %4513 = vmatprep.subr.bf16.mxu0 0
    %4514 = vmatpush1.bf16.xpose.msra.mxu0 %v4504
    %4515 = vmatprep.subr.bf16.mxu0 0
    %4516 = vmatpush1.bf16.xpose.msra.mxu0 %v4507
    %4517 = vmatprep.subr.bf16.mxu0 0
    %4518 = vmatpush1.bf16.xpose.msra.mxu0 0
    %4519 = vmatprep.subr.bf16.mxu0 0
    %4520 = vmatpush1.bf16.xpose.msra.mxu0 0
    %4521 = vmatprep.subr.bf16.mxu0 0
    %4522 = vmatpush1.bf16.xpose.msra.mxu0 0
    %4523 = vmatprep.subr.bf16.mxu0 0
    %4524 = vmatpush1.bf16.xpose.msra.mxu0 0
    %4525 = vmatprep.subr.bf16.mxu0 0
    %4526 = vmatpush1.bf16.xpose.msra.mxu0 0
    %4527 = vmatprep.subr.bf16.mxu0 0
    %4528 = vmatpush1.bf16.xpose.msra.mxu0 0
    %4529 = vmatprep.subr.bf16.mxu0 0
    %4530 = vmatpush1.bf16.xpose.msra.mxu0 0
    %4531 = vmatprep.subr.bf16.mxu0 0
    %4532 = vmatpush1.bf16.xpose.msra.mxu0 0
    %4533 = vmatprep.subr.bf16.mxu0 0
    %4534 = vmatpush1.bf16.xpose.msra.mxu0 0
    %4535 = vmatprep.subr.bf16.mxu0 0
    %4536 = vmatpush1.bf16.xpose.msra.mxu0 0
    %4537 = vmatprep.subr.bf16.mxu0 0
    %4538 = vmatpush1.bf16.xpose.msra.mxu0 0
    %4539 = vmatprep.subr.bf16.mxu0 0
    %4540 = vmatpush1.bf16.xpose.msra.mxu0 0
    %4541 = vmatprep.mubr.bf16.mxu0 0
    %4542 = vmatmul.mubr.bf16.gmra.mrb[0].mxu0 %v4486
    %v4543 = vpop.f32.mrb[0].mxu0
    %v4544 = vadd.f32 %v538, %v4543
    %v4545 = vpop.f32.mrb[0].mxu0
    %v4546 = vpop.f32.mrb[0].mxu0
    %v4547 = vadd.f32 %v539, %v4546
    %v4548 = vpop.f32.mrb[0].mxu0
    %4549 = vmatprep.mubr.bf16.mxu0 0
    %4550 = vmatmul.mubr.bf16.gmra.mrb[0].mxu0 %v4489
    %v4551 = vpop.f32.mrb[0].mxu0
    %v4552 = vadd.f32 %v540, %v4551
    %v4553 = vpop.f32.mrb[0].mxu0
    %v4554 = vpop.f32.mrb[0].mxu0
    %v4555 = vadd.f32 %v541, %v4554
    %v4556 = vpop.f32.mrb[0].mxu0
    %4557 = vmatprep.mubr.bf16.mxu0 0
    %4558 = vmatmul.mubr.bf16.gmra.mrb[0].mxu0 %v4492
    %v4559 = vpop.f32.mrb[0].mxu0
    %v4560 = vadd.f32 %v542, %v4559
    %v4561 = vpop.f32.mrb[0].mxu0
    %v4562 = vpop.f32.mrb[0].mxu0
    %v4563 = vadd.f32 %v543, %v4562
    %v4564 = vpop.f32.mrb[0].mxu0
    %4565 = vmatprep.mubr.bf16.mxu0 0
    %4566 = vmatmul.mubr.bf16.gmra.mrb[0].mxu0 %v4495
    %v4567 = vpop.f32.mrb[0].mxu0
    %v4568 = vadd.f32 %v544, %v4567
    %v4569 = vpop.f32.mrb[0].mxu0
    %v4570 = vpop.f32.mrb[0].mxu0
    %v4571 = vadd.f32 %v545, %v4570
    %v4572 = vpop.f32.mrb[0].mxu0
    %4573 = vdwg.mxu0
    %v4575 = vsel %vm1213, %v4228, 0
    %v4578 = vsel %vm1213, %v4229, 0
    %v4581 = vsel %vm1213, %v4230, 0
    %v4584 = vsel %vm1213, %v4231, 0
    %v4587 = vsel %vm1213, %v4308, 0
    %v4590 = vsel %vm1213, %v4309, 0
    %v4593 = vsel %vm1213, %v4310, 0
    %v4596 = vsel %vm1213, %v4311, 0
    %4598 = vmatprep.subr.bf16.mxu0 0
    %4599 = vmatpush1.bf16.xpose.msra.mxu0 %v4587
    %4600 = vmatprep.subr.bf16.mxu0 0
    %4601 = vmatpush1.bf16.xpose.msra.mxu0 %v4590
    %4602 = vmatprep.subr.bf16.mxu0 0
    %4603 = vmatpush1.bf16.xpose.msra.mxu0 %v4593
    %4604 = vmatprep.subr.bf16.mxu0 0
    %4605 = vmatpush1.bf16.xpose.msra.mxu0 %v4596
    %4606 = vmatprep.subr.bf16.mxu0 0
    %4607 = vmatpush1.bf16.xpose.msra.mxu0 0
    %4608 = vmatprep.subr.bf16.mxu0 0
    %4609 = vmatpush1.bf16.xpose.msra.mxu0 0
    %4610 = vmatprep.subr.bf16.mxu0 0
    %4611 = vmatpush1.bf16.xpose.msra.mxu0 0
    %4612 = vmatprep.subr.bf16.mxu0 0
    %4613 = vmatpush1.bf16.xpose.msra.mxu0 0
    %4614 = vmatprep.subr.bf16.mxu0 0
    %4615 = vmatpush1.bf16.xpose.msra.mxu0 0
    %4616 = vmatprep.subr.bf16.mxu0 0
    %4617 = vmatpush1.bf16.xpose.msra.mxu0 0
    %4618 = vmatprep.subr.bf16.mxu0 0
    %4619 = vmatpush1.bf16.xpose.msra.mxu0 0
    %4620 = vmatprep.subr.bf16.mxu0 0
    %4621 = vmatpush1.bf16.xpose.msra.mxu0 0
    %4622 = vmatprep.subr.bf16.mxu0 0
    %4623 = vmatpush1.bf16.xpose.msra.mxu0 0
    %4624 = vmatprep.subr.bf16.mxu0 0
    %4625 = vmatpush1.bf16.xpose.msra.mxu0 0
    %4626 = vmatprep.subr.bf16.mxu0 0
    %4627 = vmatpush1.bf16.xpose.msra.mxu0 0
    %4628 = vmatprep.subr.bf16.mxu0 0
    %4629 = vmatpush1.bf16.xpose.msra.mxu0 0
    %4630 = vmatprep.mubr.bf16.mxu0 0
    %4631 = vmatmul.mubr.bf16.gmra.mrb[0].mxu0 %v4575
    %v4632 = vpop.f32.mrb[0].mxu0
    %v4633 = vadd.f32 %v546, %v4632
    %v4634 = vpop.f32.mrb[0].mxu0
    %v4635 = vpop.f32.mrb[0].mxu0
    %v4636 = vadd.f32 %v547, %v4635
    %v4637 = vpop.f32.mrb[0].mxu0
    %4638 = vmatprep.mubr.bf16.mxu0 0
    %4639 = vmatmul.mubr.bf16.gmra.mrb[0].mxu0 %v4578
    %v4640 = vpop.f32.mrb[0].mxu0
    %v4641 = vadd.f32 %v548, %v4640
    %v4642 = vpop.f32.mrb[0].mxu0
    %v4643 = vpop.f32.mrb[0].mxu0
    %v4644 = vadd.f32 %v549, %v4643
    %v4645 = vpop.f32.mrb[0].mxu0
    %4646 = vmatprep.mubr.bf16.mxu0 0
    %4647 = vmatmul.mubr.bf16.gmra.mrb[0].mxu0 %v4581
    %v4648 = vpop.f32.mrb[0].mxu0
    %v4649 = vadd.f32 %v550, %v4648
    %v4650 = vpop.f32.mrb[0].mxu0
    %v4651 = vpop.f32.mrb[0].mxu0
    %v4652 = vadd.f32 %v551, %v4651
    %v4653 = vpop.f32.mrb[0].mxu0
    %4654 = vmatprep.mubr.bf16.mxu0 0
    %4655 = vmatmul.mubr.bf16.gmra.mrb[0].mxu0 %v4584
    %v4656 = vpop.f32.mrb[0].mxu0
    %v4657 = vadd.f32 %v552, %v4656
    %v4658 = vpop.f32.mrb[0].mxu0
    %v4659 = vpop.f32.mrb[0].mxu0
    %v4660 = vadd.f32 %v553, %v4659
    %v4661 = vpop.f32.mrb[0].mxu0
    %4662 = vdwg.mxu0
    %v4664 = vsel %vm1213, %v4232, 0
    %v4667 = vsel %vm1213, %v4233, 0
    %v4670 = vsel %vm1213, %v4234, 0
    %v4673 = vsel %vm1213, %v4235, 0
    %v4676 = vsel %vm1213, %v4312, 0
    %v4679 = vsel %vm1213, %v4313, 0
    %v4682 = vsel %vm1213, %v4314, 0
    %v4685 = vsel %vm1213, %v4315, 0
    %4687 = vmatprep.subr.bf16.mxu0 0
    %4688 = vmatpush1.bf16.xpose.msra.mxu0 %v4676
    %4689 = vmatprep.subr.bf16.mxu0 0
    %4690 = vmatpush1.bf16.xpose.msra.mxu0 %v4679
    %4691 = vmatprep.subr.bf16.mxu0 0
    %4692 = vmatpush1.bf16.xpose.msra.mxu0 %v4682
    %4693 = vmatprep.subr.bf16.mxu0 0
    %4694 = vmatpush1.bf16.xpose.msra.mxu0 %v4685
    %4695 = vmatprep.subr.bf16.mxu0 0
    %4696 = vmatpush1.bf16.xpose.msra.mxu0 0
    %4697 = vmatprep.subr.bf16.mxu0 0
    %4698 = vmatpush1.bf16.xpose.msra.mxu0 0
    %4699 = vmatprep.subr.bf16.mxu0 0
    %4700 = vmatpush1.bf16.xpose.msra.mxu0 0
    %4701 = vmatprep.subr.bf16.mxu0 0
    %4702 = vmatpush1.bf16.xpose.msra.mxu0 0
    %4703 = vmatprep.subr.bf16.mxu0 0
    %4704 = vmatpush1.bf16.xpose.msra.mxu0 0
    %4705 = vmatprep.subr.bf16.mxu0 0
    %4706 = vmatpush1.bf16.xpose.msra.mxu0 0
    %4707 = vmatprep.subr.bf16.mxu0 0
    %4708 = vmatpush1.bf16.xpose.msra.mxu0 0
    %4709 = vmatprep.subr.bf16.mxu0 0
    %4710 = vmatpush1.bf16.xpose.msra.mxu0 0
    %4711 = vmatprep.subr.bf16.mxu0 0
    %4712 = vmatpush1.bf16.xpose.msra.mxu0 0
    %4713 = vmatprep.subr.bf16.mxu0 0
    %4714 = vmatpush1.bf16.xpose.msra.mxu0 0
    %4715 = vmatprep.subr.bf16.mxu0 0
    %4716 = vmatpush1.bf16.xpose.msra.mxu0 0
    %4717 = vmatprep.subr.bf16.mxu0 0
    %4718 = vmatpush1.bf16.xpose.msra.mxu0 0
    %4719 = vmatprep.mubr.bf16.mxu0 0
    %4720 = vmatmul.mubr.bf16.gmra.mrb[0].mxu0 %v4664
    %v4721 = vpop.f32.mrb[0].mxu0
    %v4722 = vadd.f32 %v554, %v4721
    %v4723 = vpop.f32.mrb[0].mxu0
    %v4724 = vpop.f32.mrb[0].mxu0
    %v4725 = vadd.f32 %v555, %v4724
    %v4726 = vpop.f32.mrb[0].mxu0
    %4727 = vmatprep.mubr.bf16.mxu0 0
    %4728 = vmatmul.mubr.bf16.gmra.mrb[0].mxu0 %v4667
    %v4729 = vpop.f32.mrb[0].mxu0
    %v4730 = vadd.f32 %v556, %v4729
    %v4731 = vpop.f32.mrb[0].mxu0
    %v4732 = vpop.f32.mrb[0].mxu0
    %v4733 = vadd.f32 %v557, %v4732
    %v4734 = vpop.f32.mrb[0].mxu0
    %4735 = vmatprep.mubr.bf16.mxu0 0
    %4736 = vmatmul.mubr.bf16.gmra.mrb[0].mxu0 %v4670
    %v4737 = vpop.f32.mrb[0].mxu0
    %v4738 = vadd.f32 %v558, %v4737
    %v4739 = vpop.f32.mrb[0].mxu0
    %v4740 = vpop.f32.mrb[0].mxu0
    %v4741 = vadd.f32 %v559, %v4740
    %v4742 = vpop.f32.mrb[0].mxu0
    %4743 = vmatprep.mubr.bf16.mxu0 0
    %4744 = vmatmul.mubr.bf16.gmra.mrb[0].mxu0 %v4673
    %v4745 = vpop.f32.mrb[0].mxu0
    %v4746 = vadd.f32 %v560, %v4745
    %v4747 = vpop.f32.mrb[0].mxu0
    %v4748 = vpop.f32.mrb[0].mxu0
    %v4749 = vadd.f32 %v561, %v4748
    %v4750 = vpop.f32.mrb[0].mxu0
    %4751 = vdwg.mxu0
    %v4752 = vsel %vm1213, %v4455, -inf
    %4753 = vmax.xlane.f32.xlu0 %v4752
    %v4754 = vpop.xlane.xlu0 %4753
    %v4755 = vsel %vm1213, %v4458, -inf
    %4756 = vmax.xlane.f32.xlu0 %v4755
    %v4757 = vpop.xlane.xlu0 %4756
    %v4758 = vsel %vm1213, %v4463, -inf
    %4759 = vmax.xlane.f32.xlu0 %v4758
    %v4760 = vpop.xlane.xlu0 %4759
    %v4761 = vsel %vm1213, %v4466, -inf
    %4762 = vmax.xlane.f32.xlu0 %v4761
    %v4763 = vpop.xlane.xlu0 %4762
    %v4764 = vsel %vm1213, %v4471, -inf
    %4765 = vmax.xlane.f32.xlu0 %v4764
    %v4766 = vpop.xlane.xlu0 %4765
    %v4767 = vsel %vm1213, %v4474, -inf
    %4768 = vmax.xlane.f32.xlu0 %v4767
    %v4769 = vpop.xlane.xlu0 %4768
    %v4770 = vsel %vm1213, %v4479, -inf
    %4771 = vmax.xlane.f32.xlu0 %v4770
    %v4772 = vpop.xlane.xlu0 %4771
    %v4773 = vsel %vm1213, %v4482, -inf
    %4774 = vmax.xlane.f32.xlu0 %v4773
    %v4775 = vpop.xlane.xlu0 %4774
    %v4776 = vsel %vm1213, %v4544, -inf
    %4777 = vmax.xlane.f32.xlu0 %v4776
    %v4778 = vpop.xlane.xlu0 %4777
    %v4779 = vsel %vm1213, %v4547, -inf
    %4780 = vmax.xlane.f32.xlu0 %v4779
    %v4781 = vpop.xlane.xlu0 %4780
    %v4782 = vsel %vm1213, %v4552, -inf
    %4783 = vmax.xlane.f32.xlu0 %v4782
    %v4784 = vpop.xlane.xlu0 %4783
    %v4785 = vsel %vm1213, %v4555, -inf
    %4786 = vmax.xlane.f32.xlu0 %v4785
    %v4787 = vpop.xlane.xlu0 %4786
    %v4788 = vsel %vm1213, %v4560, -inf
    %4789 = vmax.xlane.f32.xlu0 %v4788
    %v4790 = vpop.xlane.xlu0 %4789
    %v4791 = vsel %vm1213, %v4563, -inf
    %4792 = vmax.xlane.f32.xlu0 %v4791
    %v4793 = vpop.xlane.xlu0 %4792
    %v4794 = vsel %vm1213, %v4568, -inf
    %4795 = vmax.xlane.f32.xlu0 %v4794
    %v4796 = vpop.xlane.xlu0 %4795
    %v4797 = vsel %vm1213, %v4571, -inf
    %4798 = vmax.xlane.f32.xlu0 %v4797
    %v4799 = vpop.xlane.xlu0 %4798
    %v4800 = vsel %vm1213, %v4633, -inf
    %4801 = vmax.xlane.f32.xlu0 %v4800
    %v4802 = vpop.xlane.xlu0 %4801
    %v4803 = vsel %vm1213, %v4636, -inf
    %4804 = vmax.xlane.f32.xlu0 %v4803
    %v4805 = vpop.xlane.xlu0 %4804
    %v4806 = vsel %vm1213, %v4641, -inf
    %4807 = vmax.xlane.f32.xlu0 %v4806
    %v4808 = vpop.xlane.xlu0 %4807
    %v4809 = vsel %vm1213, %v4644, -inf
    %4810 = vmax.xlane.f32.xlu0 %v4809
    %v4811 = vpop.xlane.xlu0 %4810
    %v4812 = vsel %vm1213, %v4649, -inf
    %4813 = vmax.xlane.f32.xlu0 %v4812
    %v4814 = vpop.xlane.xlu0 %4813
    %v4815 = vsel %vm1213, %v4652, -inf
    %4816 = vmax.xlane.f32.xlu0 %v4815
    %v4817 = vpop.xlane.xlu0 %4816
    %v4818 = vsel %vm1213, %v4657, -inf
    %4819 = vmax.xlane.f32.xlu0 %v4818
    %v4820 = vpop.xlane.xlu0 %4819
    %v4821 = vsel %vm1213, %v4660, -inf
    %4822 = vmax.xlane.f32.xlu0 %v4821
    %v4823 = vpop.xlane.xlu0 %4822
    %v4824 = vsel %vm1213, %v4722, -inf
    %4825 = vmax.xlane.f32.xlu0 %v4824
    %v4826 = vpop.xlane.xlu0 %4825
    %v4827 = vsel %vm1213, %v4725, -inf
    %4828 = vmax.xlane.f32.xlu0 %v4827
    %v4829 = vpop.xlane.xlu0 %4828
    %v4830 = vsel %vm1213, %v4730, -inf
    %4831 = vmax.xlane.f32.xlu0 %v4830
    %v4832 = vpop.xlane.xlu0 %4831
    %v4833 = vsel %vm1213, %v4733, -inf
    %4834 = vmax.xlane.f32.xlu0 %v4833
    %v4835 = vpop.xlane.xlu0 %4834
    %v4836 = vsel %vm1213, %v4738, -inf
    %4837 = vmax.xlane.f32.xlu0 %v4836
    %v4838 = vpop.xlane.xlu0 %4837
    %v4839 = vsel %vm1213, %v4741, -inf
    %4840 = vmax.xlane.f32.xlu0 %v4839
    %v4841 = vpop.xlane.xlu0 %4840
    %v4842 = vsel %vm1213, %v4746, -inf
    %4843 = vmax.xlane.f32.xlu0 %v4842
    %v4844 = vpop.xlane.xlu0 %4843
    %v4845 = vsel %vm1213, %v4749, -inf
    %4846 = vmax.xlane.f32.xlu0 %v4845
    %v4847 = vpop.xlane.xlu0 %4846
    %v4848 = vsub.f32 %v4455, %v4754
    %v4849 = vsub.f32 %v4458, %v4757
    %v4850 = vsub.f32 %v4463, %v4760
    %v4851 = vsub.f32 %v4466, %v4763
    %v4852 = vsub.f32 %v4471, %v4766
    %v4853 = vsub.f32 %v4474, %v4769
    %v4854 = vsub.f32 %v4479, %v4772
    %v4855 = vsub.f32 %v4482, %v4775
    %v4856 = vsub.f32 %v4544, %v4778
    %v4857 = vsub.f32 %v4547, %v4781
    %v4858 = vsub.f32 %v4552, %v4784
    %v4859 = vsub.f32 %v4555, %v4787
    %v4860 = vsub.f32 %v4560, %v4790
    %v4861 = vsub.f32 %v4563, %v4793
    %v4862 = vsub.f32 %v4568, %v4796
    %v4863 = vsub.f32 %v4571, %v4799
    %v4864 = vsub.f32 %v4633, %v4802
    %v4865 = vsub.f32 %v4636, %v4805
    %v4866 = vsub.f32 %v4641, %v4808
    %v4867 = vsub.f32 %v4644, %v4811
    %v4868 = vsub.f32 %v4649, %v4814
    %v4869 = vsub.f32 %v4652, %v4817
    %v4870 = vsub.f32 %v4657, %v4820
    %v4871 = vsub.f32 %v4660, %v4823
    %v4872 = vsub.f32 %v4722, %v4826
    %v4873 = vsub.f32 %v4725, %v4829
    %v4874 = vsub.f32 %v4730, %v4832
    %v4875 = vsub.f32 %v4733, %v4835
    %v4876 = vsub.f32 %v4738, %v4838
    %v4877 = vsub.f32 %v4741, %v4841
    %v4878 = vsub.f32 %v4746, %v4844
    %v4879 = vsub.f32 %v4749, %v4847
    %v4880 = vmul.f32 %v4848, 1.442695
    %v4881 = vpow.pop %v4880
    %v4882 = vmul.f32 %v4849, 1.442695
    %v4883 = vpow.pop %v4882
    %v4884 = vmul.f32 %v4850, 1.442695
    %v4885 = vpow.pop %v4884
    %v4886 = vmul.f32 %v4851, 1.442695
    %v4887 = vpow.pop %v4886
    %v4888 = vmul.f32 %v4852, 1.442695
    %v4889 = vpow.pop %v4888
    %v4890 = vmul.f32 %v4853, 1.442695
    %v4891 = vpow.pop %v4890
    %v4892 = vmul.f32 %v4854, 1.442695
    %v4893 = vpow.pop %v4892
    %v4894 = vmul.f32 %v4855, 1.442695
    %v4895 = vpow.pop %v4894
    %v4896 = vmul.f32 %v4856, 1.442695
    %v4897 = vpow.pop %v4896
    %v4898 = vmul.f32 %v4857, 1.442695
    %v4899 = vpow.pop %v4898
    %v4900 = vmul.f32 %v4858, 1.442695
    %v4901 = vpow.pop %v4900
    %v4902 = vmul.f32 %v4859, 1.442695
    %v4903 = vpow.pop %v4902
    %v4904 = vmul.f32 %v4860, 1.442695
    %v4905 = vpow.pop %v4904
    %v4906 = vmul.f32 %v4861, 1.442695
    %v4907 = vpow.pop %v4906
    %v4908 = vmul.f32 %v4862, 1.442695
    %v4909 = vpow.pop %v4908
    %v4910 = vmul.f32 %v4863, 1.442695
    %v4911 = vpow.pop %v4910
    %v4912 = vmul.f32 %v4864, 1.442695
    %v4913 = vpow.pop %v4912
    %v4914 = vmul.f32 %v4865, 1.442695
    %v4915 = vpow.pop %v4914
    %v4916 = vmul.f32 %v4866, 1.442695
    %v4917 = vpow.pop %v4916
    %v4918 = vmul.f32 %v4867, 1.442695
    %v4919 = vpow.pop %v4918
    %v4920 = vmul.f32 %v4868, 1.442695
    %v4921 = vpow.pop %v4920
    %v4922 = vmul.f32 %v4869, 1.442695
    %v4923 = vpow.pop %v4922
    %v4924 = vmul.f32 %v4870, 1.442695
    %v4925 = vpow.pop %v4924
    %v4926 = vmul.f32 %v4871, 1.442695
    %v4927 = vpow.pop %v4926
    %v4928 = vmul.f32 %v4872, 1.442695
    %v4929 = vpow.pop %v4928
    %v4930 = vmul.f32 %v4873, 1.442695
    %v4931 = vpow.pop %v4930
    %v4932 = vmul.f32 %v4874, 1.442695
    %v4933 = vpow.pop %v4932
    %v4934 = vmul.f32 %v4875, 1.442695
    %v4935 = vpow.pop %v4934
    %v4936 = vmul.f32 %v4876, 1.442695
    %v4937 = vpow.pop %v4936
    %v4938 = vmul.f32 %v4877, 1.442695
    %v4939 = vpow.pop %v4938
    %v4940 = vmul.f32 %v4878, 1.442695
    %v4941 = vpow.pop %v4940
    %v4942 = vmul.f32 %v4879, 1.442695
    %v4943 = vpow.pop %v4942
    %v4944 = vsel %vm1213, %v4881, 0.0
    %4945 = vadd.xlane.f32.xlu0 %v4944
    %v4946 = vpop.xlane.xlu0 %4945
    %v4947 = vsel %vm1213, %v4883, 0.0
    %4948 = vadd.xlane.f32.xlu0 %v4947
    %v4949 = vpop.xlane.xlu0 %4948
    %v4950 = vsel %vm1213, %v4885, 0.0
    %4951 = vadd.xlane.f32.xlu0 %v4950
    %v4952 = vpop.xlane.xlu0 %4951
    %v4953 = vsel %vm1213, %v4887, 0.0
    %4954 = vadd.xlane.f32.xlu0 %v4953
    %v4955 = vpop.xlane.xlu0 %4954
    %v4956 = vsel %vm1213, %v4889, 0.0
    %4957 = vadd.xlane.f32.xlu0 %v4956
    %v4958 = vpop.xlane.xlu0 %4957
    %v4959 = vsel %vm1213, %v4891, 0.0
    %4960 = vadd.xlane.f32.xlu0 %v4959
    %v4961 = vpop.xlane.xlu0 %4960
    %v4962 = vsel %vm1213, %v4893, 0.0
    %4963 = vadd.xlane.f32.xlu0 %v4962
    %v4964 = vpop.xlane.xlu0 %4963
    %v4965 = vsel %vm1213, %v4895, 0.0
    %4966 = vadd.xlane.f32.xlu0 %v4965
    %v4967 = vpop.xlane.xlu0 %4966
    %v4968 = vsel %vm1213, %v4897, 0.0
    %4969 = vadd.xlane.f32.xlu0 %v4968
    %v4970 = vpop.xlane.xlu0 %4969
    %v4971 = vsel %vm1213, %v4899, 0.0
    %4972 = vadd.xlane.f32.xlu0 %v4971
    %v4973 = vpop.xlane.xlu0 %4972
    %v4974 = vsel %vm1213, %v4901, 0.0
    %4975 = vadd.xlane.f32.xlu0 %v4974
    %v4976 = vpop.xlane.xlu0 %4975
    %v4977 = vsel %vm1213, %v4903, 0.0
    %4978 = vadd.xlane.f32.xlu0 %v4977
    %v4979 = vpop.xlane.xlu0 %4978
    %v4980 = vsel %vm1213, %v4905, 0.0
    %4981 = vadd.xlane.f32.xlu0 %v4980
    %v4982 = vpop.xlane.xlu0 %4981
    %v4983 = vsel %vm1213, %v4907, 0.0
    %4984 = vadd.xlane.f32.xlu0 %v4983
    %v4985 = vpop.xlane.xlu0 %4984
    %v4986 = vsel %vm1213, %v4909, 0.0
    %4987 = vadd.xlane.f32.xlu0 %v4986
    %v4988 = vpop.xlane.xlu0 %4987
    %v4989 = vsel %vm1213, %v4911, 0.0
    %4990 = vadd.xlane.f32.xlu0 %v4989
    %v4991 = vpop.xlane.xlu0 %4990
    %v4992 = vsel %vm1213, %v4913, 0.0
    %4993 = vadd.xlane.f32.xlu0 %v4992
    %v4994 = vpop.xlane.xlu0 %4993
    %v4995 = vsel %vm1213, %v4915, 0.0
    %4996 = vadd.xlane.f32.xlu0 %v4995
    %v4997 = vpop.xlane.xlu0 %4996
    %v4998 = vsel %vm1213, %v4917, 0.0
    %4999 = vadd.xlane.f32.xlu0 %v4998
    %v5000 = vpop.xlane.xlu0 %4999
    %v5001 = vsel %vm1213, %v4919, 0.0
    %5002 = vadd.xlane.f32.xlu0 %v5001
    %v5003 = vpop.xlane.xlu0 %5002
    %v5004 = vsel %vm1213, %v4921, 0.0
    %5005 = vadd.xlane.f32.xlu0 %v5004
    %v5006 = vpop.xlane.xlu0 %5005
    %v5007 = vsel %vm1213, %v4923, 0.0
    %5008 = vadd.xlane.f32.xlu0 %v5007
    %v5009 = vpop.xlane.xlu0 %5008
    %v5010 = vsel %vm1213, %v4925, 0.0
    %5011 = vadd.xlane.f32.xlu0 %v5010
    %v5012 = vpop.xlane.xlu0 %5011
    %v5013 = vsel %vm1213, %v4927, 0.0
    %5014 = vadd.xlane.f32.xlu0 %v5013
    %v5015 = vpop.xlane.xlu0 %5014
    %v5016 = vsel %vm1213, %v4929, 0.0
    %5017 = vadd.xlane.f32.xlu0 %v5016
    %v5018 = vpop.xlane.xlu0 %5017
    %v5019 = vsel %vm1213, %v4931, 0.0
    %5020 = vadd.xlane.f32.xlu0 %v5019
    %v5021 = vpop.xlane.xlu0 %5020
    %v5022 = vsel %vm1213, %v4933, 0.0
    %5023 = vadd.xlane.f32.xlu0 %v5022
    %v5024 = vpop.xlane.xlu0 %5023
    %v5025 = vsel %vm1213, %v4935, 0.0
    %5026 = vadd.xlane.f32.xlu0 %v5025
    %v5027 = vpop.xlane.xlu0 %5026
    %v5028 = vsel %vm1213, %v4937, 0.0
    %5029 = vadd.xlane.f32.xlu0 %v5028
    %v5030 = vpop.xlane.xlu0 %5029
    %v5031 = vsel %vm1213, %v4939, 0.0
    %5032 = vadd.xlane.f32.xlu0 %v5031
    %v5033 = vpop.xlane.xlu0 %5032
    %v5034 = vsel %vm1213, %v4941, 0.0
    %5035 = vadd.xlane.f32.xlu0 %v5034
    %v5036 = vpop.xlane.xlu0 %5035
    %v5037 = vsel %vm1213, %v4943, 0.0
    %5038 = vadd.xlane.f32.xlu0 %v5037
    %v5039 = vpop.xlane.xlu0 %5038
    %v5040 = vrcp.pop %v4946
    %v5041 = vrcp.pop %v4949
    %v5042 = vrcp.pop %v4952
    %v5043 = vrcp.pop %v4955
    %v5044 = vrcp.pop %v4958
    %v5045 = vrcp.pop %v4961
    %v5046 = vrcp.pop %v4964
    %v5047 = vrcp.pop %v4967
    %v5048 = vrcp.pop %v4970
    %v5049 = vrcp.pop %v4973
    %v5050 = vrcp.pop %v4976
    %v5051 = vrcp.pop %v4979
    %v5052 = vrcp.pop %v4982
    %v5053 = vrcp.pop %v4985
    %v5054 = vrcp.pop %v4988
    %v5055 = vrcp.pop %v4991
    %v5056 = vrcp.pop %v4994
    %v5057 = vrcp.pop %v4997
    %v5058 = vrcp.pop %v5000
    %v5059 = vrcp.pop %v5003
    %v5060 = vrcp.pop %v5006
    %v5061 = vrcp.pop %v5009
    %v5062 = vrcp.pop %v5012
    %v5063 = vrcp.pop %v5015
    %v5064 = vrcp.pop %v5018
    %v5065 = vrcp.pop %v5021
    %v5066 = vrcp.pop %v5024
    %v5067 = vrcp.pop %v5027
    %v5068 = vrcp.pop %v5030
    %v5069 = vrcp.pop %v5033
    %v5070 = vrcp.pop %v5036
    %v5071 = vrcp.pop %v5039
    %v5072 = vmul.f32 %v4881, %v5040
    %v5073 = vmul.f32 %v4883, %v5041
    %v5074 = vmul.f32 %v4885, %v5042
    %v5075 = vmul.f32 %v4887, %v5043
    %v5076 = vmul.f32 %v4889, %v5044
    %v5077 = vmul.f32 %v4891, %v5045
    %v5078 = vmul.f32 %v4893, %v5046
    %v5079 = vmul.f32 %v4895, %v5047
    %v5080 = vmul.f32 %v4897, %v5048
    %v5081 = vmul.f32 %v4899, %v5049
    %v5082 = vmul.f32 %v4901, %v5050
    %v5083 = vmul.f32 %v4903, %v5051
    %v5084 = vmul.f32 %v4905, %v5052
    %v5085 = vmul.f32 %v4907, %v5053
    %v5086 = vmul.f32 %v4909, %v5054
    %v5087 = vmul.f32 %v4911, %v5055
    %v5088 = vmul.f32 %v4913, %v5056
    %v5089 = vmul.f32 %v4915, %v5057
    %v5090 = vmul.f32 %v4917, %v5058
    %v5091 = vmul.f32 %v4919, %v5059
    %v5092 = vmul.f32 %v4921, %v5060
    %v5093 = vmul.f32 %v4923, %v5061
    %v5094 = vmul.f32 %v4925, %v5062
    %v5095 = vmul.f32 %v4927, %v5063
    %v5096 = vmul.f32 %v4929, %v5064
    %v5097 = vmul.f32 %v4931, %v5065
    %v5098 = vmul.f32 %v4933, %v5066
    %v5099 = vmul.f32 %v4935, %v5067
    %v5100 = vmul.f32 %v4937, %v5068
    %v5101 = vmul.f32 %v4939, %v5069
    %v5102 = vmul.f32 %v4941, %v5070
    %v5103 = vmul.f32 %v4943, %v5071
    %v5104 = vpack.c.bf16 %v5073, %v5072
    %v5105 = vpack.c.bf16 %v5075, %v5074
    %v5106 = vpack.c.bf16 %v5077, %v5076
    %v5107 = vpack.c.bf16 %v5079, %v5078
    %v5108 = vpack.c.bf16 %v5081, %v5080
    %v5109 = vpack.c.bf16 %v5083, %v5082
    %v5110 = vpack.c.bf16 %v5085, %v5084
    %v5111 = vpack.c.bf16 %v5087, %v5086
    %v5112 = vpack.c.bf16 %v5089, %v5088
    %v5113 = vpack.c.bf16 %v5091, %v5090
    %v5114 = vpack.c.bf16 %v5093, %v5092
    %v5115 = vpack.c.bf16 %v5095, %v5094
    %v5116 = vpack.c.bf16 %v5097, %v5096
    %v5117 = vpack.c.bf16 %v5099, %v5098
    %v5118 = vpack.c.bf16 %v5101, %v5100
    %v5119 = vpack.c.bf16 %v5103, %v5102
    %v5121 = vsel %vm1213, %v5104, 0
    %v5124 = vsel %vm1213, %v5105, 0
    %v5127 = vsel %vm1213, %v5106, 0
    %v5130 = vsel %vm1213, %v5107, 0
    %5132 = vmatprep.subr.bf16.mxu0 0
    %5133 = vmatpush1.bf16.msra.mxu0 %v4380
    %5134 = vmatprep.subr.bf16.mxu0 0
    %5135 = vmatpush1.bf16.msra.mxu0 %v4381
    %5136 = vmatprep.subr.bf16.mxu0 0
    %5137 = vmatpush1.bf16.msra.mxu0 %v4382
    %5138 = vmatprep.subr.bf16.mxu0 0
    %5139 = vmatpush1.bf16.msra.mxu0 %v4383
    %5140 = vmatprep.subr.bf16.mxu0 0
    %5141 = vmatpush1.bf16.msra.mxu0 0
    %5142 = vmatprep.subr.bf16.mxu0 0
    %5143 = vmatpush1.bf16.msra.mxu0 0
    %5144 = vmatprep.subr.bf16.mxu0 0
    %5145 = vmatpush1.bf16.msra.mxu0 0
    %5146 = vmatprep.subr.bf16.mxu0 0
    %5147 = vmatpush1.bf16.msra.mxu0 0
    %5148 = vmatprep.subr.bf16.mxu0 0
    %5149 = vmatpush1.bf16.msra.mxu0 0
    %5150 = vmatprep.subr.bf16.mxu0 0
    %5151 = vmatpush1.bf16.msra.mxu0 0
    %5152 = vmatprep.subr.bf16.mxu0 0
    %5153 = vmatpush1.bf16.msra.mxu0 0
    %5154 = vmatprep.subr.bf16.mxu0 0
    %5155 = vmatpush1.bf16.msra.mxu0 0
    %5156 = vmatprep.subr.bf16.mxu0 0
    %5157 = vmatpush1.bf16.msra.mxu0 0
    %5158 = vmatprep.subr.bf16.mxu0 0
    %5159 = vmatpush1.bf16.msra.mxu0 0
    %5160 = vmatprep.subr.bf16.mxu0 0
    %5161 = vmatpush1.bf16.msra.mxu0 0
    %5162 = vmatprep.subr.bf16.mxu0 0
    %5163 = vmatpush1.bf16.msra.mxu0 0
    %5164 = vmatprep.mubr.bf16.mxu0 0
    %5165 = vmatmul.mubr.bf16.gmra.mrb[0].mxu0 %v5121
    %v5166 = vpop.f32.mrb[0].mxu0
    %v5167 = vadd.f32 0.0, %v5166
    %v5168 = vpop.f32.mrb[0].mxu0
    %v5169 = vpop.f32.mrb[0].mxu0
    %v5170 = vadd.f32 0.0, %v5169
    %v5171 = vpop.f32.mrb[0].mxu0
    %5172 = vmatprep.mubr.bf16.mxu0 0
    %5173 = vmatmul.mubr.bf16.gmra.mrb[0].mxu0 %v5124
    %v5174 = vpop.f32.mrb[0].mxu0
    %v5175 = vadd.f32 0.0, %v5174
    %v5176 = vpop.f32.mrb[0].mxu0
    %v5177 = vpop.f32.mrb[0].mxu0
    %v5178 = vadd.f32 0.0, %v5177
    %v5179 = vpop.f32.mrb[0].mxu0
    %5180 = vmatprep.mubr.bf16.mxu0 0
    %5181 = vmatmul.mubr.bf16.gmra.mrb[0].mxu0 %v5127
    %v5182 = vpop.f32.mrb[0].mxu0
    %v5183 = vadd.f32 0.0, %v5182
    %v5184 = vpop.f32.mrb[0].mxu0
    %v5185 = vpop.f32.mrb[0].mxu0
    %v5186 = vadd.f32 0.0, %v5185
    %v5187 = vpop.f32.mrb[0].mxu0
    %5188 = vmatprep.mubr.bf16.mxu0 0
    %5189 = vmatmul.mubr.bf16.gmra.mrb[0].mxu0 %v5130
    %v5190 = vpop.f32.mrb[0].mxu0
    %v5191 = vadd.f32 0.0, %v5190
    %v5192 = vpop.f32.mrb[0].mxu0
    %v5193 = vpop.f32.mrb[0].mxu0
    %v5194 = vadd.f32 0.0, %v5193
    %v5195 = vpop.f32.mrb[0].mxu0
    %5196 = vdwg.mxu0
    %v5198 = vsel %vm1213, %v5108, 0
    %v5201 = vsel %vm1213, %v5109, 0
    %v5204 = vsel %vm1213, %v5110, 0
    %v5207 = vsel %vm1213, %v5111, 0
    %5209 = vmatprep.subr.bf16.mxu0 0
    %5210 = vmatpush1.bf16.msra.mxu0 %v4384
    %5211 = vmatprep.subr.bf16.mxu0 0
    %5212 = vmatpush1.bf16.msra.mxu0 %v4385
    %5213 = vmatprep.subr.bf16.mxu0 0
    %5214 = vmatpush1.bf16.msra.mxu0 %v4386
    %5215 = vmatprep.subr.bf16.mxu0 0
    %5216 = vmatpush1.bf16.msra.mxu0 %v4387
    %5217 = vmatprep.subr.bf16.mxu0 0
    %5218 = vmatpush1.bf16.msra.mxu0 0
    %5219 = vmatprep.subr.bf16.mxu0 0
    %5220 = vmatpush1.bf16.msra.mxu0 0
    %5221 = vmatprep.subr.bf16.mxu0 0
    %5222 = vmatpush1.bf16.msra.mxu0 0
    %5223 = vmatprep.subr.bf16.mxu0 0
    %5224 = vmatpush1.bf16.msra.mxu0 0
    %5225 = vmatprep.subr.bf16.mxu0 0
    %5226 = vmatpush1.bf16.msra.mxu0 0
    %5227 = vmatprep.subr.bf16.mxu0 0
    %5228 = vmatpush1.bf16.msra.mxu0 0
    %5229 = vmatprep.subr.bf16.mxu0 0
    %5230 = vmatpush1.bf16.msra.mxu0 0
    %5231 = vmatprep.subr.bf16.mxu0 0
    %5232 = vmatpush1.bf16.msra.mxu0 0
    %5233 = vmatprep.subr.bf16.mxu0 0
    %5234 = vmatpush1.bf16.msra.mxu0 0
    %5235 = vmatprep.subr.bf16.mxu0 0
    %5236 = vmatpush1.bf16.msra.mxu0 0
    %5237 = vmatprep.subr.bf16.mxu0 0
    %5238 = vmatpush1.bf16.msra.mxu0 0
    %5239 = vmatprep.subr.bf16.mxu0 0
    %5240 = vmatpush1.bf16.msra.mxu0 0
    %5241 = vmatprep.mubr.bf16.mxu0 0
    %5242 = vmatmul.mubr.bf16.gmra.mrb[0].mxu0 %v5198
    %v5243 = vpop.f32.mrb[0].mxu0
    %v5244 = vadd.f32 0.0, %v5243
    %v5245 = vpop.f32.mrb[0].mxu0
    %v5246 = vpop.f32.mrb[0].mxu0
    %v5247 = vadd.f32 0.0, %v5246
    %v5248 = vpop.f32.mrb[0].mxu0
    %5249 = vmatprep.mubr.bf16.mxu0 0
    %5250 = vmatmul.mubr.bf16.gmra.mrb[0].mxu0 %v5201
    %v5251 = vpop.f32.mrb[0].mxu0
    %v5252 = vadd.f32 0.0, %v5251
    %v5253 = vpop.f32.mrb[0].mxu0
    %v5254 = vpop.f32.mrb[0].mxu0
    %v5255 = vadd.f32 0.0, %v5254
    %v5256 = vpop.f32.mrb[0].mxu0
    %5257 = vmatprep.mubr.bf16.mxu0 0
    %5258 = vmatmul.mubr.bf16.gmra.mrb[0].mxu0 %v5204
    %v5259 = vpop.f32.mrb[0].mxu0
    %v5260 = vadd.f32 0.0, %v5259
    %v5261 = vpop.f32.mrb[0].mxu0
    %v5262 = vpop.f32.mrb[0].mxu0
    %v5263 = vadd.f32 0.0, %v5262
    %v5264 = vpop.f32.mrb[0].mxu0
    %5265 = vmatprep.mubr.bf16.mxu0 0
    %5266 = vmatmul.mubr.bf16.gmra.mrb[0].mxu0 %v5207
    %v5267 = vpop.f32.mrb[0].mxu0
    %v5268 = vadd.f32 0.0, %v5267
    %v5269 = vpop.f32.mrb[0].mxu0
    %v5270 = vpop.f32.mrb[0].mxu0
    %v5271 = vadd.f32 0.0, %v5270
    %v5272 = vpop.f32.mrb[0].mxu0
    %5273 = vdwg.mxu0
    %v5275 = vsel %vm1213, %v5112, 0
    %v5278 = vsel %vm1213, %v5113, 0
    %v5281 = vsel %vm1213, %v5114, 0
    %v5284 = vsel %vm1213, %v5115, 0
    %5286 = vmatprep.subr.bf16.mxu0 0
    %5287 = vmatpush1.bf16.msra.mxu0 %v4388
    %5288 = vmatprep.subr.bf16.mxu0 0
    %5289 = vmatpush1.bf16.msra.mxu0 %v4389
    %5290 = vmatprep.subr.bf16.mxu0 0
    %5291 = vmatpush1.bf16.msra.mxu0 %v4390
    %5292 = vmatprep.subr.bf16.mxu0 0
    %5293 = vmatpush1.bf16.msra.mxu0 %v4391
    %5294 = vmatprep.subr.bf16.mxu0 0
    %5295 = vmatpush1.bf16.msra.mxu0 0
    %5296 = vmatprep.subr.bf16.mxu0 0
    %5297 = vmatpush1.bf16.msra.mxu0 0
    %5298 = vmatprep.subr.bf16.mxu0 0
    %5299 = vmatpush1.bf16.msra.mxu0 0
    %5300 = vmatprep.subr.bf16.mxu0 0
    %5301 = vmatpush1.bf16.msra.mxu0 0
    %5302 = vmatprep.subr.bf16.mxu0 0
    %5303 = vmatpush1.bf16.msra.mxu0 0
    %5304 = vmatprep.subr.bf16.mxu0 0
    %5305 = vmatpush1.bf16.msra.mxu0 0
    %5306 = vmatprep.subr.bf16.mxu0 0
    %5307 = vmatpush1.bf16.msra.mxu0 0
    %5308 = vmatprep.subr.bf16.mxu0 0
    %5309 = vmatpush1.bf16.msra.mxu0 0
    %5310 = vmatprep.subr.bf16.mxu0 0
    %5311 = vmatpush1.bf16.msra.mxu0 0
    %5312 = vmatprep.subr.bf16.mxu0 0
    %5313 = vmatpush1.bf16.msra.mxu0 0
    %5314 = vmatprep.subr.bf16.mxu0 0
    %5315 = vmatpush1.bf16.msra.mxu0 0
    %5316 = vmatprep.subr.bf16.mxu0 0
    %5317 = vmatpush1.bf16.msra.mxu0 0
    %5318 = vmatprep.mubr.bf16.mxu0 0
    %5319 = vmatmul.mubr.bf16.gmra.mrb[0].mxu0 %v5275
    %v5320 = vpop.f32.mrb[0].mxu0
    %v5321 = vadd.f32 0.0, %v5320
    %v5322 = vpop.f32.mrb[0].mxu0
    %v5323 = vpop.f32.mrb[0].mxu0
    %v5324 = vadd.f32 0.0, %v5323
    %v5325 = vpop.f32.mrb[0].mxu0
    %5326 = vmatprep.mubr.bf16.mxu0 0
    %5327 = vmatmul.mubr.bf16.gmra.mrb[0].mxu0 %v5278
    %v5328 = vpop.f32.mrb[0].mxu0
    %v5329 = vadd.f32 0.0, %v5328
    %v5330 = vpop.f32.mrb[0].mxu0
    %v5331 = vpop.f32.mrb[0].mxu0
    %v5332 = vadd.f32 0.0, %v5331
    %v5333 = vpop.f32.mrb[0].mxu0
    %5334 = vmatprep.mubr.bf16.mxu0 0
    %5335 = vmatmul.mubr.bf16.gmra.mrb[0].mxu0 %v5281
    %v5336 = vpop.f32.mrb[0].mxu0
    %v5337 = vadd.f32 0.0, %v5336
    %v5338 = vpop.f32.mrb[0].mxu0
    %v5339 = vpop.f32.mrb[0].mxu0
    %v5340 = vadd.f32 0.0, %v5339
    %v5341 = vpop.f32.mrb[0].mxu0
    %5342 = vmatprep.mubr.bf16.mxu0 0
    %5343 = vmatmul.mubr.bf16.gmra.mrb[0].mxu0 %v5284
    %v5344 = vpop.f32.mrb[0].mxu0
    %v5345 = vadd.f32 0.0, %v5344
    %v5346 = vpop.f32.mrb[0].mxu0
    %v5347 = vpop.f32.mrb[0].mxu0
    %v5348 = vadd.f32 0.0, %v5347
    %v5349 = vpop.f32.mrb[0].mxu0
    %5350 = vdwg.mxu0
    %v5352 = vsel %vm1213, %v5116, 0
    %v5355 = vsel %vm1213, %v5117, 0
    %v5358 = vsel %vm1213, %v5118, 0
    %v5361 = vsel %vm1213, %v5119, 0
    %5363 = vmatprep.subr.bf16.mxu0 0
    %5364 = vmatpush1.bf16.msra.mxu0 %v4392
    %5365 = vmatprep.subr.bf16.mxu0 0
    %5366 = vmatpush1.bf16.msra.mxu0 %v4393
    %5367 = vmatprep.subr.bf16.mxu0 0
    %5368 = vmatpush1.bf16.msra.mxu0 %v4394
    %5369 = vmatprep.subr.bf16.mxu0 0
    %5370 = vmatpush1.bf16.msra.mxu0 %v4395
    %5371 = vmatprep.subr.bf16.mxu0 0
    %5372 = vmatpush1.bf16.msra.mxu0 0
    %5373 = vmatprep.subr.bf16.mxu0 0
    %5374 = vmatpush1.bf16.msra.mxu0 0
    %5375 = vmatprep.subr.bf16.mxu0 0
    %5376 = vmatpush1.bf16.msra.mxu0 0
    %5377 = vmatprep.subr.bf16.mxu0 0
    %5378 = vmatpush1.bf16.msra.mxu0 0
    %5379 = vmatprep.subr.bf16.mxu0 0
    %5380 = vmatpush1.bf16.msra.mxu0 0
    %5381 = vmatprep.subr.bf16.mxu0 0
    %5382 = vmatpush1.bf16.msra.mxu0 0
    %5383 = vmatprep.subr.bf16.mxu0 0
    %5384 = vmatpush1.bf16.msra.mxu0 0
    %5385 = vmatprep.subr.bf16.mxu0 0
    %5386 = vmatpush1.bf16.msra.mxu0 0
    %5387 = vmatprep.subr.bf16.mxu0 0
    %5388 = vmatpush1.bf16.msra.mxu0 0
    %5389 = vmatprep.subr.bf16.mxu0 0
    %5390 = vmatpush1.bf16.msra.mxu0 0
    %5391 = vmatprep.subr.bf16.mxu0 0
    %5392 = vmatpush1.bf16.msra.mxu0 0
    %5393 = vmatprep.subr.bf16.mxu0 0
    %5394 = vmatpush1.bf16.msra.mxu0 0
    %5395 = vmatprep.mubr.bf16.mxu0 0
    %5396 = vmatmul.mubr.bf16.gmra.mrb[0].mxu0 %v5352
    %v5397 = vpop.f32.mrb[0].mxu0
    %v5398 = vadd.f32 0.0, %v5397
    %v5399 = vpop.f32.mrb[0].mxu0
    %v5400 = vpop.f32.mrb[0].mxu0
    %v5401 = vadd.f32 0.0, %v5400
    %v5402 = vpop.f32.mrb[0].mxu0
    %5403 = vmatprep.mubr.bf16.mxu0 0
    %5404 = vmatmul.mubr.bf16.gmra.mrb[0].mxu0 %v5355
    %v5405 = vpop.f32.mrb[0].mxu0
    %v5406 = vadd.f32 0.0, %v5405
    %v5407 = vpop.f32.mrb[0].mxu0
    %v5408 = vpop.f32.mrb[0].mxu0
    %v5409 = vadd.f32 0.0, %v5408
    %v5410 = vpop.f32.mrb[0].mxu0
    %5411 = vmatprep.mubr.bf16.mxu0 0
    %5412 = vmatmul.mubr.bf16.gmra.mrb[0].mxu0 %v5358
    %v5413 = vpop.f32.mrb[0].mxu0
    %v5414 = vadd.f32 0.0, %v5413
    %v5415 = vpop.f32.mrb[0].mxu0
    %v5416 = vpop.f32.mrb[0].mxu0
    %v5417 = vadd.f32 0.0, %v5416
    %v5418 = vpop.f32.mrb[0].mxu0
    %5419 = vmatprep.mubr.bf16.mxu0 0
    %5420 = vmatmul.mubr.bf16.gmra.mrb[0].mxu0 %v5361
    %v5421 = vpop.f32.mrb[0].mxu0
    %v5422 = vadd.f32 0.0, %v5421
    %v5423 = vpop.f32.mrb[0].mxu0
    %v5424 = vpop.f32.mrb[0].mxu0
    %v5425 = vadd.f32 0.0, %v5424
    %v5426 = vpop.f32.mrb[0].mxu0
    %5427 = vdwg.mxu0
    %5444 = vrot.lane.b32.xlu0 %v5321, 64
    %v5445 = vpop.permute.xlu0 %5444
    %5446 = vrot.lane.b32.xlu0 %v5324, 64
    %v5447 = vpop.permute.xlu0 %5446
    %5448 = vrot.lane.b32.xlu0 %v5329, 64
    %v5449 = vpop.permute.xlu0 %5448
    %5450 = vrot.lane.b32.xlu0 %v5332, 64
    %v5451 = vpop.permute.xlu0 %5450
    %5452 = vrot.lane.b32.xlu0 %v5337, 64
    %v5453 = vpop.permute.xlu0 %5452
    %5454 = vrot.lane.b32.xlu0 %v5340, 64
    %v5455 = vpop.permute.xlu0 %5454
    %5456 = vrot.lane.b32.xlu0 %v5345, 64
    %v5457 = vpop.permute.xlu0 %5456
    %5458 = vrot.lane.b32.xlu0 %v5348, 64
    %v5459 = vpop.permute.xlu0 %5458
    %5460 = vrot.lane.b32.xlu0 %v5398, 64
    %v5461 = vpop.permute.xlu0 %5460
    %5462 = vrot.lane.b32.xlu0 %v5401, 64
    %v5463 = vpop.permute.xlu0 %5462
    %5464 = vrot.lane.b32.xlu0 %v5406, 64
    %v5465 = vpop.permute.xlu0 %5464
    %5466 = vrot.lane.b32.xlu0 %v5409, 64
    %v5467 = vpop.permute.xlu0 %5466
    %5468 = vrot.lane.b32.xlu0 %v5414, 64
    %v5469 = vpop.permute.xlu0 %5468
    %5470 = vrot.lane.b32.xlu0 %v5417, 64
    %v5471 = vpop.permute.xlu0 %5470
    %5472 = vrot.lane.b32.xlu0 %v5422, 64
    %v5473 = vpop.permute.xlu0 %5472
    %5474 = vrot.lane.b32.xlu0 %v5425, 64
    %v5475 = vpop.permute.xlu0 %5474
    %v5492 = vsel %vm1213, %v5167, %v5445
    %v5493 = vsel %vm1213, %v5170, %v5447
    %v5494 = vsel %vm1213, %v5175, %v5449
    %v5495 = vsel %vm1213, %v5178, %v5451
    %v5496 = vsel %vm1213, %v5183, %v5453
    %v5497 = vsel %vm1213, %v5186, %v5455
    %v5498 = vsel %vm1213, %v5191, %v5457
    %v5499 = vsel %vm1213, %v5194, %v5459
    %v5500 = vsel %vm1213, %v5244, %v5461
    %v5501 = vsel %vm1213, %v5247, %v5463
    %v5502 = vsel %vm1213, %v5252, %v5465
    %v5503 = vsel %vm1213, %v5255, %v5467
    %v5504 = vsel %vm1213, %v5260, %v5469
    %v5505 = vsel %vm1213, %v5263, %v5471
    %v5506 = vsel %vm1213, %v5268, %v5473
    %v5507 = vsel %vm1213, %v5271, %v5475
    %v5508 = vpack.c.bf16 %v5493, %v5492
    %v5509 = vpack.c.bf16 %v5495, %v5494
    %v5510 = vpack.c.bf16 %v5497, %v5496
    %v5511 = vpack.c.bf16 %v5499, %v5498
    %v5512 = vpack.c.bf16 %v5501, %v5500
    %v5513 = vpack.c.bf16 %v5503, %v5502
    %v5514 = vpack.c.bf16 %v5505, %v5504
    %v5515 = vpack.c.bf16 %v5507, %v5506
    %s5516 = scalar_lea.vmem [#allocation13], 64
    %v5517 = vld [vmem:[%s5516] sm:$0xf]
    %v5518 = vld [vmem:[%s5516 + $0x4] sm:$0xf]
    %v5519 = vld [vmem:[%s5516 + $0x8] sm:$0xf]
    %v5520 = vld [vmem:[%s5516 + $0xc] sm:$0xf]
    %v5521 = vld [vmem:[%s5516 + $0x10] sm:$0xf]
    %v5522 = vld [vmem:[%s5516 + $0x14] sm:$0xf]
    %v5523 = vld [vmem:[%s5516 + $0x18] sm:$0xf]
    %v5524 = vld [vmem:[%s5516 + $0x1c] sm:$0xf]
    %v5525 = vld [vmem:[%s5516 + $0x20] sm:$0xf]
    %v5526 = vld [vmem:[%s5516 + $0x24] sm:$0xf]
    %v5527 = vld [vmem:[%s5516 + $0x28] sm:$0xf]
    %v5528 = vld [vmem:[%s5516 + $0x2c] sm:$0xf]
    %v5529 = vld [vmem:[%s5516 + $0x30] sm:$0xf]
    %v5530 = vld [vmem:[%s5516 + $0x34] sm:$0xf]
    %v5531 = vld [vmem:[%s5516 + $0x38] sm:$0xf]
    %v5532 = vld [vmem:[%s5516 + $0x3c] sm:$0xf]
    %s5533 = scalar_lea.vmem [#allocation14], 1
    %v5534 = vld [vmem:[%s5533] sm:$0x1]
    %v5536 = vlaneseq
    %v5537 = vshrl.u32 %v5536, 7
    %v5538 = vsub.s32 0, %v5537
    %v5539 = vrot.slane %v5534, %v5538
    %v5557 = vunpack.c.l.b16 %v5517
    %v5558 = vunpack.c.l.b16 %v5518
    %v5559 = vunpack.c.l.b16 %v5519
    %v5560 = vunpack.c.l.b16 %v5520
    %v5561 = vunpack.c.l.b16 %v5521
    %v5562 = vunpack.c.l.b16 %v5522
    %v5563 = vunpack.c.l.b16 %v5523
    %v5564 = vunpack.c.l.b16 %v5524
    %v5565 = vunpack.c.l.b16 %v5525
    %v5566 = vunpack.c.l.b16 %v5526
    %v5567 = vunpack.c.l.b16 %v5527
    %v5568 = vunpack.c.l.b16 %v5528
    %v5569 = vunpack.c.l.b16 %v5529
    %v5570 = vunpack.c.l.b16 %v5530
    %v5571 = vunpack.c.l.b16 %v5531
    %v5572 = vunpack.c.l.b16 %v5532
    %v5573 = vpack.c.b16 %v5558, %v5557
    %v5574 = vpack.c.b16 %v5560, %v5559
    %v5575 = vpack.c.b16 %v5562, %v5561
    %v5576 = vpack.c.b16 %v5564, %v5563
    %v5577 = vpack.c.b16 %v5566, %v5565
    %v5578 = vpack.c.b16 %v5568, %v5567
    %v5579 = vpack.c.b16 %v5570, %v5569
    %v5580 = vpack.c.b16 %v5572, %v5571
    %5589 = vmatprep.subr.bf16.mxu0 0
    %5590 = vmatpush1.bf16.msra.mxu0 %v5573
    %5591 = vmatprep.subr.bf16.mxu0 0
    %5592 = vmatpush1.bf16.msra.mxu0 %v5574
    %5593 = vmatprep.subr.bf16.mxu0 0
    %5594 = vmatpush1.bf16.msra.mxu0 %v5575
    %5595 = vmatprep.subr.bf16.mxu0 0
    %5596 = vmatpush1.bf16.msra.mxu0 %v5576
    %5597 = vmatprep.subr.bf16.mxu0 0
    %5598 = vmatpush1.bf16.msra.mxu0 %v5577
    %5599 = vmatprep.subr.bf16.mxu0 0
    %5600 = vmatpush1.bf16.msra.mxu0 %v5578
    %5601 = vmatprep.subr.bf16.mxu0 0
    %5602 = vmatpush1.bf16.msra.mxu0 %v5579
    %5603 = vmatprep.subr.bf16.mxu0 0
    %5604 = vmatpush1.bf16.msra.mxu0 %v5580
    %5605 = vmatprep.subr.bf16.mxu0 0
    %5606 = vmatpush1.bf16.msra.mxu0 0
    %5607 = vmatprep.subr.bf16.mxu0 0
    %5608 = vmatpush1.bf16.msra.mxu0 0
    %5609 = vmatprep.subr.bf16.mxu0 0
    %5610 = vmatpush1.bf16.msra.mxu0 0
    %5611 = vmatprep.subr.bf16.mxu0 0
    %5612 = vmatpush1.bf16.msra.mxu0 0
    %5613 = vmatprep.subr.bf16.mxu0 0
    %5614 = vmatpush1.bf16.msra.mxu0 0
    %5615 = vmatprep.subr.bf16.mxu0 0
    %5616 = vmatpush1.bf16.msra.mxu0 0
    %5617 = vmatprep.subr.bf16.mxu0 0
    %5618 = vmatpush1.bf16.msra.mxu0 0
    %5619 = vmatprep.subr.bf16.mxu0 0
    %5620 = vmatpush1.bf16.msra.mxu0 0
    %5621 = vmatprep.mubr.bf16.mxu0 0
    %5622 = vmatmul.mubr.bf16.gmra.mrb[0].mxu0 %v5508
    %v5623 = vpop.f32.mrb[0].mxu0
    %v5624 = vadd.f32 %v5539, %v5623
    %v5625 = vpop.f32.mrb[0].mxu0
    %v5626 = vpop.f32.mrb[0].mxu0
    %v5627 = vadd.f32 %v5539, %v5626
    %v5628 = vpop.f32.mrb[0].mxu0
    %5629 = vmatprep.mubr.bf16.mxu0 0
    %5630 = vmatmul.mubr.bf16.gmra.mrb[0].mxu0 %v5509
    %v5631 = vpop.f32.mrb[0].mxu0
    %v5632 = vadd.f32 %v5539, %v5631
    %v5633 = vpop.f32.mrb[0].mxu0
    %v5634 = vpop.f32.mrb[0].mxu0
    %v5635 = vadd.f32 %v5539, %v5634
    %v5636 = vpop.f32.mrb[0].mxu0
    %5637 = vmatprep.mubr.bf16.mxu0 0
    %5638 = vmatmul.mubr.bf16.gmra.mrb[0].mxu0 %v5510
    %v5639 = vpop.f32.mrb[0].mxu0
    %v5640 = vadd.f32 %v5539, %v5639
    %v5641 = vpop.f32.mrb[0].mxu0
    %v5642 = vpop.f32.mrb[0].mxu0
    %v5643 = vadd.f32 %v5539, %v5642
    %v5644 = vpop.f32.mrb[0].mxu0
    %5645 = vmatprep.mubr.bf16.mxu0 0
    %5646 = vmatmul.mubr.bf16.gmra.mrb[0].mxu0 %v5511
    %v5647 = vpop.f32.mrb[0].mxu0
    %v5648 = vadd.f32 %v5539, %v5647
    %v5649 = vpop.f32.mrb[0].mxu0
    %v5650 = vpop.f32.mrb[0].mxu0
    %v5651 = vadd.f32 %v5539, %v5650
    %v5652 = vpop.f32.mrb[0].mxu0
    %5653 = vmatprep.mubr.bf16.mxu0 0
    %5654 = vmatmul.mubr.bf16.gmra.mrb[0].mxu0 %v5512
    %v5655 = vpop.f32.mrb[0].mxu0
    %v5656 = vadd.f32 %v5539, %v5655
    %v5657 = vpop.f32.mrb[0].mxu0
    %v5658 = vpop.f32.mrb[0].mxu0
    %v5659 = vadd.f32 %v5539, %v5658
    %v5660 = vpop.f32.mrb[0].mxu0
    %5661 = vmatprep.mubr.bf16.mxu0 0
    %5662 = vmatmul.mubr.bf16.gmra.mrb[0].mxu0 %v5513
    %v5663 = vpop.f32.mrb[0].mxu0
    %v5664 = vadd.f32 %v5539, %v5663
    %v5665 = vpop.f32.mrb[0].mxu0
    %v5666 = vpop.f32.mrb[0].mxu0
    %v5667 = vadd.f32 %v5539, %v5666
    %v5668 = vpop.f32.mrb[0].mxu0
    %5669 = vmatprep.mubr.bf16.mxu0 0
    %5670 = vmatmul.mubr.bf16.gmra.mrb[0].mxu0 %v5514
    %v5671 = vpop.f32.mrb[0].mxu0
    %v5672 = vadd.f32 %v5539, %v5671
    %v5673 = vpop.f32.mrb[0].mxu0
    %v5674 = vpop.f32.mrb[0].mxu0
    %v5675 = vadd.f32 %v5539, %v5674
    %v5676 = vpop.f32.mrb[0].mxu0
    %5677 = vmatprep.mubr.bf16.mxu0 0
    %5678 = vmatmul.mubr.bf16.gmra.mrb[0].mxu0 %v5515
    %v5679 = vpop.f32.mrb[0].mxu0
    %v5680 = vadd.f32 %v5539, %v5679
    %v5681 = vpop.f32.mrb[0].mxu0
    %v5682 = vpop.f32.mrb[0].mxu0
    %v5683 = vadd.f32 %v5539, %v5682
    %v5684 = vpop.f32.mrb[0].mxu0
    %5685 = vdwg.mxu0
    %v5686 = vadd.f32 %v5624, %v3727
    %v5687 = vadd.f32 %v5627, %v3728
    %v5688 = vadd.f32 %v5632, %v3729
    %v5689 = vadd.f32 %v5635, %v3730
    %v5690 = vadd.f32 %v5640, %v3731
    %v5691 = vadd.f32 %v5643, %v3732
    %v5692 = vadd.f32 %v5648, %v3733
    %v5693 = vadd.f32 %v5651, %v3734
    %v5694 = vadd.f32 %v5656, %v3735
    %v5695 = vadd.f32 %v5659, %v3736
    %v5696 = vadd.f32 %v5664, %v3737
    %v5697 = vadd.f32 %v5667, %v3738
    %v5698 = vadd.f32 %v5672, %v3739
    %v5699 = vadd.f32 %v5675, %v3740
    %v5700 = vadd.f32 %v5680, %v3741
    %v5701 = vadd.f32 %v5683, %v3742
    %s5702 = scalar_lea.vmem [#allocation16], 1
    %v5703 = vld [vmem:[%s5702] sm:$0x1]
    %s5704 = scalar_lea.vmem [#allocation17], 1
    %v5705 = vld [vmem:[%s5704] sm:$0x1]
    %5706 = vadd.xlane.f32.xlu0 %v5686
    %v5707 = vpop.xlane.xlu0 %5706
    %5708 = vadd.xlane.f32.xlu0 %v5687
    %v5709 = vpop.xlane.xlu0 %5708
    %5710 = vadd.xlane.f32.xlu0 %v5688
    %v5711 = vpop.xlane.xlu0 %5710
    %5712 = vadd.xlane.f32.xlu0 %v5689
    %v5713 = vpop.xlane.xlu0 %5712
    %5714 = vadd.xlane.f32.xlu0 %v5690
    %v5715 = vpop.xlane.xlu0 %5714
    %5716 = vadd.xlane.f32.xlu0 %v5691
    %v5717 = vpop.xlane.xlu0 %5716
    %5718 = vadd.xlane.f32.xlu0 %v5692
    %v5719 = vpop.xlane.xlu0 %5718
    %5720 = vadd.xlane.f32.xlu0 %v5693
    %v5721 = vpop.xlane.xlu0 %5720
    %5722 = vadd.xlane.f32.xlu0 %v5694
    %v5723 = vpop.xlane.xlu0 %5722
    %5724 = vadd.xlane.f32.xlu0 %v5695
    %v5725 = vpop.xlane.xlu0 %5724
    %5726 = vadd.xlane.f32.xlu0 %v5696
    %v5727 = vpop.xlane.xlu0 %5726
    %5728 = vadd.xlane.f32.xlu0 %v5697
    %v5729 = vpop.xlane.xlu0 %5728
    %5730 = vadd.xlane.f32.xlu0 %v5698
    %v5731 = vpop.xlane.xlu0 %5730
    %5732 = vadd.xlane.f32.xlu0 %v5699
    %v5733 = vpop.xlane.xlu0 %5732
    %5734 = vadd.xlane.f32.xlu0 %v5700
    %v5735 = vpop.xlane.xlu0 %5734
    %5736 = vadd.xlane.f32.xlu0 %v5701
    %v5737 = vpop.xlane.xlu0 %5736
    %v5738 = vmul.f32 %v5707, %v341
    %v5739 = vmul.f32 %v5709, %v341
    %v5740 = vmul.f32 %v5711, %v341
    %v5741 = vmul.f32 %v5713, %v341
    %v5742 = vmul.f32 %v5715, %v341
    %v5743 = vmul.f32 %v5717, %v341
    %v5744 = vmul.f32 %v5719, %v341
    %v5745 = vmul.f32 %v5721, %v341
    %v5746 = vmul.f32 %v5723, %v341
    %v5747 = vmul.f32 %v5725, %v341
    %v5748 = vmul.f32 %v5727, %v341
    %v5749 = vmul.f32 %v5729, %v341
    %v5750 = vmul.f32 %v5731, %v341
    %v5751 = vmul.f32 %v5733, %v341
    %v5752 = vmul.f32 %v5735, %v341
    %v5753 = vmul.f32 %v5737, %v341
    %v5754 = vsub.f32 %v5686, %v5738
    %v5755 = vsub.f32 %v5687, %v5739
    %v5756 = vsub.f32 %v5688, %v5740
    %v5757 = vsub.f32 %v5689, %v5741
    %v5758 = vsub.f32 %v5690, %v5742
    %v5759 = vsub.f32 %v5691, %v5743
    %v5760 = vsub.f32 %v5692, %v5744
    %v5761 = vsub.f32 %v5693, %v5745
    %v5762 = vsub.f32 %v5694, %v5746
    %v5763 = vsub.f32 %v5695, %v5747
    %v5764 = vsub.f32 %v5696, %v5748
    %v5765 = vsub.f32 %v5697, %v5749
    %v5766 = vsub.f32 %v5698, %v5750
    %v5767 = vsub.f32 %v5699, %v5751
    %v5768 = vsub.f32 %v5700, %v5752
    %v5769 = vsub.f32 %v5701, %v5753
    %v5770 = vmul.f32 %v5754, %v5754
    %v5771 = vmul.f32 %v5755, %v5755
    %v5772 = vmul.f32 %v5756, %v5756
    %v5773 = vmul.f32 %v5757, %v5757
    %v5774 = vmul.f32 %v5758, %v5758
    %v5775 = vmul.f32 %v5759, %v5759
    %v5776 = vmul.f32 %v5760, %v5760
    %v5777 = vmul.f32 %v5761, %v5761
    %v5778 = vmul.f32 %v5762, %v5762
    %v5779 = vmul.f32 %v5763, %v5763
    %v5780 = vmul.f32 %v5764, %v5764
    %v5781 = vmul.f32 %v5765, %v5765
    %v5782 = vmul.f32 %v5766, %v5766
    %v5783 = vmul.f32 %v5767, %v5767
    %v5784 = vmul.f32 %v5768, %v5768
    %v5785 = vmul.f32 %v5769, %v5769
    %5786 = vadd.xlane.f32.xlu0 %v5770
    %v5787 = vpop.xlane.xlu0 %5786
    %5788 = vadd.xlane.f32.xlu0 %v5771
    %v5789 = vpop.xlane.xlu0 %5788
    %5790 = vadd.xlane.f32.xlu0 %v5772
    %v5791 = vpop.xlane.xlu0 %5790
    %5792 = vadd.xlane.f32.xlu0 %v5773
    %v5793 = vpop.xlane.xlu0 %5792
    %5794 = vadd.xlane.f32.xlu0 %v5774
    %v5795 = vpop.xlane.xlu0 %5794
    %5796 = vadd.xlane.f32.xlu0 %v5775
    %v5797 = vpop.xlane.xlu0 %5796
    %5798 = vadd.xlane.f32.xlu0 %v5776
    %v5799 = vpop.xlane.xlu0 %5798
    %5800 = vadd.xlane.f32.xlu0 %v5777
    %v5801 = vpop.xlane.xlu0 %5800
    %5802 = vadd.xlane.f32.xlu0 %v5778
    %v5803 = vpop.xlane.xlu0 %5802
    %5804 = vadd.xlane.f32.xlu0 %v5779
    %v5805 = vpop.xlane.xlu0 %5804
    %5806 = vadd.xlane.f32.xlu0 %v5780
    %v5807 = vpop.xlane.xlu0 %5806
    %5808 = vadd.xlane.f32.xlu0 %v5781
    %v5809 = vpop.xlane.xlu0 %5808
    %5810 = vadd.xlane.f32.xlu0 %v5782
    %v5811 = vpop.xlane.xlu0 %5810
    %5812 = vadd.xlane.f32.xlu0 %v5783
    %v5813 = vpop.xlane.xlu0 %5812
    %5814 = vadd.xlane.f32.xlu0 %v5784
    %v5815 = vpop.xlane.xlu0 %5814
    %5816 = vadd.xlane.f32.xlu0 %v5785
    %v5817 = vpop.xlane.xlu0 %5816
    %v5818 = vmul.f32 %v5787, %v341
    %v5819 = vmul.f32 %v5789, %v341
    %v5820 = vmul.f32 %v5791, %v341
    %v5821 = vmul.f32 %v5793, %v341
    %v5822 = vmul.f32 %v5795, %v341
    %v5823 = vmul.f32 %v5797, %v341
    %v5824 = vmul.f32 %v5799, %v341
    %v5825 = vmul.f32 %v5801, %v341
    %v5826 = vmul.f32 %v5803, %v341
    %v5827 = vmul.f32 %v5805, %v341
    %v5828 = vmul.f32 %v5807, %v341
    %v5829 = vmul.f32 %v5809, %v341
    %v5830 = vmul.f32 %v5811, %v341
    %v5831 = vmul.f32 %v5813, %v341
    %v5832 = vmul.f32 %v5815, %v341
    %v5833 = vmul.f32 %v5817, %v341
    %v5834 = vadd.f32 %v5818, 1e-12
    %v5835 = vadd.f32 %v5819, 1e-12
    %v5836 = vadd.f32 %v5820, 1e-12
    %v5837 = vadd.f32 %v5821, 1e-12
    %v5838 = vadd.f32 %v5822, 1e-12
    %v5839 = vadd.f32 %v5823, 1e-12
    %v5840 = vadd.f32 %v5824, 1e-12
    %v5841 = vadd.f32 %v5825, 1e-12
    %v5842 = vadd.f32 %v5826, 1e-12
    %v5843 = vadd.f32 %v5827, 1e-12
    %v5844 = vadd.f32 %v5828, 1e-12
    %v5845 = vadd.f32 %v5829, 1e-12
    %v5846 = vadd.f32 %v5830, 1e-12
    %v5847 = vadd.f32 %v5831, 1e-12
    %v5848 = vadd.f32 %v5832, 1e-12
    %v5849 = vadd.f32 %v5833, 1e-12
    %v5850 = vrsqrt.pop %v5834
    %v5851 = vrsqrt.pop %v5835
    %v5852 = vrsqrt.pop %v5836
    %v5853 = vrsqrt.pop %v5837
    %v5854 = vrsqrt.pop %v5838
    %v5855 = vrsqrt.pop %v5839
    %v5856 = vrsqrt.pop %v5840
    %v5857 = vrsqrt.pop %v5841
    %v5858 = vrsqrt.pop %v5842
    %v5859 = vrsqrt.pop %v5843
    %v5860 = vrsqrt.pop %v5844
    %v5861 = vrsqrt.pop %v5845
    %v5862 = vrsqrt.pop %v5846
    %v5863 = vrsqrt.pop %v5847
    %v5864 = vrsqrt.pop %v5848
    %v5865 = vrsqrt.pop %v5849
    %v5866 = vmul.f32 %v5754, %v5850
    %v5867 = vmul.f32 %v5755, %v5851
    %v5868 = vmul.f32 %v5756, %v5852
    %v5869 = vmul.f32 %v5757, %v5853
    %v5870 = vmul.f32 %v5758, %v5854
    %v5871 = vmul.f32 %v5759, %v5855
    %v5872 = vmul.f32 %v5760, %v5856
    %v5873 = vmul.f32 %v5761, %v5857
    %v5874 = vmul.f32 %v5762, %v5858
    %v5875 = vmul.f32 %v5763, %v5859
    %v5876 = vmul.f32 %v5764, %v5860
    %v5877 = vmul.f32 %v5765, %v5861
    %v5878 = vmul.f32 %v5766, %v5862
    %v5879 = vmul.f32 %v5767, %v5863
    %v5880 = vmul.f32 %v5768, %v5864
    %v5881 = vmul.f32 %v5769, %v5865
    %v5883 = vlaneseq
    %v5884 = vshrl.u32 %v5883, 7
    %v5885 = vsub.s32 0, %v5884
    %v5886 = vrot.slane %v5703, %v5885
    %v5888 = vmul.f32 %v5866, %v5886
    %v5889 = vmul.f32 %v5867, %v5886
    %v5890 = vmul.f32 %v5868, %v5886
    %v5891 = vmul.f32 %v5869, %v5886
    %v5892 = vmul.f32 %v5870, %v5886
    %v5893 = vmul.f32 %v5871, %v5886
    %v5894 = vmul.f32 %v5872, %v5886
    %v5895 = vmul.f32 %v5873, %v5886
    %v5896 = vmul.f32 %v5874, %v5886
    %v5897 = vmul.f32 %v5875, %v5886
    %v5898 = vmul.f32 %v5876, %v5886
    %v5899 = vmul.f32 %v5877, %v5886
    %v5900 = vmul.f32 %v5878, %v5886
    %v5901 = vmul.f32 %v5879, %v5886
    %v5902 = vmul.f32 %v5880, %v5886
    %v5903 = vmul.f32 %v5881, %v5886
    %v5905 = vlaneseq
    %v5906 = vshrl.u32 %v5905, 7
    %v5907 = vsub.s32 0, %v5906
    %v5908 = vrot.slane %v5705, %v5907
    %v5910 = vadd.f32 %v5888, %v5908
    %v5911 = vadd.f32 %v5889, %v5908
    %v5912 = vadd.f32 %v5890, %v5908
    %v5913 = vadd.f32 %v5891, %v5908
    %v5914 = vadd.f32 %v5892, %v5908
    %v5915 = vadd.f32 %v5893, %v5908
    %v5916 = vadd.f32 %v5894, %v5908
    %v5917 = vadd.f32 %v5895, %v5908
    %v5918 = vadd.f32 %v5896, %v5908
    %v5919 = vadd.f32 %v5897, %v5908
    %v5920 = vadd.f32 %v5898, %v5908
    %v5921 = vadd.f32 %v5899, %v5908
    %v5922 = vadd.f32 %v5900, %v5908
    %v5923 = vadd.f32 %v5901, %v5908
    %v5924 = vadd.f32 %v5902, %v5908
    %v5925 = vadd.f32 %v5903, %v5908
    %v5926 = vpack.c.bf16 %v5911, %v5910
    %v5927 = vpack.c.bf16 %v5913, %v5912
    %v5928 = vpack.c.bf16 %v5915, %v5914
    %v5929 = vpack.c.bf16 %v5917, %v5916
    %v5930 = vpack.c.bf16 %v5919, %v5918
    %v5931 = vpack.c.bf16 %v5921, %v5920
    %v5932 = vpack.c.bf16 %v5923, %v5922
    %v5933 = vpack.c.bf16 %v5925, %v5924
    %s5934 = scalar_lea.vmem [#allocation19], 128
    %v5935 = vld [vmem:[%s5934] sm:$0xff]
    %v5936 = vld [vmem:[%s5934 + $0x8] sm:$0xff]
    %v5937 = vld [vmem:[%s5934 + $0x10] sm:$0xff]
    %v5938 = vld [vmem:[%s5934 + $0x18] sm:$0xff]
    %v5939 = vld [vmem:[%s5934 + $0x20] sm:$0xff]
    %v5940 = vld [vmem:[%s5934 + $0x28] sm:$0xff]
    %v5941 = vld [vmem:[%s5934 + $0x30] sm:$0xff]
    %v5942 = vld [vmem:[%s5934 + $0x38] sm:$0xff]
    %v5943 = vld [vmem:[%s5934 + $0x40] sm:$0xff]
    %v5944 = vld [vmem:[%s5934 + $0x48] sm:$0xff]
    %v5945 = vld [vmem:[%s5934 + $0x50] sm:$0xff]
    %v5946 = vld [vmem:[%s5934 + $0x58] sm:$0xff]
    %v5947 = vld [vmem:[%s5934 + $0x60] sm:$0xff]
    %v5948 = vld [vmem:[%s5934 + $0x68] sm:$0xff]
    %v5949 = vld [vmem:[%s5934 + $0x70] sm:$0xff]
    %v5950 = vld [vmem:[%s5934 + $0x78] sm:$0xff]
    %s5951 = scalar_lea.vmem %s11, 2
    %v5952 = vld [vmem:[%s5951] sm:$0x3]
    %v5954 = vlaneseq
    %v5955 = vshrl.u32 %v5954, 7
    %v5956 = vsub.s32 0, %v5955
    %v5957 = vrot.slane %v5952, %v5956
    %v5958 = vlaneseq
    %v5959 = vshrl.u32 %v5958, 7
    %v5960 = vsub.s32 1, %v5959
    %v5961 = vrot.slane %v5952, %v5960
    %v5980 = vunpack.c.l.b16 %v5935
    %v5981 = vunpack.c.h.b16 %v5935
    %v5982 = vunpack.c.l.b16 %v5936
    %v5983 = vunpack.c.h.b16 %v5936
    %v5984 = vunpack.c.l.b16 %v5937
    %v5985 = vunpack.c.h.b16 %v5937
    %v5986 = vunpack.c.l.b16 %v5938
    %v5987 = vunpack.c.h.b16 %v5938
    %v5988 = vunpack.c.l.b16 %v5939
    %v5989 = vunpack.c.h.b16 %v5939
    %v5990 = vunpack.c.l.b16 %v5940
    %v5991 = vunpack.c.h.b16 %v5940
    %v5992 = vunpack.c.l.b16 %v5941
    %v5993 = vunpack.c.h.b16 %v5941
    %v5994 = vunpack.c.l.b16 %v5942
    %v5995 = vunpack.c.h.b16 %v5942
    %v5996 = vunpack.c.l.b16 %v5943
    %v5997 = vunpack.c.h.b16 %v5943
    %v5998 = vunpack.c.l.b16 %v5944
    %v5999 = vunpack.c.h.b16 %v5944
    %v6000 = vunpack.c.l.b16 %v5945
    %v6001 = vunpack.c.h.b16 %v5945
    %v6002 = vunpack.c.l.b16 %v5946
    %v6003 = vunpack.c.h.b16 %v5946
    %v6004 = vunpack.c.l.b16 %v5947
    %v6005 = vunpack.c.h.b16 %v5947
    %v6006 = vunpack.c.l.b16 %v5948
    %v6007 = vunpack.c.h.b16 %v5948
    %v6008 = vunpack.c.l.b16 %v5949
    %v6009 = vunpack.c.h.b16 %v5949
    %v6010 = vunpack.c.l.b16 %v5950
    %v6011 = vunpack.c.h.b16 %v5950
    %v6012 = vpack.c.b16 %v5982, %v5980
    %v6013 = vpack.c.b16 %v5983, %v5981
    %v6014 = vpack.c.b16 %v5986, %v5984
    %v6015 = vpack.c.b16 %v5987, %v5985
    %v6016 = vpack.c.b16 %v5990, %v5988
    %v6017 = vpack.c.b16 %v5991, %v5989
    %v6018 = vpack.c.b16 %v5994, %v5992
    %v6019 = vpack.c.b16 %v5995, %v5993
    %v6020 = vpack.c.b16 %v5998, %v5996
    %v6021 = vpack.c.b16 %v5999, %v5997
    %v6022 = vpack.c.b16 %v6002, %v6000
    %v6023 = vpack.c.b16 %v6003, %v6001
    %v6024 = vpack.c.b16 %v6006, %v6004
    %v6025 = vpack.c.b16 %v6007, %v6005
    %v6026 = vpack.c.b16 %v6010, %v6008
    %v6027 = vpack.c.b16 %v6011, %v6009
    %6044 = vmatprep.subr.bf16.mxu0 %v6013
    %6045 = vmatpush1.bf16.msra.mxu0 %v6012
    %6046 = vmatprep.subr.bf16.mxu0 %v6015
    %6047 = vmatpush1.bf16.msra.mxu0 %v6014
    %6048 = vmatprep.subr.bf16.mxu0 %v6017
    %6049 = vmatpush1.bf16.msra.mxu0 %v6016
    %6050 = vmatprep.subr.bf16.mxu0 %v6019
    %6051 = vmatpush1.bf16.msra.mxu0 %v6018
    %6052 = vmatprep.subr.bf16.mxu0 %v6021
    %6053 = vmatpush1.bf16.msra.mxu0 %v6020
    %6054 = vmatprep.subr.bf16.mxu0 %v6023
    %6055 = vmatpush1.bf16.msra.mxu0 %v6022
    %6056 = vmatprep.subr.bf16.mxu0 %v6025
    %6057 = vmatpush1.bf16.msra.mxu0 %v6024
    %6058 = vmatprep.subr.bf16.mxu0 %v6027
    %6059 = vmatpush1.bf16.msra.mxu0 %v6026
    %6060 = vmatprep.subr.bf16.mxu0 0
    %6061 = vmatpush1.bf16.msra.mxu0 0
    %6062 = vmatprep.subr.bf16.mxu0 0
    %6063 = vmatpush1.bf16.msra.mxu0 0
    %6064 = vmatprep.subr.bf16.mxu0 0
    %6065 = vmatpush1.bf16.msra.mxu0 0
    %6066 = vmatprep.subr.bf16.mxu0 0
    %6067 = vmatpush1.bf16.msra.mxu0 0
    %6068 = vmatprep.subr.bf16.mxu0 0
    %6069 = vmatpush1.bf16.msra.mxu0 0
    %6070 = vmatprep.subr.bf16.mxu0 0
    %6071 = vmatpush1.bf16.msra.mxu0 0
    %6072 = vmatprep.subr.bf16.mxu0 0
    %6073 = vmatpush1.bf16.msra.mxu0 0
    %6074 = vmatprep.subr.bf16.mxu0 0
    %6075 = vmatpush1.bf16.msra.mxu0 0
    %6076 = vmatprep.mubr.bf16.mxu0 0
    %6077 = vmatmul.mubr.bf16.gmra.mrb[0].mxu0 %v5926
    %v6078 = vpop.f32.mrb[0].mxu0
    %v6079 = vadd.f32 %v5957, %v6078
    %v6080 = vpop.f32.mrb[0].mxu0
    %v6081 = vadd.f32 %v5961, %v6080
    %v6082 = vpop.f32.mrb[0].mxu0
    %v6083 = vadd.f32 %v5957, %v6082
    %v6084 = vpop.f32.mrb[0].mxu0
    %v6085 = vadd.f32 %v5961, %v6084
    %6086 = vmatprep.mubr.bf16.mxu0 0
    %6087 = vmatmul.mubr.bf16.gmra.mrb[0].mxu0 %v5927
    %v6088 = vpop.f32.mrb[0].mxu0
    %v6089 = vadd.f32 %v5957, %v6088
    %v6090 = vpop.f32.mrb[0].mxu0
    %v6091 = vadd.f32 %v5961, %v6090
    %v6092 = vpop.f32.mrb[0].mxu0
    %v6093 = vadd.f32 %v5957, %v6092
    %v6094 = vpop.f32.mrb[0].mxu0
    %v6095 = vadd.f32 %v5961, %v6094
    %6096 = vmatprep.mubr.bf16.mxu0 0
    %6097 = vmatmul.mubr.bf16.gmra.mrb[0].mxu0 %v5928
    %v6098 = vpop.f32.mrb[0].mxu0
    %v6099 = vadd.f32 %v5957, %v6098
    %v6100 = vpop.f32.mrb[0].mxu0
    %v6101 = vadd.f32 %v5961, %v6100
    %v6102 = vpop.f32.mrb[0].mxu0
    %v6103 = vadd.f32 %v5957, %v6102
    %v6104 = vpop.f32.mrb[0].mxu0
    %v6105 = vadd.f32 %v5961, %v6104
    %6106 = vmatprep.mubr.bf16.mxu0 0
    %6107 = vmatmul.mubr.bf16.gmra.mrb[0].mxu0 %v5929
    %v6108 = vpop.f32.mrb[0].mxu0
    %v6109 = vadd.f32 %v5957, %v6108
    %v6110 = vpop.f32.mrb[0].mxu0
    %v6111 = vadd.f32 %v5961, %v6110
    %v6112 = vpop.f32.mrb[0].mxu0
    %v6113 = vadd.f32 %v5957, %v6112
    %v6114 = vpop.f32.mrb[0].mxu0
    %v6115 = vadd.f32 %v5961, %v6114
    %6116 = vmatprep.mubr.bf16.mxu0 0
    %6117 = vmatmul.mubr.bf16.gmra.mrb[0].mxu0 %v5930
    %v6118 = vpop.f32.mrb[0].mxu0
    %v6119 = vadd.f32 %v5957, %v6118
    %v6120 = vpop.f32.mrb[0].mxu0
    %v6121 = vadd.f32 %v5961, %v6120
    %v6122 = vpop.f32.mrb[0].mxu0
    %v6123 = vadd.f32 %v5957, %v6122
    %v6124 = vpop.f32.mrb[0].mxu0
    %v6125 = vadd.f32 %v5961, %v6124
    %6126 = vmatprep.mubr.bf16.mxu0 0
    %6127 = vmatmul.mubr.bf16.gmra.mrb[0].mxu0 %v5931
    %v6128 = vpop.f32.mrb[0].mxu0
    %v6129 = vadd.f32 %v5957, %v6128
    %v6130 = vpop.f32.mrb[0].mxu0
    %v6131 = vadd.f32 %v5961, %v6130
    %v6132 = vpop.f32.mrb[0].mxu0
    %v6133 = vadd.f32 %v5957, %v6132
    %v6134 = vpop.f32.mrb[0].mxu0
    %v6135 = vadd.f32 %v5961, %v6134
    %6136 = vmatprep.mubr.bf16.mxu0 0
    %6137 = vmatmul.mubr.bf16.gmra.mrb[0].mxu0 %v5932
    %v6138 = vpop.f32.mrb[0].mxu0
    %v6139 = vadd.f32 %v5957, %v6138
    %v6140 = vpop.f32.mrb[0].mxu0
    %v6141 = vadd.f32 %v5961, %v6140
    %v6142 = vpop.f32.mrb[0].mxu0
    %v6143 = vadd.f32 %v5957, %v6142
    %v6144 = vpop.f32.mrb[0].mxu0
    %v6145 = vadd.f32 %v5961, %v6144
    %6146 = vmatprep.mubr.bf16.mxu0 0
    %6147 = vmatmul.mubr.bf16.gmra.mrb[0].mxu0 %v5933
    %v6148 = vpop.f32.mrb[0].mxu0
    %v6149 = vadd.f32 %v5957, %v6148
    %v6150 = vpop.f32.mrb[0].mxu0
    %v6151 = vadd.f32 %v5961, %v6150
    %v6152 = vpop.f32.mrb[0].mxu0
    %v6153 = vadd.f32 %v5957, %v6152
    %v6154 = vpop.f32.mrb[0].mxu0
    %v6155 = vadd.f32 %v5961, %v6154
    %6156 = vdwg.mxu0
    %v6157 = vmul.f32 %v6079, 0.5
    %v6158 = vmul.f32 %v6081, 0.5
    %v6159 = vmul.f32 %v6083, 0.5
    %v6160 = vmul.f32 %v6085, 0.5
    %v6161 = vmul.f32 %v6089, 0.5
    %v6162 = vmul.f32 %v6091, 0.5
    %v6163 = vmul.f32 %v6093, 0.5
    %v6164 = vmul.f32 %v6095, 0.5
    %v6165 = vmul.f32 %v6099, 0.5
    %v6166 = vmul.f32 %v6101, 0.5
    %v6167 = vmul.f32 %v6103, 0.5
    %v6168 = vmul.f32 %v6105, 0.5
    %v6169 = vmul.f32 %v6109, 0.5
    %v6170 = vmul.f32 %v6111, 0.5
    %v6171 = vmul.f32 %v6113, 0.5
    %v6172 = vmul.f32 %v6115, 0.5
    %v6173 = vmul.f32 %v6119, 0.5
    %v6174 = vmul.f32 %v6121, 0.5
    %v6175 = vmul.f32 %v6123, 0.5
    %v6176 = vmul.f32 %v6125, 0.5
    %v6177 = vmul.f32 %v6129, 0.5
    %v6178 = vmul.f32 %v6131, 0.5
    %v6179 = vmul.f32 %v6133, 0.5
    %v6180 = vmul.f32 %v6135, 0.5
    %v6181 = vmul.f32 %v6139, 0.5
    %v6182 = vmul.f32 %v6141, 0.5
    %v6183 = vmul.f32 %v6143, 0.5
    %v6184 = vmul.f32 %v6145, 0.5
    %v6185 = vmul.f32 %v6149, 0.5
    %v6186 = vmul.f32 %v6151, 0.5
    %v6187 = vmul.f32 %v6153, 0.5
    %v6188 = vmul.f32 %v6155, 0.5
    %v6189 = vmul.f32 %v6079, 0.044715
    %v6190 = vmul.f32 %v6081, 0.044715
    %v6191 = vmul.f32 %v6083, 0.044715
    %v6192 = vmul.f32 %v6085, 0.044715
    %v6193 = vmul.f32 %v6089, 0.044715
    %v6194 = vmul.f32 %v6091, 0.044715
    %v6195 = vmul.f32 %v6093, 0.044715
    %v6196 = vmul.f32 %v6095, 0.044715
    %v6197 = vmul.f32 %v6099, 0.044715
    %v6198 = vmul.f32 %v6101, 0.044715
    %v6199 = vmul.f32 %v6103, 0.044715
    %v6200 = vmul.f32 %v6105, 0.044715
    %v6201 = vmul.f32 %v6109, 0.044715
    %v6202 = vmul.f32 %v6111, 0.044715
    %v6203 = vmul.f32 %v6113, 0.044715
    %v6204 = vmul.f32 %v6115, 0.044715
    %v6205 = vmul.f32 %v6119, 0.044715
    %v6206 = vmul.f32 %v6121, 0.044715
    %v6207 = vmul.f32 %v6123, 0.044715
    %v6208 = vmul.f32 %v6125, 0.044715
    %v6209 = vmul.f32 %v6129, 0.044715
    %v6210 = vmul.f32 %v6131, 0.044715
    %v6211 = vmul.f32 %v6133, 0.044715
    %v6212 = vmul.f32 %v6135, 0.044715
    %v6213 = vmul.f32 %v6139, 0.044715
    %v6214 = vmul.f32 %v6141, 0.044715
    %v6215 = vmul.f32 %v6143, 0.044715
    %v6216 = vmul.f32 %v6145, 0.044715
    %v6217 = vmul.f32 %v6149, 0.044715
    %v6218 = vmul.f32 %v6151, 0.044715
    %v6219 = vmul.f32 %v6153, 0.044715
    %v6220 = vmul.f32 %v6155, 0.044715
    %v6221 = vmul.f32 %v6189, %v6079
    %v6222 = vmul.f32 %v6190, %v6081
    %v6223 = vmul.f32 %v6191, %v6083
    %v6224 = vmul.f32 %v6192, %v6085
    %v6225 = vmul.f32 %v6193, %v6089
    %v6226 = vmul.f32 %v6194, %v6091
    %v6227 = vmul.f32 %v6195, %v6093
    %v6228 = vmul.f32 %v6196, %v6095
    %v6229 = vmul.f32 %v6197, %v6099
    %v6230 = vmul.f32 %v6198, %v6101
    %v6231 = vmul.f32 %v6199, %v6103
    %v6232 = vmul.f32 %v6200, %v6105
    %v6233 = vmul.f32 %v6201, %v6109
    %v6234 = vmul.f32 %v6202, %v6111
    %v6235 = vmul.f32 %v6203, %v6113
    %v6236 = vmul.f32 %v6204, %v6115
    %v6237 = vmul.f32 %v6205, %v6119
    %v6238 = vmul.f32 %v6206, %v6121
    %v6239 = vmul.f32 %v6207, %v6123
    %v6240 = vmul.f32 %v6208, %v6125
    %v6241 = vmul.f32 %v6209, %v6129
    %v6242 = vmul.f32 %v6210, %v6131
    %v6243 = vmul.f32 %v6211, %v6133
    %v6244 = vmul.f32 %v6212, %v6135
    %v6245 = vmul.f32 %v6213, %v6139
    %v6246 = vmul.f32 %v6214, %v6141
    %v6247 = vmul.f32 %v6215, %v6143
    %v6248 = vmul.f32 %v6216, %v6145
    %v6249 = vmul.f32 %v6217, %v6149
    %v6250 = vmul.f32 %v6218, %v6151
    %v6251 = vmul.f32 %v6219, %v6153
    %v6252 = vmul.f32 %v6220, %v6155
    %v6253 = vmul.f32 %v6221, %v6079
    %v6254 = vmul.f32 %v6222, %v6081
    %v6255 = vmul.f32 %v6223, %v6083
    %v6256 = vmul.f32 %v6224, %v6085
    %v6257 = vmul.f32 %v6225, %v6089
    %v6258 = vmul.f32 %v6226, %v6091
    %v6259 = vmul.f32 %v6227, %v6093
    %v6260 = vmul.f32 %v6228, %v6095
    %v6261 = vmul.f32 %v6229, %v6099
    %v6262 = vmul.f32 %v6230, %v6101
    %v6263 = vmul.f32 %v6231, %v6103
    %v6264 = vmul.f32 %v6232, %v6105
    %v6265 = vmul.f32 %v6233, %v6109
    %v6266 = vmul.f32 %v6234, %v6111
    %v6267 = vmul.f32 %v6235, %v6113
    %v6268 = vmul.f32 %v6236, %v6115
    %v6269 = vmul.f32 %v6237, %v6119
    %v6270 = vmul.f32 %v6238, %v6121
    %v6271 = vmul.f32 %v6239, %v6123
    %v6272 = vmul.f32 %v6240, %v6125
    %v6273 = vmul.f32 %v6241, %v6129
    %v6274 = vmul.f32 %v6242, %v6131
    %v6275 = vmul.f32 %v6243, %v6133
    %v6276 = vmul.f32 %v6244, %v6135
    %v6277 = vmul.f32 %v6245, %v6139
    %v6278 = vmul.f32 %v6246, %v6141
    %v6279 = vmul.f32 %v6247, %v6143
    %v6280 = vmul.f32 %v6248, %v6145
    %v6281 = vmul.f32 %v6249, %v6149
    %v6282 = vmul.f32 %v6250, %v6151
    %v6283 = vmul.f32 %v6251, %v6153
    %v6284 = vmul.f32 %v6252, %v6155
    %v6285 = vadd.f32 %v6079, %v6253
    %v6286 = vadd.f32 %v6081, %v6254
    %v6287 = vadd.f32 %v6083, %v6255
    %v6288 = vadd.f32 %v6085, %v6256
    %v6289 = vadd.f32 %v6089, %v6257
    %v6290 = vadd.f32 %v6091, %v6258
    %v6291 = vadd.f32 %v6093, %v6259
    %v6292 = vadd.f32 %v6095, %v6260
    %v6293 = vadd.f32 %v6099, %v6261
    %v6294 = vadd.f32 %v6101, %v6262
    %v6295 = vadd.f32 %v6103, %v6263
    %v6296 = vadd.f32 %v6105, %v6264
    %v6297 = vadd.f32 %v6109, %v6265
    %v6298 = vadd.f32 %v6111, %v6266
    %v6299 = vadd.f32 %v6113, %v6267
    %v6300 = vadd.f32 %v6115, %v6268
    %v6301 = vadd.f32 %v6119, %v6269
    %v6302 = vadd.f32 %v6121, %v6270
    %v6303 = vadd.f32 %v6123, %v6271
    %v6304 = vadd.f32 %v6125, %v6272
    %v6305 = vadd.f32 %v6129, %v6273
    %v6306 = vadd.f32 %v6131, %v6274
    %v6307 = vadd.f32 %v6133, %v6275
    %v6308 = vadd.f32 %v6135, %v6276
    %v6309 = vadd.f32 %v6139, %v6277
    %v6310 = vadd.f32 %v6141, %v6278
    %v6311 = vadd.f32 %v6143, %v6279
    %v6312 = vadd.f32 %v6145, %v6280
    %v6313 = vadd.f32 %v6149, %v6281
    %v6314 = vadd.f32 %v6151, %v6282
    %v6315 = vadd.f32 %v6153, %v6283
    %v6316 = vadd.f32 %v6155, %v6284
    %v6317 = vmul.f32 %v6285, 0.7978846
    %v6318 = vmul.f32 %v6286, 0.7978846
    %v6319 = vmul.f32 %v6287, 0.7978846
    %v6320 = vmul.f32 %v6288, 0.7978846
    %v6321 = vmul.f32 %v6289, 0.7978846
    %v6322 = vmul.f32 %v6290, 0.7978846
    %v6323 = vmul.f32 %v6291, 0.7978846
    %v6324 = vmul.f32 %v6292, 0.7978846
    %v6325 = vmul.f32 %v6293, 0.7978846
    %v6326 = vmul.f32 %v6294, 0.7978846
    %v6327 = vmul.f32 %v6295, 0.7978846
    %v6328 = vmul.f32 %v6296, 0.7978846
    %v6329 = vmul.f32 %v6297, 0.7978846
    %v6330 = vmul.f32 %v6298, 0.7978846
    %v6331 = vmul.f32 %v6299, 0.7978846
    %v6332 = vmul.f32 %v6300, 0.7978846
    %v6333 = vmul.f32 %v6301, 0.7978846
    %v6334 = vmul.f32 %v6302, 0.7978846
    %v6335 = vmul.f32 %v6303, 0.7978846
    %v6336 = vmul.f32 %v6304, 0.7978846
    %v6337 = vmul.f32 %v6305, 0.7978846
    %v6338 = vmul.f32 %v6306, 0.7978846
    %v6339 = vmul.f32 %v6307, 0.7978846
    %v6340 = vmul.f32 %v6308, 0.7978846
    %v6341 = vmul.f32 %v6309, 0.7978846
    %v6342 = vmul.f32 %v6310, 0.7978846
    %v6343 = vmul.f32 %v6311, 0.7978846
    %v6344 = vmul.f32 %v6312, 0.7978846
    %v6345 = vmul.f32 %v6313, 0.7978846
    %v6346 = vmul.f32 %v6314, 0.7978846
    %v6347 = vmul.f32 %v6315, 0.7978846
    %v6348 = vmul.f32 %v6316, 0.7978846
    %v6349 = vtanh.pop %v6317
    %v6350 = vtanh.pop %v6318
    %v6351 = vtanh.pop %v6319
    %v6352 = vtanh.pop %v6320
    %v6353 = vtanh.pop %v6321
    %v6354 = vtanh.pop %v6322
    %v6355 = vtanh.pop %v6323
    %v6356 = vtanh.pop %v6324
    %v6357 = vtanh.pop %v6325
    %v6358 = vtanh.pop %v6326
    %v6359 = vtanh.pop %v6327
    %v6360 = vtanh.pop %v6328
    %v6361 = vtanh.pop %v6329
    %v6362 = vtanh.pop %v6330
    %v6363 = vtanh.pop %v6331
    %v6364 = vtanh.pop %v6332
    %v6365 = vtanh.pop %v6333
    %v6366 = vtanh.pop %v6334
    %v6367 = vtanh.pop %v6335
    %v6368 = vtanh.pop %v6336
    %v6369 = vtanh.pop %v6337
    %v6370 = vtanh.pop %v6338
    %v6371 = vtanh.pop %v6339
    %v6372 = vtanh.pop %v6340
    %v6373 = vtanh.pop %v6341
    %v6374 = vtanh.pop %v6342
    %v6375 = vtanh.pop %v6343
    %v6376 = vtanh.pop %v6344
    %v6377 = vtanh.pop %v6345
    %v6378 = vtanh.pop %v6346
    %v6379 = vtanh.pop %v6347
    %v6380 = vtanh.pop %v6348
    %v6381 = vadd.f32 %v6349, 1.0
    %v6382 = vadd.f32 %v6350, 1.0
    %v6383 = vadd.f32 %v6351, 1.0
    %v6384 = vadd.f32 %v6352, 1.0
    %v6385 = vadd.f32 %v6353, 1.0
    %v6386 = vadd.f32 %v6354, 1.0
    %v6387 = vadd.f32 %v6355, 1.0
    %v6388 = vadd.f32 %v6356, 1.0
    %v6389 = vadd.f32 %v6357, 1.0
    %v6390 = vadd.f32 %v6358, 1.0
    %v6391 = vadd.f32 %v6359, 1.0
    %v6392 = vadd.f32 %v6360, 1.0
    %v6393 = vadd.f32 %v6361, 1.0
    %v6394 = vadd.f32 %v6362, 1.0
    %v6395 = vadd.f32 %v6363, 1.0
    %v6396 = vadd.f32 %v6364, 1.0
    %v6397 = vadd.f32 %v6365, 1.0
    %v6398 = vadd.f32 %v6366, 1.0
    %v6399 = vadd.f32 %v6367, 1.0
    %v6400 = vadd.f32 %v6368, 1.0
    %v6401 = vadd.f32 %v6369, 1.0
    %v6402 = vadd.f32 %v6370, 1.0
    %v6403 = vadd.f32 %v6371, 1.0
    %v6404 = vadd.f32 %v6372, 1.0
    %v6405 = vadd.f32 %v6373, 1.0
    %v6406 = vadd.f32 %v6374, 1.0
    %v6407 = vadd.f32 %v6375, 1.0
    %v6408 = vadd.f32 %v6376, 1.0
    %v6409 = vadd.f32 %v6377, 1.0
    %v6410 = vadd.f32 %v6378, 1.0
    %v6411 = vadd.f32 %v6379, 1.0
    %v6412 = vadd.f32 %v6380, 1.0
    %v6413 = vmul.f32 %v6157, %v6381
    %v6414 = vmul.f32 %v6158, %v6382
    %v6415 = vmul.f32 %v6159, %v6383
    %v6416 = vmul.f32 %v6160, %v6384
    %v6417 = vmul.f32 %v6161, %v6385
    %v6418 = vmul.f32 %v6162, %v6386
    %v6419 = vmul.f32 %v6163, %v6387
    %v6420 = vmul.f32 %v6164, %v6388
    %v6421 = vmul.f32 %v6165, %v6389
    %v6422 = vmul.f32 %v6166, %v6390
    %v6423 = vmul.f32 %v6167, %v6391
    %v6424 = vmul.f32 %v6168, %v6392
    %v6425 = vmul.f32 %v6169, %v6393
    %v6426 = vmul.f32 %v6170, %v6394
    %v6427 = vmul.f32 %v6171, %v6395
    %v6428 = vmul.f32 %v6172, %v6396
    %v6429 = vmul.f32 %v6173, %v6397
    %v6430 = vmul.f32 %v6174, %v6398
    %v6431 = vmul.f32 %v6175, %v6399
    %v6432 = vmul.f32 %v6176, %v6400
    %v6433 = vmul.f32 %v6177, %v6401
    %v6434 = vmul.f32 %v6178, %v6402
    %v6435 = vmul.f32 %v6179, %v6403
    %v6436 = vmul.f32 %v6180, %v6404
    %v6437 = vmul.f32 %v6181, %v6405
    %v6438 = vmul.f32 %v6182, %v6406
    %v6439 = vmul.f32 %v6183, %v6407
    %v6440 = vmul.f32 %v6184, %v6408
    %v6441 = vmul.f32 %v6185, %v6409
    %v6442 = vmul.f32 %v6186, %v6410
    %v6443 = vmul.f32 %v6187, %v6411
    %v6444 = vmul.f32 %v6188, %v6412
    %v6445 = vpack.c.bf16 %v6415, %v6413
    %v6446 = vpack.c.bf16 %v6416, %v6414
    %v6447 = vpack.c.bf16 %v6419, %v6417
    %v6448 = vpack.c.bf16 %v6420, %v6418
    %v6449 = vpack.c.bf16 %v6423, %v6421
    %v6450 = vpack.c.bf16 %v6424, %v6422
    %v6451 = vpack.c.bf16 %v6427, %v6425
    %v6452 = vpack.c.bf16 %v6428, %v6426
    %v6453 = vpack.c.bf16 %v6431, %v6429
    %v6454 = vpack.c.bf16 %v6432, %v6430
    %v6455 = vpack.c.bf16 %v6435, %v6433
    %v6456 = vpack.c.bf16 %v6436, %v6434
    %v6457 = vpack.c.bf16 %v6439, %v6437
    %v6458 = vpack.c.bf16 %v6440, %v6438
    %v6459 = vpack.c.bf16 %v6443, %v6441
    %v6460 = vpack.c.bf16 %v6444, %v6442
    %s6461 = scalar_lea.vmem [#allocation20], 128
    %v6462 = vld [vmem:[%s6461] sm:$0xf]
    %v6463 = vld [vmem:[%s6461 + $0x4] sm:$0xf]
    %v6464 = vld [vmem:[%s6461 + $0x8] sm:$0xf]
    %v6465 = vld [vmem:[%s6461 + $0xc] sm:$0xf]
    %v6466 = vld [vmem:[%s6461 + $0x10] sm:$0xf]
    %v6467 = vld [vmem:[%s6461 + $0x14] sm:$0xf]
    %v6468 = vld [vmem:[%s6461 + $0x18] sm:$0xf]
    %v6469 = vld [vmem:[%s6461 + $0x1c] sm:$0xf]
    %v6470 = vld [vmem:[%s6461 + $0x20] sm:$0xf]
    %v6471 = vld [vmem:[%s6461 + $0x24] sm:$0xf]
    %v6472 = vld [vmem:[%s6461 + $0x28] sm:$0xf]
    %v6473 = vld [vmem:[%s6461 + $0x2c] sm:$0xf]
    %v6474 = vld [vmem:[%s6461 + $0x30] sm:$0xf]
    %v6475 = vld [vmem:[%s6461 + $0x34] sm:$0xf]
    %v6476 = vld [vmem:[%s6461 + $0x38] sm:$0xf]
    %v6477 = vld [vmem:[%s6461 + $0x3c] sm:$0xf]
    %v6478 = vld [vmem:[%s6461 + $0x40] sm:$0xf]
    %v6479 = vld [vmem:[%s6461 + $0x44] sm:$0xf]
    %v6480 = vld [vmem:[%s6461 + $0x48] sm:$0xf]
    %v6481 = vld [vmem:[%s6461 + $0x4c] sm:$0xf]
    %v6482 = vld [vmem:[%s6461 + $0x50] sm:$0xf]
    %v6483 = vld [vmem:[%s6461 + $0x54] sm:$0xf]
    %v6484 = vld [vmem:[%s6461 + $0x58] sm:$0xf]
    %v6485 = vld [vmem:[%s6461 + $0x5c] sm:$0xf]
    %v6486 = vld [vmem:[%s6461 + $0x60] sm:$0xf]
    %v6487 = vld [vmem:[%s6461 + $0x64] sm:$0xf]
    %v6488 = vld [vmem:[%s6461 + $0x68] sm:$0xf]
    %v6489 = vld [vmem:[%s6461 + $0x6c] sm:$0xf]
    %v6490 = vld [vmem:[%s6461 + $0x70] sm:$0xf]
    %v6491 = vld [vmem:[%s6461 + $0x74] sm:$0xf]
    %v6492 = vld [vmem:[%s6461 + $0x78] sm:$0xf]
    %v6493 = vld [vmem:[%s6461 + $0x7c] sm:$0xf]
    %s6494 = scalar_lea.vmem [#allocation22], 1
    %v6495 = vld [vmem:[%s6494] sm:$0x1]
    %v6497 = vlaneseq
    %v6498 = vshrl.u32 %v6497, 7
    %v6499 = vsub.s32 0, %v6498
    %v6500 = vrot.slane %v6495, %v6499
    %v6534 = vunpack.c.l.b16 %v6462
    %v6535 = vunpack.c.l.b16 %v6463
    %v6536 = vunpack.c.l.b16 %v6464
    %v6537 = vunpack.c.l.b16 %v6465
    %v6538 = vunpack.c.l.b16 %v6466
    %v6539 = vunpack.c.l.b16 %v6467
    %v6540 = vunpack.c.l.b16 %v6468
    %v6541 = vunpack.c.l.b16 %v6469
    %v6542 = vunpack.c.l.b16 %v6470
    %v6543 = vunpack.c.l.b16 %v6471
    %v6544 = vunpack.c.l.b16 %v6472
    %v6545 = vunpack.c.l.b16 %v6473
    %v6546 = vunpack.c.l.b16 %v6474
    %v6547 = vunpack.c.l.b16 %v6475
    %v6548 = vunpack.c.l.b16 %v6476
    %v6549 = vunpack.c.l.b16 %v6477
    %v6550 = vunpack.c.l.b16 %v6478
    %v6551 = vunpack.c.l.b16 %v6479
    %v6552 = vunpack.c.l.b16 %v6480
    %v6553 = vunpack.c.l.b16 %v6481
    %v6554 = vunpack.c.l.b16 %v6482
    %v6555 = vunpack.c.l.b16 %v6483
    %v6556 = vunpack.c.l.b16 %v6484
    %v6557 = vunpack.c.l.b16 %v6485
    %v6558 = vunpack.c.l.b16 %v6486
    %v6559 = vunpack.c.l.b16 %v6487
    %v6560 = vunpack.c.l.b16 %v6488
    %v6561 = vunpack.c.l.b16 %v6489
    %v6562 = vunpack.c.l.b16 %v6490
    %v6563 = vunpack.c.l.b16 %v6491
    %v6564 = vunpack.c.l.b16 %v6492
    %v6565 = vunpack.c.l.b16 %v6493
    %v6566 = vpack.c.b16 %v6535, %v6534
    %v6567 = vpack.c.b16 %v6537, %v6536
    %v6568 = vpack.c.b16 %v6539, %v6538
    %v6569 = vpack.c.b16 %v6541, %v6540
    %v6570 = vpack.c.b16 %v6543, %v6542
    %v6571 = vpack.c.b16 %v6545, %v6544
    %v6572 = vpack.c.b16 %v6547, %v6546
    %v6573 = vpack.c.b16 %v6549, %v6548
    %v6574 = vpack.c.b16 %v6551, %v6550
    %v6575 = vpack.c.b16 %v6553, %v6552
    %v6576 = vpack.c.b16 %v6555, %v6554
    %v6577 = vpack.c.b16 %v6557, %v6556
    %v6578 = vpack.c.b16 %v6559, %v6558
    %v6579 = vpack.c.b16 %v6561, %v6560
    %v6580 = vpack.c.b16 %v6563, %v6562
    %v6581 = vpack.c.b16 %v6565, %v6564
    %6598 = vmatprep.subr.bf16.mxu0 0
    %6599 = vmatpush1.bf16.msra.mxu0 %v6566
    %6600 = vmatprep.subr.bf16.mxu0 0
    %6601 = vmatpush1.bf16.msra.mxu0 %v6567
    %6602 = vmatprep.subr.bf16.mxu0 0
    %6603 = vmatpush1.bf16.msra.mxu0 %v6568
    %6604 = vmatprep.subr.bf16.mxu0 0
    %6605 = vmatpush1.bf16.msra.mxu0 %v6569
    %6606 = vmatprep.subr.bf16.mxu0 0
    %6607 = vmatpush1.bf16.msra.mxu0 %v6570
    %6608 = vmatprep.subr.bf16.mxu0 0
    %6609 = vmatpush1.bf16.msra.mxu0 %v6571
    %6610 = vmatprep.subr.bf16.mxu0 0
    %6611 = vmatpush1.bf16.msra.mxu0 %v6572
    %6612 = vmatprep.subr.bf16.mxu0 0
    %6613 = vmatpush1.bf16.msra.mxu0 %v6573
    %6614 = vmatprep.subr.bf16.mxu0 0
    %6615 = vmatpush1.bf16.msra.mxu0 %v6574
    %6616 = vmatprep.subr.bf16.mxu0 0
    %6617 = vmatpush1.bf16.msra.mxu0 %v6575
    %6618 = vmatprep.subr.bf16.mxu0 0
    %6619 = vmatpush1.bf16.msra.mxu0 %v6576
    %6620 = vmatprep.subr.bf16.mxu0 0
    %6621 = vmatpush1.bf16.msra.mxu0 %v6577
    %6622 = vmatprep.subr.bf16.mxu0 0
    %6623 = vmatpush1.bf16.msra.mxu0 %v6578
    %6624 = vmatprep.subr.bf16.mxu0 0
    %6625 = vmatpush1.bf16.msra.mxu0 %v6579
    %6626 = vmatprep.subr.bf16.mxu0 0
    %6627 = vmatpush1.bf16.msra.mxu0 %v6580
    %6628 = vmatprep.subr.bf16.mxu0 0
    %6629 = vmatpush1.bf16.msra.mxu0 %v6581
    %6630 = vmatprep.mubr.bf16.mxu0 %v6446
    %6631 = vmatmul.mubr.bf16.gmra.mrb[0].mxu0 %v6445
    %v6632 = vpop.f32.mrb[0].mxu0
    %v6633 = vadd.f32 %v6500, %v6632
    %v6634 = vpop.f32.mrb[0].mxu0
    %v6635 = vpop.f32.mrb[0].mxu0
    %v6636 = vpop.f32.mrb[0].mxu0
    %6637 = vmatprep.mubr.bf16.mxu0 %v6448
    %6638 = vmatmul.mubr.bf16.gmra.mrb[0].mxu0 %v6447
    %v6639 = vpop.f32.mrb[0].mxu0
    %v6640 = vpop.f32.mrb[0].mxu0
    %v6641 = vpop.f32.mrb[0].mxu0
    %v6642 = vpop.f32.mrb[0].mxu0
    %6643 = vmatprep.mubr.bf16.mxu0 %v6450
    %6644 = vmatmul.mubr.bf16.gmra.mrb[0].mxu0 %v6449
    %v6645 = vpop.f32.mrb[0].mxu0
    %v6646 = vpop.f32.mrb[0].mxu0
    %v6647 = vpop.f32.mrb[0].mxu0
    %v6648 = vpop.f32.mrb[0].mxu0
    %6649 = vmatprep.mubr.bf16.mxu0 %v6452
    %6650 = vmatmul.mubr.bf16.gmra.mrb[0].mxu0 %v6451
    %v6651 = vpop.f32.mrb[0].mxu0
    %v6652 = vpop.f32.mrb[0].mxu0
    %v6653 = vpop.f32.mrb[0].mxu0
    %v6654 = vpop.f32.mrb[0].mxu0
    %6655 = vmatprep.mubr.bf16.mxu0 %v6454
    %6656 = vmatmul.mubr.bf16.gmra.mrb[0].mxu0 %v6453
    %v6657 = vpop.f32.mrb[0].mxu0
    %v6658 = vadd.f32 %v6500, %v6657
    %v6659 = vpop.f32.mrb[0].mxu0
    %v6660 = vpop.f32.mrb[0].mxu0
    %v6661 = vpop.f32.mrb[0].mxu0
    %6662 = vmatprep.mubr.bf16.mxu0 %v6456
    %6663 = vmatmul.mubr.bf16.gmra.mrb[0].mxu0 %v6455
    %v6664 = vpop.f32.mrb[0].mxu0
    %v6665 = vpop.f32.mrb[0].mxu0
    %v6666 = vpop.f32.mrb[0].mxu0
    %v6667 = vpop.f32.mrb[0].mxu0
    %6668 = vmatprep.mubr.bf16.mxu0 %v6458
    %6669 = vmatmul.mubr.bf16.gmra.mrb[0].mxu0 %v6457
    %v6670 = vpop.f32.mrb[0].mxu0
    %v6671 = vpop.f32.mrb[0].mxu0
    %v6672 = vpop.f32.mrb[0].mxu0
    %v6673 = vpop.f32.mrb[0].mxu0
    %6674 = vmatprep.mubr.bf16.mxu0 %v6460
    %6675 = vmatmul.mubr.bf16.gmra.mrb[0].mxu0 %v6459
    %v6676 = vpop.f32.mrb[0].mxu0
    %v6677 = vpop.f32.mrb[0].mxu0
    %v6678 = vpop.f32.mrb[0].mxu0
    %v6679 = vpop.f32.mrb[0].mxu0
    %6680 = vdwg.mxu0
    %v6681 = vadd.f32 %v6633, %v5910
    %v6682 = vadd.f32 %v6658, %v5918
    %s6683 = scalar_lea.vmem [#allocation23], 1
    %v6684 = vld [vmem:[%s6683] sm:$0x1]
    %s6685 = scalar_lea.vmem [#allocation25], 1
    %v6686 = vld [vmem:[%s6685] sm:$0x1]
    %6687 = vadd.xlane.f32.xlu0 %v6681
    %v6688 = vpop.xlane.xlu0 %6687
    %6689 = vadd.xlane.f32.xlu0 %v6682
    %v6690 = vpop.xlane.xlu0 %6689
    %v6691 = vmul.f32 %v6688, %v341
    %v6692 = vmul.f32 %v6690, %v341
    %v6693 = vsub.f32 %v6681, %v6691
    %v6694 = vsub.f32 %v6682, %v6692
    %v6695 = vmul.f32 %v6693, %v6693
    %v6696 = vmul.f32 %v6694, %v6694
    %6697 = vadd.xlane.f32.xlu0 %v6695
    %v6698 = vpop.xlane.xlu0 %6697
    %6699 = vadd.xlane.f32.xlu0 %v6696
    %v6700 = vpop.xlane.xlu0 %6699
    %v6701 = vmul.f32 %v6698, %v341
    %v6702 = vmul.f32 %v6700, %v341
    %v6703 = vadd.f32 %v6701, 1e-12
    %v6704 = vadd.f32 %v6702, 1e-12
    %v6705 = vrsqrt.pop %v6703
    %v6706 = vrsqrt.pop %v6704
    %v6707 = vmul.f32 %v6693, %v6705
    %v6708 = vmul.f32 %v6694, %v6706
    %v6710 = vlaneseq
    %v6711 = vshrl.u32 %v6710, 7
    %v6712 = vsub.s32 0, %v6711
    %v6713 = vrot.slane %v6684, %v6712
    %v6715 = vmul.f32 %v6707, %v6713
    %v6716 = vmul.f32 %v6708, %v6713
    %v6718 = vlaneseq
    %v6719 = vshrl.u32 %v6718, 7
    %v6720 = vsub.s32 0, %v6719
    %v6721 = vrot.slane %v6686, %v6720
    %v6723 = vadd.f32 %v6715, %v6721
    %v6724 = vadd.f32 %v6716, %v6721
    %v6725 = vpack.c.bf16 %v6723, %v6723
    %v6726 = vpack.c.bf16 %v6724, %v6724
    %v6727 = vld [vmem:[#allocation26] sm:$0xf]
    %v6728 = vld [vmem:[#allocation26 + $0x4] sm:$0xf]
    %v6729 = vld [vmem:[#allocation26 + $0x8] sm:$0xf]
    %v6730 = vld [vmem:[#allocation26 + $0xc] sm:$0xf]
    %v6731 = vld [vmem:[#allocation26 + $0x10] sm:$0xf]
    %v6732 = vld [vmem:[#allocation26 + $0x14] sm:$0xf]
    %v6733 = vld [vmem:[#allocation26 + $0x18] sm:$0xf]
    %v6734 = vld [vmem:[#allocation26 + $0x1c] sm:$0xf]
    %v6735 = vld [vmem:[#allocation26 + $0x20] sm:$0xf]
    %v6736 = vld [vmem:[#allocation26 + $0x24] sm:$0xf]
    %v6737 = vld [vmem:[#allocation26 + $0x28] sm:$0xf]
    %v6738 = vld [vmem:[#allocation26 + $0x2c] sm:$0xf]
    %v6739 = vld [vmem:[#allocation26 + $0x30] sm:$0xf]
    %v6740 = vld [vmem:[#allocation26 + $0x34] sm:$0xf]
    %v6741 = vld [vmem:[#allocation26 + $0x38] sm:$0xf]
    %v6742 = vld [vmem:[#allocation26 + $0x3c] sm:$0xf]
    %v6743 = vld [vmem:[#allocation28] sm:$0x1]
    %v6745 = vlaneseq
    %v6746 = vshrl.u32 %v6745, 7
    %v6747 = vsub.s32 0, %v6746
    %v6748 = vrot.slane %v6743, %v6747
    %v6752 = vunpack.c.l.b16 %v6725
    %v6753 = vunpack.c.l.b16 %v6726
    %v6754 = vrot.slane %v6753, 7
    %vm6755 = vcmask 1041409
    %v6756 = vsel %vm6755, %v6754, %v6752
    %v6757 = vpack.c.b16 %v6756, %v6756
    %v6775 = vunpack.c.l.b16 %v6727
    %v6776 = vunpack.c.l.b16 %v6728
    %v6777 = vunpack.c.l.b16 %v6729
    %v6778 = vunpack.c.l.b16 %v6730
    %v6779 = vunpack.c.l.b16 %v6731
    %v6780 = vunpack.c.l.b16 %v6732
    %v6781 = vunpack.c.l.b16 %v6733
    %v6782 = vunpack.c.l.b16 %v6734
    %v6783 = vunpack.c.l.b16 %v6735
    %v6784 = vunpack.c.l.b16 %v6736
    %v6785 = vunpack.c.l.b16 %v6737
    %v6786 = vunpack.c.l.b16 %v6738
    %v6787 = vunpack.c.l.b16 %v6739
    %v6788 = vunpack.c.l.b16 %v6740
    %v6789 = vunpack.c.l.b16 %v6741
    %v6790 = vunpack.c.l.b16 %v6742
    %v6791 = vpack.c.b16 %v6776, %v6775
    %v6792 = vpack.c.b16 %v6778, %v6777
    %v6793 = vpack.c.b16 %v6780, %v6779
    %v6794 = vpack.c.b16 %v6782, %v6781
    %v6795 = vpack.c.b16 %v6784, %v6783
    %v6796 = vpack.c.b16 %v6786, %v6785
    %v6797 = vpack.c.b16 %v6788, %v6787
    %v6798 = vpack.c.b16 %v6790, %v6789
    %6807 = vmatprep.subr.bf16.mxu0 0
    %6808 = vmatpush1.bf16.msra.mxu0 %v6791
    %6809 = vmatprep.subr.bf16.mxu0 0
    %6810 = vmatpush1.bf16.msra.mxu0 %v6792
    %6811 = vmatprep.subr.bf16.mxu0 0
    %6812 = vmatpush1.bf16.msra.mxu0 %v6793
    %6813 = vmatprep.subr.bf16.mxu0 0
    %6814 = vmatpush1.bf16.msra.mxu0 %v6794
    %6815 = vmatprep.subr.bf16.mxu0 0
    %6816 = vmatpush1.bf16.msra.mxu0 %v6795
    %6817 = vmatprep.subr.bf16.mxu0 0
    %6818 = vmatpush1.bf16.msra.mxu0 %v6796
    %6819 = vmatprep.subr.bf16.mxu0 0
    %6820 = vmatpush1.bf16.msra.mxu0 %v6797
    %6821 = vmatprep.subr.bf16.mxu0 0
    %6822 = vmatpush1.bf16.msra.mxu0 %v6798
    %6823 = vmatprep.subr.bf16.mxu0 0
    %6824 = vmatpush1.bf16.msra.mxu0 0
    %6825 = vmatprep.subr.bf16.mxu0 0
    %6826 = vmatpush1.bf16.msra.mxu0 0
    %6827 = vmatprep.subr.bf16.mxu0 0
    %6828 = vmatpush1.bf16.msra.mxu0 0
    %6829 = vmatprep.subr.bf16.mxu0 0
    %6830 = vmatpush1.bf16.msra.mxu0 0
    %6831 = vmatprep.subr.bf16.mxu0 0
    %6832 = vmatpush1.bf16.msra.mxu0 0
    %6833 = vmatprep.subr.bf16.mxu0 0
    %6834 = vmatpush1.bf16.msra.mxu0 0
    %6835 = vmatprep.subr.bf16.mxu0 0
    %6836 = vmatpush1.bf16.msra.mxu0 0
    %6837 = vmatprep.subr.bf16.mxu0 0
    %6838 = vmatpush1.bf16.msra.mxu0 0
    %6839 = vmatprep.mubr.bf16.mxu0 0
    %6840 = vmatmul.mubr.bf16.gmra.mrb[0].mxu0 %v6757
    %v6841 = vpop.f32.mrb[0].mxu0
    %v6842 = vadd.f32 %v6748, %v6841
    %v6843 = vpop.f32.mrb[0].mxu0
    %v6844 = vpop.f32.mrb[0].mxu0
    %v6845 = vpop.f32.mrb[0].mxu0
    %6846 = vdwg.mxu0
    %v6847 = vmax.f32 %v6842, 0.0
    %v6848 = vpack.c.bf16 %v6847, %v6847
    %v6849 = vld [vmem:[%s18] sm:$0xf]
    %v6850 = vld [vmem:[%s18 + $0x4] sm:$0xf]
    %v6851 = vld [vmem:[%s18 + $0x8] sm:$0xf]
    %v6852 = vld [vmem:[%s18 + $0xc] sm:$0xf]
    %v6853 = vld [vmem:[%s18 + $0x10] sm:$0xf]
    %v6854 = vld [vmem:[%s18 + $0x14] sm:$0xf]
    %v6855 = vld [vmem:[%s18 + $0x18] sm:$0xf]
    %v6856 = vld [vmem:[%s18 + $0x1c] sm:$0xf]
    %v6857 = vld [vmem:[%s18 + $0x20] sm:$0xf]
    %v6858 = vld [vmem:[%s18 + $0x24] sm:$0xf]
    %v6859 = vld [vmem:[%s18 + $0x28] sm:$0xf]
    %v6860 = vld [vmem:[%s18 + $0x2c] sm:$0xf]
    %v6861 = vld [vmem:[%s18 + $0x30] sm:$0xf]
    %v6862 = vld [vmem:[%s18 + $0x34] sm:$0xf]
    %v6863 = vld [vmem:[%s18 + $0x38] sm:$0xf]
    %v6864 = vld [vmem:[%s18 + $0x3c] sm:$0xf]
    %v6865 = vld [vmem:[%s19] sm:$0x1]
    %v6867 = vlaneseq
    %v6868 = vshrl.u32 %v6867, 7
    %v6869 = vsub.s32 0, %v6868
    %v6870 = vrot.slane %v6865, %v6869
    %v6888 = vunpack.c.l.b16 %v6849
    %v6889 = vunpack.c.l.b16 %v6850
    %v6890 = vunpack.c.l.b16 %v6851
    %v6891 = vunpack.c.l.b16 %v6852
    %v6892 = vunpack.c.l.b16 %v6853
    %v6893 = vunpack.c.l.b16 %v6854
    %v6894 = vunpack.c.l.b16 %v6855
    %v6895 = vunpack.c.l.b16 %v6856
    %v6896 = vunpack.c.l.b16 %v6857
    %v6897 = vunpack.c.l.b16 %v6858
    %v6898 = vunpack.c.l.b16 %v6859
    %v6899 = vunpack.c.l.b16 %v6860
    %v6900 = vunpack.c.l.b16 %v6861
    %v6901 = vunpack.c.l.b16 %v6862
    %v6902 = vunpack.c.l.b16 %v6863
    %v6903 = vunpack.c.l.b16 %v6864
    %v6904 = vpack.c.b16 %v6889, %v6888
    %v6905 = vpack.c.b16 %v6891, %v6890
    %v6906 = vpack.c.b16 %v6893, %v6892
    %v6907 = vpack.c.b16 %v6895, %v6894
    %v6908 = vpack.c.b16 %v6897, %v6896
    %v6909 = vpack.c.b16 %v6899, %v6898
    %v6910 = vpack.c.b16 %v6901, %v6900
    %v6911 = vpack.c.b16 %v6903, %v6902
    %6920 = vmatprep.subr.bf16.mxu0 0
    %6921 = vmatpush1.bf16.msra.mxu0 %v6904
    %6922 = vmatprep.subr.bf16.mxu0 0
    %6923 = vmatpush1.bf16.msra.mxu0 %v6905
    %6924 = vmatprep.subr.bf16.mxu0 0
    %6925 = vmatpush1.bf16.msra.mxu0 %v6906
    %6926 = vmatprep.subr.bf16.mxu0 0
    %6927 = vmatpush1.bf16.msra.mxu0 %v6907
    %6928 = vmatprep.subr.bf16.mxu0 0
    %6929 = vmatpush1.bf16.msra.mxu0 %v6908
    %6930 = vmatprep.subr.bf16.mxu0 0
    %6931 = vmatpush1.bf16.msra.mxu0 %v6909
    %6932 = vmatprep.subr.bf16.mxu0 0
    %6933 = vmatpush1.bf16.msra.mxu0 %v6910
    %6934 = vmatprep.subr.bf16.mxu0 0
    %6935 = vmatpush1.bf16.msra.mxu0 %v6911
    %6936 = vmatprep.subr.bf16.mxu0 0
    %6937 = vmatpush1.bf16.msra.mxu0 0
    %6938 = vmatprep.subr.bf16.mxu0 0
    %6939 = vmatpush1.bf16.msra.mxu0 0
    %6940 = vmatprep.subr.bf16.mxu0 0
    %6941 = vmatpush1.bf16.msra.mxu0 0
    %6942 = vmatprep.subr.bf16.mxu0 0
    %6943 = vmatpush1.bf16.msra.mxu0 0
    %6944 = vmatprep.subr.bf16.mxu0 0
    %6945 = vmatpush1.bf16.msra.mxu0 0
    %6946 = vmatprep.subr.bf16.mxu0 0
    %6947 = vmatpush1.bf16.msra.mxu0 0
    %6948 = vmatprep.subr.bf16.mxu0 0
    %6949 = vmatpush1.bf16.msra.mxu0 0
    %6950 = vmatprep.subr.bf16.mxu0 0
    %6951 = vmatpush1.bf16.msra.mxu0 0
    %6952 = vmatprep.mubr.bf16.mxu0 0
    %6953 = vmatmul.mubr.bf16.gmra.mrb[0].mxu0 %v6848
    %v6954 = vpop.f32.mrb[0].mxu0
    %v6955 = vadd.f32 %v6870, %v6954
    %v6956 = vpop.f32.mrb[0].mxu0
    %v6957 = vpop.f32.mrb[0].mxu0
    %v6958 = vpop.f32.mrb[0].mxu0
    %6959 = vdwg.mxu0
    %vm6960 = vcmask 1041408
    %v6961 = vsel %vm6960, %v6955, -inf
    %6962 = vmax.xlane.f32.xlu0 %v6961
    %v6963 = vpop.xlane.xlu0 %6962
    %v6964 = vsub.f32 %v6955, %v6963
    %v6965 = vmul.f32 %v6964, 1.442695
    %v6966 = vpow.pop %v6965
    %v6967 = vsel %vm6960, %v6966, 0.0
    %6968 = vadd.xlane.f32.xlu0 %v6967
    %v6969 = vpop.xlane.xlu0 %6968
    %v6970 = vlog2.pop %v6969
    %v6971 = vmul.f32 %v6970, 0.6931472
    %v6972 = vsub.f32 %v6964, %v6971
    %6973 = vst [vmem:[#allocation29] sm:$0x3] %v6972
    // Predicated region
    $region150: #{tpu_custom_call.1} parent=1 // pred_check
      _
    $region151: #{tpu_custom_call.1} parent=1 // pred_check_branch
      %6975 = sbr.rel (0) target = $region153
    $region152: #{tpu_custom_call.1} parent=1 // pred_region
      %s6977 = ssub.s32 32, 32
      %6978 = vsyncadd [#allocation4], %s6977
      %s6980 = sshll.u32 [#allocation29], 4
      %s6981 = int_to_ptr.vmem [resolvable:$true] %s6980
      %6983 = dma.vmem_to_hbm [thread:$0]  %s6981, 32, %s20, [#allocation4]
    $region153: #{tpu_custom_call.1} parent=1 // pred_fallthru
      _
    // Predicated region
    $region154: #{tpu_custom_call.1} parent=1 // pred_check
      _
    $region155: #{tpu_custom_call.1} parent=1 // pred_check_branch
      %6985 = sbr.rel (0) target = $region157
    $region156: #{tpu_custom_call.1} parent=1 // pred_region
      %6986 = dma.done [#allocation4], 32
    $region157: #{tpu_custom_call.1} parent=1 // pred_fallthru
      _
    %6987 = vsyncpa [#allocation3], 1
    %6988 = vsyncpa [#allocation6], 1
    %6989 = vsyncpa [#allocation9], 1
    %6990 = vsyncpa [#allocation12], 1
    %6991 = vsyncpa [#allocation15], 1
    %6992 = vsyncpa [#allocation18], 1
    %6993 = vsyncpa [#allocation21], 1
    %6994 = vsyncpa [#allocation24], 1
    %6995 = vsyncpa [#allocation27], 1
    %6996 = vsyncpa [#allocation4], 1

</llo_original>
